<compile_context>
chip_gen: v7x
topology: tpu7x:2x2x1
jax: 0.10.0
libtpu: 0.0.40
codegen_flags: <defaults>
</compile_context>

<pallas_src>
import functools

import jax
import jax.numpy as jnp
from jax.experimental import pallas as pl
from jax.experimental.pallas import tpu as pltpu


def _round_up(x, m):
    return (x + m - 1) // m * m


def _fused_double_conv_kernel(xm_ref, xt_ref, w1_ref, b1_ref, w2_ref, b2_ref,
                              o_ref, shift_ref, mid_ref, *, img_h, img_w):
    """Fused (3x3 conv -> bias -> ReLU) x 2 on one (batch, row-tile) block.

    xm_ref : (1, TH, WP, CIN)   main rows (padded rows [t*TH, t*TH+TH))
    xt_ref : (1, 4,  WP, CIN)   tail rows (padded rows [t*TH+TH, t*TH+TH+4))
    w1/w2  : (3, 3, CIN, CMID) / (3, 3, CMID, COUT)  bf16, BN scale folded in
    b1/b2  : (1, CMID) / (1, COUT)                   f32 folded BN biases
    o_ref  : (1, TH, WP, COUT)  bf16 (junk in pad rows/cols, cropped in wrapper)
    shift_ref : (TH+4, WP, max(CIN, CMID)) bf16 scratch (reused for all shifts)
    mid_ref   : (TH+2, WP, CMID)           bf16 scratch (conv1 output, masked)

    The padded image has 1 zero column on the left, >=1 zero column on the
    right (WP multiple of 16) and 2 zero rows above/below the image, so a
    working set assembled from main+tail rows already carries conv1's SAME
    zero padding.
    """
    th = o_ref.shape[1]
    wp = o_ref.shape[2]
    cin = xm_ref.shape[3]
    cmid = w1_ref.shape[3]
    cout = o_ref.shape[3]
    r1 = th + 2                      # rows of the conv1 intermediate
    n1 = r1 * wp
    n2 = th * wp
    t_idx = pl.program_id(1)

    # ---------------- conv1, center taps (kx = 1) ----------------
    shift_ref[0:th, :, 0:cin] = xm_ref[0]
    shift_ref[th:th + 4, :, 0:cin] = xt_ref[0]
    acc1 = jnp.zeros((n1, cmid), jnp.float32)
    for ky in range(3):
        lhs = shift_ref[ky:ky + r1, :, 0:cin].reshape(n1, cin)
        acc1 += jnp.dot(lhs, w1_ref[ky, 1], preferred_element_type=jnp.float32)

    # ---------------- conv1, right-shifted taps (kx = 0 -> x[., c-1]) ------
    shift_ref[0:th, 1:wp, 0:cin] = xm_ref[0, :, 0:wp - 1, :]
    shift_ref[th:th + 4, 1:wp, 0:cin] = xt_ref[0, :, 0:wp - 1, :]
    shift_ref[0:th + 4, 0:1, 0:cin] = jnp.zeros((th + 4, 1, cin), jnp.bfloat16)
    for ky in range(3):
        lhs = shift_ref[ky:ky + r1, :, 0:cin].reshape(n1, cin)
        acc1 += jnp.dot(lhs, w1_ref[ky, 0], preferred_element_type=jnp.float32)

    # ---------------- conv1, left-shifted taps (kx = 2 -> x[., c+1]) -------
    shift_ref[0:th, 0:wp - 1, 0:cin] = xm_ref[0, :, 1:wp, :]
    shift_ref[th:th + 4, 0:wp - 1, 0:cin] = xt_ref[0, :, 1:wp, :]
    shift_ref[0:th + 4, wp - 1:wp, 0:cin] = jnp.zeros((th + 4, 1, cin),
                                                      jnp.bfloat16)
    for ky in range(3):
        lhs = shift_ref[ky:ky + r1, :, 0:cin].reshape(n1, cin)
        acc1 += jnp.dot(lhs, w1_ref[ky, 2], preferred_element_type=jnp.float32)

    # Bias + ReLU (BN1 scale already folded into w1).  Zero every position
    # that is conv2's SAME zero padding (outside the real image), using the
    # TRUE image row index so remainder/pad rows are handled too.
    mid = jnp.maximum(acc1 + b1_ref[...], 0.0).reshape(r1, wp, cmid)
    rows = jax.lax.broadcasted_iota(jnp.int32, (r1, wp, 1), 0)
    cols = jax.lax.broadcasted_iota(jnp.int32, (r1, wp, 1), 1)
    img_row = t_idx * th + rows - 1
    keep = jnp.logical_and(img_row >= 0, img_row <= img_h - 1)
    keep = jnp.logical_and(keep, jnp.logical_and(cols >= 1, cols <= img_w))
    mid_ref[...] = jnp.where(keep, mid, 0.0).astype(jnp.bfloat16)

    # ---------------- conv2, center taps ----------------
    acc2 = jnp.zeros((n2, cout), jnp.float32)
    for ky in range(3):
        lhs = mid_ref[ky:ky + th, :, :].reshape(n2, cmid)
        acc2 += jnp.dot(lhs, w2_ref[ky, 1], preferred_element_type=jnp.float32)

    # ---------------- conv2, right-shifted taps ----------------
    shift_ref[0:r1, 1:wp, 0:cmid] = mid_ref[:, 0:wp - 1, :]
    shift_ref[0:r1, 0:1, 0:cmid] = jnp.zeros((r1, 1, cmid), jnp.bfloat16)
    for ky in range(3):
        lhs = shift_ref[ky:ky + th, :, 0:cmid].reshape(n2, cmid)
        acc2 += jnp.dot(lhs, w2_ref[ky, 0], preferred_element_type=jnp.float32)

    # ---------------- conv2, left-shifted taps ----------------
    shift_ref[0:r1, 0:wp - 1, 0:cmid] = mid_ref[:, 1:wp, :]
    shift_ref[0:r1, wp - 1:wp, 0:cmid] = jnp.zeros((r1, 1, cmid), jnp.bfloat16)
    for ky in range(3):
        lhs = shift_ref[ky:ky + th, :, 0:cmid].reshape(n2, cmid)
        acc2 += jnp.dot(lhs, w2_ref[ky, 2], preferred_element_type=jnp.float32)

    # Bias + ReLU, lane/sublane-dense bf16 store of the full padded block.
    y = jnp.maximum(acc2 + b2_ref[...], 0.0)
    o_ref[0] = y.reshape(th, wp, cout).astype(o_ref.dtype)


def _vmem_capacity_bytes():
    try:
        return int(pltpu.get_tpu_info().vmem_capacity_bytes)
    except Exception:
        return 64 * 1024 * 1024          # conservative default (v7x-sized)


def _choose_row_tile(h, wimg, cin_p, cmid_p, cout_p, budget_bytes):
    """Largest row-tile height (multiple of 4) whose live VMEM footprint fits
    the budget: single-buffered weights, double-buffered main/tail/out blocks,
    the two scratch buffers and the f32 accumulator temporaries."""
    wp = _round_up(wimg + 2, 16)
    cmax = max(cin_p, cmid_p)
    weights = 9 * (cin_p * cmid_p + cmid_p * cout_p) * 2 + (cmid_p + cout_p) * 4
    h4 = _round_up(h, 4)
    best = 4
    for th in range(4, h4 + 1, 4):
        in_blk = 2 * (th + 4) * wp * cin_p * 2          # main + tail, 2 buffers
        out_blk = 2 * th * wp * cout_p * 2              # bf16, 2 buffers
        scratch = (th + 4) * wp * cmax * 2 + (th + 2) * wp * cmid_p * 2
        temps = ((th + 2) * wp * cmid_p * 8             # acc1 + mid (f32)
                 + th * wp * cout_p * 8                 # acc2 + y (f32)
                 + (th + 2) * wp * cmax * 2)            # one lhs slab
        if weights + in_blk + out_blk + scratch + temps <= budget_bytes:
            best = th
    return min(best, h4)


@functools.partial(jax.jit,
                   static_argnames=("row_tile", "vmem_limit",
                                    "single_buffer_consts"))
def _double_conv_impl(x_nchw, w1, b1, w2, b2, *, row_tile, vmem_limit,
                      single_buffer_consts):
    n, cin, h, wimg = x_nchw.shape
    cmid = w1.shape[-1]
    cout = w2.shape[-1]
    assert w1.shape == (3, 3, cin, cmid) and w2.shape == (3, 3, cmid, cout)

    th = row_tile
    cin_p = _round_up(cin, 128)
    cmid_p = _round_up(cmid, 128)
    cout_p = _round_up(cout, 128)
    cmax = max(cin_p, cmid_p)
    wp = _round_up(wimg + 2, 16)
    hp = _round_up(h, th)
    n_tiles = hp // th

    # One fused wrapper pass: NCHW -> NHWC, bf16, pad 2 halo rows on top,
    # (2 + hp - h) on the bottom, 1 zero col left, >= 1 zero col right
    # (width to a multiple of 16), channels to a multiple of 128.
    x = jnp.transpose(x_nchw, (0, 2, 3, 1)).astype(jnp.bfloat16)
    x = jnp.pad(x, ((0, 0), (2, 2 + hp - h), (1, wp - wimg - 1),
                    (0, cin_p - cin)))                  # (n, hp+4, wp, cin_p)

    w1p = jnp.pad(w1, ((0, 0), (0, 0), (0, cin_p - cin),
                       (0, cmid_p - cmid))).astype(jnp.bfloat16)
    w2p = jnp.pad(w2, ((0, 0), (0, 0), (0, cmid_p - cmid),
                       (0, cout_p - cout))).astype(jnp.bfloat16)
    b1p = jnp.pad(b1, (0, cmid_p - cmid)).reshape(1, cmid_p).astype(jnp.float32)
    b2p = jnp.pad(b2, (0, cout_p - cout)).reshape(1, cout_p).astype(jnp.float32)

    const_kw = {}
    if single_buffer_consts:
        const_kw = dict(pipeline_mode=pl.Buffered(buffer_count=1))

    kernel = functools.partial(_fused_double_conv_kernel, img_h=h, img_w=wimg)

    flops = 2 * 9 * n * n_tiles * ((th + 2) * wp * cin_p * cmid_p
                                   + th * wp * cmid_p * cout_p)
    bytes_accessed = (n * (hp + 4 * n_tiles) * wp * cin_p * 2
                      + n * hp * wp * cout_p * 2
                      + 9 * (cin_p * cmid_p + cmid_p * cout_p) * 2)

    out = pl.pallas_call(
        kernel,
        out_shape=jax.ShapeDtypeStruct((n, hp, wp, cout_p), jnp.bfloat16),
        grid=(n, n_tiles),
        in_specs=[
            # Same padded image passed twice: th-row main block + 4-row tail
            # block of the next tile -> overlapping halo windows with full
            # auto-pipelining and no wrapper-side unfold.
            pl.BlockSpec((1, th, wp, cin_p), lambda b, t: (b, t, 0, 0)),
            pl.BlockSpec((1, 4, wp, cin_p),
                         lambda b, t: (b, (t + 1) * (th // 4), 0, 0)),
            pl.BlockSpec((3, 3, cin_p, cmid_p), lambda b, t: (0, 0, 0, 0),
                         **const_kw),
            pl.BlockSpec((1, cmid_p), lambda b, t: (0, 0), **const_kw),
            pl.BlockSpec((3, 3, cmid_p, cout_p), lambda b, t: (0, 0, 0, 0),
                         **const_kw),
            pl.BlockSpec((1, cout_p), lambda b, t: (0, 0), **const_kw),
        ],
        out_specs=pl.BlockSpec((1, th, wp, cout_p), lambda b, t: (b, t, 0, 0)),
        scratch_shapes=[
            pltpu.VMEM((th + 4, wp, cmax), jnp.bfloat16),    # shift buffer
            pltpu.VMEM((th + 2, wp, cmid_p), jnp.bfloat16),  # conv1 output
        ],
        compiler_params=pltpu.CompilerParams(
            dimension_semantics=("parallel", "parallel"),
            vmem_limit_bytes=vmem_limit),
        cost_estimate=pl.CostEstimate(flops=flops, transcendentals=0,
                                      bytes_accessed=bytes_accessed),
    )(x, x, w1p, b1p, w2p, b2p)

    # Crop pad rows / pad cols / pad channels, back to f32 NCHW (one small
    # fused pass).
    out = out[:, :h, 1:wimg + 1, :cout].astype(jnp.float32)
    return jnp.transpose(out, (0, 3, 1, 2))


def double_conv(x_nchw, w1, b1, w2, b2, *, row_tile=None):
    """DoubleConv forward.  x is NCHW (like the PyTorch module); w1/w2 are HWIO
    with the BatchNorm scale folded in; b1/b2 are folded per-channel biases."""
    n, cin, h, wimg = x_nchw.shape
    cmid = w1.shape[-1]
    cout = w2.shape[-1]
    cin_p = _round_up(cin, 128)
    cmid_p = _round_up(cmid, 128)
    cout_p = _round_up(cout, 128)

    cap = _vmem_capacity_bytes()
    vmem_limit = max(32 * 1024 * 1024, min(cap * 3 // 4, 100 * 1024 * 1024))
    budget = max(vmem_limit - 6 * 1024 * 1024, 8 * 1024 * 1024)

    if row_tile is None:
        th = _choose_row_tile(h, wimg, cin_p, cmid_p, cout_p, budget)
    else:
        th = int(row_tile)
        if th <= 0 or th % 4 != 0:
            raise ValueError("row_tile must be a positive multiple of 4")
    th = min(th, _round_up(h, 4))

    try:
        return _double_conv_impl(x_nchw, w1, b1, w2, b2, row_tile=th,
                                 vmem_limit=vmem_limit,
                                 single_buffer_consts=True)
    except Exception:
        # Fallback if single-buffered constant operands are not supported by
        # this Pallas build; identical semantics, just double-buffered weights.
        return _double_conv_impl(x_nchw, w1, b1, w2, b2, row_tile=th,
                                 vmem_limit=vmem_limit,
                                 single_buffer_consts=False)


def fold_bn(w_hwio, conv_bias, gamma, beta, mean, var, eps=1e-5):
    """Fold inference-mode BatchNorm into the preceding conv (PyTorch
    semantics).  The scale goes into the weights so the in-kernel epilogue is
    only bias + ReLU."""
    scale = gamma / jnp.sqrt(var + eps)
    w_f = w_hwio * scale[None, None, None, :]
    b_f = (conv_bias - mean) * scale + beta
    return w_f.astype(jnp.float32), b_f.astype(jnp.float32)
    # TODO(synk): training-mode BatchNorm (batch statistics) is not implemented.


def make_double_conv_params(key, in_channels, out_channels):
    """Deterministic synthetic params matching nn.Conv2d / nn.BatchNorm2d."""
    ks = jax.random.split(key, 12)

    def conv_params(kw, kb, cin, cout):
        bound = 1.0 / (cin * 9) ** 0.5
        w = jax.random.uniform(kw, (3, 3, cin, cout), jnp.float32, -bound, bound)
        b = jax.random.uniform(kb, (cout,), jnp.float32, -bound, bound)
        return w, b

    def bn_params(kg, kb, km, kv, c):
        gamma = 1.0 + 0.1 * jax.random.normal(kg, (c,), jnp.float32)
        beta = 0.1 * jax.random.normal(kb, (c,), jnp.float32)
        mean = 0.1 * jax.random.normal(km, (c,), jnp.float32)
        var = 1.0 + 0.1 * jnp.abs(jax.random.normal(kv, (c,), jnp.float32))
        return gamma, beta, mean, var

    w1, b1 = conv_params(ks[0], ks[1], in_channels, out_channels)
    bn1 = bn_params(ks[2], ks[3], ks[4], ks[5], out_channels)
    w2, b2 = conv_params(ks[6], ks[7], out_channels, out_channels)
    bn2 = bn_params(ks[8], ks[9], ks[10], ks[11], out_channels)
    return dict(w1=w1, b1=b1, bn1=bn1, w2=w2, b2=b2, bn2=bn2)


def _reference_unfolded(x_nchw, params, eps=1e-5):
    """Pure-JAX f32 reference with UNFOLDED BatchNorm (validates the folding)."""
    def layer(x, w, b, bn):
        gamma, beta, mean, var = bn
        y = jax.lax.conv_general_dilated(
            x, w, window_strides=(1, 1), padding="SAME",
            dimension_numbers=("NHWC", "HWIO", "NHWC")) + b
        y = (y - mean) / jnp.sqrt(var + eps) * gamma + beta
        return jnp.maximum(y, 0.0)

    x = jnp.transpose(x_nchw, (0, 2, 3, 1))
    y = layer(x, params["w1"], params["b1"], params["bn1"])
    y = layer(y, params["w2"], params["b2"], params["bn2"])
    return jnp.transpose(y, (0, 3, 1, 2))


def _reference_folded_bf16(x_nchw, w1, b1, w2, b2):
    """Pure-JAX reference with the same folded params / bf16 casts as the kernel."""
    def layer(x, w, b):
        y = jax.lax.conv_general_dilated(
            x, w.astype(jnp.bfloat16), window_strides=(1, 1), padding="SAME",
            dimension_numbers=("NHWC", "HWIO", "NHWC"),
            preferred_element_type=jnp.float32)
        return jnp.maximum(y + b, 0.0)

    x = jnp.transpose(x_nchw, (0, 2, 3, 1)).astype(jnp.bfloat16)
    y = layer(x, w1, b1).astype(jnp.bfloat16)
    y = layer(y, w2, b2)
    return jnp.transpose(y, (0, 3, 1, 2))


if __name__ == "__main__":
    N, CIN, COUT, H, W = 2, 4, 8, 16, 16
    key = jax.random.PRNGKey(0)
    kx, kp = jax.random.split(key)

    x = jax.random.normal(kx, (N, CIN, H, W), jnp.float32)   # NCHW like PyTorch
    params = make_double_conv_params(kp, CIN, COUT)
    w1f, b1f = fold_bn(params["w1"], params["b1"], *params["bn1"])
    w2f, b2f = fold_bn(params["w2"], params["b2"], *params["bn2"])

    # row_tile=4 -> 4 row tiles per image: exercises halo / boundary masking.
    out = jax.block_until_ready(double_conv(x, w1f, b1f, w2f, b2f, row_tile=4))
    assert out.shape == (N, COUT, H, W)

    ref16 = _reference_folded_bf16(x, w1f, b1f, w2f, b2f)
    ref32 = _reference_unfolded(x, params)
    assert jnp.allclose(out, ref16, rtol=2e-2, atol=2e-2), "mismatch vs bf16 ref"
    assert jnp.allclose(out, ref32, rtol=5e-2, atol=5e-2), "mismatch vs f32 ref"

    # Auto tile size (single tile at this problem size) must agree as well.
    out_auto = jax.block_until_ready(double_conv(x, w1f, b1f, w2f, b2f))
    assert jnp.allclose(out_auto, ref16, rtol=2e-2, atol=2e-2), "mismatch (auto)"

    # Remainder-tile path: H not a multiple of the row tile, odd width.
    x2 = jax.random.normal(jax.random.PRNGKey(1), (1, CIN, 10, 13), jnp.float32)
    out2 = jax.block_until_ready(double_conv(x2, w1f, b1f, w2f, b2f, row_tile=4))
    ref2 = _reference_folded_bf16(x2, w1f, b1f, w2f, b2f)
    assert out2.shape == (1, COUT, 10, 13)
    assert jnp.allclose(out2, ref2, rtol=2e-2, atol=2e-2), "mismatch (remainder)"

    print("KERNEL_OK")
</pallas_src>

<mosaic_0001>
module attributes {stable_mosaic.version = 11 : i64} {
  func.func @_fused_double_conv_kernel(%arg0: i32, %arg1: i32, %arg2: memref<1x4x32x128xbf16, #tpu.memory_space<vmem>>, %arg3: memref<1x4x32x128xbf16, #tpu.memory_space<vmem>>, %arg4: memref<3x3x128x128xbf16, #tpu.memory_space<vmem>>, %arg5: memref<1x128xf32, #tpu.memory_space<vmem>>, %arg6: memref<3x3x128x128xbf16, #tpu.memory_space<vmem>>, %arg7: memref<1x128xf32, #tpu.memory_space<vmem>>, %arg8: memref<1x4x32x128xbf16, #tpu.memory_space<vmem>>, %arg9: memref<8x32x128xbf16, #tpu.memory_space<vmem>>, %arg10: memref<6x32x128xbf16, #tpu.memory_space<vmem>>) attributes {dimension_semantics = [#tpu.dimension_semantics<parallel>, #tpu.dimension_semantics<parallel>], iteration_bounds = array<i64: 2, 4>, scalar_prefetch = 0 : i64, scratch_operands = 2 : i64, tpu.core_type = #tpu.core_type<tc>, window_params = [{transform_indices = @transform_0, window_bounds = array<i64: 1, 4, 32, 128>}, {transform_indices = @transform_1, window_bounds = array<i64: 1, 4, 32, 128>}, {pipeline_mode = #tpu.pipeline_mode<synchronous>, transform_indices = @transform_2, window_bounds = array<i64: 3, 3, 128, 128>}, {pipeline_mode = #tpu.pipeline_mode<synchronous>, transform_indices = @transform_3, window_bounds = array<i64: 1, 128>}, {pipeline_mode = #tpu.pipeline_mode<synchronous>, transform_indices = @transform_4, window_bounds = array<i64: 3, 3, 128, 128>}, {pipeline_mode = #tpu.pipeline_mode<synchronous>, transform_indices = @transform_5, window_bounds = array<i64: 1, 128>}, {transform_indices = @transform_6, window_bounds = array<i64: 1, 4, 32, 128>}]} {
    %c0 = arith.constant 0 : index
    %c0_0 = arith.constant 0 : index
    %c0_1 = arith.constant 0 : index
    %c0_2 = arith.constant 0 : index
    %0 = vector.load %arg2[%c0, %c0_0, %c0_1, %c0_2] : memref<1x4x32x128xbf16, #tpu.memory_space<vmem>>, vector<1x4x32x128xbf16>
    %1 = vector.shape_cast %0 : vector<1x4x32x128xbf16> to vector<4x32x128xbf16>
    %c0_3 = arith.constant 0 : index
    %c0_4 = arith.constant 0 : index
    %c0_5 = arith.constant 0 : index
    %2 = vector.load %arg9[%c0_3, %c0_4, %c0_5] : memref<8x32x128xbf16, #tpu.memory_space<vmem>>, vector<4x32x128xbf16>
    tpu.vector_store %arg9[%c0_3, %c0_4, %c0_5], %1 {strides = array<i32>} : memref<8x32x128xbf16, #tpu.memory_space<vmem>>, vector<4x32x128xbf16>,
    %c0_6 = arith.constant 0 : index
    %c0_7 = arith.constant 0 : index
    %c0_8 = arith.constant 0 : index
    %c0_9 = arith.constant 0 : index
    %3 = vector.load %arg3[%c0_6, %c0_7, %c0_8, %c0_9] : memref<1x4x32x128xbf16, #tpu.memory_space<vmem>>, vector<1x4x32x128xbf16>
    %4 = vector.shape_cast %3 : vector<1x4x32x128xbf16> to vector<4x32x128xbf16>
    %c4 = arith.constant 4 : index
    %c0_10 = arith.constant 0 : index
    %c0_11 = arith.constant 0 : index
    %5 = vector.load %arg9[%c4, %c0_10, %c0_11] : memref<8x32x128xbf16, #tpu.memory_space<vmem>>, vector<4x32x128xbf16>
    tpu.vector_store %arg9[%c4, %c0_10, %c0_11], %4 {strides = array<i32>} : memref<8x32x128xbf16, #tpu.memory_space<vmem>>, vector<4x32x128xbf16>,
    %cst = arith.constant 0.000000e+00 : f32
    %6 = vector.broadcast %cst : f32 to vector<192x128xf32>
    %c0_12 = arith.constant 0 : index
    %c0_13 = arith.constant 0 : index
    %c0_14 = arith.constant 0 : index
    %7 = vector.load %arg9[%c0_12, %c0_13, %c0_14] : memref<8x32x128xbf16, #tpu.memory_space<vmem>>, vector<6x32x128xbf16>
    %8 = vector.shape_cast %7 : vector<6x32x128xbf16> to vector<192x128xbf16>
    %c0_15 = arith.constant 0 : index
    %c1 = arith.constant 1 : index
    %c0_16 = arith.constant 0 : index
    %c0_17 = arith.constant 0 : index
    %9 = vector.load %arg4[%c0_15, %c1, %c0_16, %c0_17] : memref<3x3x128x128xbf16, #tpu.memory_space<vmem>>, vector<1x1x128x128xbf16>
    %10 = vector.shape_cast %9 : vector<1x1x128x128xbf16> to vector<128x128xbf16>
    %cst_18 = arith.constant dense<0.000000e+00> : vector<192x128xf32>
    %11 = tpu.matmul %8, %10, %cst_18 {dimension_numbers = #tpu.dot_dimension_numbers<[1], [0], [0], [1], [0, 0, 1, 1], [], []>} : vector<192x128xbf16>, vector<128x128xbf16>, vector<192x128xf32> -> vector<192x128xf32>
    %12 = arith.addf %6, %11 : vector<192x128xf32>
    %c1_19 = arith.constant 1 : index
    %c0_20 = arith.constant 0 : index
    %c0_21 = arith.constant 0 : index
    %13 = vector.load %arg9[%c1_19, %c0_20, %c0_21] : memref<8x32x128xbf16, #tpu.memory_space<vmem>>, vector<6x32x128xbf16>
    %14 = vector.shape_cast %13 : vector<6x32x128xbf16> to vector<192x128xbf16>
    %c1_22 = arith.constant 1 : index
    %c1_23 = arith.constant 1 : index
    %c0_24 = arith.constant 0 : index
    %c0_25 = arith.constant 0 : index
    %15 = vector.load %arg4[%c1_22, %c1_23, %c0_24, %c0_25] : memref<3x3x128x128xbf16, #tpu.memory_space<vmem>>, vector<1x1x128x128xbf16>
    %16 = vector.shape_cast %15 : vector<1x1x128x128xbf16> to vector<128x128xbf16>
    %cst_26 = arith.constant dense<0.000000e+00> : vector<192x128xf32>
    %17 = tpu.matmul %14, %16, %cst_26 {dimension_numbers = #tpu.dot_dimension_numbers<[1], [0], [0], [1], [0, 0, 1, 1], [], []>} : vector<192x128xbf16>, vector<128x128xbf16>, vector<192x128xf32> -> vector<192x128xf32>
    %18 = arith.addf %12, %17 : vector<192x128xf32>
    %c2 = arith.constant 2 : index
    %c0_27 = arith.constant 0 : index
    %c0_28 = arith.constant 0 : index
    %19 = vector.load %arg9[%c2, %c0_27, %c0_28] : memref<8x32x128xbf16, #tpu.memory_space<vmem>>, vector<6x32x128xbf16>
    %20 = vector.shape_cast %19 : vector<6x32x128xbf16> to vector<192x128xbf16>
    %c2_29 = arith.constant 2 : index
    %c1_30 = arith.constant 1 : index
    %c0_31 = arith.constant 0 : index
    %c0_32 = arith.constant 0 : index
    %21 = vector.load %arg4[%c2_29, %c1_30, %c0_31, %c0_32] : memref<3x3x128x128xbf16, #tpu.memory_space<vmem>>, vector<1x1x128x128xbf16>
    %22 = vector.shape_cast %21 : vector<1x1x128x128xbf16> to vector<128x128xbf16>
    %cst_33 = arith.constant dense<0.000000e+00> : vector<192x128xf32>
    %23 = tpu.matmul %20, %22, %cst_33 {dimension_numbers = #tpu.dot_dimension_numbers<[1], [0], [0], [1], [0, 0, 1, 1], [], []>} : vector<192x128xbf16>, vector<128x128xbf16>, vector<192x128xf32> -> vector<192x128xf32>
    %24 = arith.addf %18, %23 : vector<192x128xf32>
    %c0_34 = arith.constant 0 : index
    %c0_35 = arith.constant 0 : index
    %c0_36 = arith.constant 0 : index
    %c0_37 = arith.constant 0 : index
    %25 = vector.load %arg2[%c0_34, %c0_35, %c0_36, %c0_37] : memref<1x4x32x128xbf16, #tpu.memory_space<vmem>>, vector<1x4x31x128xbf16>
    %26 = vector.shape_cast %25 : vector<1x4x31x128xbf16> to vector<4x31x128xbf16>
    %c0_38 = arith.constant 0 : index
    %c1_39 = arith.constant 1 : index
    %c0_40 = arith.constant 0 : index
    %27 = vector.load %arg9[%c0_38, %c1_39, %c0_40] : memref<8x32x128xbf16, #tpu.memory_space<vmem>>, vector<4x31x128xbf16>
    tpu.vector_store %arg9[%c0_38, %c1_39, %c0_40], %26 {strides = array<i32>} : memref<8x32x128xbf16, #tpu.memory_space<vmem>>, vector<4x31x128xbf16>,
    %c0_41 = arith.constant 0 : index
    %c0_42 = arith.constant 0 : index
    %c0_43 = arith.constant 0 : index
    %c0_44 = arith.constant 0 : index
    %28 = vector.load %arg3[%c0_41, %c0_42, %c0_43, %c0_44] : memref<1x4x32x128xbf16, #tpu.memory_space<vmem>>, vector<1x4x31x128xbf16>
    %29 = vector.shape_cast %28 : vector<1x4x31x128xbf16> to vector<4x31x128xbf16>
    %c4_45 = arith.constant 4 : index
    %c1_46 = arith.constant 1 : index
    %c0_47 = arith.constant 0 : index
    %30 = vector.load %arg9[%c4_45, %c1_46, %c0_47] : memref<8x32x128xbf16, #tpu.memory_space<vmem>>, vector<4x31x128xbf16>
    tpu.vector_store %arg9[%c4_45, %c1_46, %c0_47], %29 {strides = array<i32>} : memref<8x32x128xbf16, #tpu.memory_space<vmem>>, vector<4x31x128xbf16>,
    %cst_48 = arith.constant 0.000000e+00 : bf16
    %31 = vector.broadcast %cst_48 : bf16 to vector<8x1x128xbf16>
    %c0_49 = arith.constant 0 : index
    %c0_50 = arith.constant 0 : index
    %c0_51 = arith.constant 0 : index
    %32 = vector.load %arg9[%c0_49, %c0_50, %c0_51] : memref<8x32x128xbf16, #tpu.memory_space<vmem>>, vector<8x1x128xbf16>
    tpu.vector_store %arg9[%c0_49, %c0_50, %c0_51], %31 {strides = array<i32>} : memref<8x32x128xbf16, #tpu.memory_space<vmem>>, vector<8x1x128xbf16>,
    %c0_52 = arith.constant 0 : index
    %c0_53 = arith.constant 0 : index
    %c0_54 = arith.constant 0 : index
    %33 = vector.load %arg9[%c0_52, %c0_53, %c0_54] : memref<8x32x128xbf16, #tpu.memory_space<vmem>>, vector<6x32x128xbf16>
    %34 = vector.shape_cast %33 : vector<6x32x128xbf16> to vector<192x128xbf16>
    %c0_55 = arith.constant 0 : index
    %c0_56 = arith.constant 0 : index
    %c0_57 = arith.constant 0 : index
    %c0_58 = arith.constant 0 : index
    %35 = vector.load %arg4[%c0_55, %c0_56, %c0_57, %c0_58] : memref<3x3x128x128xbf16, #tpu.memory_space<vmem>>, vector<1x1x128x128xbf16>
    %36 = vector.shape_cast %35 : vector<1x1x128x128xbf16> to vector<128x128xbf16>
    %cst_59 = arith.constant dense<0.000000e+00> : vector<192x128xf32>
    %37 = tpu.matmul %34, %36, %cst_59 {dimension_numbers = #tpu.dot_dimension_numbers<[1], [0], [0], [1], [0, 0, 1, 1], [], []>} : vector<192x128xbf16>, vector<128x128xbf16>, vector<192x128xf32> -> vector<192x128xf32>
    %38 = arith.addf %24, %37 : vector<192x128xf32>
    %c1_60 = arith.constant 1 : index
    %c0_61 = arith.constant 0 : index
    %c0_62 = arith.constant 0 : index
    %39 = vector.load %arg9[%c1_60, %c0_61, %c0_62] : memref<8x32x128xbf16, #tpu.memory_space<vmem>>, vector<6x32x128xbf16>
    %40 = vector.shape_cast %39 : vector<6x32x128xbf16> to vector<192x128xbf16>
    %c1_63 = arith.constant 1 : index
    %c0_64 = arith.constant 0 : index
    %c0_65 = arith.constant 0 : index
    %c0_66 = arith.constant 0 : index
    %41 = vector.load %arg4[%c1_63, %c0_64, %c0_65, %c0_66] : memref<3x3x128x128xbf16, #tpu.memory_space<vmem>>, vector<1x1x128x128xbf16>
    %42 = vector.shape_cast %41 : vector<1x1x128x128xbf16> to vector<128x128xbf16>
    %cst_67 = arith.constant dense<0.000000e+00> : vector<192x128xf32>
    %43 = tpu.matmul %40, %42, %cst_67 {dimension_numbers = #tpu.dot_dimension_numbers<[1], [0], [0], [1], [0, 0, 1, 1], [], []>} : vector<192x128xbf16>, vector<128x128xbf16>, vector<192x128xf32> -> vector<192x128xf32>
    %44 = arith.addf %38, %43 : vector<192x128xf32>
    %c2_68 = arith.constant 2 : index
    %c0_69 = arith.constant 0 : index
    %c0_70 = arith.constant 0 : index
    %45 = vector.load %arg9[%c2_68, %c0_69, %c0_70] : memref<8x32x128xbf16, #tpu.memory_space<vmem>>, vector<6x32x128xbf16>
    %46 = vector.shape_cast %45 : vector<6x32x128xbf16> to vector<192x128xbf16>
    %c2_71 = arith.constant 2 : index
    %c0_72 = arith.constant 0 : index
    %c0_73 = arith.constant 0 : index
    %c0_74 = arith.constant 0 : index
    %47 = vector.load %arg4[%c2_71, %c0_72, %c0_73, %c0_74] : memref<3x3x128x128xbf16, #tpu.memory_space<vmem>>, vector<1x1x128x128xbf16>
    %48 = vector.shape_cast %47 : vector<1x1x128x128xbf16> to vector<128x128xbf16>
    %cst_75 = arith.constant dense<0.000000e+00> : vector<192x128xf32>
    %49 = tpu.matmul %46, %48, %cst_75 {dimension_numbers = #tpu.dot_dimension_numbers<[1], [0], [0], [1], [0, 0, 1, 1], [], []>} : vector<192x128xbf16>, vector<128x128xbf16>, vector<192x128xf32> -> vector<192x128xf32>
    %50 = arith.addf %44, %49 : vector<192x128xf32>
    %c0_76 = arith.constant 0 : index
    %c0_77 = arith.constant 0 : index
    %c1_78 = arith.constant 1 : index
    %c0_79 = arith.constant 0 : index
    %51 = vector.load %arg2[%c0_76, %c0_77, %c1_78, %c0_79] : memref<1x4x32x128xbf16, #tpu.memory_space<vmem>>, vector<1x4x31x128xbf16>
    %52 = vector.shape_cast %51 : vector<1x4x31x128xbf16> to vector<4x31x128xbf16>
    %c0_80 = arith.constant 0 : index
    %c0_81 = arith.constant 0 : index
    %c0_82 = arith.constant 0 : index
    %53 = vector.load %arg9[%c0_80, %c0_81, %c0_82] : memref<8x32x128xbf16, #tpu.memory_space<vmem>>, vector<4x31x128xbf16>
    tpu.vector_store %arg9[%c0_80, %c0_81, %c0_82], %52 {strides = array<i32>} : memref<8x32x128xbf16, #tpu.memory_space<vmem>>, vector<4x31x128xbf16>,
    %c0_83 = arith.constant 0 : index
    %c0_84 = arith.constant 0 : index
    %c1_85 = arith.constant 1 : index
    %c0_86 = arith.constant 0 : index
    %54 = vector.load %arg3[%c0_83, %c0_84, %c1_85, %c0_86] : memref<1x4x32x128xbf16, #tpu.memory_space<vmem>>, vector<1x4x31x128xbf16>
    %55 = vector.shape_cast %54 : vector<1x4x31x128xbf16> to vector<4x31x128xbf16>
    %c4_87 = arith.constant 4 : index
    %c0_88 = arith.constant 0 : index
    %c0_89 = arith.constant 0 : index
    %56 = vector.load %arg9[%c4_87, %c0_88, %c0_89] : memref<8x32x128xbf16, #tpu.memory_space<vmem>>, vector<4x31x128xbf16>
    tpu.vector_store %arg9[%c4_87, %c0_88, %c0_89], %55 {strides = array<i32>} : memref<8x32x128xbf16, #tpu.memory_space<vmem>>, vector<4x31x128xbf16>,
    %cst_90 = arith.constant 0.000000e+00 : bf16
    %57 = vector.broadcast %cst_90 : bf16 to vector<8x1x128xbf16>
    %c0_91 = arith.constant 0 : index
    %c31 = arith.constant 31 : index
    %c0_92 = arith.constant 0 : index
    %58 = vector.load %arg9[%c0_91, %c31, %c0_92] : memref<8x32x128xbf16, #tpu.memory_space<vmem>>, vector<8x1x128xbf16>
    tpu.vector_store %arg9[%c0_91, %c31, %c0_92], %57 {strides = array<i32>} : memref<8x32x128xbf16, #tpu.memory_space<vmem>>, vector<8x1x128xbf16>,
    %c0_93 = arith.constant 0 : index
    %c0_94 = arith.constant 0 : index
    %c0_95 = arith.constant 0 : index
    %59 = vector.load %arg9[%c0_93, %c0_94, %c0_95] : memref<8x32x128xbf16, #tpu.memory_space<vmem>>, vector<6x32x128xbf16>
    %60 = vector.shape_cast %59 : vector<6x32x128xbf16> to vector<192x128xbf16>
    %c0_96 = arith.constant 0 : index
    %c2_97 = arith.constant 2 : index
    %c0_98 = arith.constant 0 : index
    %c0_99 = arith.constant 0 : index
    %61 = vector.load %arg4[%c0_96, %c2_97, %c0_98, %c0_99] : memref<3x3x128x128xbf16, #tpu.memory_space<vmem>>, vector<1x1x128x128xbf16>
    %62 = vector.shape_cast %61 : vector<1x1x128x128xbf16> to vector<128x128xbf16>
    %cst_100 = arith.constant dense<0.000000e+00> : vector<192x128xf32>
    %63 = tpu.matmul %60, %62, %cst_100 {dimension_numbers = #tpu.dot_dimension_numbers<[1], [0], [0], [1], [0, 0, 1, 1], [], []>} : vector<192x128xbf16>, vector<128x128xbf16>, vector<192x128xf32> -> vector<192x128xf32>
    %64 = arith.addf %50, %63 : vector<192x128xf32>
    %c1_101 = arith.constant 1 : index
    %c0_102 = arith.constant 0 : index
    %c0_103 = arith.constant 0 : index
    %65 = vector.load %arg9[%c1_101, %c0_102, %c0_103] : memref<8x32x128xbf16, #tpu.memory_space<vmem>>, vector<6x32x128xbf16>
    %66 = vector.shape_cast %65 : vector<6x32x128xbf16> to vector<192x128xbf16>
    %c1_104 = arith.constant 1 : index
    %c2_105 = arith.constant 2 : index
    %c0_106 = arith.constant 0 : index
    %c0_107 = arith.constant 0 : index
    %67 = vector.load %arg4[%c1_104, %c2_105, %c0_106, %c0_107] : memref<3x3x128x128xbf16, #tpu.memory_space<vmem>>, vector<1x1x128x128xbf16>
    %68 = vector.shape_cast %67 : vector<1x1x128x128xbf16> to vector<128x128xbf16>
    %cst_108 = arith.constant dense<0.000000e+00> : vector<192x128xf32>
    %69 = tpu.matmul %66, %68, %cst_108 {dimension_numbers = #tpu.dot_dimension_numbers<[1], [0], [0], [1], [0, 0, 1, 1], [], []>} : vector<192x128xbf16>, vector<128x128xbf16>, vector<192x128xf32> -> vector<192x128xf32>
    %70 = arith.addf %64, %69 : vector<192x128xf32>
    %c2_109 = arith.constant 2 : index
    %c0_110 = arith.constant 0 : index
    %c0_111 = arith.constant 0 : index
    %71 = vector.load %arg9[%c2_109, %c0_110, %c0_111] : memref<8x32x128xbf16, #tpu.memory_space<vmem>>, vector<6x32x128xbf16>
    %72 = vector.shape_cast %71 : vector<6x32x128xbf16> to vector<192x128xbf16>
    %c2_112 = arith.constant 2 : index
    %c2_113 = arith.constant 2 : index
    %c0_114 = arith.constant 0 : index
    %c0_115 = arith.constant 0 : index
    %73 = vector.load %arg4[%c2_112, %c2_113, %c0_114, %c0_115] : memref<3x3x128x128xbf16, #tpu.memory_space<vmem>>, vector<1x1x128x128xbf16>
    %74 = vector.shape_cast %73 : vector<1x1x128x128xbf16> to vector<128x128xbf16>
    %cst_116 = arith.constant dense<0.000000e+00> : vector<192x128xf32>
    %75 = tpu.matmul %72, %74, %cst_116 {dimension_numbers = #tpu.dot_dimension_numbers<[1], [0], [0], [1], [0, 0, 1, 1], [], []>} : vector<192x128xbf16>, vector<128x128xbf16>, vector<192x128xf32> -> vector<192x128xf32>
    %76 = arith.addf %70, %75 : vector<192x128xf32>
    %c0_117 = arith.constant 0 : index
    %c0_118 = arith.constant 0 : index
    %77 = vector.load %arg5[%c0_117, %c0_118] : memref<1x128xf32, #tpu.memory_space<vmem>>, vector<1x128xf32>
    %78 = vector.broadcast %77 : vector<1x128xf32> to vector<192x128xf32>
    %79 = arith.addf %76, %78 : vector<192x128xf32>
    %cst_119 = arith.constant 0.000000e+00 : f32
    %80 = vector.broadcast %cst_119 : f32 to vector<192x128xf32>
    %81 = arith.maximumf %79, %80 : vector<192x128xf32>
    %82 = vector.shape_cast %81 : vector<192x128xf32> to vector<6x32x128xf32>
    %83 = tpu.iota {dimensions = array<i32: 0>} : vector<6x32x1xi32>
    %84 = tpu.iota {dimensions = array<i32: 1>} : vector<6x32x1xi32>
    %c4_i32 = arith.constant 4 : i32
    %85 = arith.muli %arg1, %c4_i32 : i32
    %86 = vector.broadcast %85 : i32 to vector<6x32x1xi32>
    %87 = arith.addi %86, %83 : vector<6x32x1xi32>
    %c1_i32 = arith.constant 1 : i32
    %88 = vector.broadcast %c1_i32 : i32 to vector<6x32x1xi32>
    %89 = arith.subi %87, %88 : vector<6x32x1xi32>
    %c0_i32 = arith.constant 0 : i32
    %90 = vector.broadcast %c0_i32 : i32 to vector<6x32x1xi32>
    %91 = arith.cmpi sge, %89, %90 : vector<6x32x1xi32>
    %c15_i32 = arith.constant 15 : i32
    %92 = vector.broadcast %c15_i32 : i32 to vector<6x32x1xi32>
    %93 = arith.cmpi sle, %89, %92 : vector<6x32x1xi32>
    %94 = arith.andi %91, %93 : vector<6x32x1xi1>
    %c1_i32_120 = arith.constant 1 : i32
    %95 = vector.broadcast %c1_i32_120 : i32 to vector<6x32x1xi32>
    %96 = arith.cmpi sge, %84, %95 : vector<6x32x1xi32>
    %c16_i32 = arith.constant 16 : i32
    %97 = vector.broadcast %c16_i32 : i32 to vector<6x32x1xi32>
    %98 = arith.cmpi sle, %84, %97 : vector<6x32x1xi32>
    %99 = arith.andi %96, %98 : vector<6x32x1xi1>
    %100 = arith.andi %94, %99 : vector<6x32x1xi1>
    %cst_121 = arith.constant 0.000000e+00 : f32
    %101 = vector.shape_cast %100 : vector<6x32x1xi1> to vector<6x32x1xi1>
    %102 = vector.broadcast %101 : vector<6x32x1xi1> to vector<6x32x128xi1>
    %103 = vector.broadcast %cst_121 : f32 to vector<6x32x128xf32>
    %104 = arith.select %102, %82, %103 : vector<6x32x128xi1>, vector<6x32x128xf32>
    %105 = arith.truncf %104 : vector<6x32x128xf32> to vector<6x32x128xbf16>
    %c0_122 = arith.constant 0 : index
    %c0_123 = arith.constant 0 : index
    %c0_124 = arith.constant 0 : index
    %106 = vector.load %arg10[%c0_122, %c0_123, %c0_124] : memref<6x32x128xbf16, #tpu.memory_space<vmem>>, vector<6x32x128xbf16>
    tpu.vector_store %arg10[%c0_122, %c0_123, %c0_124], %105 {strides = array<i32>} : memref<6x32x128xbf16, #tpu.memory_space<vmem>>, vector<6x32x128xbf16>,
    %cst_125 = arith.constant 0.000000e+00 : f32
    %107 = vector.broadcast %cst_125 : f32 to vector<128x128xf32>
    %c0_126 = arith.constant 0 : index
    %c0_127 = arith.constant 0 : index
    %c0_128 = arith.constant 0 : index
    %108 = vector.load %arg10[%c0_126, %c0_127, %c0_128] : memref<6x32x128xbf16, #tpu.memory_space<vmem>>, vector<4x32x128xbf16>
    %109 = vector.shape_cast %108 : vector<4x32x128xbf16> to vector<128x128xbf16>
    %c0_129 = arith.constant 0 : index
    %c1_130 = arith.constant 1 : index
    %c0_131 = arith.constant 0 : index
    %c0_132 = arith.constant 0 : index
    %110 = vector.load %arg6[%c0_129, %c1_130, %c0_131, %c0_132] : memref<3x3x128x128xbf16, #tpu.memory_space<vmem>>, vector<1x1x128x128xbf16>
    %111 = vector.shape_cast %110 : vector<1x1x128x128xbf16> to vector<128x128xbf16>
    %cst_133 = arith.constant dense<0.000000e+00> : vector<128x128xf32>
    %112 = tpu.matmul %109, %111, %cst_133 {dimension_numbers = #tpu.dot_dimension_numbers<[1], [0], [0], [1], [0, 0, 1, 1], [], []>} : vector<128x128xbf16>, vector<128x128xbf16>, vector<128x128xf32> -> vector<128x128xf32>
    %113 = arith.addf %107, %112 : vector<128x128xf32>
    %c1_134 = arith.constant 1 : index
    %c0_135 = arith.constant 0 : index
    %c0_136 = arith.constant 0 : index
    %114 = vector.load %arg10[%c1_134, %c0_135, %c0_136] : memref<6x32x128xbf16, #tpu.memory_space<vmem>>, vector<4x32x128xbf16>
    %115 = vector.shape_cast %114 : vector<4x32x128xbf16> to vector<128x128xbf16>
    %c1_137 = arith.constant 1 : index
    %c1_138 = arith.constant 1 : index
    %c0_139 = arith.constant 0 : index
    %c0_140 = arith.constant 0 : index
    %116 = vector.load %arg6[%c1_137, %c1_138, %c0_139, %c0_140] : memref<3x3x128x128xbf16, #tpu.memory_space<vmem>>, vector<1x1x128x128xbf16>
    %117 = vector.shape_cast %116 : vector<1x1x128x128xbf16> to vector<128x128xbf16>
    %cst_141 = arith.constant dense<0.000000e+00> : vector<128x128xf32>
    %118 = tpu.matmul %115, %117, %cst_141 {dimension_numbers = #tpu.dot_dimension_numbers<[1], [0], [0], [1], [0, 0, 1, 1], [], []>} : vector<128x128xbf16>, vector<128x128xbf16>, vector<128x128xf32> -> vector<128x128xf32>
    %119 = arith.addf %113, %118 : vector<128x128xf32>
    %c2_142 = arith.constant 2 : index
    %c0_143 = arith.constant 0 : index
    %c0_144 = arith.constant 0 : index
    %120 = vector.load %arg10[%c2_142, %c0_143, %c0_144] : memref<6x32x128xbf16, #tpu.memory_space<vmem>>, vector<4x32x128xbf16>
    %121 = vector.shape_cast %120 : vector<4x32x128xbf16> to vector<128x128xbf16>
    %c2_145 = arith.constant 2 : index
    %c1_146 = arith.constant 1 : index
    %c0_147 = arith.constant 0 : index
    %c0_148 = arith.constant 0 : index
    %122 = vector.load %arg6[%c2_145, %c1_146, %c0_147, %c0_148] : memref<3x3x128x128xbf16, #tpu.memory_space<vmem>>, vector<1x1x128x128xbf16>
    %123 = vector.shape_cast %122 : vector<1x1x128x128xbf16> to vector<128x128xbf16>
    %cst_149 = arith.constant dense<0.000000e+00> : vector<128x128xf32>
    %124 = tpu.matmul %121, %123, %cst_149 {dimension_numbers = #tpu.dot_dimension_numbers<[1], [0], [0], [1], [0, 0, 1, 1], [], []>} : vector<128x128xbf16>, vector<128x128xbf16>, vector<128x128xf32> -> vector<128x128xf32>
    %125 = arith.addf %119, %124 : vector<128x128xf32>
    %c0_150 = arith.constant 0 : index
    %c0_151 = arith.constant 0 : index
    %c0_152 = arith.constant 0 : index
    %126 = vector.load %arg10[%c0_150, %c0_151, %c0_152] : memref<6x32x128xbf16, #tpu.memory_space<vmem>>, vector<6x31x128xbf16>
    %c0_153 = arith.constant 0 : index
    %c1_154 = arith.constant 1 : index
    %c0_155 = arith.constant 0 : index
    %127 = vector.load %arg9[%c0_153, %c1_154, %c0_155] : memref<8x32x128xbf16, #tpu.memory_space<vmem>>, vector<6x31x128xbf16>
    tpu.vector_store %arg9[%c0_153, %c1_154, %c0_155], %126 {strides = array<i32>} : memref<8x32x128xbf16, #tpu.memory_space<vmem>>, vector<6x31x128xbf16>,
    %cst_156 = arith.constant 0.000000e+00 : bf16
    %128 = vector.broadcast %cst_156 : bf16 to vector<6x1x128xbf16>
    %c0_157 = arith.constant 0 : index
    %c0_158 = arith.constant 0 : index
    %c0_159 = arith.constant 0 : index
    %129 = vector.load %arg9[%c0_157, %c0_158, %c0_159] : memref<8x32x128xbf16, #tpu.memory_space<vmem>>, vector<6x1x128xbf16>
    tpu.vector_store %arg9[%c0_157, %c0_158, %c0_159], %128 {strides = array<i32>} : memref<8x32x128xbf16, #tpu.memory_space<vmem>>, vector<6x1x128xbf16>,
    %c0_160 = arith.constant 0 : index
    %c0_161 = arith.constant 0 : index
    %c0_162 = arith.constant 0 : index
    %130 = vector.load %arg9[%c0_160, %c0_161, %c0_162] : memref<8x32x128xbf16, #tpu.memory_space<vmem>>, vector<4x32x128xbf16>
    %131 = vector.shape_cast %130 : vector<4x32x128xbf16> to vector<128x128xbf16>
    %c0_163 = arith.constant 0 : index
    %c0_164 = arith.constant 0 : index
    %c0_165 = arith.constant 0 : index
    %c0_166 = arith.constant 0 : index
    %132 = vector.load %arg6[%c0_163, %c0_164, %c0_165, %c0_166] : memref<3x3x128x128xbf16, #tpu.memory_space<vmem>>, vector<1x1x128x128xbf16>
    %133 = vector.shape_cast %132 : vector<1x1x128x128xbf16> to vector<128x128xbf16>
    %cst_167 = arith.constant dense<0.000000e+00> : vector<128x128xf32>
    %134 = tpu.matmul %131, %133, %cst_167 {dimension_numbers = #tpu.dot_dimension_numbers<[1], [0], [0], [1], [0, 0, 1, 1], [], []>} : vector<128x128xbf16>, vector<128x128xbf16>, vector<128x128xf32> -> vector<128x128xf32>
    %135 = arith.addf %125, %134 : vector<128x128xf32>
    %c1_168 = arith.constant 1 : index
    %c0_169 = arith.constant 0 : index
    %c0_170 = arith.constant 0 : index
    %136 = vector.load %arg9[%c1_168, %c0_169, %c0_170] : memref<8x32x128xbf16, #tpu.memory_space<vmem>>, vector<4x32x128xbf16>
    %137 = vector.shape_cast %136 : vector<4x32x128xbf16> to vector<128x128xbf16>
    %c1_171 = arith.constant 1 : index
    %c0_172 = arith.constant 0 : index
    %c0_173 = arith.constant 0 : index
    %c0_174 = arith.constant 0 : index
    %138 = vector.load %arg6[%c1_171, %c0_172, %c0_173, %c0_174] : memref<3x3x128x128xbf16, #tpu.memory_space<vmem>>, vector<1x1x128x128xbf16>
    %139 = vector.shape_cast %138 : vector<1x1x128x128xbf16> to vector<128x128xbf16>
    %cst_175 = arith.constant dense<0.000000e+00> : vector<128x128xf32>
    %140 = tpu.matmul %137, %139, %cst_175 {dimension_numbers = #tpu.dot_dimension_numbers<[1], [0], [0], [1], [0, 0, 1, 1], [], []>} : vector<128x128xbf16>, vector<128x128xbf16>, vector<128x128xf32> -> vector<128x128xf32>
    %141 = arith.addf %135, %140 : vector<128x128xf32>
    %c2_176 = arith.constant 2 : index
    %c0_177 = arith.constant 0 : index
    %c0_178 = arith.constant 0 : index
    %142 = vector.load %arg9[%c2_176, %c0_177, %c0_178] : memref<8x32x128xbf16, #tpu.memory_space<vmem>>, vector<4x32x128xbf16>
    %143 = vector.shape_cast %142 : vector<4x32x128xbf16> to vector<128x128xbf16>
    %c2_179 = arith.constant 2 : index
    %c0_180 = arith.constant 0 : index
    %c0_181 = arith.constant 0 : index
    %c0_182 = arith.constant 0 : index
    %144 = vector.load %arg6[%c2_179, %c0_180, %c0_181, %c0_182] : memref<3x3x128x128xbf16, #tpu.memory_space<vmem>>, vector<1x1x128x128xbf16>
    %145 = vector.shape_cast %144 : vector<1x1x128x128xbf16> to vector<128x128xbf16>
    %cst_183 = arith.constant dense<0.000000e+00> : vector<128x128xf32>
    %146 = tpu.matmul %143, %145, %cst_183 {dimension_numbers = #tpu.dot_dimension_numbers<[1], [0], [0], [1], [0, 0, 1, 1], [], []>} : vector<128x128xbf16>, vector<128x128xbf16>, vector<128x128xf32> -> vector<128x128xf32>
    %147 = arith.addf %141, %146 : vector<128x128xf32>
    %c0_184 = arith.constant 0 : index
    %c1_185 = arith.constant 1 : index
    %c0_186 = arith.constant 0 : index
    %148 = vector.load %arg10[%c0_184, %c1_185, %c0_186] : memref<6x32x128xbf16, #tpu.memory_space<vmem>>, vector<6x31x128xbf16>
    %c0_187 = arith.constant 0 : index
    %c0_188 = arith.constant 0 : index
    %c0_189 = arith.constant 0 : index
    %149 = vector.load %arg9[%c0_187, %c0_188, %c0_189] : memref<8x32x128xbf16, #tpu.memory_space<vmem>>, vector<6x31x128xbf16>
    tpu.vector_store %arg9[%c0_187, %c0_188, %c0_189], %148 {strides = array<i32>} : memref<8x32x128xbf16, #tpu.memory_space<vmem>>, vector<6x31x128xbf16>,
    %cst_190 = arith.constant 0.000000e+00 : bf16
    %150 = vector.broadcast %cst_190 : bf16 to vector<6x1x128xbf16>
    %c0_191 = arith.constant 0 : index
    %c31_192 = arith.constant 31 : index
    %c0_193 = arith.constant 0 : index
    %151 = vector.load %arg9[%c0_191, %c31_192, %c0_193] : memref<8x32x128xbf16, #tpu.memory_space<vmem>>, vector<6x1x128xbf16>
    tpu.vector_store %arg9[%c0_191, %c31_192, %c0_193], %150 {strides = array<i32>} : memref<8x32x128xbf16, #tpu.memory_space<vmem>>, vector<6x1x128xbf16>,
    %c0_194 = arith.constant 0 : index
    %c0_195 = arith.constant 0 : index
    %c0_196 = arith.constant 0 : index
    %152 = vector.load %arg9[%c0_194, %c0_195, %c0_196] : memref<8x32x128xbf16, #tpu.memory_space<vmem>>, vector<4x32x128xbf16>
    %153 = vector.shape_cast %152 : vector<4x32x128xbf16> to vector<128x128xbf16>
    %c0_197 = arith.constant 0 : index
    %c2_198 = arith.constant 2 : index
    %c0_199 = arith.constant 0 : index
    %c0_200 = arith.constant 0 : index
    %154 = vector.load %arg6[%c0_197, %c2_198, %c0_199, %c0_200] : memref<3x3x128x128xbf16, #tpu.memory_space<vmem>>, vector<1x1x128x128xbf16>
    %155 = vector.shape_cast %154 : vector<1x1x128x128xbf16> to vector<128x128xbf16>
    %cst_201 = arith.constant dense<0.000000e+00> : vector<128x128xf32>
    %156 = tpu.matmul %153, %155, %cst_201 {dimension_numbers = #tpu.dot_dimension_numbers<[1], [0], [0], [1], [0, 0, 1, 1], [], []>} : vector<128x128xbf16>, vector<128x128xbf16>, vector<128x128xf32> -> vector<128x128xf32>
    %157 = arith.addf %147, %156 : vector<128x128xf32>
    %c1_202 = arith.constant 1 : index
    %c0_203 = arith.constant 0 : index
    %c0_204 = arith.constant 0 : index
    %158 = vector.load %arg9[%c1_202, %c0_203, %c0_204] : memref<8x32x128xbf16, #tpu.memory_space<vmem>>, vector<4x32x128xbf16>
    %159 = vector.shape_cast %158 : vector<4x32x128xbf16> to vector<128x128xbf16>
    %c1_205 = arith.constant 1 : index
    %c2_206 = arith.constant 2 : index
    %c0_207 = arith.constant 0 : index
    %c0_208 = arith.constant 0 : index
    %160 = vector.load %arg6[%c1_205, %c2_206, %c0_207, %c0_208] : memref<3x3x128x128xbf16, #tpu.memory_space<vmem>>, vector<1x1x128x128xbf16>
    %161 = vector.shape_cast %160 : vector<1x1x128x128xbf16> to vector<128x128xbf16>
    %cst_209 = arith.constant dense<0.000000e+00> : vector<128x128xf32>
    %162 = tpu.matmul %159, %161, %cst_209 {dimension_numbers = #tpu.dot_dimension_numbers<[1], [0], [0], [1], [0, 0, 1, 1], [], []>} : vector<128x128xbf16>, vector<128x128xbf16>, vector<128x128xf32> -> vector<128x128xf32>
    %163 = arith.addf %157, %162 : vector<128x128xf32>
    %c2_210 = arith.constant 2 : index
    %c0_211 = arith.constant 0 : index
    %c0_212 = arith.constant 0 : index
    %164 = vector.load %arg9[%c2_210, %c0_211, %c0_212] : memref<8x32x128xbf16, #tpu.memory_space<vmem>>, vector<4x32x128xbf16>
    %165 = vector.shape_cast %164 : vector<4x32x128xbf16> to vector<128x128xbf16>
    %c2_213 = arith.constant 2 : index
    %c2_214 = arith.constant 2 : index
    %c0_215 = arith.constant 0 : index
    %c0_216 = arith.constant 0 : index
    %166 = vector.load %arg6[%c2_213, %c2_214, %c0_215, %c0_216] : memref<3x3x128x128xbf16, #tpu.memory_space<vmem>>, vector<1x1x128x128xbf16>
    %167 = vector.shape_cast %166 : vector<1x1x128x128xbf16> to vector<128x128xbf16>
    %cst_217 = arith.constant dense<0.000000e+00> : vector<128x128xf32>
    %168 = tpu.matmul %165, %167, %cst_217 {dimension_numbers = #tpu.dot_dimension_numbers<[1], [0], [0], [1], [0, 0, 1, 1], [], []>} : vector<128x128xbf16>, vector<128x128xbf16>, vector<128x128xf32> -> vector<128x128xf32>
    %169 = arith.addf %163, %168 : vector<128x128xf32>
    %c0_218 = arith.constant 0 : index
    %c0_219 = arith.constant 0 : index
    %170 = vector.load %arg7[%c0_218, %c0_219] : memref<1x128xf32, #tpu.memory_space<vmem>>, vector<1x128xf32>
    %171 = vector.broadcast %170 : vector<1x128xf32> to vector<128x128xf32>
    %172 = arith.addf %169, %171 : vector<128x128xf32>
    %cst_220 = arith.constant 0.000000e+00 : f32
    %173 = vector.broadcast %cst_220 : f32 to vector<128x128xf32>
    %174 = arith.maximumf %172, %173 : vector<128x128xf32>
    %175 = vector.shape_cast %174 : vector<128x128xf32> to vector<4x32x128xf32>
    %176 = arith.truncf %175 : vector<4x32x128xf32> to vector<4x32x128xbf16>
    %c0_221 = arith.constant 0 : index
    %c0_222 = arith.constant 0 : index
    %c0_223 = arith.constant 0 : index
    %c0_224 = arith.constant 0 : index
    %177 = vector.load %arg8[%c0_221, %c0_222, %c0_223, %c0_224] : memref<1x4x32x128xbf16, #tpu.memory_space<vmem>>, vector<1x4x32x128xbf16>
    %178 = vector.shape_cast %177 : vector<1x4x32x128xbf16> to vector<4x32x128xbf16>
    %179 = vector.shape_cast %176 : vector<4x32x128xbf16> to vector<1x4x32x128xbf16>
    tpu.vector_store %arg8[%c0_221, %c0_222, %c0_223, %c0_224], %179 {strides = array<i32>} : memref<1x4x32x128xbf16, #tpu.memory_space<vmem>>, vector<1x4x32x128xbf16>,
    return
  }
  func.func @transform_0(%arg0: i32, %arg1: i32) -> (i32, i32, i32, i32) {
    %c0_i32 = arith.constant 0 : i32
    %c0_i32_0 = arith.constant 0 : i32
    %c0_i32_1 = arith.constant 0 : i32
    return %arg0, %arg1, %c0_i32, %c0_i32_0 : i32, i32, i32, i32
  }
  func.func @transform_1(%arg0: i32, %arg1: i32) -> (i32, i32, i32, i32) {
    %c1_i32 = arith.constant 1 : i32
    %0 = arith.addi %arg1, %c1_i32 : i32
    %c1_i32_0 = arith.constant 1 : i32
    %1 = arith.muli %0, %c1_i32_0 : i32
    %c0_i32 = arith.constant 0 : i32
    %c0_i32_1 = arith.constant 0 : i32
    %c0_i32_2 = arith.constant 0 : i32
    return %arg0, %1, %c0_i32, %c0_i32_1 : i32, i32, i32, i32
  }
  func.func @transform_2(%arg0: i32, %arg1: i32) -> (i32, i32, i32, i32) {
    %c0_i32 = arith.constant 0 : i32
    %c0_i32_0 = arith.constant 0 : i32
    %c0_i32_1 = arith.constant 0 : i32
    %c0_i32_2 = arith.constant 0 : i32
    %c0_i32_3 = arith.constant 0 : i32
    return %c0_i32, %c0_i32_0, %c0_i32_1, %c0_i32_2 : i32, i32, i32, i32
  }
  func.func @transform_3(%arg0: i32, %arg1: i32) -> (i32, i32) {
    %c0_i32 = arith.constant 0 : i32
    %c0_i32_0 = arith.constant 0 : i32
    %c0_i32_1 = arith.constant 0 : i32
    return %c0_i32, %c0_i32_0 : i32, i32
  }
  func.func @transform_4(%arg0: i32, %arg1: i32) -> (i32, i32, i32, i32) {
    %c0_i32 = arith.constant 0 : i32
    %c0_i32_0 = arith.constant 0 : i32
    %c0_i32_1 = arith.constant 0 : i32
    %c0_i32_2 = arith.constant 0 : i32
    %c0_i32_3 = arith.constant 0 : i32
    return %c0_i32, %c0_i32_0, %c0_i32_1, %c0_i32_2 : i32, i32, i32, i32
  }
  func.func @transform_5(%arg0: i32, %arg1: i32) -> (i32, i32) {
    %c0_i32 = arith.constant 0 : i32
    %c0_i32_0 = arith.constant 0 : i32
    %c0_i32_1 = arith.constant 0 : i32
    return %c0_i32, %c0_i32_0 : i32, i32
  }
  func.func @transform_6(%arg0: i32, %arg1: i32) -> (i32, i32, i32, i32) {
    %c0_i32 = arith.constant 0 : i32
    %c0_i32_0 = arith.constant 0 : i32
    %c0_i32_1 = arith.constant 0 : i32
    return %arg0, %arg1, %c0_i32, %c0_i32_0 : i32, i32, i32, i32
  }
}

module attributes {stable_mosaic.version = 11 : i64} {
  func.func @_fused_double_conv_kernel(%arg0: i32, %arg1: i32, %arg2: memref<1x4x32x128xbf16, #tpu.memory_space<vmem>>, %arg3: memref<1x4x32x128xbf16, #tpu.memory_space<vmem>>, %arg4: memref<3x3x128x128xbf16, #tpu.memory_space<vmem>>, %arg5: memref<1x128xf32, #tpu.memory_space<vmem>>, %arg6: memref<3x3x128x128xbf16, #tpu.memory_space<vmem>>, %arg7: memref<1x128xf32, #tpu.memory_space<vmem>>, %arg8: memref<1x4x32x128xbf16, #tpu.memory_space<vmem>>, %arg9: memref<8x32x128xbf16, #tpu.memory_space<vmem>>, %arg10: memref<6x32x128xbf16, #tpu.memory_space<vmem>>) attributes {dimension_semantics = [#tpu.dimension_semantics<parallel>, #tpu.dimension_semantics<parallel>], iteration_bounds = array<i64: 2, 4>, scalar_prefetch = 0 : i64, scratch_operands = 2 : i64, tpu.core_type = #tpu.core_type<tc>, window_params = [{transform_indices = @transform_0, window_bounds = array<i64: 1, 4, 32, 128>}, {transform_indices = @transform_1, window_bounds = array<i64: 1, 4, 32, 128>}, {pipeline_mode = #tpu.pipeline_mode<synchronous>, transform_indices = @transform_2, window_bounds = array<i64: 3, 3, 128, 128>}, {pipeline_mode = #tpu.pipeline_mode<synchronous>, transform_indices = @transform_3, window_bounds = array<i64: 1, 128>}, {pipeline_mode = #tpu.pipeline_mode<synchronous>, transform_indices = @transform_4, window_bounds = array<i64: 3, 3, 128, 128>}, {pipeline_mode = #tpu.pipeline_mode<synchronous>, transform_indices = @transform_5, window_bounds = array<i64: 1, 128>}, {transform_indices = @transform_6, window_bounds = array<i64: 1, 4, 32, 128>}]} {
    %c0 = arith.constant 0 : index
    %c0_0 = arith.constant 0 : index
    %c0_1 = arith.constant 0 : index
    %c0_2 = arith.constant 0 : index
    %0 = vector.load %arg2[%c0, %c0_0, %c0_1, %c0_2] : memref<1x4x32x128xbf16, #tpu.memory_space<vmem>>, vector<1x4x32x128xbf16>
    %1 = vector.shape_cast %0 : vector<1x4x32x128xbf16> to vector<4x32x128xbf16>
    %c0_3 = arith.constant 0 : index
    %c0_4 = arith.constant 0 : index
    %c0_5 = arith.constant 0 : index
    %2 = vector.load %arg9[%c0_3, %c0_4, %c0_5] : memref<8x32x128xbf16, #tpu.memory_space<vmem>>, vector<4x32x128xbf16>
    tpu.vector_store %arg9[%c0_3, %c0_4, %c0_5], %1 {strides = array<i32>} : memref<8x32x128xbf16, #tpu.memory_space<vmem>>, vector<4x32x128xbf16>,
    %c0_6 = arith.constant 0 : index
    %c0_7 = arith.constant 0 : index
    %c0_8 = arith.constant 0 : index
    %c0_9 = arith.constant 0 : index
    %3 = vector.load %arg3[%c0_6, %c0_7, %c0_8, %c0_9] : memref<1x4x32x128xbf16, #tpu.memory_space<vmem>>, vector<1x4x32x128xbf16>
    %4 = vector.shape_cast %3 : vector<1x4x32x128xbf16> to vector<4x32x128xbf16>
    %c4 = arith.constant 4 : index
    %c0_10 = arith.constant 0 : index
    %c0_11 = arith.constant 0 : index
    %5 = vector.load %arg9[%c4, %c0_10, %c0_11] : memref<8x32x128xbf16, #tpu.memory_space<vmem>>, vector<4x32x128xbf16>
    tpu.vector_store %arg9[%c4, %c0_10, %c0_11], %4 {strides = array<i32>} : memref<8x32x128xbf16, #tpu.memory_space<vmem>>, vector<4x32x128xbf16>,
    %cst = arith.constant 0.000000e+00 : f32
    %6 = vector.broadcast %cst : f32 to vector<192x128xf32>
    %c0_12 = arith.constant 0 : index
    %c0_13 = arith.constant 0 : index
    %c0_14 = arith.constant 0 : index
    %7 = vector.load %arg9[%c0_12, %c0_13, %c0_14] : memref<8x32x128xbf16, #tpu.memory_space<vmem>>, vector<6x32x128xbf16>
    %8 = vector.shape_cast %7 : vector<6x32x128xbf16> to vector<192x128xbf16>
    %c0_15 = arith.constant 0 : index
    %c1 = arith.constant 1 : index
    %c0_16 = arith.constant 0 : index
    %c0_17 = arith.constant 0 : index
    %9 = vector.load %arg4[%c0_15, %c1, %c0_16, %c0_17] : memref<3x3x128x128xbf16, #tpu.memory_space<vmem>>, vector<1x1x128x128xbf16>
    %10 = vector.shape_cast %9 : vector<1x1x128x128xbf16> to vector<128x128xbf16>
    %cst_18 = arith.constant dense<0.000000e+00> : vector<192x128xf32>
    %11 = tpu.matmul %8, %10, %cst_18 {dimension_numbers = #tpu.dot_dimension_numbers<[1], [0], [0], [1], [0, 0, 1, 1], [], []>} : vector<192x128xbf16>, vector<128x128xbf16>, vector<192x128xf32> -> vector<192x128xf32>
    %12 = arith.addf %6, %11 : vector<192x128xf32>
    %c1_19 = arith.constant 1 : index
    %c0_20 = arith.constant 0 : index
    %c0_21 = arith.constant 0 : index
    %13 = vector.load %arg9[%c1_19, %c0_20, %c0_21] : memref<8x32x128xbf16, #tpu.memory_space<vmem>>, vector<6x32x128xbf16>
    %14 = vector.shape_cast %13 : vector<6x32x128xbf16> to vector<192x128xbf16>
    %c1_22 = arith.constant 1 : index
    %c1_23 = arith.constant 1 : index
    %c0_24 = arith.constant 0 : index
    %c0_25 = arith.constant 0 : index
    %15 = vector.load %arg4[%c1_22, %c1_23, %c0_24, %c0_25] : memref<3x3x128x128xbf16, #tpu.memory_space<vmem>>, vector<1x1x128x128xbf16>
    %16 = vector.shape_cast %15 : vector<1x1x128x128xbf16> to vector<128x128xbf16>
    %cst_26 = arith.constant dense<0.000000e+00> : vector<192x128xf32>
    %17 = tpu.matmul %14, %16, %cst_26 {dimension_numbers = #tpu.dot_dimension_numbers<[1], [0], [0], [1], [0, 0, 1, 1], [], []>} : vector<192x128xbf16>, vector<128x128xbf16>, vector<192x128xf32> -> vector<192x128xf32>
    %18 = arith.addf %12, %17 : vector<192x128xf32>
    %c2 = arith.constant 2 : index
    %c0_27 = arith.constant 0 : index
    %c0_28 = arith.constant 0 : index
    %19 = vector.load %arg9[%c2, %c0_27, %c0_28] : memref<8x32x128xbf16, #tpu.memory_space<vmem>>, vector<6x32x128xbf16>
    %20 = vector.shape_cast %19 : vector<6x32x128xbf16> to vector<192x128xbf16>
    %c2_29 = arith.constant 2 : index
    %c1_30 = arith.constant 1 : index
    %c0_31 = arith.constant 0 : index
    %c0_32 = arith.constant 0 : index
    %21 = vector.load %arg4[%c2_29, %c1_30, %c0_31, %c0_32] : memref<3x3x128x128xbf16, #tpu.memory_space<vmem>>, vector<1x1x128x128xbf16>
    %22 = vector.shape_cast %21 : vector<1x1x128x128xbf16> to vector<128x128xbf16>
    %cst_33 = arith.constant dense<0.000000e+00> : vector<192x128xf32>
    %23 = tpu.matmul %20, %22, %cst_33 {dimension_numbers = #tpu.dot_dimension_numbers<[1], [0], [0], [1], [0, 0, 1, 1], [], []>} : vector<192x128xbf16>, vector<128x128xbf16>, vector<192x128xf32> -> vector<192x128xf32>
    %24 = arith.addf %18, %23 : vector<192x128xf32>
    %c0_34 = arith.constant 0 : index
    %c0_35 = arith.constant 0 : index
    %c0_36 = arith.constant 0 : index
    %c0_37 = arith.constant 0 : index
    %25 = vector.load %arg2[%c0_34, %c0_35, %c0_36, %c0_37] : memref<1x4x32x128xbf16, #tpu.memory_space<vmem>>, vector<1x4x31x128xbf16>
    %26 = vector.shape_cast %25 : vector<1x4x31x128xbf16> to vector<4x31x128xbf16>
    %c0_38 = arith.constant 0 : index
    %c1_39 = arith.constant 1 : index
    %c0_40 = arith.constant 0 : index
    %27 = vector.load %arg9[%c0_38, %c1_39, %c0_40] : memref<8x32x128xbf16, #tpu.memory_space<vmem>>, vector<4x31x128xbf16>
    tpu.vector_store %arg9[%c0_38, %c1_39, %c0_40], %26 {strides = array<i32>} : memref<8x32x128xbf16, #tpu.memory_space<vmem>>, vector<4x31x128xbf16>,
    %c0_41 = arith.constant 0 : index
    %c0_42 = arith.constant 0 : index
    %c0_43 = arith.constant 0 : index
    %c0_44 = arith.constant 0 : index
    %28 = vector.load %arg3[%c0_41, %c0_42, %c0_43, %c0_44] : memref<1x4x32x128xbf16, #tpu.memory_space<vmem>>, vector<1x4x31x128xbf16>
    %29 = vector.shape_cast %28 : vector<1x4x31x128xbf16> to vector<4x31x128xbf16>
    %c4_45 = arith.constant 4 : index
    %c1_46 = arith.constant 1 : index
    %c0_47 = arith.constant 0 : index
    %30 = vector.load %arg9[%c4_45, %c1_46, %c0_47] : memref<8x32x128xbf16, #tpu.memory_space<vmem>>, vector<4x31x128xbf16>
    tpu.vector_store %arg9[%c4_45, %c1_46, %c0_47], %29 {strides = array<i32>} : memref<8x32x128xbf16, #tpu.memory_space<vmem>>, vector<4x31x128xbf16>,
    %cst_48 = arith.constant 0.000000e+00 : bf16
    %31 = vector.broadcast %cst_48 : bf16 to vector<8x1x128xbf16>
    %c0_49 = arith.constant 0 : index
    %c0_50 = arith.constant 0 : index
    %c0_51 = arith.constant 0 : index
    %32 = vector.load %arg9[%c0_49, %c0_50, %c0_51] : memref<8x32x128xbf16, #tpu.memory_space<vmem>>, vector<8x1x128xbf16>
    tpu.vector_store %arg9[%c0_49, %c0_50, %c0_51], %31 {strides = array<i32>} : memref<8x32x128xbf16, #tpu.memory_space<vmem>>, vector<8x1x128xbf16>,
    %c0_52 = arith.constant 0 : index
    %c0_53 = arith.constant 0 : index
    %c0_54 = arith.constant 0 : index
    %33 = vector.load %arg9[%c0_52, %c0_53, %c0_54] : memref<8x32x128xbf16, #tpu.memory_space<vmem>>, vector<6x32x128xbf16>
    %34 = vector.shape_cast %33 : vector<6x32x128xbf16> to vector<192x128xbf16>
    %c0_55 = arith.constant 0 : index
    %c0_56 = arith.constant 0 : index
    %c0_57 = arith.constant 0 : index
    %c0_58 = arith.constant 0 : index
    %35 = vector.load %arg4[%c0_55, %c0_56, %c0_57, %c0_58] : memref<3x3x128x128xbf16, #tpu.memory_space<vmem>>, vector<1x1x128x128xbf16>
    %36 = vector.shape_cast %35 : vector<1x1x128x128xbf16> to vector<128x128xbf16>
    %cst_59 = arith.constant dense<0.000000e+00> : vector<192x128xf32>
    %37 = tpu.matmul %34, %36, %cst_59 {dimension_numbers = #tpu.dot_dimension_numbers<[1], [0], [0], [1], [0, 0, 1, 1], [], []>} : vector<192x128xbf16>, vector<128x128xbf16>, vector<192x128xf32> -> vector<192x128xf32>
    %38 = arith.addf %24, %37 : vector<192x128xf32>
    %c1_60 = arith.constant 1 : index
    %c0_61 = arith.constant 0 : index
    %c0_62 = arith.constant 0 : index
    %39 = vector.load %arg9[%c1_60, %c0_61, %c0_62] : memref<8x32x128xbf16, #tpu.memory_space<vmem>>, vector<6x32x128xbf16>
    %40 = vector.shape_cast %39 : vector<6x32x128xbf16> to vector<192x128xbf16>
    %c1_63 = arith.constant 1 : index
    %c0_64 = arith.constant 0 : index
    %c0_65 = arith.constant 0 : index
    %c0_66 = arith.constant 0 : index
    %41 = vector.load %arg4[%c1_63, %c0_64, %c0_65, %c0_66] : memref<3x3x128x128xbf16, #tpu.memory_space<vmem>>, vector<1x1x128x128xbf16>
    %42 = vector.shape_cast %41 : vector<1x1x128x128xbf16> to vector<128x128xbf16>
    %cst_67 = arith.constant dense<0.000000e+00> : vector<192x128xf32>
    %43 = tpu.matmul %40, %42, %cst_67 {dimension_numbers = #tpu.dot_dimension_numbers<[1], [0], [0], [1], [0, 0, 1, 1], [], []>} : vector<192x128xbf16>, vector<128x128xbf16>, vector<192x128xf32> -> vector<192x128xf32>
    %44 = arith.addf %38, %43 : vector<192x128xf32>
    %c2_68 = arith.constant 2 : index
    %c0_69 = arith.constant 0 : index
    %c0_70 = arith.constant 0 : index
    %45 = vector.load %arg9[%c2_68, %c0_69, %c0_70] : memref<8x32x128xbf16, #tpu.memory_space<vmem>>, vector<6x32x128xbf16>
    %46 = vector.shape_cast %45 : vector<6x32x128xbf16> to vector<192x128xbf16>
    %c2_71 = arith.constant 2 : index
    %c0_72 = arith.constant 0 : index
    %c0_73 = arith.constant 0 : index
    %c0_74 = arith.constant 0 : index
    %47 = vector.load %arg4[%c2_71, %c0_72, %c0_73, %c0_74] : memref<3x3x128x128xbf16, #tpu.memory_space<vmem>>, vector<1x1x128x128xbf16>
    %48 = vector.shape_cast %47 : vector<1x1x128x128xbf16> to vector<128x128xbf16>
    %cst_75 = arith.constant dense<0.000000e+00> : vector<192x128xf32>
    %49 = tpu.matmul %46, %48, %cst_75 {dimension_numbers = #tpu.dot_dimension_numbers<[1], [0], [0], [1], [0, 0, 1, 1], [], []>} : vector<192x128xbf16>, vector<128x128xbf16>, vector<192x128xf32> -> vector<192x128xf32>
    %50 = arith.addf %44, %49 : vector<192x128xf32>
    %c0_76 = arith.constant 0 : index
    %c0_77 = arith.constant 0 : index
    %c1_78 = arith.constant 1 : index
    %c0_79 = arith.constant 0 : index
    %51 = vector.load %arg2[%c0_76, %c0_77, %c1_78, %c0_79] : memref<1x4x32x128xbf16, #tpu.memory_space<vmem>>, vector<1x4x31x128xbf16>
    %52 = vector.shape_cast %51 : vector<1x4x31x128xbf16> to vector<4x31x128xbf16>
    %c0_80 = arith.constant 0 : index
    %c0_81 = arith.constant 0 : index
    %c0_82 = arith.constant 0 : index
    %53 = vector.load %arg9[%c0_80, %c0_81, %c0_82] : memref<8x32x128xbf16, #tpu.memory_space<vmem>>, vector<4x31x128xbf16>
    tpu.vector_store %arg9[%c0_80, %c0_81, %c0_82], %52 {strides = array<i32>} : memref<8x32x128xbf16, #tpu.memory_space<vmem>>, vector<4x31x128xbf16>,
    %c0_83 = arith.constant 0 : index
    %c0_84 = arith.constant 0 : index
    %c1_85 = arith.constant 1 : index
    %c0_86 = arith.constant 0 : index
    %54 = vector.load %arg3[%c0_83, %c0_84, %c1_85, %c0_86] : memref<1x4x32x128xbf16, #tpu.memory_space<vmem>>, vector<1x4x31x128xbf16>
    %55 = vector.shape_cast %54 : vector<1x4x31x128xbf16> to vector<4x31x128xbf16>
    %c4_87 = arith.constant 4 : index
    %c0_88 = arith.constant 0 : index
    %c0_89 = arith.constant 0 : index
    %56 = vector.load %arg9[%c4_87, %c0_88, %c0_89] : memref<8x32x128xbf16, #tpu.memory_space<vmem>>, vector<4x31x128xbf16>
    tpu.vector_store %arg9[%c4_87, %c0_88, %c0_89], %55 {strides = array<i32>} : memref<8x32x128xbf16, #tpu.memory_space<vmem>>, vector<4x31x128xbf16>,
    %cst_90 = arith.constant 0.000000e+00 : bf16
    %57 = vector.broadcast %cst_90 : bf16 to vector<8x1x128xbf16>
    %c0_91 = arith.constant 0 : index
    %c31 = arith.constant 31 : index
    %c0_92 = arith.constant 0 : index
    %58 = vector.load %arg9[%c0_91, %c31, %c0_92] : memref<8x32x128xbf16, #tpu.memory_space<vmem>>, vector<8x1x128xbf16>
    tpu.vector_store %arg9[%c0_91, %c31, %c0_92], %57 {strides = array<i32>} : memref<8x32x128xbf16, #tpu.memory_space<vmem>>, vector<8x1x128xbf16>,
    %c0_93 = arith.constant 0 : index
    %c0_94 = arith.constant 0 : index
    %c0_95 = arith.constant 0 : index
    %59 = vector.load %arg9[%c0_93, %c0_94, %c0_95] : memref<8x32x128xbf16, #tpu.memory_space<vmem>>, vector<6x32x128xbf16>
    %60 = vector.shape_cast %59 : vector<6x32x128xbf16> to vector<192x128xbf16>
    %c0_96 = arith.constant 0 : index
    %c2_97 = arith.constant 2 : index
    %c0_98 = arith.constant 0 : index
    %c0_99 = arith.constant 0 : index
    %61 = vector.load %arg4[%c0_96, %c2_97, %c0_98, %c0_99] : memref<3x3x128x128xbf16, #tpu.memory_space<vmem>>, vector<1x1x128x128xbf16>
    %62 = vector.shape_cast %61 : vector<1x1x128x128xbf16> to vector<128x128xbf16>
    %cst_100 = arith.constant dense<0.000000e+00> : vector<192x128xf32>
    %63 = tpu.matmul %60, %62, %cst_100 {dimension_numbers = #tpu.dot_dimension_numbers<[1], [0], [0], [1], [0, 0, 1, 1], [], []>} : vector<192x128xbf16>, vector<128x128xbf16>, vector<192x128xf32> -> vector<192x128xf32>
    %64 = arith.addf %50, %63 : vector<192x128xf32>
    %c1_101 = arith.constant 1 : index
    %c0_102 = arith.constant 0 : index
    %c0_103 = arith.constant 0 : index
    %65 = vector.load %arg9[%c1_101, %c0_102, %c0_103] : memref<8x32x128xbf16, #tpu.memory_space<vmem>>, vector<6x32x128xbf16>
    %66 = vector.shape_cast %65 : vector<6x32x128xbf16> to vector<192x128xbf16>
    %c1_104 = arith.constant 1 : index
    %c2_105 = arith.constant 2 : index
    %c0_106 = arith.constant 0 : index
    %c0_107 = arith.constant 0 : index
    %67 = vector.load %arg4[%c1_104, %c2_105, %c0_106, %c0_107] : memref<3x3x128x128xbf16, #tpu.memory_space<vmem>>, vector<1x1x128x128xbf16>
    %68 = vector.shape_cast %67 : vector<1x1x128x128xbf16> to vector<128x128xbf16>
    %cst_108 = arith.constant dense<0.000000e+00> : vector<192x128xf32>
    %69 = tpu.matmul %66, %68, %cst_108 {dimension_numbers = #tpu.dot_dimension_numbers<[1], [0], [0], [1], [0, 0, 1, 1], [], []>} : vector<192x128xbf16>, vector<128x128xbf16>, vector<192x128xf32> -> vector<192x128xf32>
    %70 = arith.addf %64, %69 : vector<192x128xf32>
    %c2_109 = arith.constant 2 : index
    %c0_110 = arith.constant 0 : index
    %c0_111 = arith.constant 0 : index
    %71 = vector.load %arg9[%c2_109, %c0_110, %c0_111] : memref<8x32x128xbf16, #tpu.memory_space<vmem>>, vector<6x32x128xbf16>
    %72 = vector.shape_cast %71 : vector<6x32x128xbf16> to vector<192x128xbf16>
    %c2_112 = arith.constant 2 : index
    %c2_113 = arith.constant 2 : index
    %c0_114 = arith.constant 0 : index
    %c0_115 = arith.constant 0 : index
    %73 = vector.load %arg4[%c2_112, %c2_113, %c0_114, %c0_115] : memref<3x3x128x128xbf16, #tpu.memory_space<vmem>>, vector<1x1x128x128xbf16>
    %74 = vector.shape_cast %73 : vector<1x1x128x128xbf16> to vector<128x128xbf16>
    %cst_116 = arith.constant dense<0.000000e+00> : vector<192x128xf32>
    %75 = tpu.matmul %72, %74, %cst_116 {dimension_numbers = #tpu.dot_dimension_numbers<[1], [0], [0], [1], [0, 0, 1, 1], [], []>} : vector<192x128xbf16>, vector<128x128xbf16>, vector<192x128xf32> -> vector<192x128xf32>
    %76 = arith.addf %70, %75 : vector<192x128xf32>
    %c0_117 = arith.constant 0 : index
    %c0_118 = arith.constant 0 : index
    %77 = vector.load %arg5[%c0_117, %c0_118] : memref<1x128xf32, #tpu.memory_space<vmem>>, vector<1x128xf32>
    %78 = vector.broadcast %77 : vector<1x128xf32> to vector<192x128xf32>
    %79 = arith.addf %76, %78 : vector<192x128xf32>
    %cst_119 = arith.constant 0.000000e+00 : f32
    %80 = vector.broadcast %cst_119 : f32 to vector<192x128xf32>
    %81 = arith.maximumf %79, %80 : vector<192x128xf32>
    %82 = vector.shape_cast %81 : vector<192x128xf32> to vector<6x32x128xf32>
    %83 = tpu.iota {dimensions = array<i32: 0>} : vector<6x32x1xi32>
    %84 = tpu.iota {dimensions = array<i32: 1>} : vector<6x32x1xi32>
    %c4_i32 = arith.constant 4 : i32
    %85 = arith.muli %arg1, %c4_i32 : i32
    %86 = vector.broadcast %85 : i32 to vector<6x32x1xi32>
    %87 = arith.addi %86, %83 : vector<6x32x1xi32>
    %c1_i32 = arith.constant 1 : i32
    %88 = vector.broadcast %c1_i32 : i32 to vector<6x32x1xi32>
    %89 = arith.subi %87, %88 : vector<6x32x1xi32>
    %c0_i32 = arith.constant 0 : i32
    %90 = vector.broadcast %c0_i32 : i32 to vector<6x32x1xi32>
    %91 = arith.cmpi sge, %89, %90 : vector<6x32x1xi32>
    %c15_i32 = arith.constant 15 : i32
    %92 = vector.broadcast %c15_i32 : i32 to vector<6x32x1xi32>
    %93 = arith.cmpi sle, %89, %92 : vector<6x32x1xi32>
    %94 = arith.andi %91, %93 : vector<6x32x1xi1>
    %c1_i32_120 = arith.constant 1 : i32
    %95 = vector.broadcast %c1_i32_120 : i32 to vector<6x32x1xi32>
    %96 = arith.cmpi sge, %84, %95 : vector<6x32x1xi32>
    %c16_i32 = arith.constant 16 : i32
    %97 = vector.broadcast %c16_i32 : i32 to vector<6x32x1xi32>
    %98 = arith.cmpi sle, %84, %97 : vector<6x32x1xi32>
    %99 = arith.andi %96, %98 : vector<6x32x1xi1>
    %100 = arith.andi %94, %99 : vector<6x32x1xi1>
    %cst_121 = arith.constant 0.000000e+00 : f32
    %101 = vector.shape_cast %100 : vector<6x32x1xi1> to vector<6x32x1xi1>
    %102 = vector.broadcast %101 : vector<6x32x1xi1> to vector<6x32x128xi1>
    %103 = vector.broadcast %cst_121 : f32 to vector<6x32x128xf32>
    %104 = arith.select %102, %82, %103 : vector<6x32x128xi1>, vector<6x32x128xf32>
    %105 = arith.truncf %104 : vector<6x32x128xf32> to vector<6x32x128xbf16>
    %c0_122 = arith.constant 0 : index
    %c0_123 = arith.constant 0 : index
    %c0_124 = arith.constant 0 : index
    %106 = vector.load %arg10[%c0_122, %c0_123, %c0_124] : memref<6x32x128xbf16, #tpu.memory_space<vmem>>, vector<6x32x128xbf16>
    tpu.vector_store %arg10[%c0_122, %c0_123, %c0_124], %105 {strides = array<i32>} : memref<6x32x128xbf16, #tpu.memory_space<vmem>>, vector<6x32x128xbf16>,
    %cst_125 = arith.constant 0.000000e+00 : f32
    %107 = vector.broadcast %cst_125 : f32 to vector<128x128xf32>
    %c0_126 = arith.constant 0 : index
    %c0_127 = arith.constant 0 : index
    %c0_128 = arith.constant 0 : index
    %108 = vector.load %arg10[%c0_126, %c0_127, %c0_128] : memref<6x32x128xbf16, #tpu.memory_space<vmem>>, vector<4x32x128xbf16>
    %109 = vector.shape_cast %108 : vector<4x32x128xbf16> to vector<128x128xbf16>
    %c0_129 = arith.constant 0 : index
    %c1_130 = arith.constant 1 : index
    %c0_131 = arith.constant 0 : index
    %c0_132 = arith.constant 0 : index
    %110 = vector.load %arg6[%c0_129, %c1_130, %c0_131, %c0_132] : memref<3x3x128x128xbf16, #tpu.memory_space<vmem>>, vector<1x1x128x128xbf16>
    %111 = vector.shape_cast %110 : vector<1x1x128x128xbf16> to vector<128x128xbf16>
    %cst_133 = arith.constant dense<0.000000e+00> : vector<128x128xf32>
    %112 = tpu.matmul %109, %111, %cst_133 {dimension_numbers = #tpu.dot_dimension_numbers<[1], [0], [0], [1], [0, 0, 1, 1], [], []>} : vector<128x128xbf16>, vector<128x128xbf16>, vector<128x128xf32> -> vector<128x128xf32>
    %113 = arith.addf %107, %112 : vector<128x128xf32>
    %c1_134 = arith.constant 1 : index
    %c0_135 = arith.constant 0 : index
    %c0_136 = arith.constant 0 : index
    %114 = vector.load %arg10[%c1_134, %c0_135, %c0_136] : memref<6x32x128xbf16, #tpu.memory_space<vmem>>, vector<4x32x128xbf16>
    %115 = vector.shape_cast %114 : vector<4x32x128xbf16> to vector<128x128xbf16>
    %c1_137 = arith.constant 1 : index
    %c1_138 = arith.constant 1 : index
    %c0_139 = arith.constant 0 : index
    %c0_140 = arith.constant 0 : index
    %116 = vector.load %arg6[%c1_137, %c1_138, %c0_139, %c0_140] : memref<3x3x128x128xbf16, #tpu.memory_space<vmem>>, vector<1x1x128x128xbf16>
    %117 = vector.shape_cast %116 : vector<1x1x128x128xbf16> to vector<128x128xbf16>
    %cst_141 = arith.constant dense<0.000000e+00> : vector<128x128xf32>
    %118 = tpu.matmul %115, %117, %cst_141 {dimension_numbers = #tpu.dot_dimension_numbers<[1], [0], [0], [1], [0, 0, 1, 1], [], []>} : vector<128x128xbf16>, vector<128x128xbf16>, vector<128x128xf32> -> vector<128x128xf32>
    %119 = arith.addf %113, %118 : vector<128x128xf32>
    %c2_142 = arith.constant 2 : index
    %c0_143 = arith.constant 0 : index
    %c0_144 = arith.constant 0 : index
    %120 = vector.load %arg10[%c2_142, %c0_143, %c0_144] : memref<6x32x128xbf16, #tpu.memory_space<vmem>>, vector<4x32x128xbf16>
    %121 = vector.shape_cast %120 : vector<4x32x128xbf16> to vector<128x128xbf16>
    %c2_145 = arith.constant 2 : index
    %c1_146 = arith.constant 1 : index
    %c0_147 = arith.constant 0 : index
    %c0_148 = arith.constant 0 : index
    %122 = vector.load %arg6[%c2_145, %c1_146, %c0_147, %c0_148] : memref<3x3x128x128xbf16, #tpu.memory_space<vmem>>, vector<1x1x128x128xbf16>
    %123 = vector.shape_cast %122 : vector<1x1x128x128xbf16> to vector<128x128xbf16>
    %cst_149 = arith.constant dense<0.000000e+00> : vector<128x128xf32>
    %124 = tpu.matmul %121, %123, %cst_149 {dimension_numbers = #tpu.dot_dimension_numbers<[1], [0], [0], [1], [0, 0, 1, 1], [], []>} : vector<128x128xbf16>, vector<128x128xbf16>, vector<128x128xf32> -> vector<128x128xf32>
    %125 = arith.addf %119, %124 : vector<128x128xf32>
    %c0_150 = arith.constant 0 : index
    %c0_151 = arith.constant 0 : index
    %c0_152 = arith.constant 0 : index
    %126 = vector.load %arg10[%c0_150, %c0_151, %c0_152] : memref<6x32x128xbf16, #tpu.memory_space<vmem>>, vector<6x31x128xbf16>
    %c0_153 = arith.constant 0 : index
    %c1_154 = arith.constant 1 : index
    %c0_155 = arith.constant 0 : index
    %127 = vector.load %arg9[%c0_153, %c1_154, %c0_155] : memref<8x32x128xbf16, #tpu.memory_space<vmem>>, vector<6x31x128xbf16>
    tpu.vector_store %arg9[%c0_153, %c1_154, %c0_155], %126 {strides = array<i32>} : memref<8x32x128xbf16, #tpu.memory_space<vmem>>, vector<6x31x128xbf16>,
    %cst_156 = arith.constant 0.000000e+00 : bf16
    %128 = vector.broadcast %cst_156 : bf16 to vector<6x1x128xbf16>
    %c0_157 = arith.constant 0 : index
    %c0_158 = arith.constant 0 : index
    %c0_159 = arith.constant 0 : index
    %129 = vector.load %arg9[%c0_157, %c0_158, %c0_159] : memref<8x32x128xbf16, #tpu.memory_space<vmem>>, vector<6x1x128xbf16>
    tpu.vector_store %arg9[%c0_157, %c0_158, %c0_159], %128 {strides = array<i32>} : memref<8x32x128xbf16, #tpu.memory_space<vmem>>, vector<6x1x128xbf16>,
    %c0_160 = arith.constant 0 : index
    %c0_161 = arith.constant 0 : index
    %c0_162 = arith.constant 0 : index
    %130 = vector.load %arg9[%c0_160, %c0_161, %c0_162] : memref<8x32x128xbf16, #tpu.memory_space<vmem>>, vector<4x32x128xbf16>
    %131 = vector.shape_cast %130 : vector<4x32x128xbf16> to vector<128x128xbf16>
    %c0_163 = arith.constant 0 : index
    %c0_164 = arith.constant 0 : index
    %c0_165 = arith.constant 0 : index
    %c0_166 = arith.constant 0 : index
    %132 = vector.load %arg6[%c0_163, %c0_164, %c0_165, %c0_166] : memref<3x3x128x128xbf16, #tpu.memory_space<vmem>>, vector<1x1x128x128xbf16>
    %133 = vector.shape_cast %132 : vector<1x1x128x128xbf16> to vector<128x128xbf16>
    %cst_167 = arith.constant dense<0.000000e+00> : vector<128x128xf32>
    %134 = tpu.matmul %131, %133, %cst_167 {dimension_numbers = #tpu.dot_dimension_numbers<[1], [0], [0], [1], [0, 0, 1, 1], [], []>} : vector<128x128xbf16>, vector<128x128xbf16>, vector<128x128xf32> -> vector<128x128xf32>
    %135 = arith.addf %125, %134 : vector<128x128xf32>
    %c1_168 = arith.constant 1 : index
    %c0_169 = arith.constant 0 : index
    %c0_170 = arith.constant 0 : index
    %136 = vector.load %arg9[%c1_168, %c0_169, %c0_170] : memref<8x32x128xbf16, #tpu.memory_space<vmem>>, vector<4x32x128xbf16>
    %137 = vector.shape_cast %136 : vector<4x32x128xbf16> to vector<128x128xbf16>
    %c1_171 = arith.constant 1 : index
    %c0_172 = arith.constant 0 : index
    %c0_173 = arith.constant 0 : index
    %c0_174 = arith.constant 0 : index
    %138 = vector.load %arg6[%c1_171, %c0_172, %c0_173, %c0_174] : memref<3x3x128x128xbf16, #tpu.memory_space<vmem>>, vector<1x1x128x128xbf16>
    %139 = vector.shape_cast %138 : vector<1x1x128x128xbf16> to vector<128x128xbf16>
    %cst_175 = arith.constant dense<0.000000e+00> : vector<128x128xf32>
    %140 = tpu.matmul %137, %139, %cst_175 {dimension_numbers = #tpu.dot_dimension_numbers<[1], [0], [0], [1], [0, 0, 1, 1], [], []>} : vector<128x128xbf16>, vector<128x128xbf16>, vector<128x128xf32> -> vector<128x128xf32>
    %141 = arith.addf %135, %140 : vector<128x128xf32>
    %c2_176 = arith.constant 2 : index
    %c0_177 = arith.constant 0 : index
    %c0_178 = arith.constant 0 : index
    %142 = vector.load %arg9[%c2_176, %c0_177, %c0_178] : memref<8x32x128xbf16, #tpu.memory_space<vmem>>, vector<4x32x128xbf16>
    %143 = vector.shape_cast %142 : vector<4x32x128xbf16> to vector<128x128xbf16>
    %c2_179 = arith.constant 2 : index
    %c0_180 = arith.constant 0 : index
    %c0_181 = arith.constant 0 : index
    %c0_182 = arith.constant 0 : index
    %144 = vector.load %arg6[%c2_179, %c0_180, %c0_181, %c0_182] : memref<3x3x128x128xbf16, #tpu.memory_space<vmem>>, vector<1x1x128x128xbf16>
    %145 = vector.shape_cast %144 : vector<1x1x128x128xbf16> to vector<128x128xbf16>
    %cst_183 = arith.constant dense<0.000000e+00> : vector<128x128xf32>
    %146 = tpu.matmul %143, %145, %cst_183 {dimension_numbers = #tpu.dot_dimension_numbers<[1], [0], [0], [1], [0, 0, 1, 1], [], []>} : vector<128x128xbf16>, vector<128x128xbf16>, vector<128x128xf32> -> vector<128x128xf32>
    %147 = arith.addf %141, %146 : vector<128x128xf32>
    %c0_184 = arith.constant 0 : index
    %c1_185 = arith.constant 1 : index
    %c0_186 = arith.constant 0 : index
    %148 = vector.load %arg10[%c0_184, %c1_185, %c0_186] : memref<6x32x128xbf16, #tpu.memory_space<vmem>>, vector<6x31x128xbf16>
    %c0_187 = arith.constant 0 : index
    %c0_188 = arith.constant 0 : index
    %c0_189 = arith.constant 0 : index
    %149 = vector.load %arg9[%c0_187, %c0_188, %c0_189] : memref<8x32x128xbf16, #tpu.memory_space<vmem>>, vector<6x31x128xbf16>
    tpu.vector_store %arg9[%c0_187, %c0_188, %c0_189], %148 {strides = array<i32>} : memref<8x32x128xbf16, #tpu.memory_space<vmem>>, vector<6x31x128xbf16>,
    %cst_190 = arith.constant 0.000000e+00 : bf16
    %150 = vector.broadcast %cst_190 : bf16 to vector<6x1x128xbf16>
    %c0_191 = arith.constant 0 : index
    %c31_192 = arith.constant 31 : index
    %c0_193 = arith.constant 0 : index
    %151 = vector.load %arg9[%c0_191, %c31_192, %c0_193] : memref<8x32x128xbf16, #tpu.memory_space<vmem>>, vector<6x1x128xbf16>
    tpu.vector_store %arg9[%c0_191, %c31_192, %c0_193], %150 {strides = array<i32>} : memref<8x32x128xbf16, #tpu.memory_space<vmem>>, vector<6x1x128xbf16>,
    %c0_194 = arith.constant 0 : index
    %c0_195 = arith.constant 0 : index
    %c0_196 = arith.constant 0 : index
    %152 = vector.load %arg9[%c0_194, %c0_195, %c0_196] : memref<8x32x128xbf16, #tpu.memory_space<vmem>>, vector<4x32x128xbf16>
    %153 = vector.shape_cast %152 : vector<4x32x128xbf16> to vector<128x128xbf16>
    %c0_197 = arith.constant 0 : index
    %c2_198 = arith.constant 2 : index
    %c0_199 = arith.constant 0 : index
    %c0_200 = arith.constant 0 : index
    %154 = vector.load %arg6[%c0_197, %c2_198, %c0_199, %c0_200] : memref<3x3x128x128xbf16, #tpu.memory_space<vmem>>, vector<1x1x128x128xbf16>
    %155 = vector.shape_cast %154 : vector<1x1x128x128xbf16> to vector<128x128xbf16>
    %cst_201 = arith.constant dense<0.000000e+00> : vector<128x128xf32>
    %156 = tpu.matmul %153, %155, %cst_201 {dimension_numbers = #tpu.dot_dimension_numbers<[1], [0], [0], [1], [0, 0, 1, 1], [], []>} : vector<128x128xbf16>, vector<128x128xbf16>, vector<128x128xf32> -> vector<128x128xf32>
    %157 = arith.addf %147, %156 : vector<128x128xf32>
    %c1_202 = arith.constant 1 : index
    %c0_203 = arith.constant 0 : index
    %c0_204 = arith.constant 0 : index
    %158 = vector.load %arg9[%c1_202, %c0_203, %c0_204] : memref<8x32x128xbf16, #tpu.memory_space<vmem>>, vector<4x32x128xbf16>
    %159 = vector.shape_cast %158 : vector<4x32x128xbf16> to vector<128x128xbf16>
    %c1_205 = arith.constant 1 : index
    %c2_206 = arith.constant 2 : index
    %c0_207 = arith.constant 0 : index
    %c0_208 = arith.constant 0 : index
    %160 = vector.load %arg6[%c1_205, %c2_206, %c0_207, %c0_208] : memref<3x3x128x128xbf16, #tpu.memory_space<vmem>>, vector<1x1x128x128xbf16>
    %161 = vector.shape_cast %160 : vector<1x1x128x128xbf16> to vector<128x128xbf16>
    %cst_209 = arith.constant dense<0.000000e+00> : vector<128x128xf32>
    %162 = tpu.matmul %159, %161, %cst_209 {dimension_numbers = #tpu.dot_dimension_numbers<[1], [0], [0], [1], [0, 0, 1, 1], [], []>} : vector<128x128xbf16>, vector<128x128xbf16>, vector<128x128xf32> -> vector<128x128xf32>
    %163 = arith.addf %157, %162 : vector<128x128xf32>
    %c2_210 = arith.constant 2 : index
    %c0_211 = arith.constant 0 : index
    %c0_212 = arith.constant 0 : index
    %164 = vector.load %arg9[%c2_210, %c0_211, %c0_212] : memref<8x32x128xbf16, #tpu.memory_space<vmem>>, vector<4x32x128xbf16>
    %165 = vector.shape_cast %164 : vector<4x32x128xbf16> to vector<128x128xbf16>
    %c2_213 = arith.constant 2 : index
    %c2_214 = arith.constant 2 : index
    %c0_215 = arith.constant 0 : index
    %c0_216 = arith.constant 0 : index
    %166 = vector.load %arg6[%c2_213, %c2_214, %c0_215, %c0_216] : memref<3x3x128x128xbf16, #tpu.memory_space<vmem>>, vector<1x1x128x128xbf16>
    %167 = vector.shape_cast %166 : vector<1x1x128x128xbf16> to vector<128x128xbf16>
    %cst_217 = arith.constant dense<0.000000e+00> : vector<128x128xf32>
    %168 = tpu.matmul %165, %167, %cst_217 {dimension_numbers = #tpu.dot_dimension_numbers<[1], [0], [0], [1], [0, 0, 1, 1], [], []>} : vector<128x128xbf16>, vector<128x128xbf16>, vector<128x128xf32> -> vector<128x128xf32>
    %169 = arith.addf %163, %168 : vector<128x128xf32>
    %c0_218 = arith.constant 0 : index
    %c0_219 = arith.constant 0 : index
    %170 = vector.load %arg7[%c0_218, %c0_219] : memref<1x128xf32, #tpu.memory_space<vmem>>, vector<1x128xf32>
    %171 = vector.broadcast %170 : vector<1x128xf32> to vector<128x128xf32>
    %172 = arith.addf %169, %171 : vector<128x128xf32>
    %cst_220 = arith.constant 0.000000e+00 : f32
    %173 = vector.broadcast %cst_220 : f32 to vector<128x128xf32>
    %174 = arith.maximumf %172, %173 : vector<128x128xf32>
    %175 = vector.shape_cast %174 : vector<128x128xf32> to vector<4x32x128xf32>
    %176 = arith.truncf %175 : vector<4x32x128xf32> to vector<4x32x128xbf16>
    %c0_221 = arith.constant 0 : index
    %c0_222 = arith.constant 0 : index
    %c0_223 = arith.constant 0 : index
    %c0_224 = arith.constant 0 : index
    %177 = vector.load %arg8[%c0_221, %c0_222, %c0_223, %c0_224] : memref<1x4x32x128xbf16, #tpu.memory_space<vmem>>, vector<1x4x32x128xbf16>
    %178 = vector.shape_cast %177 : vector<1x4x32x128xbf16> to vector<4x32x128xbf16>
    %179 = vector.shape_cast %176 : vector<4x32x128xbf16> to vector<1x4x32x128xbf16>
    tpu.vector_store %arg8[%c0_221, %c0_222, %c0_223, %c0_224], %179 {strides = array<i32>} : memref<1x4x32x128xbf16, #tpu.memory_space<vmem>>, vector<1x4x32x128xbf16>,
    return
  }
  func.func @transform_0(%arg0: i32, %arg1: i32) -> (i32, i32, i32, i32) {
    %c0_i32 = arith.constant 0 : i32
    %c0_i32_0 = arith.constant 0 : i32
    %c0_i32_1 = arith.constant 0 : i32
    return %arg0, %arg1, %c0_i32, %c0_i32_0 : i32, i32, i32, i32
  }
  func.func @transform_1(%arg0: i32, %arg1: i32) -> (i32, i32, i32, i32) {
    %c1_i32 = arith.constant 1 : i32
    %0 = arith.addi %arg1, %c1_i32 : i32
    %c1_i32_0 = arith.constant 1 : i32
    %1 = arith.muli %0, %c1_i32_0 : i32
    %c0_i32 = arith.constant 0 : i32
    %c0_i32_1 = arith.constant 0 : i32
    %c0_i32_2 = arith.constant 0 : i32
    return %arg0, %1, %c0_i32, %c0_i32_1 : i32, i32, i32, i32
  }
  func.func @transform_2(%arg0: i32, %arg1: i32) -> (i32, i32, i32, i32) {
    %c0_i32 = arith.constant 0 : i32
    %c0_i32_0 = arith.constant 0 : i32
    %c0_i32_1 = arith.constant 0 : i32
    %c0_i32_2 = arith.constant 0 : i32
    %c0_i32_3 = arith.constant 0 : i32
    return %c0_i32, %c0_i32_0, %c0_i32_1, %c0_i32_2 : i32, i32, i32, i32
  }
  func.func @transform_3(%arg0: i32, %arg1: i32) -> (i32, i32) {
    %c0_i32 = arith.constant 0 : i32
    %c0_i32_0 = arith.constant 0 : i32
    %c0_i32_1 = arith.constant 0 : i32
    return %c0_i32, %c0_i32_0 : i32, i32
  }
  func.func @transform_4(%arg0: i32, %arg1: i32) -> (i32, i32, i32, i32) {
    %c0_i32 = arith.constant 0 : i32
    %c0_i32_0 = arith.constant 0 : i32
    %c0_i32_1 = arith.constant 0 : i32
    %c0_i32_2 = arith.constant 0 : i32
    %c0_i32_3 = arith.constant 0 : i32
    return %c0_i32, %c0_i32_0, %c0_i32_1, %c0_i32_2 : i32, i32, i32, i32
  }
  func.func @transform_5(%arg0: i32, %arg1: i32) -> (i32, i32) {
    %c0_i32 = arith.constant 0 : i32
    %c0_i32_0 = arith.constant 0 : i32
    %c0_i32_1 = arith.constant 0 : i32
    return %c0_i32, %c0_i32_0 : i32, i32
  }
  func.func @transform_6(%arg0: i32, %arg1: i32) -> (i32, i32, i32, i32) {
    %c0_i32 = arith.constant 0 : i32
    %c0_i32_0 = arith.constant 0 : i32
    %c0_i32_1 = arith.constant 0 : i32
    return %arg0, %arg1, %c0_i32, %c0_i32_0 : i32, i32, i32, i32
  }
}

</mosaic_0001>

<llo_original>
// kernel: _double_conv_impl.1
$region0: #{_double_conv_impl.1}
  #allocation0 [shape = 'u32[]', space=smem, size = 0x4, offset = 0x4, fixed_abs, tag = 'smem constant byte address 0x4 - core index']
  #allocation1 [shape = 'u32[144,128]{1,0:T(1,128)}', space=vmem, size = 0x12000, scoped, tag = 'internal scratch']
  #allocation2 [shape = 'bf16[8,32,128]{2,1,0:T(16,128)(2,1)}', space=vmem, size = 0x10000, scoped, tag = 'scratch operand']
  #allocation3 [shape = 'bf16[6,32,128]{2,1,0:T(16,128)(2,1)}', space=vmem, size = 0xc000, scoped, tag = 'scratch operand']
  %s0 = inlined_call_operand.vmem [shape: bf16[2,20,32,128], index: 0, kind: input, shape index: {}, may-alias: {0,1}]
  %s1 = inlined_call_operand.vmem [shape: bf16[2,20,32,128], index: 1, kind: input, shape index: {}, may-alias: {0,1}]
  %s2 = inlined_call_operand.vmem [shape: bf16[3,3,128,128], index: 2, kind: input, shape index: {}]
  %s3 = inlined_call_operand.vmem [shape: f32[1,128], index: 3, kind: input, shape index: {}]
  %s4 = inlined_call_operand.vmem [shape: bf16[3,3,128,128], index: 4, kind: input, shape index: {}]
  %s5 = inlined_call_operand.vmem [shape: f32[1,128], index: 5, kind: input, shape index: {}]
  %s6 = inlined_call_operand.vmem [shape: bf16[2,16,32,128], index: 6, kind: output, shape index: {}]
  %s7 = sld [smem:[#allocation0]]
  $region57: #{_double_conv_impl.1} parent=0
    _
  %s9 = ssub.s32 1, %s7
  %s10 = scalar_select 0, %s9, %s7
  loop: start=0, step=1, limit=10
  $region2: #{_double_conv_impl.1} parent=0 // loop_pre_header
    _
  $region3: #{_double_conv_impl.1} parent=0 // loop_header
    %s12 = sphi 0, %s16
    %p13 = scmp.ge.s32.totalorder %s12, 10
    %s19 = sphi 0, %s31
    %s20 = sphi 0, %s27
    %s21 = sphi 0, %s19
    %s22 = sphi 0, %s20
    %s23 = sphi 0, %s21
    %s24 = sphi 0, %s22
    %s36 = sphi 0, %s38
    %s39 = sphi 0, %s36
    %s40 = sphi 0, %s39
    %s56 = sphi 0, %s40
    %s66 = sphi 0, %s68
    %s69 = sphi 0, %s66
    %s70 = sphi 0, %s69
    %s86 = sphi 0, %s70
    %s90 = sphi 0, %s90
    %s92 = sphi 0, %s90
    %s93 = sphi 0, %s92
    %s107 = sphi 0, %s93
    %s111 = sphi 0, %s111
    %s113 = sphi 0, %s111
    %s114 = sphi 0, %s113
    %s128 = sphi 0, %s114
    %s132 = sphi 0, %s132
    %s134 = sphi 0, %s132
    %s135 = sphi 0, %s134
    %s149 = sphi 0, %s135
    %s153 = sphi 0, %s153
    %s155 = sphi 0, %s153
    %s156 = sphi 0, %s155
    %s170 = sphi 0, %s156
    %s178 = sphi 0, %s180
    %s181 = sphi 0, %s178
    %s182 = sphi 0, %s181
    %s198 = sphi 0, %s182
  $region4: #{_double_conv_impl.1} parent=0 // loop_header_branch
    %15 = sbr.rel (%p13) target = $region8
  $region5: #{_double_conv_impl.1} parent=0 // loop_body
    %s17 = ssub.s32 %s12, 1
    %s18 = ssub.s32 %s12, 2
    %s25 = sadd.s32 1, %s20
    %p26 = scmp.ge.s32.totalorder %s25, 4
    %s27 = scalar_select %p26, 0, %s25
    %s28 = sadd.s32 1, %s19
    %s29 = scalar_select %p26, %s28, %s19
    %p30 = scmp.ge.s32.totalorder %s29, 2
    %s31 = scalar_select %p30, 0, %s29
    %s32 = ssub.s32 %s19, %s31
    %s33 = ssub.s32 %s20, %s27
    %s34 = sor.u32 %s32, %s33
    %p35 = scmp.eq.s32.totalorder %s34, 0
    %s37 = sadd.s32 %s36, 1
    %s38 = scalar_select %p35, %s36, %s37
    %p41 = pneg %p35
    %p42 = scmp.eq.s32.totalorder %s12, 7
    %p43 = por %p41, %p42
    %p44 = scmp.ne.s32.totalorder %s36, %s39
    %p45 = scmp.eq.s32.totalorder %s12, 0
    %p46 = por %p44, %p45
    %p47 = scmp.ne.s32.totalorder %s36, %s39
    %p48 = scmp.eq.s32.totalorder %s17, 7
    %p49 = por %p47, %p48
    %p50 = scmp.ne.s32.totalorder %s39, %s40
    %p51 = scmp.eq.s32.totalorder %s17, 0
    %p52 = por %p50, %p51
    %p53 = scmp.ne.s32.totalorder %s39, %s40
    %p54 = scmp.eq.s32.totalorder %s18, 7
    %p55 = por %p53, %p54
    %p57 = scmp.ne.s32.totalorder %s40, %s56
    %p58 = scmp.eq.s32.totalorder %s18, 0
    %p59 = por %p57, %p58
    %s60 = sadd.s32 %s20, 1
    %s61 = sadd.s32 %s27, 1
    %s62 = ssub.s32 %s19, %s31
    %s63 = ssub.s32 %s60, %s61
    %s64 = sor.u32 %s62, %s63
    %p65 = scmp.eq.s32.totalorder %s64, 0
    %s67 = sadd.s32 %s66, 1
    %s68 = scalar_select %p65, %s66, %s67
    %p71 = pneg %p65
    %p72 = scmp.eq.s32.totalorder %s12, 7
    %p73 = por %p71, %p72
    %p74 = scmp.ne.s32.totalorder %s66, %s69
    %p75 = scmp.eq.s32.totalorder %s12, 0
    %p76 = por %p74, %p75
    %p77 = scmp.ne.s32.totalorder %s66, %s69
    %p78 = scmp.eq.s32.totalorder %s17, 7
    %p79 = por %p77, %p78
    %p80 = scmp.ne.s32.totalorder %s69, %s70
    %p81 = scmp.eq.s32.totalorder %s17, 0
    %p82 = por %p80, %p81
    %p83 = scmp.ne.s32.totalorder %s69, %s70
    %p84 = scmp.eq.s32.totalorder %s18, 7
    %p85 = por %p83, %p84
    %p87 = scmp.ne.s32.totalorder %s70, %s86
    %p88 = scmp.eq.s32.totalorder %s18, 0
    %p89 = por %p87, %p88
    %s91 = sadd.s32 %s90, 1
    %p94 = scmp.eq.s32.totalorder %s12, 7
    %p95 = scmp.ne.s32.totalorder %s90, %s92
    %p96 = scmp.eq.s32.totalorder %s12, 0
    %p97 = por %p95, %p96
    %p98 = scmp.ne.s32.totalorder %s90, %s92
    %p99 = scmp.eq.s32.totalorder %s17, 7
    %p100 = por %p98, %p99
    %p101 = scmp.ne.s32.totalorder %s92, %s93
    %p102 = scmp.eq.s32.totalorder %s17, 0
    %p103 = por %p101, %p102
    %p104 = scmp.ne.s32.totalorder %s92, %s93
    %p105 = scmp.eq.s32.totalorder %s18, 7
    %p106 = por %p104, %p105
    %p108 = scmp.ne.s32.totalorder %s93, %s107
    %p109 = scmp.eq.s32.totalorder %s18, 0
    %p110 = por %p108, %p109
    %s112 = sadd.s32 %s111, 1
    %p115 = scmp.eq.s32.totalorder %s12, 7
    %p116 = scmp.ne.s32.totalorder %s111, %s113
    %p117 = scmp.eq.s32.totalorder %s12, 0
    %p118 = por %p116, %p117
    %p119 = scmp.ne.s32.totalorder %s111, %s113
    %p120 = scmp.eq.s32.totalorder %s17, 7
    %p121 = por %p119, %p120
    %p122 = scmp.ne.s32.totalorder %s113, %s114
    %p123 = scmp.eq.s32.totalorder %s17, 0
    %p124 = por %p122, %p123
    %p125 = scmp.ne.s32.totalorder %s113, %s114
    %p126 = scmp.eq.s32.totalorder %s18, 7
    %p127 = por %p125, %p126
    %p129 = scmp.ne.s32.totalorder %s114, %s128
    %p130 = scmp.eq.s32.totalorder %s18, 0
    %p131 = por %p129, %p130
    %s133 = sadd.s32 %s132, 1
    %p136 = scmp.eq.s32.totalorder %s12, 7
    %p137 = scmp.ne.s32.totalorder %s132, %s134
    %p138 = scmp.eq.s32.totalorder %s12, 0
    %p139 = por %p137, %p138
    %p140 = scmp.ne.s32.totalorder %s132, %s134
    %p141 = scmp.eq.s32.totalorder %s17, 7
    %p142 = por %p140, %p141
    %p143 = scmp.ne.s32.totalorder %s134, %s135
    %p144 = scmp.eq.s32.totalorder %s17, 0
    %p145 = por %p143, %p144
    %p146 = scmp.ne.s32.totalorder %s134, %s135
    %p147 = scmp.eq.s32.totalorder %s18, 7
    %p148 = por %p146, %p147
    %p150 = scmp.ne.s32.totalorder %s135, %s149
    %p151 = scmp.eq.s32.totalorder %s18, 0
    %p152 = por %p150, %p151
    %s154 = sadd.s32 %s153, 1
    %p157 = scmp.eq.s32.totalorder %s12, 7
    %p158 = scmp.ne.s32.totalorder %s153, %s155
    %p159 = scmp.eq.s32.totalorder %s12, 0
    %p160 = por %p158, %p159
    %p161 = scmp.ne.s32.totalorder %s153, %s155
    %p162 = scmp.eq.s32.totalorder %s17, 7
    %p163 = por %p161, %p162
    %p164 = scmp.ne.s32.totalorder %s155, %s156
    %p165 = scmp.eq.s32.totalorder %s17, 0
    %p166 = por %p164, %p165
    %p167 = scmp.ne.s32.totalorder %s155, %s156
    %p168 = scmp.eq.s32.totalorder %s18, 7
    %p169 = por %p167, %p168
    %p171 = scmp.ne.s32.totalorder %s156, %s170
    %p172 = scmp.eq.s32.totalorder %s18, 0
    %p173 = por %p171, %p172
    %s174 = ssub.s32 %s19, %s31
    %s175 = ssub.s32 %s20, %s27
    %s176 = sor.u32 %s174, %s175
    %p177 = scmp.eq.s32.totalorder %s176, 0
    %s179 = sadd.s32 %s178, 1
    %s180 = scalar_select %p177, %s178, %s179
    %p183 = pneg %p177
    %p184 = scmp.eq.s32.totalorder %s12, 7
    %p185 = por %p183, %p184
    %p186 = scmp.ne.s32.totalorder %s178, %s181
    %p187 = scmp.eq.s32.totalorder %s12, 0
    %p188 = por %p186, %p187
    %p189 = scmp.ne.s32.totalorder %s178, %s181
    %p190 = scmp.eq.s32.totalorder %s17, 7
    %p191 = por %p189, %p190
    %p192 = scmp.ne.s32.totalorder %s181, %s182
    %p193 = scmp.eq.s32.totalorder %s17, 0
    %p194 = por %p192, %p193
    %p195 = scmp.ne.s32.totalorder %s181, %s182
    %p196 = scmp.eq.s32.totalorder %s18, 7
    %p197 = por %p195, %p196
    %p199 = scmp.ne.s32.totalorder %s182, %s198
    %p200 = scmp.eq.s32.totalorder %s18, 0
    %p201 = por %p199, %p200
    %p202 = scmp.le.s32.totalorder 1, %s12
    %p203 = scmp.lt.s32.totalorder %s12, 9
    %p204 = pnand %p202, %p203
    %p205 = pneg %p204
    // Predicated region
    $region9: #{_double_conv_impl.1} parent=5 // pred_check
      _
    $region10: #{_double_conv_impl.1} parent=5 // pred_check_branch
      %207 = sbr.rel (%p204) target = $region12
    $region11: #{_double_conv_impl.1} parent=5 // pred_region
      %s208 = ssub.s32 %s12, 1
      // Predicated region
      $region13: #{_double_conv_impl.1} parent=11 // pred_check
        %p209 = pneg %p103
      $region14: #{_double_conv_impl.1} parent=11 // pred_check_branch
        %211 = sbr.rel (%p209) target = $region16
      $region15: #{_double_conv_impl.1} parent=11 // pred_region
        _
      $region16: #{_double_conv_impl.1} parent=11 // pred_fallthru
        _
      // Predicated region
      $region17: #{_double_conv_impl.1} parent=11 // pred_check
        %p212 = pneg %p124
      $region18: #{_double_conv_impl.1} parent=11 // pred_check_branch
        %214 = sbr.rel (%p212) target = $region20
      $region19: #{_double_conv_impl.1} parent=11 // pred_region
        _
      $region20: #{_double_conv_impl.1} parent=11 // pred_fallthru
        _
      // Predicated region
      $region21: #{_double_conv_impl.1} parent=11 // pred_check
        %p215 = pneg %p145
      $region22: #{_double_conv_impl.1} parent=11 // pred_check_branch
        %217 = sbr.rel (%p215) target = $region24
      $region23: #{_double_conv_impl.1} parent=11 // pred_region
        _
      $region24: #{_double_conv_impl.1} parent=11 // pred_fallthru
        _
      // Predicated region
      $region25: #{_double_conv_impl.1} parent=11 // pred_check
        %p218 = pneg %p166
      $region26: #{_double_conv_impl.1} parent=11 // pred_check_branch
        %220 = sbr.rel (%p218) target = $region28
      $region27: #{_double_conv_impl.1} parent=11 // pred_region
        _
      $region28: #{_double_conv_impl.1} parent=11 // pred_fallthru
        _
    $region12: #{_double_conv_impl.1} parent=5 // pred_fallthru
      _
    %p221 = scmp.lt.s32.totalorder %s12, 8
    // Predicated region
    $region29: #{_double_conv_impl.1} parent=5 // pred_check
      %p222 = pneg %p221
    $region30: #{_double_conv_impl.1} parent=5 // pred_check_branch
      %224 = sbr.rel (%p222) target = $region32
    $region31: #{_double_conv_impl.1} parent=5 // pred_region
      // Predicated region
      $region33: #{_double_conv_impl.1} parent=31 // pred_check
        %p225 = pneg %p46
      $region34: #{_double_conv_impl.1} parent=31 // pred_check_branch
        %227 = sbr.rel (%p225) target = $region36
      $region35: #{_double_conv_impl.1} parent=31 // pred_region
        %s228 = smul.u32 4, %s20
        %p229 = scmp.lt.s32.totalorder %s19, 1
        %s230 = scalar_select %p229, %s19, 1
        %p231 = scmp.lt.s32.totalorder %s228, 19
        %s232 = scalar_select %p231, %s228, 19
        %s233 = smul.addr %s232, 4
        %s234 = smul.addr %s230, 80
        %s235 = sadd.s32 %s233, %s234
        %s236 = smul.addr %s235, 4
        %s237 = scalar_lea.vmem %s0, %s236
        %s238 = smul.u32 4, %s20
      $region36: #{_double_conv_impl.1} parent=31 // pred_fallthru
        _
      // Predicated region
      $region37: #{_double_conv_impl.1} parent=31 // pred_check
        %p239 = pneg %p76
      $region38: #{_double_conv_impl.1} parent=31 // pred_check_branch
        %241 = sbr.rel (%p239) target = $region40
      $region39: #{_double_conv_impl.1} parent=31 // pred_region
        %s242 = sadd.s32 %s20, 1
        %s243 = smul.u32 4, %s242
        %p244 = scmp.lt.s32.totalorder %s19, 1
        %s245 = scalar_select %p244, %s19, 1
        %p246 = scmp.lt.s32.totalorder %s243, 19
        %s247 = scalar_select %p246, %s243, 19
        %s248 = smul.addr %s247, 4
        %s249 = smul.addr %s245, 80
        %s250 = sadd.s32 %s248, %s249
        %s251 = smul.addr %s250, 4
        %s252 = scalar_lea.vmem %s1, %s251
        %s253 = sadd.s32 %s20, 1
        %s254 = smul.u32 4, %s253
      $region40: #{_double_conv_impl.1} parent=31 // pred_fallthru
        _
    $region32: #{_double_conv_impl.1} parent=5 // pred_fallthru
      _
    %p255 = scmp.le.s32.totalorder 1, %s12
    %p256 = scmp.lt.s32.totalorder %s12, 9
    %p257 = pnand %p255, %p256
    %p258 = pneg %p257
    // Predicated region
    $region41: #{_double_conv_impl.1} parent=5 // pred_check
      _
    $region42: #{_double_conv_impl.1} parent=5 // pred_check_branch
      %260 = sbr.rel (%p257) target = $region44
    $region43: #{_double_conv_impl.1} parent=5 // pred_region
      %s261 = ssub.s32 %s12, 1
      %s262 = smul.u32 4, %s22
      %p263 = scmp.lt.s32.totalorder %s21, 1
      %s264 = scalar_select %p263, %s21, 1
      %p265 = scmp.lt.s32.totalorder %s262, 19
      %s266 = scalar_select %p265, %s262, 19
      %s267 = smul.addr %s266, 4
      %s268 = smul.addr %s264, 80
      %s269 = sadd.s32 %s267, %s268
      %s270 = smul.addr %s269, 4
      %s271 = scalar_lea.vmem %s0, %s270
      %p272 = pneg %p52
      %p273 = pneg %p49
      %s274 = sadd.s32 %s22, 1
      %s275 = smul.u32 4, %s274
      %p276 = scmp.lt.s32.totalorder %s21, 1
      %s277 = scalar_select %p276, %s21, 1
      %p278 = scmp.lt.s32.totalorder %s275, 19
      %s279 = scalar_select %p278, %s275, 19
      %s280 = smul.addr %s279, 4
      %s281 = smul.addr %s277, 80
      %s282 = sadd.s32 %s280, %s281
      %s283 = smul.addr %s282, 4
      %s284 = scalar_lea.vmem %s1, %s283
      %p285 = pneg %p82
      %p286 = pneg %p79
      %p287 = pneg %p103
      %p288 = pneg %p100
      %p289 = pneg %p124
      %p290 = pneg %p121
      %p291 = pneg %p145
      %p292 = pneg %p142
      %p293 = pneg %p166
      %p294 = pneg %p163
      %p295 = pneg %p194
      %p296 = pneg %p191
      %s297 = smul.u32 4, %s22
      %p298 = scmp.lt.s32.totalorder %s21, 1
      %s299 = scalar_select %p298, %s21, 1
      %p300 = scmp.lt.s32.totalorder %s297, 15
      %s301 = scalar_select %p300, %s297, 15
      %s302 = smul.addr %s301, 4
      %s303 = smul.addr %s299, 64
      %s304 = sadd.s32 %s302, %s303
      %s305 = smul.addr %s304, 4
      %s306 = scalar_lea.vmem %s6, %s305
      %s307 = smul.u32 4, %s22
      %p308 = scmp.lt.s32.totalorder %s21, 1
      %s309 = scalar_select %p308, %s21, 1
      %p310 = scmp.lt.s32.totalorder %s307, 19
      %s311 = scalar_select %p310, %s307, 19
      %s312 = smul.addr %s311, 4
      %s313 = smul.addr %s309, 80
      %s314 = sadd.s32 %s312, %s313
      %s315 = smul.addr %s314, 4
      %s316 = scalar_lea.vmem %s0, %s315
      %s317 = smul.u32 4, %s22
      %s318 = sadd.s32 %s22, 1
      %s319 = smul.u32 4, %s318
      %p320 = scmp.lt.s32.totalorder %s21, 1
      %s321 = scalar_select %p320, %s21, 1
      %p322 = scmp.lt.s32.totalorder %s319, 19
      %s323 = scalar_select %p322, %s319, 19
      %s324 = smul.addr %s323, 4
      %s325 = smul.addr %s321, 80
      %s326 = sadd.s32 %s324, %s325
      %s327 = smul.addr %s326, 4
      %s328 = scalar_lea.vmem %s1, %s327
      %s329 = sadd.s32 %s22, 1
      %s330 = smul.u32 4, %s329
      %s331 = smul.u32 4, %s22
      %p332 = scmp.lt.s32.totalorder %s21, 1
      %s333 = scalar_select %p332, %s21, 1
      %p334 = scmp.lt.s32.totalorder %s331, 15
      %s335 = scalar_select %p334, %s331, 15
      %s336 = smul.addr %s335, 4
      %s337 = smul.addr %s333, 64
      %s338 = sadd.s32 %s336, %s337
      %s339 = smul.addr %s338, 4
      %s340 = scalar_lea.vmem %s6, %s339
      %s341 = smul.u32 4, %s22
      %v343 = vld [vmem:[%s316] sm:$0xf]
      %v344 = vld [vmem:[%s316 + $0x4] sm:$0xf]
      %v345 = vld [vmem:[%s316 + $0x8] sm:$0xf]
      %v346 = vld [vmem:[%s316 + $0xc] sm:$0xf]
      %v347 = vld [vmem:[%s316 + $0x10] sm:$0xf]
      %v348 = vld [vmem:[%s316 + $0x14] sm:$0xf]
      %v349 = vld [vmem:[%s316 + $0x18] sm:$0xf]
      %v350 = vld [vmem:[%s316 + $0x1c] sm:$0xf]
      %v351 = vld [vmem:[%s316 + $0x20] sm:$0xf]
      %v352 = vld [vmem:[%s316 + $0x24] sm:$0xf]
      %v353 = vld [vmem:[%s316 + $0x28] sm:$0xf]
      %v354 = vld [vmem:[%s316 + $0x2c] sm:$0xf]
      %v355 = vld [vmem:[%s316 + $0x30] sm:$0xf]
      %v356 = vld [vmem:[%s316 + $0x34] sm:$0xf]
      %v357 = vld [vmem:[%s316 + $0x38] sm:$0xf]
      %v358 = vld [vmem:[%s316 + $0x3c] sm:$0xf]
      %v375 = vunpack.c.l.b16 %v343
      %v376 = vunpack.c.l.b16 %v344
      %v377 = vunpack.c.l.b16 %v345
      %v378 = vunpack.c.l.b16 %v346
      %v379 = vunpack.c.l.b16 %v347
      %v380 = vunpack.c.l.b16 %v348
      %v381 = vunpack.c.l.b16 %v349
      %v382 = vunpack.c.l.b16 %v350
      %v383 = vunpack.c.l.b16 %v351
      %v384 = vunpack.c.l.b16 %v352
      %v385 = vunpack.c.l.b16 %v353
      %v386 = vunpack.c.l.b16 %v354
      %v387 = vunpack.c.l.b16 %v355
      %v388 = vunpack.c.l.b16 %v356
      %v389 = vunpack.c.l.b16 %v357
      %v390 = vunpack.c.l.b16 %v358
      %v391 = vpack.c.b16 %v376, %v375
      %v392 = vpack.c.b16 %v378, %v377
      %v393 = vpack.c.b16 %v380, %v379
      %v394 = vpack.c.b16 %v382, %v381
      %v395 = vpack.c.b16 %v384, %v383
      %v396 = vpack.c.b16 %v386, %v385
      %v397 = vpack.c.b16 %v388, %v387
      %v398 = vpack.c.b16 %v390, %v389
      %407 = vst [vmem:[#allocation2] sm:$0xff] %v391
      %408 = vst [vmem:[#allocation2 + $0x8] sm:$0xff] %v392
      %409 = vst [vmem:[#allocation2 + $0x10] sm:$0xff] %v393
      %410 = vst [vmem:[#allocation2 + $0x18] sm:$0xff] %v394
      %411 = vst [vmem:[#allocation2 + $0x20] sm:$0xff] %v395
      %412 = vst [vmem:[#allocation2 + $0x28] sm:$0xff] %v396
      %413 = vst [vmem:[#allocation2 + $0x30] sm:$0xff] %v397
      %414 = vst [vmem:[#allocation2 + $0x38] sm:$0xff] %v398
      %v415 = vld [vmem:[%s328] sm:$0xf]
      %v416 = vld [vmem:[%s328 + $0x4] sm:$0xf]
      %v417 = vld [vmem:[%s328 + $0x8] sm:$0xf]
      %v418 = vld [vmem:[%s328 + $0xc] sm:$0xf]
      %v419 = vld [vmem:[%s328 + $0x10] sm:$0xf]
      %v420 = vld [vmem:[%s328 + $0x14] sm:$0xf]
      %v421 = vld [vmem:[%s328 + $0x18] sm:$0xf]
      %v422 = vld [vmem:[%s328 + $0x1c] sm:$0xf]
      %v423 = vld [vmem:[%s328 + $0x20] sm:$0xf]
      %v424 = vld [vmem:[%s328 + $0x24] sm:$0xf]
      %v425 = vld [vmem:[%s328 + $0x28] sm:$0xf]
      %v426 = vld [vmem:[%s328 + $0x2c] sm:$0xf]
      %v427 = vld [vmem:[%s328 + $0x30] sm:$0xf]
      %v428 = vld [vmem:[%s328 + $0x34] sm:$0xf]
      %v429 = vld [vmem:[%s328 + $0x38] sm:$0xf]
      %v430 = vld [vmem:[%s328 + $0x3c] sm:$0xf]
      %v447 = vunpack.c.l.b16 %v415
      %v448 = vunpack.c.l.b16 %v416
      %v449 = vunpack.c.l.b16 %v417
      %v450 = vunpack.c.l.b16 %v418
      %v451 = vunpack.c.l.b16 %v419
      %v452 = vunpack.c.l.b16 %v420
      %v453 = vunpack.c.l.b16 %v421
      %v454 = vunpack.c.l.b16 %v422
      %v455 = vunpack.c.l.b16 %v423
      %v456 = vunpack.c.l.b16 %v424
      %v457 = vunpack.c.l.b16 %v425
      %v458 = vunpack.c.l.b16 %v426
      %v459 = vunpack.c.l.b16 %v427
      %v460 = vunpack.c.l.b16 %v428
      %v461 = vunpack.c.l.b16 %v429
      %v462 = vunpack.c.l.b16 %v430
      %v463 = vpack.c.b16 %v448, %v447
      %v464 = vpack.c.b16 %v450, %v449
      %v465 = vpack.c.b16 %v452, %v451
      %v466 = vpack.c.b16 %v454, %v453
      %v467 = vpack.c.b16 %v456, %v455
      %v468 = vpack.c.b16 %v458, %v457
      %v469 = vpack.c.b16 %v460, %v459
      %v470 = vpack.c.b16 %v462, %v461
      %s479 = scalar_lea.vmem [#allocation2], 64
      %480 = vst [vmem:[%s479] sm:$0xff] %v463
      %481 = vst [vmem:[%s479 + $0x8] sm:$0xff] %v464
      %482 = vst [vmem:[%s479 + $0x10] sm:$0xff] %v465
      %483 = vst [vmem:[%s479 + $0x18] sm:$0xff] %v466
      %484 = vst [vmem:[%s479 + $0x20] sm:$0xff] %v467
      %485 = vst [vmem:[%s479 + $0x28] sm:$0xff] %v468
      %486 = vst [vmem:[%s479 + $0x30] sm:$0xff] %v469
      %487 = vst [vmem:[%s479 + $0x38] sm:$0xff] %v470
      %v488 = vld [vmem:[#allocation2] sm:$0xff]
      %v489 = vld [vmem:[#allocation2 + $0x8] sm:$0xff]
      %v490 = vld [vmem:[#allocation2 + $0x10] sm:$0xff]
      %v491 = vld [vmem:[#allocation2 + $0x18] sm:$0xff]
      %v492 = vld [vmem:[#allocation2 + $0x20] sm:$0xff]
      %v493 = vld [vmem:[#allocation2 + $0x28] sm:$0xff]
      %v494 = vld [vmem:[#allocation2 + $0x30] sm:$0xff]
      %v495 = vld [vmem:[#allocation2 + $0x38] sm:$0xff]
      %v496 = vld [vmem:[#allocation2 + $0x40] sm:$0xff]
      %v497 = vld [vmem:[#allocation2 + $0x48] sm:$0xff]
      %v498 = vld [vmem:[#allocation2 + $0x50] sm:$0xff]
      %v499 = vld [vmem:[#allocation2 + $0x58] sm:$0xff]
      %s500 = scalar_lea.vmem %s2, 64
      %v501 = vld [vmem:[%s500] sm:$0xf]
      %v502 = vld [vmem:[%s500 + $0x4] sm:$0xf]
      %v503 = vld [vmem:[%s500 + $0x8] sm:$0xf]
      %v504 = vld [vmem:[%s500 + $0xc] sm:$0xf]
      %v505 = vld [vmem:[%s500 + $0x10] sm:$0xf]
      %v506 = vld [vmem:[%s500 + $0x14] sm:$0xf]
      %v507 = vld [vmem:[%s500 + $0x18] sm:$0xf]
      %v508 = vld [vmem:[%s500 + $0x1c] sm:$0xf]
      %v509 = vld [vmem:[%s500 + $0x20] sm:$0xf]
      %v510 = vld [vmem:[%s500 + $0x24] sm:$0xf]
      %v511 = vld [vmem:[%s500 + $0x28] sm:$0xf]
      %v512 = vld [vmem:[%s500 + $0x2c] sm:$0xf]
      %v513 = vld [vmem:[%s500 + $0x30] sm:$0xf]
      %v514 = vld [vmem:[%s500 + $0x34] sm:$0xf]
      %v515 = vld [vmem:[%s500 + $0x38] sm:$0xf]
      %v516 = vld [vmem:[%s500 + $0x3c] sm:$0xf]
      %s517 = scalar_lea.vmem [#allocation2], 16
      %v518 = vld [vmem:[%s517] sm:$0xff]
      %v519 = vld [vmem:[%s517 + $0x8] sm:$0xff]
      %v520 = vld [vmem:[%s517 + $0x10] sm:$0xff]
      %v521 = vld [vmem:[%s517 + $0x18] sm:$0xff]
      %v522 = vld [vmem:[%s517 + $0x20] sm:$0xff]
      %v523 = vld [vmem:[%s517 + $0x28] sm:$0xff]
      %v524 = vld [vmem:[%s517 + $0x30] sm:$0xff]
      %v525 = vld [vmem:[%s517 + $0x38] sm:$0xff]
      %v526 = vld [vmem:[%s517 + $0x40] sm:$0xff]
      %v527 = vld [vmem:[%s517 + $0x48] sm:$0xff]
      %v528 = vld [vmem:[%s517 + $0x50] sm:$0xff]
      %v529 = vld [vmem:[%s517 + $0x58] sm:$0xff]
      %s530 = scalar_lea.vmem %s2, 256
      %v531 = vld [vmem:[%s530] sm:$0xf]
      %v532 = vld [vmem:[%s530 + $0x4] sm:$0xf]
      %v533 = vld [vmem:[%s530 + $0x8] sm:$0xf]
      %v534 = vld [vmem:[%s530 + $0xc] sm:$0xf]
      %v535 = vld [vmem:[%s530 + $0x10] sm:$0xf]
      %v536 = vld [vmem:[%s530 + $0x14] sm:$0xf]
      %v537 = vld [vmem:[%s530 + $0x18] sm:$0xf]
      %v538 = vld [vmem:[%s530 + $0x1c] sm:$0xf]
      %v539 = vld [vmem:[%s530 + $0x20] sm:$0xf]
      %v540 = vld [vmem:[%s530 + $0x24] sm:$0xf]
      %v541 = vld [vmem:[%s530 + $0x28] sm:$0xf]
      %v542 = vld [vmem:[%s530 + $0x2c] sm:$0xf]
      %v543 = vld [vmem:[%s530 + $0x30] sm:$0xf]
      %v544 = vld [vmem:[%s530 + $0x34] sm:$0xf]
      %v545 = vld [vmem:[%s530 + $0x38] sm:$0xf]
      %v546 = vld [vmem:[%s530 + $0x3c] sm:$0xf]
      %v563 = vunpack.c.l.b16 %v531
      %v564 = vunpack.c.l.b16 %v532
      %v565 = vunpack.c.l.b16 %v533
      %v566 = vunpack.c.l.b16 %v534
      %v567 = vunpack.c.l.b16 %v535
      %v568 = vunpack.c.l.b16 %v536
      %v569 = vunpack.c.l.b16 %v537
      %v570 = vunpack.c.l.b16 %v538
      %v571 = vunpack.c.l.b16 %v539
      %v572 = vunpack.c.l.b16 %v540
      %v573 = vunpack.c.l.b16 %v541
      %v574 = vunpack.c.l.b16 %v542
      %v575 = vunpack.c.l.b16 %v543
      %v576 = vunpack.c.l.b16 %v544
      %v577 = vunpack.c.l.b16 %v545
      %v578 = vunpack.c.l.b16 %v546
      %v579 = vpack.c.b16 %v564, %v563
      %v580 = vpack.c.b16 %v566, %v565
      %v581 = vpack.c.b16 %v568, %v567
      %v582 = vpack.c.b16 %v570, %v569
      %v583 = vpack.c.b16 %v572, %v571
      %v584 = vpack.c.b16 %v574, %v573
      %v585 = vpack.c.b16 %v576, %v575
      %v586 = vpack.c.b16 %v578, %v577
      %595 = vmatprep.subr.bf16.mxu0 0
      %596 = vmatpush1.bf16.msra.mxu0 %v579
      %597 = vmatprep.subr.bf16.mxu0 0
      %598 = vmatpush1.bf16.msra.mxu0 %v580
      %599 = vmatprep.subr.bf16.mxu0 0
      %600 = vmatpush1.bf16.msra.mxu0 %v581
      %601 = vmatprep.subr.bf16.mxu0 0
      %602 = vmatpush1.bf16.msra.mxu0 %v582
      %603 = vmatprep.subr.bf16.mxu0 0
      %604 = vmatpush1.bf16.msra.mxu0 %v583
      %605 = vmatprep.subr.bf16.mxu0 0
      %606 = vmatpush1.bf16.msra.mxu0 %v584
      %607 = vmatprep.subr.bf16.mxu0 0
      %608 = vmatpush1.bf16.msra.mxu0 %v585
      %609 = vmatprep.subr.bf16.mxu0 0
      %610 = vmatpush1.bf16.msra.mxu0 %v586
      %611 = vmatprep.subr.bf16.mxu0 0
      %612 = vmatpush1.bf16.msra.mxu0 0
      %613 = vmatprep.subr.bf16.mxu0 0
      %614 = vmatpush1.bf16.msra.mxu0 0
      %615 = vmatprep.subr.bf16.mxu0 0
      %616 = vmatpush1.bf16.msra.mxu0 0
      %617 = vmatprep.subr.bf16.mxu0 0
      %618 = vmatpush1.bf16.msra.mxu0 0
      %619 = vmatprep.subr.bf16.mxu0 0
      %620 = vmatpush1.bf16.msra.mxu0 0
      %621 = vmatprep.subr.bf16.mxu0 0
      %622 = vmatpush1.bf16.msra.mxu0 0
      %623 = vmatprep.subr.bf16.mxu0 0
      %624 = vmatpush1.bf16.msra.mxu0 0
      %625 = vmatprep.subr.bf16.mxu0 0
      %626 = vmatpush1.bf16.msra.mxu0 0
      %627 = vmatprep.mubr.bf16.mxu0 0
      %628 = vmatmul.mubr.bf16.gmra.mrb[0].mxu0 %v518
      %v629 = vpop.f32.mrb[0].mxu0
      %v630 = vadd.f32 0.0, %v629
      %v631 = vpop.f32.mrb[0].mxu0
      %v632 = vpop.f32.mrb[0].mxu0
      %v633 = vadd.f32 0.0, %v632
      %v634 = vpop.f32.mrb[0].mxu0
      %635 = vmatprep.mubr.bf16.mxu0 0
      %636 = vmatmul.mubr.bf16.gmra.mrb[0].mxu0 %v519
      %v637 = vpop.f32.mrb[0].mxu0
      %v638 = vadd.f32 0.0, %v637
      %v639 = vpop.f32.mrb[0].mxu0
      %v640 = vpop.f32.mrb[0].mxu0
      %v641 = vadd.f32 0.0, %v640
      %v642 = vpop.f32.mrb[0].mxu0
      %643 = vmatprep.mubr.bf16.mxu0 0
      %644 = vmatmul.mubr.bf16.gmra.mrb[0].mxu0 %v520
      %v645 = vpop.f32.mrb[0].mxu0
      %v646 = vadd.f32 0.0, %v645
      %v647 = vpop.f32.mrb[0].mxu0
      %v648 = vpop.f32.mrb[0].mxu0
      %v649 = vadd.f32 0.0, %v648
      %v650 = vpop.f32.mrb[0].mxu0
      %651 = vmatprep.mubr.bf16.mxu0 0
      %652 = vmatmul.mubr.bf16.gmra.mrb[0].mxu0 %v521
      %v653 = vpop.f32.mrb[0].mxu0
      %v654 = vadd.f32 0.0, %v653
      %v655 = vpop.f32.mrb[0].mxu0
      %v656 = vpop.f32.mrb[0].mxu0
      %v657 = vadd.f32 0.0, %v656
      %v658 = vpop.f32.mrb[0].mxu0
      %659 = vmatprep.mubr.bf16.mxu0 0
      %660 = vmatmul.mubr.bf16.gmra.mrb[0].mxu0 %v522
      %v661 = vpop.f32.mrb[0].mxu0
      %v662 = vadd.f32 0.0, %v661
      %v663 = vpop.f32.mrb[0].mxu0
      %v664 = vpop.f32.mrb[0].mxu0
      %v665 = vadd.f32 0.0, %v664
      %v666 = vpop.f32.mrb[0].mxu0
      %667 = vmatprep.mubr.bf16.mxu0 0
      %668 = vmatmul.mubr.bf16.gmra.mrb[0].mxu0 %v523
      %v669 = vpop.f32.mrb[0].mxu0
      %v670 = vadd.f32 0.0, %v669
      %v671 = vpop.f32.mrb[0].mxu0
      %v672 = vpop.f32.mrb[0].mxu0
      %v673 = vadd.f32 0.0, %v672
      %v674 = vpop.f32.mrb[0].mxu0
      %675 = vmatprep.mubr.bf16.mxu0 0
      %676 = vmatmul.mubr.bf16.gmra.mrb[0].mxu0 %v524
      %v677 = vpop.f32.mrb[0].mxu0
      %v678 = vadd.f32 0.0, %v677
      %v679 = vpop.f32.mrb[0].mxu0
      %v680 = vpop.f32.mrb[0].mxu0
      %v681 = vadd.f32 0.0, %v680
      %v682 = vpop.f32.mrb[0].mxu0
      %683 = vmatprep.mubr.bf16.mxu0 0
      %684 = vmatmul.mubr.bf16.gmra.mrb[0].mxu0 %v525
      %v685 = vpop.f32.mrb[0].mxu0
      %v686 = vadd.f32 0.0, %v685
      %v687 = vpop.f32.mrb[0].mxu0
      %v688 = vpop.f32.mrb[0].mxu0
      %v689 = vadd.f32 0.0, %v688
      %v690 = vpop.f32.mrb[0].mxu0
      %691 = vmatprep.mubr.bf16.mxu0 0
      %692 = vmatmul.mubr.bf16.gmra.mrb[0].mxu0 %v526
      %v693 = vpop.f32.mrb[0].mxu0
      %v694 = vadd.f32 0.0, %v693
      %v695 = vpop.f32.mrb[0].mxu0
      %v696 = vpop.f32.mrb[0].mxu0
      %v697 = vadd.f32 0.0, %v696
      %v698 = vpop.f32.mrb[0].mxu0
      %699 = vmatprep.mubr.bf16.mxu0 0
      %700 = vmatmul.mubr.bf16.gmra.mrb[0].mxu0 %v527
      %v701 = vpop.f32.mrb[0].mxu0
      %v702 = vadd.f32 0.0, %v701
      %v703 = vpop.f32.mrb[0].mxu0
      %v704 = vpop.f32.mrb[0].mxu0
      %v705 = vadd.f32 0.0, %v704
      %v706 = vpop.f32.mrb[0].mxu0
      %707 = vmatprep.mubr.bf16.mxu0 0
      %708 = vmatmul.mubr.bf16.gmra.mrb[0].mxu0 %v528
      %v709 = vpop.f32.mrb[0].mxu0
      %v710 = vadd.f32 0.0, %v709
      %v711 = vpop.f32.mrb[0].mxu0
      %v712 = vpop.f32.mrb[0].mxu0
      %v713 = vadd.f32 0.0, %v712
      %v714 = vpop.f32.mrb[0].mxu0
      %715 = vmatprep.mubr.bf16.mxu0 0
      %716 = vmatmul.mubr.bf16.gmra.mrb[0].mxu0 %v529
      %v717 = vpop.f32.mrb[0].mxu0
      %v718 = vadd.f32 0.0, %v717
      %v719 = vpop.f32.mrb[0].mxu0
      %v720 = vpop.f32.mrb[0].mxu0
      %v721 = vadd.f32 0.0, %v720
      %v722 = vpop.f32.mrb[0].mxu0
      %723 = vdwg.mxu0
      %v740 = vunpack.c.l.b16 %v501
      %v741 = vunpack.c.l.b16 %v502
      %v742 = vunpack.c.l.b16 %v503
      %v743 = vunpack.c.l.b16 %v504
      %v744 = vunpack.c.l.b16 %v505
      %v745 = vunpack.c.l.b16 %v506
      %v746 = vunpack.c.l.b16 %v507
      %v747 = vunpack.c.l.b16 %v508
      %v748 = vunpack.c.l.b16 %v509
      %v749 = vunpack.c.l.b16 %v510
      %v750 = vunpack.c.l.b16 %v511
      %v751 = vunpack.c.l.b16 %v512
      %v752 = vunpack.c.l.b16 %v513
      %v753 = vunpack.c.l.b16 %v514
      %v754 = vunpack.c.l.b16 %v515
      %v755 = vunpack.c.l.b16 %v516
      %v756 = vpack.c.b16 %v741, %v740
      %v757 = vpack.c.b16 %v743, %v742
      %v758 = vpack.c.b16 %v745, %v744
      %v759 = vpack.c.b16 %v747, %v746
      %v760 = vpack.c.b16 %v749, %v748
      %v761 = vpack.c.b16 %v751, %v750
      %v762 = vpack.c.b16 %v753, %v752
      %v763 = vpack.c.b16 %v755, %v754
      %772 = vmatprep.subr.bf16.mxu0 0
      %773 = vmatpush1.bf16.msra.mxu0 %v756
      %774 = vmatprep.subr.bf16.mxu0 0
      %775 = vmatpush1.bf16.msra.mxu0 %v757
      %776 = vmatprep.subr.bf16.mxu0 0
      %777 = vmatpush1.bf16.msra.mxu0 %v758
      %778 = vmatprep.subr.bf16.mxu0 0
      %779 = vmatpush1.bf16.msra.mxu0 %v759
      %780 = vmatprep.subr.bf16.mxu0 0
      %781 = vmatpush1.bf16.msra.mxu0 %v760
      %782 = vmatprep.subr.bf16.mxu0 0
      %783 = vmatpush1.bf16.msra.mxu0 %v761
      %784 = vmatprep.subr.bf16.mxu0 0
      %785 = vmatpush1.bf16.msra.mxu0 %v762
      %786 = vmatprep.subr.bf16.mxu0 0
      %787 = vmatpush1.bf16.msra.mxu0 %v763
      %788 = vmatprep.subr.bf16.mxu0 0
      %789 = vmatpush1.bf16.msra.mxu0 0
      %790 = vmatprep.subr.bf16.mxu0 0
      %791 = vmatpush1.bf16.msra.mxu0 0
      %792 = vmatprep.subr.bf16.mxu0 0
      %793 = vmatpush1.bf16.msra.mxu0 0
      %794 = vmatprep.subr.bf16.mxu0 0
      %795 = vmatpush1.bf16.msra.mxu0 0
      %796 = vmatprep.subr.bf16.mxu0 0
      %797 = vmatpush1.bf16.msra.mxu0 0
      %798 = vmatprep.subr.bf16.mxu0 0
      %799 = vmatpush1.bf16.msra.mxu0 0
      %800 = vmatprep.subr.bf16.mxu0 0
      %801 = vmatpush1.bf16.msra.mxu0 0
      %802 = vmatprep.subr.bf16.mxu0 0
      %803 = vmatpush1.bf16.msra.mxu0 0
      %804 = vmatprep.mubr.bf16.mxu0 0
      %805 = vmatmul.mubr.bf16.gmra.mrb[0].mxu0 %v488
      %v806 = vpop.f32.mrb[0].mxu0
      %v807 = vadd.f32 %v630, %v806
      %v808 = vpop.f32.mrb[0].mxu0
      %v809 = vpop.f32.mrb[0].mxu0
      %v810 = vadd.f32 %v633, %v809
      %v811 = vpop.f32.mrb[0].mxu0
      %812 = vmatprep.mubr.bf16.mxu0 0
      %813 = vmatmul.mubr.bf16.gmra.mrb[0].mxu0 %v489
      %v814 = vpop.f32.mrb[0].mxu0
      %v815 = vadd.f32 %v638, %v814
      %v816 = vpop.f32.mrb[0].mxu0
      %v817 = vpop.f32.mrb[0].mxu0
      %v818 = vadd.f32 %v641, %v817
      %v819 = vpop.f32.mrb[0].mxu0
      %820 = vmatprep.mubr.bf16.mxu0 0
      %821 = vmatmul.mubr.bf16.gmra.mrb[0].mxu0 %v490
      %v822 = vpop.f32.mrb[0].mxu0
      %v823 = vadd.f32 %v646, %v822
      %v824 = vpop.f32.mrb[0].mxu0
      %v825 = vpop.f32.mrb[0].mxu0
      %v826 = vadd.f32 %v649, %v825
      %v827 = vpop.f32.mrb[0].mxu0
      %828 = vmatprep.mubr.bf16.mxu0 0
      %829 = vmatmul.mubr.bf16.gmra.mrb[0].mxu0 %v491
      %v830 = vpop.f32.mrb[0].mxu0
      %v831 = vadd.f32 %v654, %v830
      %v832 = vpop.f32.mrb[0].mxu0
      %v833 = vpop.f32.mrb[0].mxu0
      %v834 = vadd.f32 %v657, %v833
      %v835 = vpop.f32.mrb[0].mxu0
      %836 = vmatprep.mubr.bf16.mxu0 0
      %837 = vmatmul.mubr.bf16.gmra.mrb[0].mxu0 %v492
      %v838 = vpop.f32.mrb[0].mxu0
      %v839 = vadd.f32 %v662, %v838
      %v840 = vpop.f32.mrb[0].mxu0
      %v841 = vpop.f32.mrb[0].mxu0
      %v842 = vadd.f32 %v665, %v841
      %v843 = vpop.f32.mrb[0].mxu0
      %844 = vmatprep.mubr.bf16.mxu0 0
      %845 = vmatmul.mubr.bf16.gmra.mrb[0].mxu0 %v493
      %v846 = vpop.f32.mrb[0].mxu0
      %v847 = vadd.f32 %v670, %v846
      %v848 = vpop.f32.mrb[0].mxu0
      %v849 = vpop.f32.mrb[0].mxu0
      %v850 = vadd.f32 %v673, %v849
      %v851 = vpop.f32.mrb[0].mxu0
      %852 = vmatprep.mubr.bf16.mxu0 0
      %853 = vmatmul.mubr.bf16.gmra.mrb[0].mxu0 %v494
      %v854 = vpop.f32.mrb[0].mxu0
      %v855 = vadd.f32 %v678, %v854
      %v856 = vpop.f32.mrb[0].mxu0
      %v857 = vpop.f32.mrb[0].mxu0
      %v858 = vadd.f32 %v681, %v857
      %v859 = vpop.f32.mrb[0].mxu0
      %860 = vmatprep.mubr.bf16.mxu0 0
      %861 = vmatmul.mubr.bf16.gmra.mrb[0].mxu0 %v495
      %v862 = vpop.f32.mrb[0].mxu0
      %v863 = vadd.f32 %v686, %v862
      %v864 = vpop.f32.mrb[0].mxu0
      %v865 = vpop.f32.mrb[0].mxu0
      %v866 = vadd.f32 %v689, %v865
      %v867 = vpop.f32.mrb[0].mxu0
      %868 = vmatprep.mubr.bf16.mxu0 0
      %869 = vmatmul.mubr.bf16.gmra.mrb[0].mxu0 %v496
      %v870 = vpop.f32.mrb[0].mxu0
      %v871 = vadd.f32 %v694, %v870
      %v872 = vpop.f32.mrb[0].mxu0
      %v873 = vpop.f32.mrb[0].mxu0
      %v874 = vadd.f32 %v697, %v873
      %v875 = vpop.f32.mrb[0].mxu0
      %876 = vmatprep.mubr.bf16.mxu0 0
      %877 = vmatmul.mubr.bf16.gmra.mrb[0].mxu0 %v497
      %v878 = vpop.f32.mrb[0].mxu0
      %v879 = vadd.f32 %v702, %v878
      %v880 = vpop.f32.mrb[0].mxu0
      %v881 = vpop.f32.mrb[0].mxu0
      %v882 = vadd.f32 %v705, %v881
      %v883 = vpop.f32.mrb[0].mxu0
      %884 = vmatprep.mubr.bf16.mxu0 0
      %885 = vmatmul.mubr.bf16.gmra.mrb[0].mxu0 %v498
      %v886 = vpop.f32.mrb[0].mxu0
      %v887 = vadd.f32 %v710, %v886
      %v888 = vpop.f32.mrb[0].mxu0
      %v889 = vpop.f32.mrb[0].mxu0
      %v890 = vadd.f32 %v713, %v889
      %v891 = vpop.f32.mrb[0].mxu0
      %892 = vmatprep.mubr.bf16.mxu0 0
      %893 = vmatmul.mubr.bf16.gmra.mrb[0].mxu0 %v499
      %v894 = vpop.f32.mrb[0].mxu0
      %v895 = vadd.f32 %v718, %v894
      %v896 = vpop.f32.mrb[0].mxu0
      %v897 = vpop.f32.mrb[0].mxu0
      %v898 = vadd.f32 %v721, %v897
      %v899 = vpop.f32.mrb[0].mxu0
      %900 = vdwg.mxu0
      %s901 = scalar_lea.vmem [#allocation2], 32
      %v902 = vld [vmem:[%s901] sm:$0xff]
      %v903 = vld [vmem:[%s901 + $0x8] sm:$0xff]
      %v904 = vld [vmem:[%s901 + $0x10] sm:$0xff]
      %v905 = vld [vmem:[%s901 + $0x18] sm:$0xff]
      %v906 = vld [vmem:[%s901 + $0x20] sm:$0xff]
      %v907 = vld [vmem:[%s901 + $0x28] sm:$0xff]
      %v908 = vld [vmem:[%s901 + $0x30] sm:$0xff]
      %v909 = vld [vmem:[%s901 + $0x38] sm:$0xff]
      %v910 = vld [vmem:[%s901 + $0x40] sm:$0xff]
      %v911 = vld [vmem:[%s901 + $0x48] sm:$0xff]
      %v912 = vld [vmem:[%s901 + $0x50] sm:$0xff]
      %v913 = vld [vmem:[%s901 + $0x58] sm:$0xff]
      %s914 = scalar_lea.vmem %s2, 448
      %v915 = vld [vmem:[%s914] sm:$0xf]
      %v916 = vld [vmem:[%s914 + $0x4] sm:$0xf]
      %v917 = vld [vmem:[%s914 + $0x8] sm:$0xf]
      %v918 = vld [vmem:[%s914 + $0xc] sm:$0xf]
      %v919 = vld [vmem:[%s914 + $0x10] sm:$0xf]
      %v920 = vld [vmem:[%s914 + $0x14] sm:$0xf]
      %v921 = vld [vmem:[%s914 + $0x18] sm:$0xf]
      %v922 = vld [vmem:[%s914 + $0x1c] sm:$0xf]
      %v923 = vld [vmem:[%s914 + $0x20] sm:$0xf]
      %v924 = vld [vmem:[%s914 + $0x24] sm:$0xf]
      %v925 = vld [vmem:[%s914 + $0x28] sm:$0xf]
      %v926 = vld [vmem:[%s914 + $0x2c] sm:$0xf]
      %v927 = vld [vmem:[%s914 + $0x30] sm:$0xf]
      %v928 = vld [vmem:[%s914 + $0x34] sm:$0xf]
      %v929 = vld [vmem:[%s914 + $0x38] sm:$0xf]
      %v930 = vld [vmem:[%s914 + $0x3c] sm:$0xf]
      %v947 = vunpack.c.l.b16 %v915
      %v948 = vunpack.c.l.b16 %v916
      %v949 = vunpack.c.l.b16 %v917
      %v950 = vunpack.c.l.b16 %v918
      %v951 = vunpack.c.l.b16 %v919
      %v952 = vunpack.c.l.b16 %v920
      %v953 = vunpack.c.l.b16 %v921
      %v954 = vunpack.c.l.b16 %v922
      %v955 = vunpack.c.l.b16 %v923
      %v956 = vunpack.c.l.b16 %v924
      %v957 = vunpack.c.l.b16 %v925
      %v958 = vunpack.c.l.b16 %v926
      %v959 = vunpack.c.l.b16 %v927
      %v960 = vunpack.c.l.b16 %v928
      %v961 = vunpack.c.l.b16 %v929
      %v962 = vunpack.c.l.b16 %v930
      %v963 = vpack.c.b16 %v948, %v947
      %v964 = vpack.c.b16 %v950, %v949
      %v965 = vpack.c.b16 %v952, %v951
      %v966 = vpack.c.b16 %v954, %v953
      %v967 = vpack.c.b16 %v956, %v955
      %v968 = vpack.c.b16 %v958, %v957
      %v969 = vpack.c.b16 %v960, %v959
      %v970 = vpack.c.b16 %v962, %v961
      %979 = vmatprep.subr.bf16.mxu0 0
      %980 = vmatpush1.bf16.msra.mxu0 %v963
      %981 = vmatprep.subr.bf16.mxu0 0
      %982 = vmatpush1.bf16.msra.mxu0 %v964
      %983 = vmatprep.subr.bf16.mxu0 0
      %984 = vmatpush1.bf16.msra.mxu0 %v965
      %985 = vmatprep.subr.bf16.mxu0 0
      %986 = vmatpush1.bf16.msra.mxu0 %v966
      %987 = vmatprep.subr.bf16.mxu0 0
      %988 = vmatpush1.bf16.msra.mxu0 %v967
      %989 = vmatprep.subr.bf16.mxu0 0
      %990 = vmatpush1.bf16.msra.mxu0 %v968
      %991 = vmatprep.subr.bf16.mxu0 0
      %992 = vmatpush1.bf16.msra.mxu0 %v969
      %993 = vmatprep.subr.bf16.mxu0 0
      %994 = vmatpush1.bf16.msra.mxu0 %v970
      %995 = vmatprep.subr.bf16.mxu0 0
      %996 = vmatpush1.bf16.msra.mxu0 0
      %997 = vmatprep.subr.bf16.mxu0 0
      %998 = vmatpush1.bf16.msra.mxu0 0
      %999 = vmatprep.subr.bf16.mxu0 0
      %1000 = vmatpush1.bf16.msra.mxu0 0
      %1001 = vmatprep.subr.bf16.mxu0 0
      %1002 = vmatpush1.bf16.msra.mxu0 0
      %1003 = vmatprep.subr.bf16.mxu0 0
      %1004 = vmatpush1.bf16.msra.mxu0 0
      %1005 = vmatprep.subr.bf16.mxu0 0
      %1006 = vmatpush1.bf16.msra.mxu0 0
      %1007 = vmatprep.subr.bf16.mxu0 0
      %1008 = vmatpush1.bf16.msra.mxu0 0
      %1009 = vmatprep.subr.bf16.mxu0 0
      %1010 = vmatpush1.bf16.msra.mxu0 0
      %1011 = vmatprep.mubr.bf16.mxu0 0
      %1012 = vmatmul.mubr.bf16.gmra.mrb[0].mxu0 %v902
      %v1013 = vpop.f32.mrb[0].mxu0
      %v1014 = vadd.f32 0.0, %v1013
      %v1015 = vpop.f32.mrb[0].mxu0
      %v1016 = vpop.f32.mrb[0].mxu0
      %v1017 = vadd.f32 0.0, %v1016
      %v1018 = vpop.f32.mrb[0].mxu0
      %1019 = vmatprep.mubr.bf16.mxu0 0
      %1020 = vmatmul.mubr.bf16.gmra.mrb[0].mxu0 %v903
      %v1021 = vpop.f32.mrb[0].mxu0
      %v1022 = vadd.f32 0.0, %v1021
      %v1023 = vpop.f32.mrb[0].mxu0
      %v1024 = vpop.f32.mrb[0].mxu0
      %v1025 = vadd.f32 0.0, %v1024
      %v1026 = vpop.f32.mrb[0].mxu0
      %1027 = vmatprep.mubr.bf16.mxu0 0
      %1028 = vmatmul.mubr.bf16.gmra.mrb[0].mxu0 %v904
      %v1029 = vpop.f32.mrb[0].mxu0
      %v1030 = vadd.f32 0.0, %v1029
      %v1031 = vpop.f32.mrb[0].mxu0
      %v1032 = vpop.f32.mrb[0].mxu0
      %v1033 = vadd.f32 0.0, %v1032
      %v1034 = vpop.f32.mrb[0].mxu0
      %1035 = vmatprep.mubr.bf16.mxu0 0
      %1036 = vmatmul.mubr.bf16.gmra.mrb[0].mxu0 %v905
      %v1037 = vpop.f32.mrb[0].mxu0
      %v1038 = vadd.f32 0.0, %v1037
      %v1039 = vpop.f32.mrb[0].mxu0
      %v1040 = vpop.f32.mrb[0].mxu0
      %v1041 = vadd.f32 0.0, %v1040
      %v1042 = vpop.f32.mrb[0].mxu0
      %1043 = vmatprep.mubr.bf16.mxu0 0
      %1044 = vmatmul.mubr.bf16.gmra.mrb[0].mxu0 %v906
      %v1045 = vpop.f32.mrb[0].mxu0
      %v1046 = vadd.f32 0.0, %v1045
      %v1047 = vpop.f32.mrb[0].mxu0
      %v1048 = vpop.f32.mrb[0].mxu0
      %v1049 = vadd.f32 0.0, %v1048
      %v1050 = vpop.f32.mrb[0].mxu0
      %1051 = vmatprep.mubr.bf16.mxu0 0
      %1052 = vmatmul.mubr.bf16.gmra.mrb[0].mxu0 %v907
      %v1053 = vpop.f32.mrb[0].mxu0
      %v1054 = vadd.f32 0.0, %v1053
      %v1055 = vpop.f32.mrb[0].mxu0
      %v1056 = vpop.f32.mrb[0].mxu0
      %v1057 = vadd.f32 0.0, %v1056
      %v1058 = vpop.f32.mrb[0].mxu0
      %1059 = vmatprep.mubr.bf16.mxu0 0
      %1060 = vmatmul.mubr.bf16.gmra.mrb[0].mxu0 %v908
      %v1061 = vpop.f32.mrb[0].mxu0
      %v1062 = vadd.f32 0.0, %v1061
      %v1063 = vpop.f32.mrb[0].mxu0
      %v1064 = vpop.f32.mrb[0].mxu0
      %v1065 = vadd.f32 0.0, %v1064
      %v1066 = vpop.f32.mrb[0].mxu0
      %1067 = vmatprep.mubr.bf16.mxu0 0
      %1068 = vmatmul.mubr.bf16.gmra.mrb[0].mxu0 %v909
      %v1069 = vpop.f32.mrb[0].mxu0
      %v1070 = vadd.f32 0.0, %v1069
      %v1071 = vpop.f32.mrb[0].mxu0
      %v1072 = vpop.f32.mrb[0].mxu0
      %v1073 = vadd.f32 0.0, %v1072
      %v1074 = vpop.f32.mrb[0].mxu0
      %1075 = vmatprep.mubr.bf16.mxu0 0
      %1076 = vmatmul.mubr.bf16.gmra.mrb[0].mxu0 %v910
      %v1077 = vpop.f32.mrb[0].mxu0
      %v1078 = vadd.f32 0.0, %v1077
      %v1079 = vpop.f32.mrb[0].mxu0
      %v1080 = vpop.f32.mrb[0].mxu0
      %v1081 = vadd.f32 0.0, %v1080
      %v1082 = vpop.f32.mrb[0].mxu0
      %1083 = vmatprep.mubr.bf16.mxu0 0
      %1084 = vmatmul.mubr.bf16.gmra.mrb[0].mxu0 %v911
      %v1085 = vpop.f32.mrb[0].mxu0
      %v1086 = vadd.f32 0.0, %v1085
      %v1087 = vpop.f32.mrb[0].mxu0
      %v1088 = vpop.f32.mrb[0].mxu0
      %v1089 = vadd.f32 0.0, %v1088
      %v1090 = vpop.f32.mrb[0].mxu0
      %1091 = vmatprep.mubr.bf16.mxu0 0
      %1092 = vmatmul.mubr.bf16.gmra.mrb[0].mxu0 %v912
      %v1093 = vpop.f32.mrb[0].mxu0
      %v1094 = vadd.f32 0.0, %v1093
      %v1095 = vpop.f32.mrb[0].mxu0
      %v1096 = vpop.f32.mrb[0].mxu0
      %v1097 = vadd.f32 0.0, %v1096
      %v1098 = vpop.f32.mrb[0].mxu0
      %1099 = vmatprep.mubr.bf16.mxu0 0
      %1100 = vmatmul.mubr.bf16.gmra.mrb[0].mxu0 %v913
      %v1101 = vpop.f32.mrb[0].mxu0
      %v1102 = vadd.f32 0.0, %v1101
      %v1103 = vpop.f32.mrb[0].mxu0
      %v1104 = vpop.f32.mrb[0].mxu0
      %v1105 = vadd.f32 0.0, %v1104
      %v1106 = vpop.f32.mrb[0].mxu0
      %1107 = vdwg.mxu0
      %v1108 = vadd.f32 %v807, %v1014
      %v1109 = vadd.f32 %v810, %v1017
      %v1110 = vadd.f32 %v815, %v1022
      %v1111 = vadd.f32 %v818, %v1025
      %v1112 = vadd.f32 %v823, %v1030
      %v1113 = vadd.f32 %v826, %v1033
      %v1114 = vadd.f32 %v831, %v1038
      %v1115 = vadd.f32 %v834, %v1041
      %v1116 = vadd.f32 %v839, %v1046
      %v1117 = vadd.f32 %v842, %v1049
      %v1118 = vadd.f32 %v847, %v1054
      %v1119 = vadd.f32 %v850, %v1057
      %v1120 = vadd.f32 %v855, %v1062
      %v1121 = vadd.f32 %v858, %v1065
      %v1122 = vadd.f32 %v863, %v1070
      %v1123 = vadd.f32 %v866, %v1073
      %v1124 = vadd.f32 %v871, %v1078
      %v1125 = vadd.f32 %v874, %v1081
      %v1126 = vadd.f32 %v879, %v1086
      %v1127 = vadd.f32 %v882, %v1089
      %v1128 = vadd.f32 %v887, %v1094
      %v1129 = vadd.f32 %v890, %v1097
      %v1130 = vadd.f32 %v895, %v1102
      %v1131 = vadd.f32 %v898, %v1105
      %v1132 = vld [vmem:[%s316] sm:$0xf]
      %v1133 = vld [vmem:[%s316 + $0x4] sm:$0xf]
      %v1134 = vld [vmem:[%s316 + $0x8] sm:$0xf]
      %v1135 = vld [vmem:[%s316 + $0xc] sm:$0xf]
      %v1136 = vld [vmem:[%s316 + $0x10] sm:$0xf]
      %v1137 = vld [vmem:[%s316 + $0x14] sm:$0xf]
      %v1138 = vld [vmem:[%s316 + $0x18] sm:$0xf]
      %v1139 = vld [vmem:[%s316 + $0x1c] sm:$0xf]
      %v1140 = vld [vmem:[%s316 + $0x20] sm:$0xf]
      %v1141 = vld [vmem:[%s316 + $0x24] sm:$0xf]
      %v1142 = vld [vmem:[%s316 + $0x28] sm:$0xf]
      %v1143 = vld [vmem:[%s316 + $0x2c] sm:$0xf]
      %v1144 = vld [vmem:[%s316 + $0x30] sm:$0xf]
      %v1145 = vld [vmem:[%s316 + $0x34] sm:$0xf]
      %v1146 = vld [vmem:[%s316 + $0x38] sm:$0xf]
      %v1147 = vld [vmem:[%s316 + $0x3c] sm:$0xf]
      %v1164 = vunpack.c.l.b16 %v1132
      %v1165 = vunpack.c.l.b16 %v1133
      %v1166 = vunpack.c.l.b16 %v1134
      %v1167 = vunpack.c.l.b16 %v1135
      %v1168 = vunpack.c.l.b16 %v1136
      %v1169 = vunpack.c.l.b16 %v1137
      %v1170 = vunpack.c.l.b16 %v1138
      %v1171 = vunpack.c.l.b16 %v1139
      %v1172 = vunpack.c.l.b16 %v1140
      %v1173 = vunpack.c.l.b16 %v1141
      %v1174 = vunpack.c.l.b16 %v1142
      %v1175 = vunpack.c.l.b16 %v1143
      %v1176 = vunpack.c.l.b16 %v1144
      %v1177 = vunpack.c.l.b16 %v1145
      %v1178 = vunpack.c.l.b16 %v1146
      %v1179 = vunpack.c.l.b16 %v1147
      %v1180 = vpack.c.b16 %v1165, %v1164
      %v1181 = vpack.c.b16 %v1167, %v1166
      %v1182 = vpack.c.b16 %v1169, %v1168
      %v1183 = vpack.c.b16 %v1171, %v1170
      %v1184 = vpack.c.b16 %v1173, %v1172
      %v1185 = vpack.c.b16 %v1175, %v1174
      %v1186 = vpack.c.b16 %v1177, %v1176
      %v1187 = vpack.c.b16 %v1179, %v1178
      %vm1188 = vsmask.f32 256
      %v1190 = vshrl.u32 %v1180, 16
      %v1192 = vrot.slane %v1190, 7
      %v1193 = vshll.u32 %v1180, 16
      %v1195 = vor.u32 %v1192, %v1193
      %v1197 = vshrl.u32 %v1181, 16
      %v1199 = vrot.slane %v1197, 7
      %v1200 = vshll.u32 %v1181, 16
      %v1202 = vor.u32 %v1199, %v1200
      %v1203 = vsel %vm1188, %v1192, %v1202
      %v1205 = vshrl.u32 %v1182, 16
      %v1207 = vrot.slane %v1205, 7
      %v1208 = vshll.u32 %v1182, 16
      %v1210 = vor.u32 %v1207, %v1208
      %v1212 = vshrl.u32 %v1183, 16
      %v1214 = vrot.slane %v1212, 7
      %v1215 = vshll.u32 %v1183, 16
      %v1217 = vor.u32 %v1214, %v1215
      %v1218 = vsel %vm1188, %v1207, %v1217
      %v1220 = vshrl.u32 %v1184, 16
      %v1222 = vrot.slane %v1220, 7
      %v1223 = vshll.u32 %v1184, 16
      %v1225 = vor.u32 %v1222, %v1223
      %v1227 = vshrl.u32 %v1185, 16
      %v1229 = vrot.slane %v1227, 7
      %v1230 = vshll.u32 %v1185, 16
      %v1232 = vor.u32 %v1229, %v1230
      %v1233 = vsel %vm1188, %v1222, %v1232
      %v1235 = vshrl.u32 %v1186, 16
      %v1237 = vrot.slane %v1235, 7
      %v1238 = vshll.u32 %v1186, 16
      %v1240 = vor.u32 %v1237, %v1238
      %v1242 = vshrl.u32 %v1187, 16
      %v1244 = vrot.slane %v1242, 7
      %v1245 = vshll.u32 %v1187, 16
      %v1247 = vor.u32 %v1244, %v1245
      %v1248 = vsel %vm1188, %v1237, %v1247
      %vm1257 = vcmask 1047552
      %vm1258 = vsmask.f32 7938
      %vm1259 = vmand %vm1257, %vm1258
      %v1260 = vld [vmem:[#allocation2] sm:$0xff]
      %v1261 = vsel %vm1259, %v1195, %v1260
      %1262 = vst [vmem:[#allocation2] sm:$0xff] %v1261
      %1263 = vst [vmem:[#allocation2 + $0x8] sm:$0xff] %v1203
      %v1264 = vld [vmem:[#allocation2 + $0x10] sm:$0xff]
      %v1265 = vsel %vm1259, %v1210, %v1264
      %1266 = vst [vmem:[#allocation2 + $0x10] sm:$0xff] %v1265
      %1267 = vst [vmem:[#allocation2 + $0x18] sm:$0xff] %v1218
      %v1268 = vld [vmem:[#allocation2 + $0x20] sm:$0xff]
      %v1269 = vsel %vm1259, %v1225, %v1268
      %1270 = vst [vmem:[#allocation2 + $0x20] sm:$0xff] %v1269
      %1271 = vst [vmem:[#allocation2 + $0x28] sm:$0xff] %v1233
      %v1272 = vld [vmem:[#allocation2 + $0x30] sm:$0xff]
      %v1273 = vsel %vm1259, %v1240, %v1272
      %1274 = vst [vmem:[#allocation2 + $0x30] sm:$0xff] %v1273
      %1275 = vst [vmem:[#allocation2 + $0x38] sm:$0xff] %v1248
      %v1276 = vld [vmem:[%s328] sm:$0xf]
      %v1277 = vld [vmem:[%s328 + $0x4] sm:$0xf]
      %v1278 = vld [vmem:[%s328 + $0x8] sm:$0xf]
      %v1279 = vld [vmem:[%s328 + $0xc] sm:$0xf]
      %v1280 = vld [vmem:[%s328 + $0x10] sm:$0xf]
      %v1281 = vld [vmem:[%s328 + $0x14] sm:$0xf]
      %v1282 = vld [vmem:[%s328 + $0x18] sm:$0xf]
      %v1283 = vld [vmem:[%s328 + $0x1c] sm:$0xf]
      %v1284 = vld [vmem:[%s328 + $0x20] sm:$0xf]
      %v1285 = vld [vmem:[%s328 + $0x24] sm:$0xf]
      %v1286 = vld [vmem:[%s328 + $0x28] sm:$0xf]
      %v1287 = vld [vmem:[%s328 + $0x2c] sm:$0xf]
      %v1288 = vld [vmem:[%s328 + $0x30] sm:$0xf]
      %v1289 = vld [vmem:[%s328 + $0x34] sm:$0xf]
      %v1290 = vld [vmem:[%s328 + $0x38] sm:$0xf]
      %v1291 = vld [vmem:[%s328 + $0x3c] sm:$0xf]
      %v1308 = vunpack.c.l.b16 %v1276
      %v1309 = vunpack.c.l.b16 %v1277
      %v1310 = vunpack.c.l.b16 %v1278
      %v1311 = vunpack.c.l.b16 %v1279
      %v1312 = vunpack.c.l.b16 %v1280
      %v1313 = vunpack.c.l.b16 %v1281
      %v1314 = vunpack.c.l.b16 %v1282
      %v1315 = vunpack.c.l.b16 %v1283
      %v1316 = vunpack.c.l.b16 %v1284
      %v1317 = vunpack.c.l.b16 %v1285
      %v1318 = vunpack.c.l.b16 %v1286
      %v1319 = vunpack.c.l.b16 %v1287
      %v1320 = vunpack.c.l.b16 %v1288
      %v1321 = vunpack.c.l.b16 %v1289
      %v1322 = vunpack.c.l.b16 %v1290
      %v1323 = vunpack.c.l.b16 %v1291
      %v1324 = vpack.c.b16 %v1309, %v1308
      %v1325 = vpack.c.b16 %v1311, %v1310
      %v1326 = vpack.c.b16 %v1313, %v1312
      %v1327 = vpack.c.b16 %v1315, %v1314
      %v1328 = vpack.c.b16 %v1317, %v1316
      %v1329 = vpack.c.b16 %v1319, %v1318
      %v1330 = vpack.c.b16 %v1321, %v1320
      %v1331 = vpack.c.b16 %v1323, %v1322
      %v1333 = vshrl.u32 %v1324, 16
      %v1335 = vrot.slane %v1333, 7
      %v1336 = vshll.u32 %v1324, 16
      %v1338 = vor.u32 %v1335, %v1336
      %v1340 = vshrl.u32 %v1325, 16
      %v1342 = vrot.slane %v1340, 7
      %v1343 = vshll.u32 %v1325, 16
      %v1345 = vor.u32 %v1342, %v1343
      %v1346 = vsel %vm1188, %v1335, %v1345
      %v1348 = vshrl.u32 %v1326, 16
      %v1350 = vrot.slane %v1348, 7
      %v1351 = vshll.u32 %v1326, 16
      %v1353 = vor.u32 %v1350, %v1351
      %v1355 = vshrl.u32 %v1327, 16
      %v1357 = vrot.slane %v1355, 7
      %v1358 = vshll.u32 %v1327, 16
      %v1360 = vor.u32 %v1357, %v1358
      %v1361 = vsel %vm1188, %v1350, %v1360
      %v1363 = vshrl.u32 %v1328, 16
      %v1365 = vrot.slane %v1363, 7
      %v1366 = vshll.u32 %v1328, 16
      %v1368 = vor.u32 %v1365, %v1366
      %v1370 = vshrl.u32 %v1329, 16
      %v1372 = vrot.slane %v1370, 7
      %v1373 = vshll.u32 %v1329, 16
      %v1375 = vor.u32 %v1372, %v1373
      %v1376 = vsel %vm1188, %v1365, %v1375
      %v1378 = vshrl.u32 %v1330, 16
      %v1380 = vrot.slane %v1378, 7
      %v1381 = vshll.u32 %v1330, 16
      %v1383 = vor.u32 %v1380, %v1381
      %v1385 = vshrl.u32 %v1331, 16
      %v1387 = vrot.slane %v1385, 7
      %v1388 = vshll.u32 %v1331, 16
      %v1390 = vor.u32 %v1387, %v1388
      %v1391 = vsel %vm1188, %v1380, %v1390
      %v1400 = vld [vmem:[%s479] sm:$0xff]
      %v1401 = vsel %vm1259, %v1338, %v1400
      %1402 = vst [vmem:[%s479] sm:$0xff] %v1401
      %1403 = vst [vmem:[%s479 + $0x8] sm:$0xff] %v1346
      %v1404 = vld [vmem:[%s479 + $0x10] sm:$0xff]
      %v1405 = vsel %vm1259, %v1353, %v1404
      %1406 = vst [vmem:[%s479 + $0x10] sm:$0xff] %v1405
      %1407 = vst [vmem:[%s479 + $0x18] sm:$0xff] %v1361
      %v1408 = vld [vmem:[%s479 + $0x20] sm:$0xff]
      %v1409 = vsel %vm1259, %v1368, %v1408
      %1410 = vst [vmem:[%s479 + $0x20] sm:$0xff] %v1409
      %1411 = vst [vmem:[%s479 + $0x28] sm:$0xff] %v1376
      %v1412 = vld [vmem:[%s479 + $0x30] sm:$0xff]
      %v1413 = vsel %vm1259, %v1383, %v1412
      %1414 = vst [vmem:[%s479 + $0x30] sm:$0xff] %v1413
      %1415 = vst [vmem:[%s479 + $0x38] sm:$0xff] %v1391
      %vm1416 = vcmask 1040384
      %vm1417 = vmand %vm1416, %vm1188
      %v1418 = vld [vmem:[#allocation2] sm:$0x1]
      %v1419 = vsel %vm1417, 0, %v1418
      %1420 = vst [vmem:[#allocation2] sm:$0x1] %v1419
      %v1421 = vld [vmem:[#allocation2 + $0x10] sm:$0x1]
      %v1422 = vsel %vm1417, 0, %v1421
      %1423 = vst [vmem:[#allocation2 + $0x10] sm:$0x1] %v1422
      %v1424 = vld [vmem:[#allocation2 + $0x20] sm:$0x1]
      %v1425 = vsel %vm1417, 0, %v1424
      %1426 = vst [vmem:[#allocation2 + $0x20] sm:$0x1] %v1425
      %v1427 = vld [vmem:[#allocation2 + $0x30] sm:$0x1]
      %v1428 = vsel %vm1417, 0, %v1427
      %1429 = vst [vmem:[#allocation2 + $0x30] sm:$0x1] %v1428
      %v1430 = vld [vmem:[#allocation2 + $0x40] sm:$0x1]
      %v1431 = vsel %vm1417, 0, %v1430
      %1432 = vst [vmem:[#allocation2 + $0x40] sm:$0x1] %v1431
      %v1433 = vld [vmem:[#allocation2 + $0x50] sm:$0x1]
      %v1434 = vsel %vm1417, 0, %v1433
      %1435 = vst [vmem:[#allocation2 + $0x50] sm:$0x1] %v1434
      %v1436 = vld [vmem:[#allocation2 + $0x60] sm:$0x1]
      %v1437 = vsel %vm1417, 0, %v1436
      %1438 = vst [vmem:[#allocation2 + $0x60] sm:$0x1] %v1437
      %v1439 = vld [vmem:[#allocation2 + $0x70] sm:$0x1]
      %v1440 = vsel %vm1417, 0, %v1439
      %1441 = vst [vmem:[#allocation2 + $0x70] sm:$0x1] %v1440
      %v1442 = vld [vmem:[#allocation2] sm:$0xff]
      %v1443 = vld [vmem:[#allocation2 + $0x8] sm:$0xff]
      %v1444 = vld [vmem:[#allocation2 + $0x10] sm:$0xff]
      %v1445 = vld [vmem:[#allocation2 + $0x18] sm:$0xff]
      %v1446 = vld [vmem:[#allocation2 + $0x20] sm:$0xff]
      %v1447 = vld [vmem:[#allocation2 + $0x28] sm:$0xff]
      %v1448 = vld [vmem:[#allocation2 + $0x30] sm:$0xff]
      %v1449 = vld [vmem:[#allocation2 + $0x38] sm:$0xff]
      %v1450 = vld [vmem:[#allocation2 + $0x40] sm:$0xff]
      %v1451 = vld [vmem:[#allocation2 + $0x48] sm:$0xff]
      %v1452 = vld [vmem:[#allocation2 + $0x50] sm:$0xff]
      %v1453 = vld [vmem:[#allocation2 + $0x58] sm:$0xff]
      %v1454 = vld [vmem:[%s2] sm:$0xf]
      %v1455 = vld [vmem:[%s2 + $0x4] sm:$0xf]
      %v1456 = vld [vmem:[%s2 + $0x8] sm:$0xf]
      %v1457 = vld [vmem:[%s2 + $0xc] sm:$0xf]
      %v1458 = vld [vmem:[%s2 + $0x10] sm:$0xf]
      %v1459 = vld [vmem:[%s2 + $0x14] sm:$0xf]
      %v1460 = vld [vmem:[%s2 + $0x18] sm:$0xf]
      %v1461 = vld [vmem:[%s2 + $0x1c] sm:$0xf]
      %v1462 = vld [vmem:[%s2 + $0x20] sm:$0xf]
      %v1463 = vld [vmem:[%s2 + $0x24] sm:$0xf]
      %v1464 = vld [vmem:[%s2 + $0x28] sm:$0xf]
      %v1465 = vld [vmem:[%s2 + $0x2c] sm:$0xf]
      %v1466 = vld [vmem:[%s2 + $0x30] sm:$0xf]
      %v1467 = vld [vmem:[%s2 + $0x34] sm:$0xf]
      %v1468 = vld [vmem:[%s2 + $0x38] sm:$0xf]
      %v1469 = vld [vmem:[%s2 + $0x3c] sm:$0xf]
      %v1486 = vunpack.c.l.b16 %v1454
      %v1487 = vunpack.c.l.b16 %v1455
      %v1488 = vunpack.c.l.b16 %v1456
      %v1489 = vunpack.c.l.b16 %v1457
      %v1490 = vunpack.c.l.b16 %v1458
      %v1491 = vunpack.c.l.b16 %v1459
      %v1492 = vunpack.c.l.b16 %v1460
      %v1493 = vunpack.c.l.b16 %v1461
      %v1494 = vunpack.c.l.b16 %v1462
      %v1495 = vunpack.c.l.b16 %v1463
      %v1496 = vunpack.c.l.b16 %v1464
      %v1497 = vunpack.c.l.b16 %v1465
      %v1498 = vunpack.c.l.b16 %v1466
      %v1499 = vunpack.c.l.b16 %v1467
      %v1500 = vunpack.c.l.b16 %v1468
      %v1501 = vunpack.c.l.b16 %v1469
      %v1502 = vpack.c.b16 %v1487, %v1486
      %v1503 = vpack.c.b16 %v1489, %v1488
      %v1504 = vpack.c.b16 %v1491, %v1490
      %v1505 = vpack.c.b16 %v1493, %v1492
      %v1506 = vpack.c.b16 %v1495, %v1494
      %v1507 = vpack.c.b16 %v1497, %v1496
      %v1508 = vpack.c.b16 %v1499, %v1498
      %v1509 = vpack.c.b16 %v1501, %v1500
      %1518 = vmatprep.subr.bf16.mxu0 0
      %1519 = vmatpush1.bf16.msra.mxu0 %v1502
      %1520 = vmatprep.subr.bf16.mxu0 0
      %1521 = vmatpush1.bf16.msra.mxu0 %v1503
      %1522 = vmatprep.subr.bf16.mxu0 0
      %1523 = vmatpush1.bf16.msra.mxu0 %v1504
      %1524 = vmatprep.subr.bf16.mxu0 0
      %1525 = vmatpush1.bf16.msra.mxu0 %v1505
      %1526 = vmatprep.subr.bf16.mxu0 0
      %1527 = vmatpush1.bf16.msra.mxu0 %v1506
      %1528 = vmatprep.subr.bf16.mxu0 0
      %1529 = vmatpush1.bf16.msra.mxu0 %v1507
      %1530 = vmatprep.subr.bf16.mxu0 0
      %1531 = vmatpush1.bf16.msra.mxu0 %v1508
      %1532 = vmatprep.subr.bf16.mxu0 0
      %1533 = vmatpush1.bf16.msra.mxu0 %v1509
      %1534 = vmatprep.subr.bf16.mxu0 0
      %1535 = vmatpush1.bf16.msra.mxu0 0
      %1536 = vmatprep.subr.bf16.mxu0 0
      %1537 = vmatpush1.bf16.msra.mxu0 0
      %1538 = vmatprep.subr.bf16.mxu0 0
      %1539 = vmatpush1.bf16.msra.mxu0 0
      %1540 = vmatprep.subr.bf16.mxu0 0
      %1541 = vmatpush1.bf16.msra.mxu0 0
      %1542 = vmatprep.subr.bf16.mxu0 0
      %1543 = vmatpush1.bf16.msra.mxu0 0
      %1544 = vmatprep.subr.bf16.mxu0 0
      %1545 = vmatpush1.bf16.msra.mxu0 0
      %1546 = vmatprep.subr.bf16.mxu0 0
      %1547 = vmatpush1.bf16.msra.mxu0 0
      %1548 = vmatprep.subr.bf16.mxu0 0
      %1549 = vmatpush1.bf16.msra.mxu0 0
      %1550 = vmatprep.mubr.bf16.mxu0 0
      %1551 = vmatmul.mubr.bf16.gmra.mrb[0].mxu0 %v1442
      %v1552 = vpop.f32.mrb[0].mxu0
      %v1553 = vadd.f32 0.0, %v1552
      %v1554 = vpop.f32.mrb[0].mxu0
      %v1555 = vpop.f32.mrb[0].mxu0
      %v1556 = vadd.f32 0.0, %v1555
      %v1557 = vpop.f32.mrb[0].mxu0
      %1558 = vmatprep.mubr.bf16.mxu0 0
      %1559 = vmatmul.mubr.bf16.gmra.mrb[0].mxu0 %v1443
      %v1560 = vpop.f32.mrb[0].mxu0
      %v1561 = vadd.f32 0.0, %v1560
      %v1562 = vpop.f32.mrb[0].mxu0
      %v1563 = vpop.f32.mrb[0].mxu0
      %v1564 = vadd.f32 0.0, %v1563
      %v1565 = vpop.f32.mrb[0].mxu0
      %1566 = vmatprep.mubr.bf16.mxu0 0
      %1567 = vmatmul.mubr.bf16.gmra.mrb[0].mxu0 %v1444
      %v1568 = vpop.f32.mrb[0].mxu0
      %v1569 = vadd.f32 0.0, %v1568
      %v1570 = vpop.f32.mrb[0].mxu0
      %v1571 = vpop.f32.mrb[0].mxu0
      %v1572 = vadd.f32 0.0, %v1571
      %v1573 = vpop.f32.mrb[0].mxu0
      %1574 = vmatprep.mubr.bf16.mxu0 0
      %1575 = vmatmul.mubr.bf16.gmra.mrb[0].mxu0 %v1445
      %v1576 = vpop.f32.mrb[0].mxu0
      %v1577 = vadd.f32 0.0, %v1576
      %v1578 = vpop.f32.mrb[0].mxu0
      %v1579 = vpop.f32.mrb[0].mxu0
      %v1580 = vadd.f32 0.0, %v1579
      %v1581 = vpop.f32.mrb[0].mxu0
      %1582 = vmatprep.mubr.bf16.mxu0 0
      %1583 = vmatmul.mubr.bf16.gmra.mrb[0].mxu0 %v1446
      %v1584 = vpop.f32.mrb[0].mxu0
      %v1585 = vadd.f32 0.0, %v1584
      %v1586 = vpop.f32.mrb[0].mxu0
      %v1587 = vpop.f32.mrb[0].mxu0
      %v1588 = vadd.f32 0.0, %v1587
      %v1589 = vpop.f32.mrb[0].mxu0
      %1590 = vmatprep.mubr.bf16.mxu0 0
      %1591 = vmatmul.mubr.bf16.gmra.mrb[0].mxu0 %v1447
      %v1592 = vpop.f32.mrb[0].mxu0
      %v1593 = vadd.f32 0.0, %v1592
      %v1594 = vpop.f32.mrb[0].mxu0
      %v1595 = vpop.f32.mrb[0].mxu0
      %v1596 = vadd.f32 0.0, %v1595
      %v1597 = vpop.f32.mrb[0].mxu0
      %1598 = vmatprep.mubr.bf16.mxu0 0
      %1599 = vmatmul.mubr.bf16.gmra.mrb[0].mxu0 %v1448
      %v1600 = vpop.f32.mrb[0].mxu0
      %v1601 = vadd.f32 0.0, %v1600
      %v1602 = vpop.f32.mrb[0].mxu0
      %v1603 = vpop.f32.mrb[0].mxu0
      %v1604 = vadd.f32 0.0, %v1603
      %v1605 = vpop.f32.mrb[0].mxu0
      %1606 = vmatprep.mubr.bf16.mxu0 0
      %1607 = vmatmul.mubr.bf16.gmra.mrb[0].mxu0 %v1449
      %v1608 = vpop.f32.mrb[0].mxu0
      %v1609 = vadd.f32 0.0, %v1608
      %v1610 = vpop.f32.mrb[0].mxu0
      %v1611 = vpop.f32.mrb[0].mxu0
      %v1612 = vadd.f32 0.0, %v1611
      %v1613 = vpop.f32.mrb[0].mxu0
      %1614 = vmatprep.mubr.bf16.mxu0 0
      %1615 = vmatmul.mubr.bf16.gmra.mrb[0].mxu0 %v1450
      %v1616 = vpop.f32.mrb[0].mxu0
      %v1617 = vadd.f32 0.0, %v1616
      %v1618 = vpop.f32.mrb[0].mxu0
      %v1619 = vpop.f32.mrb[0].mxu0
      %v1620 = vadd.f32 0.0, %v1619
      %v1621 = vpop.f32.mrb[0].mxu0
      %1622 = vmatprep.mubr.bf16.mxu0 0
      %1623 = vmatmul.mubr.bf16.gmra.mrb[0].mxu0 %v1451
      %v1624 = vpop.f32.mrb[0].mxu0
      %v1625 = vadd.f32 0.0, %v1624
      %v1626 = vpop.f32.mrb[0].mxu0
      %v1627 = vpop.f32.mrb[0].mxu0
      %v1628 = vadd.f32 0.0, %v1627
      %v1629 = vpop.f32.mrb[0].mxu0
      %1630 = vmatprep.mubr.bf16.mxu0 0
      %1631 = vmatmul.mubr.bf16.gmra.mrb[0].mxu0 %v1452
      %v1632 = vpop.f32.mrb[0].mxu0
      %v1633 = vadd.f32 0.0, %v1632
      %v1634 = vpop.f32.mrb[0].mxu0
      %v1635 = vpop.f32.mrb[0].mxu0
      %v1636 = vadd.f32 0.0, %v1635
      %v1637 = vpop.f32.mrb[0].mxu0
      %1638 = vmatprep.mubr.bf16.mxu0 0
      %1639 = vmatmul.mubr.bf16.gmra.mrb[0].mxu0 %v1453
      %v1640 = vpop.f32.mrb[0].mxu0
      %v1641 = vadd.f32 0.0, %v1640
      %v1642 = vpop.f32.mrb[0].mxu0
      %v1643 = vpop.f32.mrb[0].mxu0
      %v1644 = vadd.f32 0.0, %v1643
      %v1645 = vpop.f32.mrb[0].mxu0
      %1646 = vdwg.mxu0
      %v1647 = vadd.f32 %v1108, %v1553
      %v1648 = vadd.f32 %v1109, %v1556
      %v1649 = vadd.f32 %v1110, %v1561
      %v1650 = vadd.f32 %v1111, %v1564
      %v1651 = vadd.f32 %v1112, %v1569
      %v1652 = vadd.f32 %v1113, %v1572
      %v1653 = vadd.f32 %v1114, %v1577
      %v1654 = vadd.f32 %v1115, %v1580
      %v1655 = vadd.f32 %v1116, %v1585
      %v1656 = vadd.f32 %v1117, %v1588
      %v1657 = vadd.f32 %v1118, %v1593
      %v1658 = vadd.f32 %v1119, %v1596
      %v1659 = vadd.f32 %v1120, %v1601
      %v1660 = vadd.f32 %v1121, %v1604
      %v1661 = vadd.f32 %v1122, %v1609
      %v1662 = vadd.f32 %v1123, %v1612
      %v1663 = vadd.f32 %v1124, %v1617
      %v1664 = vadd.f32 %v1125, %v1620
      %v1665 = vadd.f32 %v1126, %v1625
      %v1666 = vadd.f32 %v1127, %v1628
      %v1667 = vadd.f32 %v1128, %v1633
      %v1668 = vadd.f32 %v1129, %v1636
      %v1669 = vadd.f32 %v1130, %v1641
      %v1670 = vadd.f32 %v1131, %v1644
      %v1671 = vld [vmem:[%s517] sm:$0xff]
      %v1672 = vld [vmem:[%s517 + $0x8] sm:$0xff]
      %v1673 = vld [vmem:[%s517 + $0x10] sm:$0xff]
      %v1674 = vld [vmem:[%s517 + $0x18] sm:$0xff]
      %v1675 = vld [vmem:[%s517 + $0x20] sm:$0xff]
      %v1676 = vld [vmem:[%s517 + $0x28] sm:$0xff]
      %v1677 = vld [vmem:[%s517 + $0x30] sm:$0xff]
      %v1678 = vld [vmem:[%s517 + $0x38] sm:$0xff]
      %v1679 = vld [vmem:[%s517 + $0x40] sm:$0xff]
      %v1680 = vld [vmem:[%s517 + $0x48] sm:$0xff]
      %v1681 = vld [vmem:[%s517 + $0x50] sm:$0xff]
      %v1682 = vld [vmem:[%s517 + $0x58] sm:$0xff]
      %s1683 = scalar_lea.vmem %s2, 192
      %v1684 = vld [vmem:[%s1683] sm:$0xf]
      %v1685 = vld [vmem:[%s1683 + $0x4] sm:$0xf]
      %v1686 = vld [vmem:[%s1683 + $0x8] sm:$0xf]
      %v1687 = vld [vmem:[%s1683 + $0xc] sm:$0xf]
      %v1688 = vld [vmem:[%s1683 + $0x10] sm:$0xf]
      %v1689 = vld [vmem:[%s1683 + $0x14] sm:$0xf]
      %v1690 = vld [vmem:[%s1683 + $0x18] sm:$0xf]
      %v1691 = vld [vmem:[%s1683 + $0x1c] sm:$0xf]
      %v1692 = vld [vmem:[%s1683 + $0x20] sm:$0xf]
      %v1693 = vld [vmem:[%s1683 + $0x24] sm:$0xf]
      %v1694 = vld [vmem:[%s1683 + $0x28] sm:$0xf]
      %v1695 = vld [vmem:[%s1683 + $0x2c] sm:$0xf]
      %v1696 = vld [vmem:[%s1683 + $0x30] sm:$0xf]
      %v1697 = vld [vmem:[%s1683 + $0x34] sm:$0xf]
      %v1698 = vld [vmem:[%s1683 + $0x38] sm:$0xf]
      %v1699 = vld [vmem:[%s1683 + $0x3c] sm:$0xf]
      %v1716 = vunpack.c.l.b16 %v1684
      %v1717 = vunpack.c.l.b16 %v1685
      %v1718 = vunpack.c.l.b16 %v1686
      %v1719 = vunpack.c.l.b16 %v1687
      %v1720 = vunpack.c.l.b16 %v1688
      %v1721 = vunpack.c.l.b16 %v1689
      %v1722 = vunpack.c.l.b16 %v1690
      %v1723 = vunpack.c.l.b16 %v1691
      %v1724 = vunpack.c.l.b16 %v1692
      %v1725 = vunpack.c.l.b16 %v1693
      %v1726 = vunpack.c.l.b16 %v1694
      %v1727 = vunpack.c.l.b16 %v1695
      %v1728 = vunpack.c.l.b16 %v1696
      %v1729 = vunpack.c.l.b16 %v1697
      %v1730 = vunpack.c.l.b16 %v1698
      %v1731 = vunpack.c.l.b16 %v1699
      %v1732 = vpack.c.b16 %v1717, %v1716
      %v1733 = vpack.c.b16 %v1719, %v1718
      %v1734 = vpack.c.b16 %v1721, %v1720
      %v1735 = vpack.c.b16 %v1723, %v1722
      %v1736 = vpack.c.b16 %v1725, %v1724
      %v1737 = vpack.c.b16 %v1727, %v1726
      %v1738 = vpack.c.b16 %v1729, %v1728
      %v1739 = vpack.c.b16 %v1731, %v1730
      %1748 = vmatprep.subr.bf16.mxu0 0
      %1749 = vmatpush1.bf16.msra.mxu0 %v1732
      %1750 = vmatprep.subr.bf16.mxu0 0
      %1751 = vmatpush1.bf16.msra.mxu0 %v1733
      %1752 = vmatprep.subr.bf16.mxu0 0
      %1753 = vmatpush1.bf16.msra.mxu0 %v1734
      %1754 = vmatprep.subr.bf16.mxu0 0
      %1755 = vmatpush1.bf16.msra.mxu0 %v1735
      %1756 = vmatprep.subr.bf16.mxu0 0
      %1757 = vmatpush1.bf16.msra.mxu0 %v1736
      %1758 = vmatprep.subr.bf16.mxu0 0
      %1759 = vmatpush1.bf16.msra.mxu0 %v1737
      %1760 = vmatprep.subr.bf16.mxu0 0
      %1761 = vmatpush1.bf16.msra.mxu0 %v1738
      %1762 = vmatprep.subr.bf16.mxu0 0
      %1763 = vmatpush1.bf16.msra.mxu0 %v1739
      %1764 = vmatprep.subr.bf16.mxu0 0
      %1765 = vmatpush1.bf16.msra.mxu0 0
      %1766 = vmatprep.subr.bf16.mxu0 0
      %1767 = vmatpush1.bf16.msra.mxu0 0
      %1768 = vmatprep.subr.bf16.mxu0 0
      %1769 = vmatpush1.bf16.msra.mxu0 0
      %1770 = vmatprep.subr.bf16.mxu0 0
      %1771 = vmatpush1.bf16.msra.mxu0 0
      %1772 = vmatprep.subr.bf16.mxu0 0
      %1773 = vmatpush1.bf16.msra.mxu0 0
      %1774 = vmatprep.subr.bf16.mxu0 0
      %1775 = vmatpush1.bf16.msra.mxu0 0
      %1776 = vmatprep.subr.bf16.mxu0 0
      %1777 = vmatpush1.bf16.msra.mxu0 0
      %1778 = vmatprep.subr.bf16.mxu0 0
      %1779 = vmatpush1.bf16.msra.mxu0 0
      %1780 = vmatprep.mubr.bf16.mxu0 0
      %1781 = vmatmul.mubr.bf16.gmra.mrb[0].mxu0 %v1671
      %v1782 = vpop.f32.mrb[0].mxu0
      %v1783 = vadd.f32 0.0, %v1782
      %v1784 = vpop.f32.mrb[0].mxu0
      %v1785 = vpop.f32.mrb[0].mxu0
      %v1786 = vadd.f32 0.0, %v1785
      %v1787 = vpop.f32.mrb[0].mxu0
      %1788 = vmatprep.mubr.bf16.mxu0 0
      %1789 = vmatmul.mubr.bf16.gmra.mrb[0].mxu0 %v1672
      %v1790 = vpop.f32.mrb[0].mxu0
      %v1791 = vadd.f32 0.0, %v1790
      %v1792 = vpop.f32.mrb[0].mxu0
      %v1793 = vpop.f32.mrb[0].mxu0
      %v1794 = vadd.f32 0.0, %v1793
      %v1795 = vpop.f32.mrb[0].mxu0
      %1796 = vmatprep.mubr.bf16.mxu0 0
      %1797 = vmatmul.mubr.bf16.gmra.mrb[0].mxu0 %v1673
      %v1798 = vpop.f32.mrb[0].mxu0
      %v1799 = vadd.f32 0.0, %v1798
      %v1800 = vpop.f32.mrb[0].mxu0
      %v1801 = vpop.f32.mrb[0].mxu0
      %v1802 = vadd.f32 0.0, %v1801
      %v1803 = vpop.f32.mrb[0].mxu0
      %1804 = vmatprep.mubr.bf16.mxu0 0
      %1805 = vmatmul.mubr.bf16.gmra.mrb[0].mxu0 %v1674
      %v1806 = vpop.f32.mrb[0].mxu0
      %v1807 = vadd.f32 0.0, %v1806
      %v1808 = vpop.f32.mrb[0].mxu0
      %v1809 = vpop.f32.mrb[0].mxu0
      %v1810 = vadd.f32 0.0, %v1809
      %v1811 = vpop.f32.mrb[0].mxu0
      %1812 = vmatprep.mubr.bf16.mxu0 0
      %1813 = vmatmul.mubr.bf16.gmra.mrb[0].mxu0 %v1675
      %v1814 = vpop.f32.mrb[0].mxu0
      %v1815 = vadd.f32 0.0, %v1814
      %v1816 = vpop.f32.mrb[0].mxu0
      %v1817 = vpop.f32.mrb[0].mxu0
      %v1818 = vadd.f32 0.0, %v1817
      %v1819 = vpop.f32.mrb[0].mxu0
      %1820 = vmatprep.mubr.bf16.mxu0 0
      %1821 = vmatmul.mubr.bf16.gmra.mrb[0].mxu0 %v1676
      %v1822 = vpop.f32.mrb[0].mxu0
      %v1823 = vadd.f32 0.0, %v1822
      %v1824 = vpop.f32.mrb[0].mxu0
      %v1825 = vpop.f32.mrb[0].mxu0
      %v1826 = vadd.f32 0.0, %v1825
      %v1827 = vpop.f32.mrb[0].mxu0
      %1828 = vmatprep.mubr.bf16.mxu0 0
      %1829 = vmatmul.mubr.bf16.gmra.mrb[0].mxu0 %v1677
      %v1830 = vpop.f32.mrb[0].mxu0
      %v1831 = vadd.f32 0.0, %v1830
      %v1832 = vpop.f32.mrb[0].mxu0
      %v1833 = vpop.f32.mrb[0].mxu0
      %v1834 = vadd.f32 0.0, %v1833
      %v1835 = vpop.f32.mrb[0].mxu0
      %1836 = vmatprep.mubr.bf16.mxu0 0
      %1837 = vmatmul.mubr.bf16.gmra.mrb[0].mxu0 %v1678
      %v1838 = vpop.f32.mrb[0].mxu0
      %v1839 = vadd.f32 0.0, %v1838
      %v1840 = vpop.f32.mrb[0].mxu0
      %v1841 = vpop.f32.mrb[0].mxu0
      %v1842 = vadd.f32 0.0, %v1841
      %v1843 = vpop.f32.mrb[0].mxu0
      %1844 = vmatprep.mubr.bf16.mxu0 0
      %1845 = vmatmul.mubr.bf16.gmra.mrb[0].mxu0 %v1679
      %v1846 = vpop.f32.mrb[0].mxu0
      %v1847 = vadd.f32 0.0, %v1846
      %v1848 = vpop.f32.mrb[0].mxu0
      %v1849 = vpop.f32.mrb[0].mxu0
      %v1850 = vadd.f32 0.0, %v1849
      %v1851 = vpop.f32.mrb[0].mxu0
      %1852 = vmatprep.mubr.bf16.mxu0 0
      %1853 = vmatmul.mubr.bf16.gmra.mrb[0].mxu0 %v1680
      %v1854 = vpop.f32.mrb[0].mxu0
      %v1855 = vadd.f32 0.0, %v1854
      %v1856 = vpop.f32.mrb[0].mxu0
      %v1857 = vpop.f32.mrb[0].mxu0
      %v1858 = vadd.f32 0.0, %v1857
      %v1859 = vpop.f32.mrb[0].mxu0
      %1860 = vmatprep.mubr.bf16.mxu0 0
      %1861 = vmatmul.mubr.bf16.gmra.mrb[0].mxu0 %v1681
      %v1862 = vpop.f32.mrb[0].mxu0
      %v1863 = vadd.f32 0.0, %v1862
      %v1864 = vpop.f32.mrb[0].mxu0
      %v1865 = vpop.f32.mrb[0].mxu0
      %v1866 = vadd.f32 0.0, %v1865
      %v1867 = vpop.f32.mrb[0].mxu0
      %1868 = vmatprep.mubr.bf16.mxu0 0
      %1869 = vmatmul.mubr.bf16.gmra.mrb[0].mxu0 %v1682
      %v1870 = vpop.f32.mrb[0].mxu0
      %v1871 = vadd.f32 0.0, %v1870
      %v1872 = vpop.f32.mrb[0].mxu0
      %v1873 = vpop.f32.mrb[0].mxu0
      %v1874 = vadd.f32 0.0, %v1873
      %v1875 = vpop.f32.mrb[0].mxu0
      %1876 = vdwg.mxu0
      %v1877 = vadd.f32 %v1647, %v1783
      %v1878 = vadd.f32 %v1648, %v1786
      %v1879 = vadd.f32 %v1649, %v1791
      %v1880 = vadd.f32 %v1650, %v1794
      %v1881 = vadd.f32 %v1651, %v1799
      %v1882 = vadd.f32 %v1652, %v1802
      %v1883 = vadd.f32 %v1653, %v1807
      %v1884 = vadd.f32 %v1654, %v1810
      %v1885 = vadd.f32 %v1655, %v1815
      %v1886 = vadd.f32 %v1656, %v1818
      %v1887 = vadd.f32 %v1657, %v1823
      %v1888 = vadd.f32 %v1658, %v1826
      %v1889 = vadd.f32 %v1659, %v1831
      %v1890 = vadd.f32 %v1660, %v1834
      %v1891 = vadd.f32 %v1661, %v1839
      %v1892 = vadd.f32 %v1662, %v1842
      %v1893 = vadd.f32 %v1663, %v1847
      %v1894 = vadd.f32 %v1664, %v1850
      %v1895 = vadd.f32 %v1665, %v1855
      %v1896 = vadd.f32 %v1666, %v1858
      %v1897 = vadd.f32 %v1667, %v1863
      %v1898 = vadd.f32 %v1668, %v1866
      %v1899 = vadd.f32 %v1669, %v1871
      %v1900 = vadd.f32 %v1670, %v1874
      %v1901 = vld [vmem:[%s901] sm:$0xff]
      %v1902 = vld [vmem:[%s901 + $0x8] sm:$0xff]
      %v1903 = vld [vmem:[%s901 + $0x10] sm:$0xff]
      %v1904 = vld [vmem:[%s901 + $0x18] sm:$0xff]
      %v1905 = vld [vmem:[%s901 + $0x20] sm:$0xff]
      %v1906 = vld [vmem:[%s901 + $0x28] sm:$0xff]
      %v1907 = vld [vmem:[%s901 + $0x30] sm:$0xff]
      %v1908 = vld [vmem:[%s901 + $0x38] sm:$0xff]
      %v1909 = vld [vmem:[%s901 + $0x40] sm:$0xff]
      %v1910 = vld [vmem:[%s901 + $0x48] sm:$0xff]
      %v1911 = vld [vmem:[%s901 + $0x50] sm:$0xff]
      %v1912 = vld [vmem:[%s901 + $0x58] sm:$0xff]
      %s1913 = scalar_lea.vmem %s2, 384
      %v1914 = vld [vmem:[%s1913] sm:$0xf]
      %v1915 = vld [vmem:[%s1913 + $0x4] sm:$0xf]
      %v1916 = vld [vmem:[%s1913 + $0x8] sm:$0xf]
      %v1917 = vld [vmem:[%s1913 + $0xc] sm:$0xf]
      %v1918 = vld [vmem:[%s1913 + $0x10] sm:$0xf]
      %v1919 = vld [vmem:[%s1913 + $0x14] sm:$0xf]
      %v1920 = vld [vmem:[%s1913 + $0x18] sm:$0xf]
      %v1921 = vld [vmem:[%s1913 + $0x1c] sm:$0xf]
      %v1922 = vld [vmem:[%s1913 + $0x20] sm:$0xf]
      %v1923 = vld [vmem:[%s1913 + $0x24] sm:$0xf]
      %v1924 = vld [vmem:[%s1913 + $0x28] sm:$0xf]
      %v1925 = vld [vmem:[%s1913 + $0x2c] sm:$0xf]
      %v1926 = vld [vmem:[%s1913 + $0x30] sm:$0xf]
      %v1927 = vld [vmem:[%s1913 + $0x34] sm:$0xf]
      %v1928 = vld [vmem:[%s1913 + $0x38] sm:$0xf]
      %v1929 = vld [vmem:[%s1913 + $0x3c] sm:$0xf]
      %v1946 = vunpack.c.l.b16 %v1914
      %v1947 = vunpack.c.l.b16 %v1915
      %v1948 = vunpack.c.l.b16 %v1916
      %v1949 = vunpack.c.l.b16 %v1917
      %v1950 = vunpack.c.l.b16 %v1918
      %v1951 = vunpack.c.l.b16 %v1919
      %v1952 = vunpack.c.l.b16 %v1920
      %v1953 = vunpack.c.l.b16 %v1921
      %v1954 = vunpack.c.l.b16 %v1922
      %v1955 = vunpack.c.l.b16 %v1923
      %v1956 = vunpack.c.l.b16 %v1924
      %v1957 = vunpack.c.l.b16 %v1925
      %v1958 = vunpack.c.l.b16 %v1926
      %v1959 = vunpack.c.l.b16 %v1927
      %v1960 = vunpack.c.l.b16 %v1928
      %v1961 = vunpack.c.l.b16 %v1929
      %v1962 = vpack.c.b16 %v1947, %v1946
      %v1963 = vpack.c.b16 %v1949, %v1948
      %v1964 = vpack.c.b16 %v1951, %v1950
      %v1965 = vpack.c.b16 %v1953, %v1952
      %v1966 = vpack.c.b16 %v1955, %v1954
      %v1967 = vpack.c.b16 %v1957, %v1956
      %v1968 = vpack.c.b16 %v1959, %v1958
      %v1969 = vpack.c.b16 %v1961, %v1960
      %1978 = vmatprep.subr.bf16.mxu0 0
      %1979 = vmatpush1.bf16.msra.mxu0 %v1962
      %1980 = vmatprep.subr.bf16.mxu0 0
      %1981 = vmatpush1.bf16.msra.mxu0 %v1963
      %1982 = vmatprep.subr.bf16.mxu0 0
      %1983 = vmatpush1.bf16.msra.mxu0 %v1964
      %1984 = vmatprep.subr.bf16.mxu0 0
      %1985 = vmatpush1.bf16.msra.mxu0 %v1965
      %1986 = vmatprep.subr.bf16.mxu0 0
      %1987 = vmatpush1.bf16.msra.mxu0 %v1966
      %1988 = vmatprep.subr.bf16.mxu0 0
      %1989 = vmatpush1.bf16.msra.mxu0 %v1967
      %1990 = vmatprep.subr.bf16.mxu0 0
      %1991 = vmatpush1.bf16.msra.mxu0 %v1968
      %1992 = vmatprep.subr.bf16.mxu0 0
      %1993 = vmatpush1.bf16.msra.mxu0 %v1969
      %1994 = vmatprep.subr.bf16.mxu0 0
      %1995 = vmatpush1.bf16.msra.mxu0 0
      %1996 = vmatprep.subr.bf16.mxu0 0
      %1997 = vmatpush1.bf16.msra.mxu0 0
      %1998 = vmatprep.subr.bf16.mxu0 0
      %1999 = vmatpush1.bf16.msra.mxu0 0
      %2000 = vmatprep.subr.bf16.mxu0 0
      %2001 = vmatpush1.bf16.msra.mxu0 0
      %2002 = vmatprep.subr.bf16.mxu0 0
      %2003 = vmatpush1.bf16.msra.mxu0 0
      %2004 = vmatprep.subr.bf16.mxu0 0
      %2005 = vmatpush1.bf16.msra.mxu0 0
      %2006 = vmatprep.subr.bf16.mxu0 0
      %2007 = vmatpush1.bf16.msra.mxu0 0
      %2008 = vmatprep.subr.bf16.mxu0 0
      %2009 = vmatpush1.bf16.msra.mxu0 0
      %2010 = vmatprep.mubr.bf16.mxu0 0
      %2011 = vmatmul.mubr.bf16.gmra.mrb[0].mxu0 %v1901
      %v2012 = vpop.f32.mrb[0].mxu0
      %v2013 = vadd.f32 0.0, %v2012
      %v2014 = vpop.f32.mrb[0].mxu0
      %v2015 = vpop.f32.mrb[0].mxu0
      %v2016 = vadd.f32 0.0, %v2015
      %v2017 = vpop.f32.mrb[0].mxu0
      %2018 = vmatprep.mubr.bf16.mxu0 0
      %2019 = vmatmul.mubr.bf16.gmra.mrb[0].mxu0 %v1902
      %v2020 = vpop.f32.mrb[0].mxu0
      %v2021 = vadd.f32 0.0, %v2020
      %v2022 = vpop.f32.mrb[0].mxu0
      %v2023 = vpop.f32.mrb[0].mxu0
      %v2024 = vadd.f32 0.0, %v2023
      %v2025 = vpop.f32.mrb[0].mxu0
      %2026 = vmatprep.mubr.bf16.mxu0 0
      %2027 = vmatmul.mubr.bf16.gmra.mrb[0].mxu0 %v1903
      %v2028 = vpop.f32.mrb[0].mxu0
      %v2029 = vadd.f32 0.0, %v2028
      %v2030 = vpop.f32.mrb[0].mxu0
      %v2031 = vpop.f32.mrb[0].mxu0
      %v2032 = vadd.f32 0.0, %v2031
      %v2033 = vpop.f32.mrb[0].mxu0
      %2034 = vmatprep.mubr.bf16.mxu0 0
      %2035 = vmatmul.mubr.bf16.gmra.mrb[0].mxu0 %v1904
      %v2036 = vpop.f32.mrb[0].mxu0
      %v2037 = vadd.f32 0.0, %v2036
      %v2038 = vpop.f32.mrb[0].mxu0
      %v2039 = vpop.f32.mrb[0].mxu0
      %v2040 = vadd.f32 0.0, %v2039
      %v2041 = vpop.f32.mrb[0].mxu0
      %2042 = vmatprep.mubr.bf16.mxu0 0
      %2043 = vmatmul.mubr.bf16.gmra.mrb[0].mxu0 %v1905
      %v2044 = vpop.f32.mrb[0].mxu0
      %v2045 = vadd.f32 0.0, %v2044
      %v2046 = vpop.f32.mrb[0].mxu0
      %v2047 = vpop.f32.mrb[0].mxu0
      %v2048 = vadd.f32 0.0, %v2047
      %v2049 = vpop.f32.mrb[0].mxu0
      %2050 = vmatprep.mubr.bf16.mxu0 0
      %2051 = vmatmul.mubr.bf16.gmra.mrb[0].mxu0 %v1906
      %v2052 = vpop.f32.mrb[0].mxu0
      %v2053 = vadd.f32 0.0, %v2052
      %v2054 = vpop.f32.mrb[0].mxu0
      %v2055 = vpop.f32.mrb[0].mxu0
      %v2056 = vadd.f32 0.0, %v2055
      %v2057 = vpop.f32.mrb[0].mxu0
      %2058 = vmatprep.mubr.bf16.mxu0 0
      %2059 = vmatmul.mubr.bf16.gmra.mrb[0].mxu0 %v1907
      %v2060 = vpop.f32.mrb[0].mxu0
      %v2061 = vadd.f32 0.0, %v2060
      %v2062 = vpop.f32.mrb[0].mxu0
      %v2063 = vpop.f32.mrb[0].mxu0
      %v2064 = vadd.f32 0.0, %v2063
      %v2065 = vpop.f32.mrb[0].mxu0
      %2066 = vmatprep.mubr.bf16.mxu0 0
      %2067 = vmatmul.mubr.bf16.gmra.mrb[0].mxu0 %v1908
      %v2068 = vpop.f32.mrb[0].mxu0
      %v2069 = vadd.f32 0.0, %v2068
      %v2070 = vpop.f32.mrb[0].mxu0
      %v2071 = vpop.f32.mrb[0].mxu0
      %v2072 = vadd.f32 0.0, %v2071
      %v2073 = vpop.f32.mrb[0].mxu0
      %2074 = vmatprep.mubr.bf16.mxu0 0
      %2075 = vmatmul.mubr.bf16.gmra.mrb[0].mxu0 %v1909
      %v2076 = vpop.f32.mrb[0].mxu0
      %v2077 = vadd.f32 0.0, %v2076
      %v2078 = vpop.f32.mrb[0].mxu0
      %v2079 = vpop.f32.mrb[0].mxu0
      %v2080 = vadd.f32 0.0, %v2079
      %v2081 = vpop.f32.mrb[0].mxu0
      %2082 = vmatprep.mubr.bf16.mxu0 0
      %2083 = vmatmul.mubr.bf16.gmra.mrb[0].mxu0 %v1910
      %v2084 = vpop.f32.mrb[0].mxu0
      %v2085 = vadd.f32 0.0, %v2084
      %v2086 = vpop.f32.mrb[0].mxu0
      %v2087 = vpop.f32.mrb[0].mxu0
      %v2088 = vadd.f32 0.0, %v2087
      %v2089 = vpop.f32.mrb[0].mxu0
      %2090 = vmatprep.mubr.bf16.mxu0 0
      %2091 = vmatmul.mubr.bf16.gmra.mrb[0].mxu0 %v1911
      %v2092 = vpop.f32.mrb[0].mxu0
      %v2093 = vadd.f32 0.0, %v2092
      %v2094 = vpop.f32.mrb[0].mxu0
      %v2095 = vpop.f32.mrb[0].mxu0
      %v2096 = vadd.f32 0.0, %v2095
      %v2097 = vpop.f32.mrb[0].mxu0
      %2098 = vmatprep.mubr.bf16.mxu0 0
      %2099 = vmatmul.mubr.bf16.gmra.mrb[0].mxu0 %v1912
      %v2100 = vpop.f32.mrb[0].mxu0
      %v2101 = vadd.f32 0.0, %v2100
      %v2102 = vpop.f32.mrb[0].mxu0
      %v2103 = vpop.f32.mrb[0].mxu0
      %v2104 = vadd.f32 0.0, %v2103
      %v2105 = vpop.f32.mrb[0].mxu0
      %2106 = vdwg.mxu0
      %v2107 = vadd.f32 %v1877, %v2013
      %v2108 = vadd.f32 %v1878, %v2016
      %v2109 = vadd.f32 %v1879, %v2021
      %v2110 = vadd.f32 %v1880, %v2024
      %v2111 = vadd.f32 %v1881, %v2029
      %v2112 = vadd.f32 %v1882, %v2032
      %v2113 = vadd.f32 %v1883, %v2037
      %v2114 = vadd.f32 %v1884, %v2040
      %v2115 = vadd.f32 %v1885, %v2045
      %v2116 = vadd.f32 %v1886, %v2048
      %v2117 = vadd.f32 %v1887, %v2053
      %v2118 = vadd.f32 %v1888, %v2056
      %v2119 = vadd.f32 %v1889, %v2061
      %v2120 = vadd.f32 %v1890, %v2064
      %v2121 = vadd.f32 %v1891, %v2069
      %v2122 = vadd.f32 %v1892, %v2072
      %v2123 = vadd.f32 %v1893, %v2077
      %v2124 = vadd.f32 %v1894, %v2080
      %v2125 = vadd.f32 %v1895, %v2085
      %v2126 = vadd.f32 %v1896, %v2088
      %v2127 = vadd.f32 %v1897, %v2093
      %v2128 = vadd.f32 %v1898, %v2096
      %v2129 = vadd.f32 %v1899, %v2101
      %v2130 = vadd.f32 %v1900, %v2104
      %v2131 = vld [vmem:[%s316] sm:$0xf]
      %v2132 = vld [vmem:[%s316 + $0x4] sm:$0xf]
      %v2133 = vld [vmem:[%s316 + $0x8] sm:$0xf]
      %v2134 = vld [vmem:[%s316 + $0xc] sm:$0xf]
      %v2135 = vld [vmem:[%s316 + $0x10] sm:$0xf]
      %v2136 = vld [vmem:[%s316 + $0x14] sm:$0xf]
      %v2137 = vld [vmem:[%s316 + $0x18] sm:$0xf]
      %v2138 = vld [vmem:[%s316 + $0x1c] sm:$0xf]
      %v2139 = vld [vmem:[%s316 + $0x20] sm:$0xf]
      %v2140 = vld [vmem:[%s316 + $0x24] sm:$0xf]
      %v2141 = vld [vmem:[%s316 + $0x28] sm:$0xf]
      %v2142 = vld [vmem:[%s316 + $0x2c] sm:$0xf]
      %v2143 = vld [vmem:[%s316 + $0x30] sm:$0xf]
      %v2144 = vld [vmem:[%s316 + $0x34] sm:$0xf]
      %v2145 = vld [vmem:[%s316 + $0x38] sm:$0xf]
      %v2146 = vld [vmem:[%s316 + $0x3c] sm:$0xf]
      %v2163 = vunpack.c.l.b16 %v2131
      %v2164 = vunpack.c.l.b16 %v2132
      %v2165 = vunpack.c.l.b16 %v2133
      %v2166 = vunpack.c.l.b16 %v2134
      %v2167 = vunpack.c.l.b16 %v2135
      %v2168 = vunpack.c.l.b16 %v2136
      %v2169 = vunpack.c.l.b16 %v2137
      %v2170 = vunpack.c.l.b16 %v2138
      %v2171 = vunpack.c.l.b16 %v2139
      %v2172 = vunpack.c.l.b16 %v2140
      %v2173 = vunpack.c.l.b16 %v2141
      %v2174 = vunpack.c.l.b16 %v2142
      %v2175 = vunpack.c.l.b16 %v2143
      %v2176 = vunpack.c.l.b16 %v2144
      %v2177 = vunpack.c.l.b16 %v2145
      %v2178 = vunpack.c.l.b16 %v2146
      %v2179 = vpack.c.b16 %v2164, %v2163
      %v2180 = vpack.c.b16 %v2166, %v2165
      %v2181 = vpack.c.b16 %v2168, %v2167
      %v2182 = vpack.c.b16 %v2170, %v2169
      %v2183 = vpack.c.b16 %v2172, %v2171
      %v2184 = vpack.c.b16 %v2174, %v2173
      %v2185 = vpack.c.b16 %v2176, %v2175
      %v2186 = vpack.c.b16 %v2178, %v2177
      %vm2187 = vsmask.f32 7424
      %v2189 = vshrl.u32 %v2179, 16
      %v2191 = vshll.u32 %v2179, 16
      %v2193 = vrot.slane %v2191, 1
      %v2194 = vor.u32 %v2189, %v2193
      %v2196 = vshll.u32 %v2180, 16
      %v2198 = vrot.slane %v2196, 1
      %v2199 = vsel %vm2187, %v2194, %v2198
      %v2200 = vshrl.u32 %v2180, 16
      %v2202 = vor.u32 %v2200, %v2198
      %v2204 = vshrl.u32 %v2181, 16
      %v2206 = vshll.u32 %v2181, 16
      %v2208 = vrot.slane %v2206, 1
      %v2209 = vor.u32 %v2204, %v2208
      %v2211 = vshll.u32 %v2182, 16
      %v2213 = vrot.slane %v2211, 1
      %v2214 = vsel %vm2187, %v2209, %v2213
      %v2215 = vshrl.u32 %v2182, 16
      %v2217 = vor.u32 %v2215, %v2213
      %v2219 = vshrl.u32 %v2183, 16
      %v2221 = vshll.u32 %v2183, 16
      %v2223 = vrot.slane %v2221, 1
      %v2224 = vor.u32 %v2219, %v2223
      %v2226 = vshll.u32 %v2184, 16
      %v2228 = vrot.slane %v2226, 1
      %v2229 = vsel %vm2187, %v2224, %v2228
      %v2230 = vshrl.u32 %v2184, 16
      %v2232 = vor.u32 %v2230, %v2228
      %v2234 = vshrl.u32 %v2185, 16
      %v2236 = vshll.u32 %v2185, 16
      %v2238 = vrot.slane %v2236, 1
      %v2239 = vor.u32 %v2234, %v2238
      %v2241 = vshll.u32 %v2186, 16
      %v2243 = vrot.slane %v2241, 1
      %v2244 = vsel %vm2187, %v2239, %v2243
      %v2245 = vshrl.u32 %v2186, 16
      %v2247 = vor.u32 %v2245, %v2243
      %2256 = vst [vmem:[#allocation2] sm:$0xff] %v2199
      %vm2257 = vmand %vm1257, %vm2187
      %v2258 = vld [vmem:[#allocation2 + $0x8] sm:$0xff]
      %v2259 = vsel %vm2257, %v2202, %v2258
      %2260 = vst [vmem:[#allocation2 + $0x8] sm:$0xff] %v2259
      %2261 = vst [vmem:[#allocation2 + $0x10] sm:$0xff] %v2214
      %v2262 = vld [vmem:[#allocation2 + $0x18] sm:$0xff]
      %v2263 = vsel %vm2257, %v2217, %v2262
      %2264 = vst [vmem:[#allocation2 + $0x18] sm:$0xff] %v2263
      %2265 = vst [vmem:[#allocation2 + $0x20] sm:$0xff] %v2229
      %v2266 = vld [vmem:[#allocation2 + $0x28] sm:$0xff]
      %v2267 = vsel %vm2257, %v2232, %v2266
      %2268 = vst [vmem:[#allocation2 + $0x28] sm:$0xff] %v2267
      %2269 = vst [vmem:[#allocation2 + $0x30] sm:$0xff] %v2244
      %v2270 = vld [vmem:[#allocation2 + $0x38] sm:$0xff]
      %v2271 = vsel %vm2257, %v2247, %v2270
      %2272 = vst [vmem:[#allocation2 + $0x38] sm:$0xff] %v2271
      %v2273 = vld [vmem:[%s328] sm:$0xf]
      %v2274 = vld [vmem:[%s328 + $0x4] sm:$0xf]
      %v2275 = vld [vmem:[%s328 + $0x8] sm:$0xf]
      %v2276 = vld [vmem:[%s328 + $0xc] sm:$0xf]
      %v2277 = vld [vmem:[%s328 + $0x10] sm:$0xf]
      %v2278 = vld [vmem:[%s328 + $0x14] sm:$0xf]
      %v2279 = vld [vmem:[%s328 + $0x18] sm:$0xf]
      %v2280 = vld [vmem:[%s328 + $0x1c] sm:$0xf]
      %v2281 = vld [vmem:[%s328 + $0x20] sm:$0xf]
      %v2282 = vld [vmem:[%s328 + $0x24] sm:$0xf]
      %v2283 = vld [vmem:[%s328 + $0x28] sm:$0xf]
      %v2284 = vld [vmem:[%s328 + $0x2c] sm:$0xf]
      %v2285 = vld [vmem:[%s328 + $0x30] sm:$0xf]
      %v2286 = vld [vmem:[%s328 + $0x34] sm:$0xf]
      %v2287 = vld [vmem:[%s328 + $0x38] sm:$0xf]
      %v2288 = vld [vmem:[%s328 + $0x3c] sm:$0xf]
      %v2305 = vunpack.c.l.b16 %v2273
      %v2306 = vunpack.c.l.b16 %v2274
      %v2307 = vunpack.c.l.b16 %v2275
      %v2308 = vunpack.c.l.b16 %v2276
      %v2309 = vunpack.c.l.b16 %v2277
      %v2310 = vunpack.c.l.b16 %v2278
      %v2311 = vunpack.c.l.b16 %v2279
      %v2312 = vunpack.c.l.b16 %v2280
      %v2313 = vunpack.c.l.b16 %v2281
      %v2314 = vunpack.c.l.b16 %v2282
      %v2315 = vunpack.c.l.b16 %v2283
      %v2316 = vunpack.c.l.b16 %v2284
      %v2317 = vunpack.c.l.b16 %v2285
      %v2318 = vunpack.c.l.b16 %v2286
      %v2319 = vunpack.c.l.b16 %v2287
      %v2320 = vunpack.c.l.b16 %v2288
      %v2321 = vpack.c.b16 %v2306, %v2305
      %v2322 = vpack.c.b16 %v2308, %v2307
      %v2323 = vpack.c.b16 %v2310, %v2309
      %v2324 = vpack.c.b16 %v2312, %v2311
      %v2325 = vpack.c.b16 %v2314, %v2313
      %v2326 = vpack.c.b16 %v2316, %v2315
      %v2327 = vpack.c.b16 %v2318, %v2317
      %v2328 = vpack.c.b16 %v2320, %v2319
      %v2330 = vshrl.u32 %v2321, 16
      %v2332 = vshll.u32 %v2321, 16
      %v2334 = vrot.slane %v2332, 1
      %v2335 = vor.u32 %v2330, %v2334
      %v2337 = vshll.u32 %v2322, 16
      %v2339 = vrot.slane %v2337, 1
      %v2340 = vsel %vm2187, %v2335, %v2339
      %v2341 = vshrl.u32 %v2322, 16
      %v2343 = vor.u32 %v2341, %v2339
      %v2345 = vshrl.u32 %v2323, 16
      %v2347 = vshll.u32 %v2323, 16
      %v2349 = vrot.slane %v2347, 1
      %v2350 = vor.u32 %v2345, %v2349
      %v2352 = vshll.u32 %v2324, 16
      %v2354 = vrot.slane %v2352, 1
      %v2355 = vsel %vm2187, %v2350, %v2354
      %v2356 = vshrl.u32 %v2324, 16
      %v2358 = vor.u32 %v2356, %v2354
      %v2360 = vshrl.u32 %v2325, 16
      %v2362 = vshll.u32 %v2325, 16
      %v2364 = vrot.slane %v2362, 1
      %v2365 = vor.u32 %v2360, %v2364
      %v2367 = vshll.u32 %v2326, 16
      %v2369 = vrot.slane %v2367, 1
      %v2370 = vsel %vm2187, %v2365, %v2369
      %v2371 = vshrl.u32 %v2326, 16
      %v2373 = vor.u32 %v2371, %v2369
      %v2375 = vshrl.u32 %v2327, 16
      %v2377 = vshll.u32 %v2327, 16
      %v2379 = vrot.slane %v2377, 1
      %v2380 = vor.u32 %v2375, %v2379
      %v2382 = vshll.u32 %v2328, 16
      %v2384 = vrot.slane %v2382, 1
      %v2385 = vsel %vm2187, %v2380, %v2384
      %v2386 = vshrl.u32 %v2328, 16
      %v2388 = vor.u32 %v2386, %v2384
      %2397 = vst [vmem:[%s479] sm:$0xff] %v2340
      %v2398 = vld [vmem:[%s479 + $0x8] sm:$0xff]
      %v2399 = vsel %vm2257, %v2343, %v2398
      %2400 = vst [vmem:[%s479 + $0x8] sm:$0xff] %v2399
      %2401 = vst [vmem:[%s479 + $0x10] sm:$0xff] %v2355
      %v2402 = vld [vmem:[%s479 + $0x18] sm:$0xff]
      %v2403 = vsel %vm2257, %v2358, %v2402
      %2404 = vst [vmem:[%s479 + $0x18] sm:$0xff] %v2403
      %2405 = vst [vmem:[%s479 + $0x20] sm:$0xff] %v2370
      %v2406 = vld [vmem:[%s479 + $0x28] sm:$0xff]
      %v2407 = vsel %vm2257, %v2373, %v2406
      %2408 = vst [vmem:[%s479 + $0x28] sm:$0xff] %v2407
      %2409 = vst [vmem:[%s479 + $0x30] sm:$0xff] %v2385
      %v2410 = vld [vmem:[%s479 + $0x38] sm:$0xff]
      %v2411 = vsel %vm2257, %v2388, %v2410
      %2412 = vst [vmem:[%s479 + $0x38] sm:$0xff] %v2411
      %vm2413 = vcmask 1047559
      %vm2414 = vsmask.f32 7966
      %vm2415 = vmand %vm2413, %vm2414
      %v2416 = vld [vmem:[#allocation2 + $0x8] sm:$0x80]
      %v2417 = vsel %vm2415, 0, %v2416
      %2418 = vst [vmem:[#allocation2 + $0x8] sm:$0x80] %v2417
      %v2419 = vld [vmem:[#allocation2 + $0x18] sm:$0x80]
      %v2420 = vsel %vm2415, 0, %v2419
      %2421 = vst [vmem:[#allocation2 + $0x18] sm:$0x80] %v2420
      %v2422 = vld [vmem:[#allocation2 + $0x28] sm:$0x80]
      %v2423 = vsel %vm2415, 0, %v2422
      %2424 = vst [vmem:[#allocation2 + $0x28] sm:$0x80] %v2423
      %v2425 = vld [vmem:[#allocation2 + $0x38] sm:$0x80]
      %v2426 = vsel %vm2415, 0, %v2425
      %2427 = vst [vmem:[#allocation2 + $0x38] sm:$0x80] %v2426
      %v2428 = vld [vmem:[#allocation2 + $0x48] sm:$0x80]
      %v2429 = vsel %vm2415, 0, %v2428
      %2430 = vst [vmem:[#allocation2 + $0x48] sm:$0x80] %v2429
      %v2431 = vld [vmem:[#allocation2 + $0x58] sm:$0x80]
      %v2432 = vsel %vm2415, 0, %v2431
      %2433 = vst [vmem:[#allocation2 + $0x58] sm:$0x80] %v2432
      %v2434 = vld [vmem:[#allocation2 + $0x68] sm:$0x80]
      %v2435 = vsel %vm2415, 0, %v2434
      %2436 = vst [vmem:[#allocation2 + $0x68] sm:$0x80] %v2435
      %v2437 = vld [vmem:[#allocation2 + $0x78] sm:$0x80]
      %v2438 = vsel %vm2415, 0, %v2437
      %2439 = vst [vmem:[#allocation2 + $0x78] sm:$0x80] %v2438
      %v2440 = vld [vmem:[#allocation2] sm:$0xff]
      %v2441 = vld [vmem:[#allocation2 + $0x8] sm:$0xff]
      %v2442 = vld [vmem:[#allocation2 + $0x10] sm:$0xff]
      %v2443 = vld [vmem:[#allocation2 + $0x18] sm:$0xff]
      %v2444 = vld [vmem:[#allocation2 + $0x20] sm:$0xff]
      %v2445 = vld [vmem:[#allocation2 + $0x28] sm:$0xff]
      %v2446 = vld [vmem:[#allocation2 + $0x30] sm:$0xff]
      %v2447 = vld [vmem:[#allocation2 + $0x38] sm:$0xff]
      %v2448 = vld [vmem:[#allocation2 + $0x40] sm:$0xff]
      %v2449 = vld [vmem:[#allocation2 + $0x48] sm:$0xff]
      %v2450 = vld [vmem:[#allocation2 + $0x50] sm:$0xff]
      %v2451 = vld [vmem:[#allocation2 + $0x58] sm:$0xff]
      %s2452 = scalar_lea.vmem %s2, 128
      %v2453 = vld [vmem:[%s2452] sm:$0xf]
      %v2454 = vld [vmem:[%s2452 + $0x4] sm:$0xf]
      %v2455 = vld [vmem:[%s2452 + $0x8] sm:$0xf]
      %v2456 = vld [vmem:[%s2452 + $0xc] sm:$0xf]
      %v2457 = vld [vmem:[%s2452 + $0x10] sm:$0xf]
      %v2458 = vld [vmem:[%s2452 + $0x14] sm:$0xf]
      %v2459 = vld [vmem:[%s2452 + $0x18] sm:$0xf]
      %v2460 = vld [vmem:[%s2452 + $0x1c] sm:$0xf]
      %v2461 = vld [vmem:[%s2452 + $0x20] sm:$0xf]
      %v2462 = vld [vmem:[%s2452 + $0x24] sm:$0xf]
      %v2463 = vld [vmem:[%s2452 + $0x28] sm:$0xf]
      %v2464 = vld [vmem:[%s2452 + $0x2c] sm:$0xf]
      %v2465 = vld [vmem:[%s2452 + $0x30] sm:$0xf]
      %v2466 = vld [vmem:[%s2452 + $0x34] sm:$0xf]
      %v2467 = vld [vmem:[%s2452 + $0x38] sm:$0xf]
      %v2468 = vld [vmem:[%s2452 + $0x3c] sm:$0xf]
      %v2485 = vunpack.c.l.b16 %v2453
      %v2486 = vunpack.c.l.b16 %v2454
      %v2487 = vunpack.c.l.b16 %v2455
      %v2488 = vunpack.c.l.b16 %v2456
      %v2489 = vunpack.c.l.b16 %v2457
      %v2490 = vunpack.c.l.b16 %v2458
      %v2491 = vunpack.c.l.b16 %v2459
      %v2492 = vunpack.c.l.b16 %v2460
      %v2493 = vunpack.c.l.b16 %v2461
      %v2494 = vunpack.c.l.b16 %v2462
      %v2495 = vunpack.c.l.b16 %v2463
      %v2496 = vunpack.c.l.b16 %v2464
      %v2497 = vunpack.c.l.b16 %v2465
      %v2498 = vunpack.c.l.b16 %v2466
      %v2499 = vunpack.c.l.b16 %v2467
      %v2500 = vunpack.c.l.b16 %v2468
      %v2501 = vpack.c.b16 %v2486, %v2485
      %v2502 = vpack.c.b16 %v2488, %v2487
      %v2503 = vpack.c.b16 %v2490, %v2489
      %v2504 = vpack.c.b16 %v2492, %v2491
      %v2505 = vpack.c.b16 %v2494, %v2493
      %v2506 = vpack.c.b16 %v2496, %v2495
      %v2507 = vpack.c.b16 %v2498, %v2497
      %v2508 = vpack.c.b16 %v2500, %v2499
      %2517 = vmatprep.subr.bf16.mxu0 0
      %2518 = vmatpush1.bf16.msra.mxu0 %v2501
      %2519 = vmatprep.subr.bf16.mxu0 0
      %2520 = vmatpush1.bf16.msra.mxu0 %v2502
      %2521 = vmatprep.subr.bf16.mxu0 0
      %2522 = vmatpush1.bf16.msra.mxu0 %v2503
      %2523 = vmatprep.subr.bf16.mxu0 0
      %2524 = vmatpush1.bf16.msra.mxu0 %v2504
      %2525 = vmatprep.subr.bf16.mxu0 0
      %2526 = vmatpush1.bf16.msra.mxu0 %v2505
      %2527 = vmatprep.subr.bf16.mxu0 0
      %2528 = vmatpush1.bf16.msra.mxu0 %v2506
      %2529 = vmatprep.subr.bf16.mxu0 0
      %2530 = vmatpush1.bf16.msra.mxu0 %v2507
      %2531 = vmatprep.subr.bf16.mxu0 0
      %2532 = vmatpush1.bf16.msra.mxu0 %v2508
      %2533 = vmatprep.subr.bf16.mxu0 0
      %2534 = vmatpush1.bf16.msra.mxu0 0
      %2535 = vmatprep.subr.bf16.mxu0 0
      %2536 = vmatpush1.bf16.msra.mxu0 0
      %2537 = vmatprep.subr.bf16.mxu0 0
      %2538 = vmatpush1.bf16.msra.mxu0 0
      %2539 = vmatprep.subr.bf16.mxu0 0
      %2540 = vmatpush1.bf16.msra.mxu0 0
      %2541 = vmatprep.subr.bf16.mxu0 0
      %2542 = vmatpush1.bf16.msra.mxu0 0
      %2543 = vmatprep.subr.bf16.mxu0 0
      %2544 = vmatpush1.bf16.msra.mxu0 0
      %2545 = vmatprep.subr.bf16.mxu0 0
      %2546 = vmatpush1.bf16.msra.mxu0 0
      %2547 = vmatprep.subr.bf16.mxu0 0
      %2548 = vmatpush1.bf16.msra.mxu0 0
      %2549 = vmatprep.mubr.bf16.mxu0 0
      %2550 = vmatmul.mubr.bf16.gmra.mrb[0].mxu0 %v2440
      %v2551 = vpop.f32.mrb[0].mxu0
      %v2552 = vadd.f32 0.0, %v2551
      %v2553 = vpop.f32.mrb[0].mxu0
      %v2554 = vpop.f32.mrb[0].mxu0
      %v2555 = vadd.f32 0.0, %v2554
      %v2556 = vpop.f32.mrb[0].mxu0
      %2557 = vmatprep.mubr.bf16.mxu0 0
      %2558 = vmatmul.mubr.bf16.gmra.mrb[0].mxu0 %v2441
      %v2559 = vpop.f32.mrb[0].mxu0
      %v2560 = vadd.f32 0.0, %v2559
      %v2561 = vpop.f32.mrb[0].mxu0
      %v2562 = vpop.f32.mrb[0].mxu0
      %v2563 = vadd.f32 0.0, %v2562
      %v2564 = vpop.f32.mrb[0].mxu0
      %2565 = vmatprep.mubr.bf16.mxu0 0
      %2566 = vmatmul.mubr.bf16.gmra.mrb[0].mxu0 %v2442
      %v2567 = vpop.f32.mrb[0].mxu0
      %v2568 = vadd.f32 0.0, %v2567
      %v2569 = vpop.f32.mrb[0].mxu0
      %v2570 = vpop.f32.mrb[0].mxu0
      %v2571 = vadd.f32 0.0, %v2570
      %v2572 = vpop.f32.mrb[0].mxu0
      %2573 = vmatprep.mubr.bf16.mxu0 0
      %2574 = vmatmul.mubr.bf16.gmra.mrb[0].mxu0 %v2443
      %v2575 = vpop.f32.mrb[0].mxu0
      %v2576 = vadd.f32 0.0, %v2575
      %v2577 = vpop.f32.mrb[0].mxu0
      %v2578 = vpop.f32.mrb[0].mxu0
      %v2579 = vadd.f32 0.0, %v2578
      %v2580 = vpop.f32.mrb[0].mxu0
      %2581 = vmatprep.mubr.bf16.mxu0 0
      %2582 = vmatmul.mubr.bf16.gmra.mrb[0].mxu0 %v2444
      %v2583 = vpop.f32.mrb[0].mxu0
      %v2584 = vadd.f32 0.0, %v2583
      %v2585 = vpop.f32.mrb[0].mxu0
      %v2586 = vpop.f32.mrb[0].mxu0
      %v2587 = vadd.f32 0.0, %v2586
      %v2588 = vpop.f32.mrb[0].mxu0
      %2589 = vmatprep.mubr.bf16.mxu0 0
      %2590 = vmatmul.mubr.bf16.gmra.mrb[0].mxu0 %v2445
      %v2591 = vpop.f32.mrb[0].mxu0
      %v2592 = vadd.f32 0.0, %v2591
      %v2593 = vpop.f32.mrb[0].mxu0
      %v2594 = vpop.f32.mrb[0].mxu0
      %v2595 = vadd.f32 0.0, %v2594
      %v2596 = vpop.f32.mrb[0].mxu0
      %2597 = vmatprep.mubr.bf16.mxu0 0
      %2598 = vmatmul.mubr.bf16.gmra.mrb[0].mxu0 %v2446
      %v2599 = vpop.f32.mrb[0].mxu0
      %v2600 = vadd.f32 0.0, %v2599
      %v2601 = vpop.f32.mrb[0].mxu0
      %v2602 = vpop.f32.mrb[0].mxu0
      %v2603 = vadd.f32 0.0, %v2602
      %v2604 = vpop.f32.mrb[0].mxu0
      %2605 = vmatprep.mubr.bf16.mxu0 0
      %2606 = vmatmul.mubr.bf16.gmra.mrb[0].mxu0 %v2447
      %v2607 = vpop.f32.mrb[0].mxu0
      %v2608 = vadd.f32 0.0, %v2607
      %v2609 = vpop.f32.mrb[0].mxu0
      %v2610 = vpop.f32.mrb[0].mxu0
      %v2611 = vadd.f32 0.0, %v2610
      %v2612 = vpop.f32.mrb[0].mxu0
      %2613 = vmatprep.mubr.bf16.mxu0 0
      %2614 = vmatmul.mubr.bf16.gmra.mrb[0].mxu0 %v2448
      %v2615 = vpop.f32.mrb[0].mxu0
      %v2616 = vadd.f32 0.0, %v2615
      %v2617 = vpop.f32.mrb[0].mxu0
      %v2618 = vpop.f32.mrb[0].mxu0
      %v2619 = vadd.f32 0.0, %v2618
      %v2620 = vpop.f32.mrb[0].mxu0
      %2621 = vmatprep.mubr.bf16.mxu0 0
      %2622 = vmatmul.mubr.bf16.gmra.mrb[0].mxu0 %v2449
      %v2623 = vpop.f32.mrb[0].mxu0
      %v2624 = vadd.f32 0.0, %v2623
      %v2625 = vpop.f32.mrb[0].mxu0
      %v2626 = vpop.f32.mrb[0].mxu0
      %v2627 = vadd.f32 0.0, %v2626
      %v2628 = vpop.f32.mrb[0].mxu0
      %2629 = vmatprep.mubr.bf16.mxu0 0
      %2630 = vmatmul.mubr.bf16.gmra.mrb[0].mxu0 %v2450
      %v2631 = vpop.f32.mrb[0].mxu0
      %v2632 = vadd.f32 0.0, %v2631
      %v2633 = vpop.f32.mrb[0].mxu0
      %v2634 = vpop.f32.mrb[0].mxu0
      %v2635 = vadd.f32 0.0, %v2634
      %v2636 = vpop.f32.mrb[0].mxu0
      %2637 = vmatprep.mubr.bf16.mxu0 0
      %2638 = vmatmul.mubr.bf16.gmra.mrb[0].mxu0 %v2451
      %v2639 = vpop.f32.mrb[0].mxu0
      %v2640 = vadd.f32 0.0, %v2639
      %v2641 = vpop.f32.mrb[0].mxu0
      %v2642 = vpop.f32.mrb[0].mxu0
      %v2643 = vadd.f32 0.0, %v2642
      %v2644 = vpop.f32.mrb[0].mxu0
      %2645 = vdwg.mxu0
      %v2646 = vadd.f32 %v2107, %v2552
      %v2647 = vadd.f32 %v2108, %v2555
      %v2648 = vadd.f32 %v2109, %v2560
      %v2649 = vadd.f32 %v2110, %v2563
      %v2650 = vadd.f32 %v2111, %v2568
      %v2651 = vadd.f32 %v2112, %v2571
      %v2652 = vadd.f32 %v2113, %v2576
      %v2653 = vadd.f32 %v2114, %v2579
      %v2654 = vadd.f32 %v2115, %v2584
      %v2655 = vadd.f32 %v2116, %v2587
      %v2656 = vadd.f32 %v2117, %v2592
      %v2657 = vadd.f32 %v2118, %v2595
      %v2658 = vadd.f32 %v2119, %v2600
      %v2659 = vadd.f32 %v2120, %v2603
      %v2660 = vadd.f32 %v2121, %v2608
      %v2661 = vadd.f32 %v2122, %v2611
      %v2662 = vadd.f32 %v2123, %v2616
      %v2663 = vadd.f32 %v2124, %v2619
      %v2664 = vadd.f32 %v2125, %v2624
      %v2665 = vadd.f32 %v2126, %v2627
      %v2666 = vadd.f32 %v2127, %v2632
      %v2667 = vadd.f32 %v2128, %v2635
      %v2668 = vadd.f32 %v2129, %v2640
      %v2669 = vadd.f32 %v2130, %v2643
      %v2670 = vld [vmem:[%s517] sm:$0xff]
      %v2671 = vld [vmem:[%s517 + $0x8] sm:$0xff]
      %v2672 = vld [vmem:[%s517 + $0x10] sm:$0xff]
      %v2673 = vld [vmem:[%s517 + $0x18] sm:$0xff]
      %v2674 = vld [vmem:[%s517 + $0x20] sm:$0xff]
      %v2675 = vld [vmem:[%s517 + $0x28] sm:$0xff]
      %v2676 = vld [vmem:[%s517 + $0x30] sm:$0xff]
      %v2677 = vld [vmem:[%s517 + $0x38] sm:$0xff]
      %v2678 = vld [vmem:[%s517 + $0x40] sm:$0xff]
      %v2679 = vld [vmem:[%s517 + $0x48] sm:$0xff]
      %v2680 = vld [vmem:[%s517 + $0x50] sm:$0xff]
      %v2681 = vld [vmem:[%s517 + $0x58] sm:$0xff]
      %s2682 = scalar_lea.vmem %s2, 320
      %v2683 = vld [vmem:[%s2682] sm:$0xf]
      %v2684 = vld [vmem:[%s2682 + $0x4] sm:$0xf]
      %v2685 = vld [vmem:[%s2682 + $0x8] sm:$0xf]
      %v2686 = vld [vmem:[%s2682 + $0xc] sm:$0xf]
      %v2687 = vld [vmem:[%s2682 + $0x10] sm:$0xf]
      %v2688 = vld [vmem:[%s2682 + $0x14] sm:$0xf]
      %v2689 = vld [vmem:[%s2682 + $0x18] sm:$0xf]
      %v2690 = vld [vmem:[%s2682 + $0x1c] sm:$0xf]
      %v2691 = vld [vmem:[%s2682 + $0x20] sm:$0xf]
      %v2692 = vld [vmem:[%s2682 + $0x24] sm:$0xf]
      %v2693 = vld [vmem:[%s2682 + $0x28] sm:$0xf]
      %v2694 = vld [vmem:[%s2682 + $0x2c] sm:$0xf]
      %v2695 = vld [vmem:[%s2682 + $0x30] sm:$0xf]
      %v2696 = vld [vmem:[%s2682 + $0x34] sm:$0xf]
      %v2697 = vld [vmem:[%s2682 + $0x38] sm:$0xf]
      %v2698 = vld [vmem:[%s2682 + $0x3c] sm:$0xf]
      %v2715 = vunpack.c.l.b16 %v2683
      %v2716 = vunpack.c.l.b16 %v2684
      %v2717 = vunpack.c.l.b16 %v2685
      %v2718 = vunpack.c.l.b16 %v2686
      %v2719 = vunpack.c.l.b16 %v2687
      %v2720 = vunpack.c.l.b16 %v2688
      %v2721 = vunpack.c.l.b16 %v2689
      %v2722 = vunpack.c.l.b16 %v2690
      %v2723 = vunpack.c.l.b16 %v2691
      %v2724 = vunpack.c.l.b16 %v2692
      %v2725 = vunpack.c.l.b16 %v2693
      %v2726 = vunpack.c.l.b16 %v2694
      %v2727 = vunpack.c.l.b16 %v2695
      %v2728 = vunpack.c.l.b16 %v2696
      %v2729 = vunpack.c.l.b16 %v2697
      %v2730 = vunpack.c.l.b16 %v2698
      %v2731 = vpack.c.b16 %v2716, %v2715
      %v2732 = vpack.c.b16 %v2718, %v2717
      %v2733 = vpack.c.b16 %v2720, %v2719
      %v2734 = vpack.c.b16 %v2722, %v2721
      %v2735 = vpack.c.b16 %v2724, %v2723
      %v2736 = vpack.c.b16 %v2726, %v2725
      %v2737 = vpack.c.b16 %v2728, %v2727
      %v2738 = vpack.c.b16 %v2730, %v2729
      %2747 = vmatprep.subr.bf16.mxu0 0
      %2748 = vmatpush1.bf16.msra.mxu0 %v2731
      %2749 = vmatprep.subr.bf16.mxu0 0
      %2750 = vmatpush1.bf16.msra.mxu0 %v2732
      %2751 = vmatprep.subr.bf16.mxu0 0
      %2752 = vmatpush1.bf16.msra.mxu0 %v2733
      %2753 = vmatprep.subr.bf16.mxu0 0
      %2754 = vmatpush1.bf16.msra.mxu0 %v2734
      %2755 = vmatprep.subr.bf16.mxu0 0
      %2756 = vmatpush1.bf16.msra.mxu0 %v2735
      %2757 = vmatprep.subr.bf16.mxu0 0
      %2758 = vmatpush1.bf16.msra.mxu0 %v2736
      %2759 = vmatprep.subr.bf16.mxu0 0
      %2760 = vmatpush1.bf16.msra.mxu0 %v2737
      %2761 = vmatprep.subr.bf16.mxu0 0
      %2762 = vmatpush1.bf16.msra.mxu0 %v2738
      %2763 = vmatprep.subr.bf16.mxu0 0
      %2764 = vmatpush1.bf16.msra.mxu0 0
      %2765 = vmatprep.subr.bf16.mxu0 0
      %2766 = vmatpush1.bf16.msra.mxu0 0
      %2767 = vmatprep.subr.bf16.mxu0 0
      %2768 = vmatpush1.bf16.msra.mxu0 0
      %2769 = vmatprep.subr.bf16.mxu0 0
      %2770 = vmatpush1.bf16.msra.mxu0 0
      %2771 = vmatprep.subr.bf16.mxu0 0
      %2772 = vmatpush1.bf16.msra.mxu0 0
      %2773 = vmatprep.subr.bf16.mxu0 0
      %2774 = vmatpush1.bf16.msra.mxu0 0
      %2775 = vmatprep.subr.bf16.mxu0 0
      %2776 = vmatpush1.bf16.msra.mxu0 0
      %2777 = vmatprep.subr.bf16.mxu0 0
      %2778 = vmatpush1.bf16.msra.mxu0 0
      %2779 = vmatprep.mubr.bf16.mxu0 0
      %2780 = vmatmul.mubr.bf16.gmra.mrb[0].mxu0 %v2670
      %v2781 = vpop.f32.mrb[0].mxu0
      %v2782 = vadd.f32 0.0, %v2781
      %v2783 = vpop.f32.mrb[0].mxu0
      %v2784 = vpop.f32.mrb[0].mxu0
      %v2785 = vadd.f32 0.0, %v2784
      %v2786 = vpop.f32.mrb[0].mxu0
      %2787 = vmatprep.mubr.bf16.mxu0 0
      %2788 = vmatmul.mubr.bf16.gmra.mrb[0].mxu0 %v2671
      %v2789 = vpop.f32.mrb[0].mxu0
      %v2790 = vadd.f32 0.0, %v2789
      %v2791 = vpop.f32.mrb[0].mxu0
      %v2792 = vpop.f32.mrb[0].mxu0
      %v2793 = vadd.f32 0.0, %v2792
      %v2794 = vpop.f32.mrb[0].mxu0
      %2795 = vmatprep.mubr.bf16.mxu0 0
      %2796 = vmatmul.mubr.bf16.gmra.mrb[0].mxu0 %v2672
      %v2797 = vpop.f32.mrb[0].mxu0
      %v2798 = vadd.f32 0.0, %v2797
      %v2799 = vpop.f32.mrb[0].mxu0
      %v2800 = vpop.f32.mrb[0].mxu0
      %v2801 = vadd.f32 0.0, %v2800
      %v2802 = vpop.f32.mrb[0].mxu0
      %2803 = vmatprep.mubr.bf16.mxu0 0
      %2804 = vmatmul.mubr.bf16.gmra.mrb[0].mxu0 %v2673
      %v2805 = vpop.f32.mrb[0].mxu0
      %v2806 = vadd.f32 0.0, %v2805
      %v2807 = vpop.f32.mrb[0].mxu0
      %v2808 = vpop.f32.mrb[0].mxu0
      %v2809 = vadd.f32 0.0, %v2808
      %v2810 = vpop.f32.mrb[0].mxu0
      %2811 = vmatprep.mubr.bf16.mxu0 0
      %2812 = vmatmul.mubr.bf16.gmra.mrb[0].mxu0 %v2674
      %v2813 = vpop.f32.mrb[0].mxu0
      %v2814 = vadd.f32 0.0, %v2813
      %v2815 = vpop.f32.mrb[0].mxu0
      %v2816 = vpop.f32.mrb[0].mxu0
      %v2817 = vadd.f32 0.0, %v2816
      %v2818 = vpop.f32.mrb[0].mxu0
      %2819 = vmatprep.mubr.bf16.mxu0 0
      %2820 = vmatmul.mubr.bf16.gmra.mrb[0].mxu0 %v2675
      %v2821 = vpop.f32.mrb[0].mxu0
      %v2822 = vadd.f32 0.0, %v2821
      %v2823 = vpop.f32.mrb[0].mxu0
      %v2824 = vpop.f32.mrb[0].mxu0
      %v2825 = vadd.f32 0.0, %v2824
      %v2826 = vpop.f32.mrb[0].mxu0
      %2827 = vmatprep.mubr.bf16.mxu0 0
      %2828 = vmatmul.mubr.bf16.gmra.mrb[0].mxu0 %v2676
      %v2829 = vpop.f32.mrb[0].mxu0
      %v2830 = vadd.f32 0.0, %v2829
      %v2831 = vpop.f32.mrb[0].mxu0
      %v2832 = vpop.f32.mrb[0].mxu0
      %v2833 = vadd.f32 0.0, %v2832
      %v2834 = vpop.f32.mrb[0].mxu0
      %2835 = vmatprep.mubr.bf16.mxu0 0
      %2836 = vmatmul.mubr.bf16.gmra.mrb[0].mxu0 %v2677
      %v2837 = vpop.f32.mrb[0].mxu0
      %v2838 = vadd.f32 0.0, %v2837
      %v2839 = vpop.f32.mrb[0].mxu0
      %v2840 = vpop.f32.mrb[0].mxu0
      %v2841 = vadd.f32 0.0, %v2840
      %v2842 = vpop.f32.mrb[0].mxu0
      %2843 = vmatprep.mubr.bf16.mxu0 0
      %2844 = vmatmul.mubr.bf16.gmra.mrb[0].mxu0 %v2678
      %v2845 = vpop.f32.mrb[0].mxu0
      %v2846 = vadd.f32 0.0, %v2845
      %v2847 = vpop.f32.mrb[0].mxu0
      %v2848 = vpop.f32.mrb[0].mxu0
      %v2849 = vadd.f32 0.0, %v2848
      %v2850 = vpop.f32.mrb[0].mxu0
      %2851 = vmatprep.mubr.bf16.mxu0 0
      %2852 = vmatmul.mubr.bf16.gmra.mrb[0].mxu0 %v2679
      %v2853 = vpop.f32.mrb[0].mxu0
      %v2854 = vadd.f32 0.0, %v2853
      %v2855 = vpop.f32.mrb[0].mxu0
      %v2856 = vpop.f32.mrb[0].mxu0
      %v2857 = vadd.f32 0.0, %v2856
      %v2858 = vpop.f32.mrb[0].mxu0
      %2859 = vmatprep.mubr.bf16.mxu0 0
      %2860 = vmatmul.mubr.bf16.gmra.mrb[0].mxu0 %v2680
      %v2861 = vpop.f32.mrb[0].mxu0
      %v2862 = vadd.f32 0.0, %v2861
      %v2863 = vpop.f32.mrb[0].mxu0
      %v2864 = vpop.f32.mrb[0].mxu0
      %v2865 = vadd.f32 0.0, %v2864
      %v2866 = vpop.f32.mrb[0].mxu0
      %2867 = vmatprep.mubr.bf16.mxu0 0
      %2868 = vmatmul.mubr.bf16.gmra.mrb[0].mxu0 %v2681
      %v2869 = vpop.f32.mrb[0].mxu0
      %v2870 = vadd.f32 0.0, %v2869
      %v2871 = vpop.f32.mrb[0].mxu0
      %v2872 = vpop.f32.mrb[0].mxu0
      %v2873 = vadd.f32 0.0, %v2872
      %v2874 = vpop.f32.mrb[0].mxu0
      %2875 = vdwg.mxu0
      %v2876 = vadd.f32 %v2646, %v2782
      %v2877 = vadd.f32 %v2647, %v2785
      %v2878 = vadd.f32 %v2648, %v2790
      %v2879 = vadd.f32 %v2649, %v2793
      %v2880 = vadd.f32 %v2650, %v2798
      %v2881 = vadd.f32 %v2651, %v2801
      %v2882 = vadd.f32 %v2652, %v2806
      %v2883 = vadd.f32 %v2653, %v2809
      %v2884 = vadd.f32 %v2654, %v2814
      %v2885 = vadd.f32 %v2655, %v2817
      %v2886 = vadd.f32 %v2656, %v2822
      %v2887 = vadd.f32 %v2657, %v2825
      %v2888 = vadd.f32 %v2658, %v2830
      %v2889 = vadd.f32 %v2659, %v2833
      %v2890 = vadd.f32 %v2660, %v2838
      %v2891 = vadd.f32 %v2661, %v2841
      %v2892 = vadd.f32 %v2662, %v2846
      %v2893 = vadd.f32 %v2663, %v2849
      %v2894 = vadd.f32 %v2664, %v2854
      %v2895 = vadd.f32 %v2665, %v2857
      %v2896 = vadd.f32 %v2666, %v2862
      %v2897 = vadd.f32 %v2667, %v2865
      %v2898 = vadd.f32 %v2668, %v2870
      %v2899 = vadd.f32 %v2669, %v2873
      %v2900 = vld [vmem:[%s901] sm:$0xff]
      %v2901 = vld [vmem:[%s901 + $0x8] sm:$0xff]
      %v2902 = vld [vmem:[%s901 + $0x10] sm:$0xff]
      %v2903 = vld [vmem:[%s901 + $0x18] sm:$0xff]
      %v2904 = vld [vmem:[%s901 + $0x20] sm:$0xff]
      %v2905 = vld [vmem:[%s901 + $0x28] sm:$0xff]
      %v2906 = vld [vmem:[%s901 + $0x30] sm:$0xff]
      %v2907 = vld [vmem:[%s901 + $0x38] sm:$0xff]
      %v2908 = vld [vmem:[%s901 + $0x40] sm:$0xff]
      %v2909 = vld [vmem:[%s901 + $0x48] sm:$0xff]
      %v2910 = vld [vmem:[%s901 + $0x50] sm:$0xff]
      %v2911 = vld [vmem:[%s901 + $0x58] sm:$0xff]
      %s2912 = scalar_lea.vmem %s2, 512
      %v2913 = vld [vmem:[%s2912] sm:$0xf]
      %v2914 = vld [vmem:[%s2912 + $0x4] sm:$0xf]
      %v2915 = vld [vmem:[%s2912 + $0x8] sm:$0xf]
      %v2916 = vld [vmem:[%s2912 + $0xc] sm:$0xf]
      %v2917 = vld [vmem:[%s2912 + $0x10] sm:$0xf]
      %v2918 = vld [vmem:[%s2912 + $0x14] sm:$0xf]
      %v2919 = vld [vmem:[%s2912 + $0x18] sm:$0xf]
      %v2920 = vld [vmem:[%s2912 + $0x1c] sm:$0xf]
      %v2921 = vld [vmem:[%s2912 + $0x20] sm:$0xf]
      %v2922 = vld [vmem:[%s2912 + $0x24] sm:$0xf]
      %v2923 = vld [vmem:[%s2912 + $0x28] sm:$0xf]
      %v2924 = vld [vmem:[%s2912 + $0x2c] sm:$0xf]
      %v2925 = vld [vmem:[%s2912 + $0x30] sm:$0xf]
      %v2926 = vld [vmem:[%s2912 + $0x34] sm:$0xf]
      %v2927 = vld [vmem:[%s2912 + $0x38] sm:$0xf]
      %v2928 = vld [vmem:[%s2912 + $0x3c] sm:$0xf]
      %v2945 = vunpack.c.l.b16 %v2913
      %v2946 = vunpack.c.l.b16 %v2914
      %v2947 = vunpack.c.l.b16 %v2915
      %v2948 = vunpack.c.l.b16 %v2916
      %v2949 = vunpack.c.l.b16 %v2917
      %v2950 = vunpack.c.l.b16 %v2918
      %v2951 = vunpack.c.l.b16 %v2919
      %v2952 = vunpack.c.l.b16 %v2920
      %v2953 = vunpack.c.l.b16 %v2921
      %v2954 = vunpack.c.l.b16 %v2922
      %v2955 = vunpack.c.l.b16 %v2923
      %v2956 = vunpack.c.l.b16 %v2924
      %v2957 = vunpack.c.l.b16 %v2925
      %v2958 = vunpack.c.l.b16 %v2926
      %v2959 = vunpack.c.l.b16 %v2927
      %v2960 = vunpack.c.l.b16 %v2928
      %v2961 = vpack.c.b16 %v2946, %v2945
      %v2962 = vpack.c.b16 %v2948, %v2947
      %v2963 = vpack.c.b16 %v2950, %v2949
      %v2964 = vpack.c.b16 %v2952, %v2951
      %v2965 = vpack.c.b16 %v2954, %v2953
      %v2966 = vpack.c.b16 %v2956, %v2955
      %v2967 = vpack.c.b16 %v2958, %v2957
      %v2968 = vpack.c.b16 %v2960, %v2959
      %2977 = vmatprep.subr.bf16.mxu0 0
      %2978 = vmatpush1.bf16.msra.mxu0 %v2961
      %2979 = vmatprep.subr.bf16.mxu0 0
      %2980 = vmatpush1.bf16.msra.mxu0 %v2962
      %2981 = vmatprep.subr.bf16.mxu0 0
      %2982 = vmatpush1.bf16.msra.mxu0 %v2963
      %2983 = vmatprep.subr.bf16.mxu0 0
      %2984 = vmatpush1.bf16.msra.mxu0 %v2964
      %2985 = vmatprep.subr.bf16.mxu0 0
      %2986 = vmatpush1.bf16.msra.mxu0 %v2965
      %2987 = vmatprep.subr.bf16.mxu0 0
      %2988 = vmatpush1.bf16.msra.mxu0 %v2966
      %2989 = vmatprep.subr.bf16.mxu0 0
      %2990 = vmatpush1.bf16.msra.mxu0 %v2967
      %2991 = vmatprep.subr.bf16.mxu0 0
      %2992 = vmatpush1.bf16.msra.mxu0 %v2968
      %2993 = vmatprep.subr.bf16.mxu0 0
      %2994 = vmatpush1.bf16.msra.mxu0 0
      %2995 = vmatprep.subr.bf16.mxu0 0
      %2996 = vmatpush1.bf16.msra.mxu0 0
      %2997 = vmatprep.subr.bf16.mxu0 0
      %2998 = vmatpush1.bf16.msra.mxu0 0
      %2999 = vmatprep.subr.bf16.mxu0 0
      %3000 = vmatpush1.bf16.msra.mxu0 0
      %3001 = vmatprep.subr.bf16.mxu0 0
      %3002 = vmatpush1.bf16.msra.mxu0 0
      %3003 = vmatprep.subr.bf16.mxu0 0
      %3004 = vmatpush1.bf16.msra.mxu0 0
      %3005 = vmatprep.subr.bf16.mxu0 0
      %3006 = vmatpush1.bf16.msra.mxu0 0
      %3007 = vmatprep.subr.bf16.mxu0 0
      %3008 = vmatpush1.bf16.msra.mxu0 0
      %3009 = vmatprep.mubr.bf16.mxu0 0
      %3010 = vmatmul.mubr.bf16.gmra.mrb[0].mxu0 %v2900
      %v3011 = vpop.f32.mrb[0].mxu0
      %v3012 = vadd.f32 0.0, %v3011
      %v3013 = vpop.f32.mrb[0].mxu0
      %v3014 = vpop.f32.mrb[0].mxu0
      %v3015 = vadd.f32 0.0, %v3014
      %v3016 = vpop.f32.mrb[0].mxu0
      %3017 = vmatprep.mubr.bf16.mxu0 0
      %3018 = vmatmul.mubr.bf16.gmra.mrb[0].mxu0 %v2901
      %v3019 = vpop.f32.mrb[0].mxu0
      %v3020 = vadd.f32 0.0, %v3019
      %v3021 = vpop.f32.mrb[0].mxu0
      %v3022 = vpop.f32.mrb[0].mxu0
      %v3023 = vadd.f32 0.0, %v3022
      %v3024 = vpop.f32.mrb[0].mxu0
      %3025 = vmatprep.mubr.bf16.mxu0 0
      %3026 = vmatmul.mubr.bf16.gmra.mrb[0].mxu0 %v2902
      %v3027 = vpop.f32.mrb[0].mxu0
      %v3028 = vadd.f32 0.0, %v3027
      %v3029 = vpop.f32.mrb[0].mxu0
      %v3030 = vpop.f32.mrb[0].mxu0
      %v3031 = vadd.f32 0.0, %v3030
      %v3032 = vpop.f32.mrb[0].mxu0
      %3033 = vmatprep.mubr.bf16.mxu0 0
      %3034 = vmatmul.mubr.bf16.gmra.mrb[0].mxu0 %v2903
      %v3035 = vpop.f32.mrb[0].mxu0
      %v3036 = vadd.f32 0.0, %v3035
      %v3037 = vpop.f32.mrb[0].mxu0
      %v3038 = vpop.f32.mrb[0].mxu0
      %v3039 = vadd.f32 0.0, %v3038
      %v3040 = vpop.f32.mrb[0].mxu0
      %3041 = vmatprep.mubr.bf16.mxu0 0
      %3042 = vmatmul.mubr.bf16.gmra.mrb[0].mxu0 %v2904
      %v3043 = vpop.f32.mrb[0].mxu0
      %v3044 = vadd.f32 0.0, %v3043
      %v3045 = vpop.f32.mrb[0].mxu0
      %v3046 = vpop.f32.mrb[0].mxu0
      %v3047 = vadd.f32 0.0, %v3046
      %v3048 = vpop.f32.mrb[0].mxu0
      %3049 = vmatprep.mubr.bf16.mxu0 0
      %3050 = vmatmul.mubr.bf16.gmra.mrb[0].mxu0 %v2905
      %v3051 = vpop.f32.mrb[0].mxu0
      %v3052 = vadd.f32 0.0, %v3051
      %v3053 = vpop.f32.mrb[0].mxu0
      %v3054 = vpop.f32.mrb[0].mxu0
      %v3055 = vadd.f32 0.0, %v3054
      %v3056 = vpop.f32.mrb[0].mxu0
      %3057 = vmatprep.mubr.bf16.mxu0 0
      %3058 = vmatmul.mubr.bf16.gmra.mrb[0].mxu0 %v2906
      %v3059 = vpop.f32.mrb[0].mxu0
      %v3060 = vadd.f32 0.0, %v3059
      %v3061 = vpop.f32.mrb[0].mxu0
      %v3062 = vpop.f32.mrb[0].mxu0
      %v3063 = vadd.f32 0.0, %v3062
      %v3064 = vpop.f32.mrb[0].mxu0
      %3065 = vmatprep.mubr.bf16.mxu0 0
      %3066 = vmatmul.mubr.bf16.gmra.mrb[0].mxu0 %v2907
      %v3067 = vpop.f32.mrb[0].mxu0
      %v3068 = vadd.f32 0.0, %v3067
      %v3069 = vpop.f32.mrb[0].mxu0
      %v3070 = vpop.f32.mrb[0].mxu0
      %v3071 = vadd.f32 0.0, %v3070
      %v3072 = vpop.f32.mrb[0].mxu0
      %3073 = vmatprep.mubr.bf16.mxu0 0
      %3074 = vmatmul.mubr.bf16.gmra.mrb[0].mxu0 %v2908
      %v3075 = vpop.f32.mrb[0].mxu0
      %v3076 = vadd.f32 0.0, %v3075
      %v3077 = vpop.f32.mrb[0].mxu0
      %v3078 = vpop.f32.mrb[0].mxu0
      %v3079 = vadd.f32 0.0, %v3078
      %v3080 = vpop.f32.mrb[0].mxu0
      %3081 = vmatprep.mubr.bf16.mxu0 0
      %3082 = vmatmul.mubr.bf16.gmra.mrb[0].mxu0 %v2909
      %v3083 = vpop.f32.mrb[0].mxu0
      %v3084 = vadd.f32 0.0, %v3083
      %v3085 = vpop.f32.mrb[0].mxu0
      %v3086 = vpop.f32.mrb[0].mxu0
      %v3087 = vadd.f32 0.0, %v3086
      %v3088 = vpop.f32.mrb[0].mxu0
      %3089 = vmatprep.mubr.bf16.mxu0 0
      %3090 = vmatmul.mubr.bf16.gmra.mrb[0].mxu0 %v2910
      %v3091 = vpop.f32.mrb[0].mxu0
      %v3092 = vadd.f32 0.0, %v3091
      %v3093 = vpop.f32.mrb[0].mxu0
      %v3094 = vpop.f32.mrb[0].mxu0
      %v3095 = vadd.f32 0.0, %v3094
      %v3096 = vpop.f32.mrb[0].mxu0
      %3097 = vmatprep.mubr.bf16.mxu0 0
      %3098 = vmatmul.mubr.bf16.gmra.mrb[0].mxu0 %v2911
      %v3099 = vpop.f32.mrb[0].mxu0
      %v3100 = vadd.f32 0.0, %v3099
      %v3101 = vpop.f32.mrb[0].mxu0
      %v3102 = vpop.f32.mrb[0].mxu0
      %v3103 = vadd.f32 0.0, %v3102
      %v3104 = vpop.f32.mrb[0].mxu0
      %3105 = vdwg.mxu0
      %v3106 = vadd.f32 %v2876, %v3012
      %v3107 = vadd.f32 %v2877, %v3015
      %v3108 = vadd.f32 %v2878, %v3020
      %v3109 = vadd.f32 %v2879, %v3023
      %v3110 = vadd.f32 %v2880, %v3028
      %v3111 = vadd.f32 %v2881, %v3031
      %v3112 = vadd.f32 %v2882, %v3036
      %v3113 = vadd.f32 %v2883, %v3039
      %v3114 = vadd.f32 %v2884, %v3044
      %v3115 = vadd.f32 %v2885, %v3047
      %v3116 = vadd.f32 %v2886, %v3052
      %v3117 = vadd.f32 %v2887, %v3055
      %v3118 = vadd.f32 %v2888, %v3060
      %v3119 = vadd.f32 %v2889, %v3063
      %v3120 = vadd.f32 %v2890, %v3068
      %v3121 = vadd.f32 %v2891, %v3071
      %v3122 = vadd.f32 %v2892, %v3076
      %v3123 = vadd.f32 %v2893, %v3079
      %v3124 = vadd.f32 %v2894, %v3084
      %v3125 = vadd.f32 %v2895, %v3087
      %v3126 = vadd.f32 %v2896, %v3092
      %v3127 = vadd.f32 %v2897, %v3095
      %v3128 = vadd.f32 %v2898, %v3100
      %v3129 = vadd.f32 %v2899, %v3103
      %v3130 = vld [vmem:[%s3] sm:$0x1]
      %v3132 = vlaneseq
      %v3133 = vshrl.u32 %v3132, 7
      %v3134 = vsub.s32 0, %v3133
      %v3135 = vrot.slane %v3130, %v3134
      %v3137 = vadd.f32 %v3106, %v3135
      %v3138 = vadd.f32 %v3107, %v3135
      %v3139 = vadd.f32 %v3108, %v3135
      %v3140 = vadd.f32 %v3109, %v3135
      %v3141 = vadd.f32 %v3110, %v3135
      %v3142 = vadd.f32 %v3111, %v3135
      %v3143 = vadd.f32 %v3112, %v3135
      %v3144 = vadd.f32 %v3113, %v3135
      %v3145 = vadd.f32 %v3114, %v3135
      %v3146 = vadd.f32 %v3115, %v3135
      %v3147 = vadd.f32 %v3116, %v3135
      %v3148 = vadd.f32 %v3117, %v3135
      %v3149 = vadd.f32 %v3118, %v3135
      %v3150 = vadd.f32 %v3119, %v3135
      %v3151 = vadd.f32 %v3120, %v3135
      %v3152 = vadd.f32 %v3121, %v3135
      %v3153 = vadd.f32 %v3122, %v3135
      %v3154 = vadd.f32 %v3123, %v3135
      %v3155 = vadd.f32 %v3124, %v3135
      %v3156 = vadd.f32 %v3125, %v3135
      %v3157 = vadd.f32 %v3126, %v3135
      %v3158 = vadd.f32 %v3127, %v3135
      %v3159 = vadd.f32 %v3128, %v3135
      %v3160 = vadd.f32 %v3129, %v3135
      %v3161 = vmax.f32 %v3137, 0.0
      %v3162 = vmax.f32 %v3138, 0.0
      %v3163 = vmax.f32 %v3139, 0.0
      %v3164 = vmax.f32 %v3140, 0.0
      %v3165 = vmax.f32 %v3141, 0.0
      %v3166 = vmax.f32 %v3142, 0.0
      %v3167 = vmax.f32 %v3143, 0.0
      %v3168 = vmax.f32 %v3144, 0.0
      %v3169 = vmax.f32 %v3145, 0.0
      %v3170 = vmax.f32 %v3146, 0.0
      %v3171 = vmax.f32 %v3147, 0.0
      %v3172 = vmax.f32 %v3148, 0.0
      %v3173 = vmax.f32 %v3149, 0.0
      %v3174 = vmax.f32 %v3150, 0.0
      %v3175 = vmax.f32 %v3151, 0.0
      %v3176 = vmax.f32 %v3152, 0.0
      %v3177 = vmax.f32 %v3153, 0.0
      %v3178 = vmax.f32 %v3154, 0.0
      %v3179 = vmax.f32 %v3155, 0.0
      %v3180 = vmax.f32 %v3156, 0.0
      %v3181 = vmax.f32 %v3157, 0.0
      %v3182 = vmax.f32 %v3158, 0.0
      %v3183 = vmax.f32 %v3159, 0.0
      %v3184 = vmax.f32 %v3160, 0.0
      %v3185 = vlaneseq
      %v3186 = vshrl.u32 %v3185, 7
      %v3187 = vadd.s32 %v3186, 8
      %v3188 = vadd.s32 %v3186, 16
      %v3189 = vadd.s32 %v3186, 24
      %s3190 = smul.u32 %s22, 4
      %v3191 = vstv %s3190
      %v3192 = vadd.s32 %v3191, 2
      %v3193 = vadd.s32 %v3191, 3
      %v3194 = vadd.s32 %v3191, 4
      %v3195 = vadd.s32 %v3191, 5
      %v3196 = vsub.s32 %v3191, 1
      %v3197 = vsub.s32 %v3192, 1
      %v3198 = vsub.s32 %v3193, 1
      %v3199 = vsub.s32 %v3194, 1
      %v3200 = vsub.s32 %v3195, 1
      %vm3201 = vcmp.ge.s32.totalorder %v3196, 0
      %vm3202 = vcmp.ge.s32.totalorder %v3191, 0
      %vm3203 = vcmp.ge.s32.totalorder %v3197, 0
      %vm3204 = vcmp.ge.s32.totalorder %v3198, 0
      %vm3205 = vcmp.ge.s32.totalorder %v3199, 0
      %vm3206 = vcmp.ge.s32.totalorder %v3200, 0
      %vm3207 = vcmp.le.s32.totalorder %v3196, 15
      %vm3208 = vcmp.le.s32.totalorder %v3191, 15
      %vm3209 = vcmp.le.s32.totalorder %v3197, 15
      %vm3210 = vcmp.le.s32.totalorder %v3198, 15
      %vm3211 = vcmp.le.s32.totalorder %v3199, 15
      %vm3212 = vcmp.le.s32.totalorder %v3200, 15
      %vm3213 = vmand %vm3201, %vm3207
      %vm3214 = vmand %vm3202, %vm3208
      %vm3215 = vmand %vm3203, %vm3209
      %vm3216 = vmand %vm3204, %vm3210
      %vm3217 = vmand %vm3205, %vm3211
      %vm3218 = vmand %vm3206, %vm3212
      %vm3219 = vcmp.ge.s32.totalorder %v3186, 1
      %vm3220 = vcmp.ge.s32.totalorder %v3187, 1
      %vm3221 = vcmp.ge.s32.totalorder %v3188, 1
      %vm3222 = vcmp.ge.s32.totalorder %v3189, 1
      %vm3223 = vcmp.le.s32.totalorder %v3186, 16
      %vm3224 = vcmp.le.s32.totalorder %v3187, 16
      %vm3225 = vcmp.le.s32.totalorder %v3188, 16
      %vm3226 = vcmp.le.s32.totalorder %v3189, 16
      %vm3227 = vmand %vm3219, %vm3223
      %vm3228 = vmand %vm3220, %vm3224
      %vm3229 = vmand %vm3221, %vm3225
      %vm3230 = vmand %vm3222, %vm3226
      %vm3231 = vmand %vm3213, %vm3227
      %vm3232 = vmand %vm3213, %vm3228
      %vm3233 = vmand %vm3213, %vm3229
      %vm3234 = vmand %vm3213, %vm3230
      %vm3235 = vmand %vm3214, %vm3227
      %vm3236 = vmand %vm3214, %vm3228
      %vm3237 = vmand %vm3214, %vm3229
      %vm3238 = vmand %vm3214, %vm3230
      %vm3239 = vmand %vm3215, %vm3227
      %vm3240 = vmand %vm3215, %vm3228
      %vm3241 = vmand %vm3215, %vm3229
      %vm3242 = vmand %vm3215, %vm3230
      %vm3243 = vmand %vm3216, %vm3227
      %vm3244 = vmand %vm3216, %vm3228
      %vm3245 = vmand %vm3216, %vm3229
      %vm3246 = vmand %vm3216, %vm3230
      %vm3247 = vmand %vm3217, %vm3227
      %vm3248 = vmand %vm3217, %vm3228
      %vm3249 = vmand %vm3217, %vm3229
      %vm3250 = vmand %vm3217, %vm3230
      %vm3251 = vmand %vm3218, %vm3227
      %vm3252 = vmand %vm3218, %vm3228
      %vm3253 = vmand %vm3218, %vm3229
      %vm3254 = vmand %vm3218, %vm3230
      %v3255 = vsel %vm3231, 1, 0
      %v3256 = vsel %vm3232, 1, 0
      %v3257 = vsel %vm3233, 1, 0
      %v3258 = vsel %vm3234, 1, 0
      %v3259 = vsel %vm3235, 1, 0
      %v3260 = vsel %vm3236, 1, 0
      %v3261 = vsel %vm3237, 1, 0
      %v3262 = vsel %vm3238, 1, 0
      %v3263 = vsel %vm3239, 1, 0
      %v3264 = vsel %vm3240, 1, 0
      %v3265 = vsel %vm3241, 1, 0
      %v3266 = vsel %vm3242, 1, 0
      %v3267 = vsel %vm3243, 1, 0
      %v3268 = vsel %vm3244, 1, 0
      %v3269 = vsel %vm3245, 1, 0
      %v3270 = vsel %vm3246, 1, 0
      %v3271 = vsel %vm3247, 1, 0
      %v3272 = vsel %vm3248, 1, 0
      %v3273 = vsel %vm3249, 1, 0
      %v3274 = vsel %vm3250, 1, 0
      %v3275 = vsel %vm3251, 1, 0
      %v3276 = vsel %vm3252, 1, 0
      %v3277 = vsel %vm3253, 1, 0
      %v3278 = vsel %vm3254, 1, 0
      %vm3279 = vcmp.eq.s32.totalorder %v3255, 1
      %vm3280 = vcmp.eq.s32.totalorder %v3256, 1
      %vm3281 = vcmp.eq.s32.totalorder %v3257, 1
      %vm3282 = vcmp.eq.s32.totalorder %v3258, 1
      %vm3283 = vcmp.eq.s32.totalorder %v3259, 1
      %vm3284 = vcmp.eq.s32.totalorder %v3260, 1
      %vm3285 = vcmp.eq.s32.totalorder %v3261, 1
      %vm3286 = vcmp.eq.s32.totalorder %v3262, 1
      %vm3287 = vcmp.eq.s32.totalorder %v3263, 1
      %vm3288 = vcmp.eq.s32.totalorder %v3264, 1
      %vm3289 = vcmp.eq.s32.totalorder %v3265, 1
      %vm3290 = vcmp.eq.s32.totalorder %v3266, 1
      %vm3291 = vcmp.eq.s32.totalorder %v3267, 1
      %vm3292 = vcmp.eq.s32.totalorder %v3268, 1
      %vm3293 = vcmp.eq.s32.totalorder %v3269, 1
      %vm3294 = vcmp.eq.s32.totalorder %v3270, 1
      %vm3295 = vcmp.eq.s32.totalorder %v3271, 1
      %vm3296 = vcmp.eq.s32.totalorder %v3272, 1
      %vm3297 = vcmp.eq.s32.totalorder %v3273, 1
      %vm3298 = vcmp.eq.s32.totalorder %v3274, 1
      %vm3299 = vcmp.eq.s32.totalorder %v3275, 1
      %vm3300 = vcmp.eq.s32.totalorder %v3276, 1
      %vm3301 = vcmp.eq.s32.totalorder %v3277, 1
      %vm3302 = vcmp.eq.s32.totalorder %v3278, 1
      %v3303 = vsel %vm3279, %v3161, 0.0
      %v3304 = vsel %vm3280, %v3162, 0.0
      %v3305 = vsel %vm3281, %v3163, 0.0
      %v3306 = vsel %vm3282, %v3164, 0.0
      %v3307 = vsel %vm3283, %v3165, 0.0
      %v3308 = vsel %vm3284, %v3166, 0.0
      %v3309 = vsel %vm3285, %v3167, 0.0
      %v3310 = vsel %vm3286, %v3168, 0.0
      %v3311 = vsel %vm3287, %v3169, 0.0
      %v3312 = vsel %vm3288, %v3170, 0.0
      %v3313 = vsel %vm3289, %v3171, 0.0
      %v3314 = vsel %vm3290, %v3172, 0.0
      %v3315 = vsel %vm3291, %v3173, 0.0
      %v3316 = vsel %vm3292, %v3174, 0.0
      %v3317 = vsel %vm3293, %v3175, 0.0
      %v3318 = vsel %vm3294, %v3176, 0.0
      %v3319 = vsel %vm3295, %v3177, 0.0
      %v3320 = vsel %vm3296, %v3178, 0.0
      %v3321 = vsel %vm3297, %v3179, 0.0
      %v3322 = vsel %vm3298, %v3180, 0.0
      %v3323 = vsel %vm3299, %v3181, 0.0
      %v3324 = vsel %vm3300, %v3182, 0.0
      %v3325 = vsel %vm3301, %v3183, 0.0
      %v3326 = vsel %vm3302, %v3184, 0.0
      %v3327 = vpack.c.bf16 %v3304, %v3303
      %v3328 = vpack.c.bf16 %v3306, %v3305
      %v3329 = vpack.c.bf16 %v3308, %v3307
      %v3330 = vpack.c.bf16 %v3310, %v3309
      %v3331 = vpack.c.bf16 %v3312, %v3311
      %v3332 = vpack.c.bf16 %v3314, %v3313
      %v3333 = vpack.c.bf16 %v3316, %v3315
      %v3334 = vpack.c.bf16 %v3318, %v3317
      %v3335 = vpack.c.bf16 %v3320, %v3319
      %v3336 = vpack.c.bf16 %v3322, %v3321
      %v3337 = vpack.c.bf16 %v3324, %v3323
      %v3338 = vpack.c.bf16 %v3326, %v3325
      %3339 = vst [vmem:[#allocation3] sm:$0xff] %v3327
      %3340 = vst [vmem:[#allocation3 + $0x8] sm:$0xff] %v3328
      %3341 = vst [vmem:[#allocation3 + $0x10] sm:$0xff] %v3329
      %3342 = vst [vmem:[#allocation3 + $0x18] sm:$0xff] %v3330
      %3343 = vst [vmem:[#allocation3 + $0x20] sm:$0xff] %v3331
      %3344 = vst [vmem:[#allocation3 + $0x28] sm:$0xff] %v3332
      %3345 = vst [vmem:[#allocation3 + $0x30] sm:$0xff] %v3333
      %3346 = vst [vmem:[#allocation3 + $0x38] sm:$0xff] %v3334
      %3347 = vst [vmem:[#allocation3 + $0x40] sm:$0xff] %v3335
      %3348 = vst [vmem:[#allocation3 + $0x48] sm:$0xff] %v3336
      %3349 = vst [vmem:[#allocation3 + $0x50] sm:$0xff] %v3337
      %3350 = vst [vmem:[#allocation3 + $0x58] sm:$0xff] %v3338
      %v3351 = vld [vmem:[#allocation3] sm:$0xff]
      %v3352 = vld [vmem:[#allocation3 + $0x8] sm:$0xff]
      %v3353 = vld [vmem:[#allocation3 + $0x10] sm:$0xff]
      %v3354 = vld [vmem:[#allocation3 + $0x18] sm:$0xff]
      %v3355 = vld [vmem:[#allocation3 + $0x20] sm:$0xff]
      %v3356 = vld [vmem:[#allocation3 + $0x28] sm:$0xff]
      %v3357 = vld [vmem:[#allocation3 + $0x30] sm:$0xff]
      %v3358 = vld [vmem:[#allocation3 + $0x38] sm:$0xff]
      %s3359 = scalar_lea.vmem %s4, 64
      %v3360 = vld [vmem:[%s3359] sm:$0xf]
      %v3361 = vld [vmem:[%s3359 + $0x4] sm:$0xf]
      %v3362 = vld [vmem:[%s3359 + $0x8] sm:$0xf]
      %v3363 = vld [vmem:[%s3359 + $0xc] sm:$0xf]
      %v3364 = vld [vmem:[%s3359 + $0x10] sm:$0xf]
      %v3365 = vld [vmem:[%s3359 + $0x14] sm:$0xf]
      %v3366 = vld [vmem:[%s3359 + $0x18] sm:$0xf]
      %v3367 = vld [vmem:[%s3359 + $0x1c] sm:$0xf]
      %v3368 = vld [vmem:[%s3359 + $0x20] sm:$0xf]
      %v3369 = vld [vmem:[%s3359 + $0x24] sm:$0xf]
      %v3370 = vld [vmem:[%s3359 + $0x28] sm:$0xf]
      %v3371 = vld [vmem:[%s3359 + $0x2c] sm:$0xf]
      %v3372 = vld [vmem:[%s3359 + $0x30] sm:$0xf]
      %v3373 = vld [vmem:[%s3359 + $0x34] sm:$0xf]
      %v3374 = vld [vmem:[%s3359 + $0x38] sm:$0xf]
      %v3375 = vld [vmem:[%s3359 + $0x3c] sm:$0xf]
      %s3376 = scalar_lea.vmem [#allocation3], 16
      %v3377 = vld [vmem:[%s3376] sm:$0xff]
      %v3378 = vld [vmem:[%s3376 + $0x8] sm:$0xff]
      %v3379 = vld [vmem:[%s3376 + $0x10] sm:$0xff]
      %v3380 = vld [vmem:[%s3376 + $0x18] sm:$0xff]
      %v3381 = vld [vmem:[%s3376 + $0x20] sm:$0xff]
      %v3382 = vld [vmem:[%s3376 + $0x28] sm:$0xff]
      %v3383 = vld [vmem:[%s3376 + $0x30] sm:$0xff]
      %v3384 = vld [vmem:[%s3376 + $0x38] sm:$0xff]
      %s3385 = scalar_lea.vmem %s4, 256
      %v3386 = vld [vmem:[%s3385] sm:$0xf]
      %v3387 = vld [vmem:[%s3385 + $0x4] sm:$0xf]
      %v3388 = vld [vmem:[%s3385 + $0x8] sm:$0xf]
      %v3389 = vld [vmem:[%s3385 + $0xc] sm:$0xf]
      %v3390 = vld [vmem:[%s3385 + $0x10] sm:$0xf]
      %v3391 = vld [vmem:[%s3385 + $0x14] sm:$0xf]
      %v3392 = vld [vmem:[%s3385 + $0x18] sm:$0xf]
      %v3393 = vld [vmem:[%s3385 + $0x1c] sm:$0xf]
      %v3394 = vld [vmem:[%s3385 + $0x20] sm:$0xf]
      %v3395 = vld [vmem:[%s3385 + $0x24] sm:$0xf]
      %v3396 = vld [vmem:[%s3385 + $0x28] sm:$0xf]
      %v3397 = vld [vmem:[%s3385 + $0x2c] sm:$0xf]
      %v3398 = vld [vmem:[%s3385 + $0x30] sm:$0xf]
      %v3399 = vld [vmem:[%s3385 + $0x34] sm:$0xf]
      %v3400 = vld [vmem:[%s3385 + $0x38] sm:$0xf]
      %v3401 = vld [vmem:[%s3385 + $0x3c] sm:$0xf]
      %v3418 = vunpack.c.l.b16 %v3386
      %v3419 = vunpack.c.l.b16 %v3387
      %v3420 = vunpack.c.l.b16 %v3388
      %v3421 = vunpack.c.l.b16 %v3389
      %v3422 = vunpack.c.l.b16 %v3390
      %v3423 = vunpack.c.l.b16 %v3391
      %v3424 = vunpack.c.l.b16 %v3392
      %v3425 = vunpack.c.l.b16 %v3393
      %v3426 = vunpack.c.l.b16 %v3394
      %v3427 = vunpack.c.l.b16 %v3395
      %v3428 = vunpack.c.l.b16 %v3396
      %v3429 = vunpack.c.l.b16 %v3397
      %v3430 = vunpack.c.l.b16 %v3398
      %v3431 = vunpack.c.l.b16 %v3399
      %v3432 = vunpack.c.l.b16 %v3400
      %v3433 = vunpack.c.l.b16 %v3401
      %v3434 = vpack.c.b16 %v3419, %v3418
      %v3435 = vpack.c.b16 %v3421, %v3420
      %v3436 = vpack.c.b16 %v3423, %v3422
      %v3437 = vpack.c.b16 %v3425, %v3424
      %v3438 = vpack.c.b16 %v3427, %v3426
      %v3439 = vpack.c.b16 %v3429, %v3428
      %v3440 = vpack.c.b16 %v3431, %v3430
      %v3441 = vpack.c.b16 %v3433, %v3432
      %3450 = vmatprep.subr.bf16.mxu0 0
      %3451 = vmatpush1.bf16.msra.mxu0 %v3434
      %3452 = vmatprep.subr.bf16.mxu0 0
      %3453 = vmatpush1.bf16.msra.mxu0 %v3435
      %3454 = vmatprep.subr.bf16.mxu0 0
      %3455 = vmatpush1.bf16.msra.mxu0 %v3436
      %3456 = vmatprep.subr.bf16.mxu0 0
      %3457 = vmatpush1.bf16.msra.mxu0 %v3437
      %3458 = vmatprep.subr.bf16.mxu0 0
      %3459 = vmatpush1.bf16.msra.mxu0 %v3438
      %3460 = vmatprep.subr.bf16.mxu0 0
      %3461 = vmatpush1.bf16.msra.mxu0 %v3439
      %3462 = vmatprep.subr.bf16.mxu0 0
      %3463 = vmatpush1.bf16.msra.mxu0 %v3440
      %3464 = vmatprep.subr.bf16.mxu0 0
      %3465 = vmatpush1.bf16.msra.mxu0 %v3441
      %3466 = vmatprep.subr.bf16.mxu0 0
      %3467 = vmatpush1.bf16.msra.mxu0 0
      %3468 = vmatprep.subr.bf16.mxu0 0
      %3469 = vmatpush1.bf16.msra.mxu0 0
      %3470 = vmatprep.subr.bf16.mxu0 0
      %3471 = vmatpush1.bf16.msra.mxu0 0
      %3472 = vmatprep.subr.bf16.mxu0 0
      %3473 = vmatpush1.bf16.msra.mxu0 0
      %3474 = vmatprep.subr.bf16.mxu0 0
      %3475 = vmatpush1.bf16.msra.mxu0 0
      %3476 = vmatprep.subr.bf16.mxu0 0
      %3477 = vmatpush1.bf16.msra.mxu0 0
      %3478 = vmatprep.subr.bf16.mxu0 0
      %3479 = vmatpush1.bf16.msra.mxu0 0
      %3480 = vmatprep.subr.bf16.mxu0 0
      %3481 = vmatpush1.bf16.msra.mxu0 0
      %3482 = vmatprep.mubr.bf16.mxu0 0
      %3483 = vmatmul.mubr.bf16.gmra.mrb[0].mxu0 %v3377
      %v3484 = vpop.f32.mrb[0].mxu0
      %v3485 = vadd.f32 0.0, %v3484
      %v3486 = vpop.f32.mrb[0].mxu0
      %v3487 = vpop.f32.mrb[0].mxu0
      %v3488 = vadd.f32 0.0, %v3487
      %v3489 = vpop.f32.mrb[0].mxu0
      %3490 = vmatprep.mubr.bf16.mxu0 0
      %3491 = vmatmul.mubr.bf16.gmra.mrb[0].mxu0 %v3378
      %v3492 = vpop.f32.mrb[0].mxu0
      %v3493 = vadd.f32 0.0, %v3492
      %v3494 = vpop.f32.mrb[0].mxu0
      %v3495 = vpop.f32.mrb[0].mxu0
      %v3496 = vadd.f32 0.0, %v3495
      %v3497 = vpop.f32.mrb[0].mxu0
      %3498 = vmatprep.mubr.bf16.mxu0 0
      %3499 = vmatmul.mubr.bf16.gmra.mrb[0].mxu0 %v3379
      %v3500 = vpop.f32.mrb[0].mxu0
      %v3501 = vadd.f32 0.0, %v3500
      %v3502 = vpop.f32.mrb[0].mxu0
      %v3503 = vpop.f32.mrb[0].mxu0
      %v3504 = vadd.f32 0.0, %v3503
      %v3505 = vpop.f32.mrb[0].mxu0
      %3506 = vmatprep.mubr.bf16.mxu0 0
      %3507 = vmatmul.mubr.bf16.gmra.mrb[0].mxu0 %v3380
      %v3508 = vpop.f32.mrb[0].mxu0
      %v3509 = vadd.f32 0.0, %v3508
      %v3510 = vpop.f32.mrb[0].mxu0
      %v3511 = vpop.f32.mrb[0].mxu0
      %v3512 = vadd.f32 0.0, %v3511
      %v3513 = vpop.f32.mrb[0].mxu0
      %3514 = vmatprep.mubr.bf16.mxu0 0
      %3515 = vmatmul.mubr.bf16.gmra.mrb[0].mxu0 %v3381
      %v3516 = vpop.f32.mrb[0].mxu0
      %v3517 = vadd.f32 0.0, %v3516
      %v3518 = vpop.f32.mrb[0].mxu0
      %v3519 = vpop.f32.mrb[0].mxu0
      %v3520 = vadd.f32 0.0, %v3519
      %v3521 = vpop.f32.mrb[0].mxu0
      %3522 = vmatprep.mubr.bf16.mxu0 0
      %3523 = vmatmul.mubr.bf16.gmra.mrb[0].mxu0 %v3382
      %v3524 = vpop.f32.mrb[0].mxu0
      %v3525 = vadd.f32 0.0, %v3524
      %v3526 = vpop.f32.mrb[0].mxu0
      %v3527 = vpop.f32.mrb[0].mxu0
      %v3528 = vadd.f32 0.0, %v3527
      %v3529 = vpop.f32.mrb[0].mxu0
      %3530 = vmatprep.mubr.bf16.mxu0 0
      %3531 = vmatmul.mubr.bf16.gmra.mrb[0].mxu0 %v3383
      %v3532 = vpop.f32.mrb[0].mxu0
      %v3533 = vadd.f32 0.0, %v3532
      %v3534 = vpop.f32.mrb[0].mxu0
      %v3535 = vpop.f32.mrb[0].mxu0
      %v3536 = vadd.f32 0.0, %v3535
      %v3537 = vpop.f32.mrb[0].mxu0
      %3538 = vmatprep.mubr.bf16.mxu0 0
      %3539 = vmatmul.mubr.bf16.gmra.mrb[0].mxu0 %v3384
      %v3540 = vpop.f32.mrb[0].mxu0
      %v3541 = vadd.f32 0.0, %v3540
      %v3542 = vpop.f32.mrb[0].mxu0
      %v3543 = vpop.f32.mrb[0].mxu0
      %v3544 = vadd.f32 0.0, %v3543
      %v3545 = vpop.f32.mrb[0].mxu0
      %3546 = vdwg.mxu0
      %v3563 = vunpack.c.l.b16 %v3360
      %v3564 = vunpack.c.l.b16 %v3361
      %v3565 = vunpack.c.l.b16 %v3362
      %v3566 = vunpack.c.l.b16 %v3363
      %v3567 = vunpack.c.l.b16 %v3364
      %v3568 = vunpack.c.l.b16 %v3365
      %v3569 = vunpack.c.l.b16 %v3366
      %v3570 = vunpack.c.l.b16 %v3367
      %v3571 = vunpack.c.l.b16 %v3368
      %v3572 = vunpack.c.l.b16 %v3369
      %v3573 = vunpack.c.l.b16 %v3370
      %v3574 = vunpack.c.l.b16 %v3371
      %v3575 = vunpack.c.l.b16 %v3372
      %v3576 = vunpack.c.l.b16 %v3373
      %v3577 = vunpack.c.l.b16 %v3374
      %v3578 = vunpack.c.l.b16 %v3375
      %v3579 = vpack.c.b16 %v3564, %v3563
      %v3580 = vpack.c.b16 %v3566, %v3565
      %v3581 = vpack.c.b16 %v3568, %v3567
      %v3582 = vpack.c.b16 %v3570, %v3569
      %v3583 = vpack.c.b16 %v3572, %v3571
      %v3584 = vpack.c.b16 %v3574, %v3573
      %v3585 = vpack.c.b16 %v3576, %v3575
      %v3586 = vpack.c.b16 %v3578, %v3577
      %3595 = vmatprep.subr.bf16.mxu0 0
      %3596 = vmatpush1.bf16.msra.mxu0 %v3579
      %3597 = vmatprep.subr.bf16.mxu0 0
      %3598 = vmatpush1.bf16.msra.mxu0 %v3580
      %3599 = vmatprep.subr.bf16.mxu0 0
      %3600 = vmatpush1.bf16.msra.mxu0 %v3581
      %3601 = vmatprep.subr.bf16.mxu0 0
      %3602 = vmatpush1.bf16.msra.mxu0 %v3582
      %3603 = vmatprep.subr.bf16.mxu0 0
      %3604 = vmatpush1.bf16.msra.mxu0 %v3583
      %3605 = vmatprep.subr.bf16.mxu0 0
      %3606 = vmatpush1.bf16.msra.mxu0 %v3584
      %3607 = vmatprep.subr.bf16.mxu0 0
      %3608 = vmatpush1.bf16.msra.mxu0 %v3585
      %3609 = vmatprep.subr.bf16.mxu0 0
      %3610 = vmatpush1.bf16.msra.mxu0 %v3586
      %3611 = vmatprep.subr.bf16.mxu0 0
      %3612 = vmatpush1.bf16.msra.mxu0 0
      %3613 = vmatprep.subr.bf16.mxu0 0
      %3614 = vmatpush1.bf16.msra.mxu0 0
      %3615 = vmatprep.subr.bf16.mxu0 0
      %3616 = vmatpush1.bf16.msra.mxu0 0
      %3617 = vmatprep.subr.bf16.mxu0 0
      %3618 = vmatpush1.bf16.msra.mxu0 0
      %3619 = vmatprep.subr.bf16.mxu0 0
      %3620 = vmatpush1.bf16.msra.mxu0 0
      %3621 = vmatprep.subr.bf16.mxu0 0
      %3622 = vmatpush1.bf16.msra.mxu0 0
      %3623 = vmatprep.subr.bf16.mxu0 0
      %3624 = vmatpush1.bf16.msra.mxu0 0
      %3625 = vmatprep.subr.bf16.mxu0 0
      %3626 = vmatpush1.bf16.msra.mxu0 0
      %3627 = vmatprep.mubr.bf16.mxu0 0
      %3628 = vmatmul.mubr.bf16.gmra.mrb[0].mxu0 %v3351
      %v3629 = vpop.f32.mrb[0].mxu0
      %v3630 = vadd.f32 %v3485, %v3629
      %v3631 = vpop.f32.mrb[0].mxu0
      %v3632 = vpop.f32.mrb[0].mxu0
      %v3633 = vadd.f32 %v3488, %v3632
      %v3634 = vpop.f32.mrb[0].mxu0
      %3635 = vmatprep.mubr.bf16.mxu0 0
      %3636 = vmatmul.mubr.bf16.gmra.mrb[0].mxu0 %v3352
      %v3637 = vpop.f32.mrb[0].mxu0
      %v3638 = vadd.f32 %v3493, %v3637
      %v3639 = vpop.f32.mrb[0].mxu0
      %v3640 = vpop.f32.mrb[0].mxu0
      %v3641 = vadd.f32 %v3496, %v3640
      %v3642 = vpop.f32.mrb[0].mxu0
      %3643 = vmatprep.mubr.bf16.mxu0 0
      %3644 = vmatmul.mubr.bf16.gmra.mrb[0].mxu0 %v3353
      %v3645 = vpop.f32.mrb[0].mxu0
      %v3646 = vadd.f32 %v3501, %v3645
      %v3647 = vpop.f32.mrb[0].mxu0
      %v3648 = vpop.f32.mrb[0].mxu0
      %v3649 = vadd.f32 %v3504, %v3648
      %v3650 = vpop.f32.mrb[0].mxu0
      %3651 = vmatprep.mubr.bf16.mxu0 0
      %3652 = vmatmul.mubr.bf16.gmra.mrb[0].mxu0 %v3354
      %v3653 = vpop.f32.mrb[0].mxu0
      %v3654 = vadd.f32 %v3509, %v3653
      %v3655 = vpop.f32.mrb[0].mxu0
      %v3656 = vpop.f32.mrb[0].mxu0
      %v3657 = vadd.f32 %v3512, %v3656
      %v3658 = vpop.f32.mrb[0].mxu0
      %3659 = vmatprep.mubr.bf16.mxu0 0
      %3660 = vmatmul.mubr.bf16.gmra.mrb[0].mxu0 %v3355
      %v3661 = vpop.f32.mrb[0].mxu0
      %v3662 = vadd.f32 %v3517, %v3661
      %v3663 = vpop.f32.mrb[0].mxu0
      %v3664 = vpop.f32.mrb[0].mxu0
      %v3665 = vadd.f32 %v3520, %v3664
      %v3666 = vpop.f32.mrb[0].mxu0
      %3667 = vmatprep.mubr.bf16.mxu0 0
      %3668 = vmatmul.mubr.bf16.gmra.mrb[0].mxu0 %v3356
      %v3669 = vpop.f32.mrb[0].mxu0
      %v3670 = vadd.f32 %v3525, %v3669
      %v3671 = vpop.f32.mrb[0].mxu0
      %v3672 = vpop.f32.mrb[0].mxu0
      %v3673 = vadd.f32 %v3528, %v3672
      %v3674 = vpop.f32.mrb[0].mxu0
      %3675 = vmatprep.mubr.bf16.mxu0 0
      %3676 = vmatmul.mubr.bf16.gmra.mrb[0].mxu0 %v3357
      %v3677 = vpop.f32.mrb[0].mxu0
      %v3678 = vadd.f32 %v3533, %v3677
      %v3679 = vpop.f32.mrb[0].mxu0
      %v3680 = vpop.f32.mrb[0].mxu0
      %v3681 = vadd.f32 %v3536, %v3680
      %v3682 = vpop.f32.mrb[0].mxu0
      %3683 = vmatprep.mubr.bf16.mxu0 0
      %3684 = vmatmul.mubr.bf16.gmra.mrb[0].mxu0 %v3358
      %v3685 = vpop.f32.mrb[0].mxu0
      %v3686 = vadd.f32 %v3541, %v3685
      %v3687 = vpop.f32.mrb[0].mxu0
      %v3688 = vpop.f32.mrb[0].mxu0
      %v3689 = vadd.f32 %v3544, %v3688
      %v3690 = vpop.f32.mrb[0].mxu0
      %3691 = vdwg.mxu0
      %s3692 = scalar_lea.vmem [#allocation3], 32
      %v3693 = vld [vmem:[%s3692] sm:$0xff]
      %v3694 = vld [vmem:[%s3692 + $0x8] sm:$0xff]
      %v3695 = vld [vmem:[%s3692 + $0x10] sm:$0xff]
      %v3696 = vld [vmem:[%s3692 + $0x18] sm:$0xff]
      %v3697 = vld [vmem:[%s3692 + $0x20] sm:$0xff]
      %v3698 = vld [vmem:[%s3692 + $0x28] sm:$0xff]
      %v3699 = vld [vmem:[%s3692 + $0x30] sm:$0xff]
      %v3700 = vld [vmem:[%s3692 + $0x38] sm:$0xff]
      %s3701 = scalar_lea.vmem %s4, 448
      %v3702 = vld [vmem:[%s3701] sm:$0xf]
      %v3703 = vld [vmem:[%s3701 + $0x4] sm:$0xf]
      %v3704 = vld [vmem:[%s3701 + $0x8] sm:$0xf]
      %v3705 = vld [vmem:[%s3701 + $0xc] sm:$0xf]
      %v3706 = vld [vmem:[%s3701 + $0x10] sm:$0xf]
      %v3707 = vld [vmem:[%s3701 + $0x14] sm:$0xf]
      %v3708 = vld [vmem:[%s3701 + $0x18] sm:$0xf]
      %v3709 = vld [vmem:[%s3701 + $0x1c] sm:$0xf]
      %v3710 = vld [vmem:[%s3701 + $0x20] sm:$0xf]
      %v3711 = vld [vmem:[%s3701 + $0x24] sm:$0xf]
      %v3712 = vld [vmem:[%s3701 + $0x28] sm:$0xf]
      %v3713 = vld [vmem:[%s3701 + $0x2c] sm:$0xf]
      %v3714 = vld [vmem:[%s3701 + $0x30] sm:$0xf]
      %v3715 = vld [vmem:[%s3701 + $0x34] sm:$0xf]
      %v3716 = vld [vmem:[%s3701 + $0x38] sm:$0xf]
      %v3717 = vld [vmem:[%s3701 + $0x3c] sm:$0xf]
      %v3734 = vunpack.c.l.b16 %v3702
      %v3735 = vunpack.c.l.b16 %v3703
      %v3736 = vunpack.c.l.b16 %v3704
      %v3737 = vunpack.c.l.b16 %v3705
      %v3738 = vunpack.c.l.b16 %v3706
      %v3739 = vunpack.c.l.b16 %v3707
      %v3740 = vunpack.c.l.b16 %v3708
      %v3741 = vunpack.c.l.b16 %v3709
      %v3742 = vunpack.c.l.b16 %v3710
      %v3743 = vunpack.c.l.b16 %v3711
      %v3744 = vunpack.c.l.b16 %v3712
      %v3745 = vunpack.c.l.b16 %v3713
      %v3746 = vunpack.c.l.b16 %v3714
      %v3747 = vunpack.c.l.b16 %v3715
      %v3748 = vunpack.c.l.b16 %v3716
      %v3749 = vunpack.c.l.b16 %v3717
      %v3750 = vpack.c.b16 %v3735, %v3734
      %v3751 = vpack.c.b16 %v3737, %v3736
      %v3752 = vpack.c.b16 %v3739, %v3738
      %v3753 = vpack.c.b16 %v3741, %v3740
      %v3754 = vpack.c.b16 %v3743, %v3742
      %v3755 = vpack.c.b16 %v3745, %v3744
      %v3756 = vpack.c.b16 %v3747, %v3746
      %v3757 = vpack.c.b16 %v3749, %v3748
      %3766 = vmatprep.subr.bf16.mxu0 0
      %3767 = vmatpush1.bf16.msra.mxu0 %v3750
      %3768 = vmatprep.subr.bf16.mxu0 0
      %3769 = vmatpush1.bf16.msra.mxu0 %v3751
      %3770 = vmatprep.subr.bf16.mxu0 0
      %3771 = vmatpush1.bf16.msra.mxu0 %v3752
      %3772 = vmatprep.subr.bf16.mxu0 0
      %3773 = vmatpush1.bf16.msra.mxu0 %v3753
      %3774 = vmatprep.subr.bf16.mxu0 0
      %3775 = vmatpush1.bf16.msra.mxu0 %v3754
      %3776 = vmatprep.subr.bf16.mxu0 0
      %3777 = vmatpush1.bf16.msra.mxu0 %v3755
      %3778 = vmatprep.subr.bf16.mxu0 0
      %3779 = vmatpush1.bf16.msra.mxu0 %v3756
      %3780 = vmatprep.subr.bf16.mxu0 0
      %3781 = vmatpush1.bf16.msra.mxu0 %v3757
      %3782 = vmatprep.subr.bf16.mxu0 0
      %3783 = vmatpush1.bf16.msra.mxu0 0
      %3784 = vmatprep.subr.bf16.mxu0 0
      %3785 = vmatpush1.bf16.msra.mxu0 0
      %3786 = vmatprep.subr.bf16.mxu0 0
      %3787 = vmatpush1.bf16.msra.mxu0 0
      %3788 = vmatprep.subr.bf16.mxu0 0
      %3789 = vmatpush1.bf16.msra.mxu0 0
      %3790 = vmatprep.subr.bf16.mxu0 0
      %3791 = vmatpush1.bf16.msra.mxu0 0
      %3792 = vmatprep.subr.bf16.mxu0 0
      %3793 = vmatpush1.bf16.msra.mxu0 0
      %3794 = vmatprep.subr.bf16.mxu0 0
      %3795 = vmatpush1.bf16.msra.mxu0 0
      %3796 = vmatprep.subr.bf16.mxu0 0
      %3797 = vmatpush1.bf16.msra.mxu0 0
      %3798 = vmatprep.mubr.bf16.mxu0 0
      %3799 = vmatmul.mubr.bf16.gmra.mrb[0].mxu0 %v3693
      %v3800 = vpop.f32.mrb[0].mxu0
      %v3801 = vadd.f32 0.0, %v3800
      %v3802 = vpop.f32.mrb[0].mxu0
      %v3803 = vpop.f32.mrb[0].mxu0
      %v3804 = vadd.f32 0.0, %v3803
      %v3805 = vpop.f32.mrb[0].mxu0
      %3806 = vmatprep.mubr.bf16.mxu0 0
      %3807 = vmatmul.mubr.bf16.gmra.mrb[0].mxu0 %v3694
      %v3808 = vpop.f32.mrb[0].mxu0
      %v3809 = vadd.f32 0.0, %v3808
      %v3810 = vpop.f32.mrb[0].mxu0
      %v3811 = vpop.f32.mrb[0].mxu0
      %v3812 = vadd.f32 0.0, %v3811
      %v3813 = vpop.f32.mrb[0].mxu0
      %3814 = vmatprep.mubr.bf16.mxu0 0
      %3815 = vmatmul.mubr.bf16.gmra.mrb[0].mxu0 %v3695
      %v3816 = vpop.f32.mrb[0].mxu0
      %v3817 = vadd.f32 0.0, %v3816
      %v3818 = vpop.f32.mrb[0].mxu0
      %v3819 = vpop.f32.mrb[0].mxu0
      %v3820 = vadd.f32 0.0, %v3819
      %v3821 = vpop.f32.mrb[0].mxu0
      %3822 = vmatprep.mubr.bf16.mxu0 0
      %3823 = vmatmul.mubr.bf16.gmra.mrb[0].mxu0 %v3696
      %v3824 = vpop.f32.mrb[0].mxu0
      %v3825 = vadd.f32 0.0, %v3824
      %v3826 = vpop.f32.mrb[0].mxu0
      %v3827 = vpop.f32.mrb[0].mxu0
      %v3828 = vadd.f32 0.0, %v3827
      %v3829 = vpop.f32.mrb[0].mxu0
      %3830 = vmatprep.mubr.bf16.mxu0 0
      %3831 = vmatmul.mubr.bf16.gmra.mrb[0].mxu0 %v3697
      %v3832 = vpop.f32.mrb[0].mxu0
      %v3833 = vadd.f32 0.0, %v3832
      %v3834 = vpop.f32.mrb[0].mxu0
      %v3835 = vpop.f32.mrb[0].mxu0
      %v3836 = vadd.f32 0.0, %v3835
      %v3837 = vpop.f32.mrb[0].mxu0
      %3838 = vmatprep.mubr.bf16.mxu0 0
      %3839 = vmatmul.mubr.bf16.gmra.mrb[0].mxu0 %v3698
      %v3840 = vpop.f32.mrb[0].mxu0
      %v3841 = vadd.f32 0.0, %v3840
      %v3842 = vpop.f32.mrb[0].mxu0
      %v3843 = vpop.f32.mrb[0].mxu0
      %v3844 = vadd.f32 0.0, %v3843
      %v3845 = vpop.f32.mrb[0].mxu0
      %3846 = vmatprep.mubr.bf16.mxu0 0
      %3847 = vmatmul.mubr.bf16.gmra.mrb[0].mxu0 %v3699
      %v3848 = vpop.f32.mrb[0].mxu0
      %v3849 = vadd.f32 0.0, %v3848
      %v3850 = vpop.f32.mrb[0].mxu0
      %v3851 = vpop.f32.mrb[0].mxu0
      %v3852 = vadd.f32 0.0, %v3851
      %v3853 = vpop.f32.mrb[0].mxu0
      %3854 = vmatprep.mubr.bf16.mxu0 0
      %3855 = vmatmul.mubr.bf16.gmra.mrb[0].mxu0 %v3700
      %v3856 = vpop.f32.mrb[0].mxu0
      %v3857 = vadd.f32 0.0, %v3856
      %v3858 = vpop.f32.mrb[0].mxu0
      %v3859 = vpop.f32.mrb[0].mxu0
      %v3860 = vadd.f32 0.0, %v3859
      %v3861 = vpop.f32.mrb[0].mxu0
      %3862 = vdwg.mxu0
      %v3863 = vadd.f32 %v3630, %v3801
      %v3864 = vadd.f32 %v3633, %v3804
      %v3865 = vadd.f32 %v3638, %v3809
      %v3866 = vadd.f32 %v3641, %v3812
      %v3867 = vadd.f32 %v3646, %v3817
      %v3868 = vadd.f32 %v3649, %v3820
      %v3869 = vadd.f32 %v3654, %v3825
      %v3870 = vadd.f32 %v3657, %v3828
      %v3871 = vadd.f32 %v3662, %v3833
      %v3872 = vadd.f32 %v3665, %v3836
      %v3873 = vadd.f32 %v3670, %v3841
      %v3874 = vadd.f32 %v3673, %v3844
      %v3875 = vadd.f32 %v3678, %v3849
      %v3876 = vadd.f32 %v3681, %v3852
      %v3877 = vadd.f32 %v3686, %v3857
      %v3878 = vadd.f32 %v3689, %v3860
      %v3879 = vld [vmem:[#allocation3] sm:$0xff]
      %v3880 = vld [vmem:[#allocation3 + $0x8] sm:$0xff]
      %v3881 = vld [vmem:[#allocation3 + $0x10] sm:$0xff]
      %v3882 = vld [vmem:[#allocation3 + $0x18] sm:$0xff]
      %v3883 = vld [vmem:[#allocation3 + $0x20] sm:$0xff]
      %v3884 = vld [vmem:[#allocation3 + $0x28] sm:$0xff]
      %v3885 = vld [vmem:[#allocation3 + $0x30] sm:$0xff]
      %v3886 = vld [vmem:[#allocation3 + $0x38] sm:$0xff]
      %v3887 = vld [vmem:[#allocation3 + $0x40] sm:$0xff]
      %v3888 = vld [vmem:[#allocation3 + $0x48] sm:$0xff]
      %v3889 = vld [vmem:[#allocation3 + $0x50] sm:$0xff]
      %v3890 = vld [vmem:[#allocation3 + $0x58] sm:$0xff]
      %v3892 = vshrl.u32 %v3879, 16
      %v3894 = vrot.slane %v3892, 7
      %v3895 = vshll.u32 %v3879, 16
      %v3897 = vor.u32 %v3894, %v3895
      %v3899 = vshrl.u32 %v3880, 16
      %v3901 = vrot.slane %v3899, 7
      %v3902 = vshll.u32 %v3880, 16
      %v3904 = vor.u32 %v3901, %v3902
      %v3905 = vsel %vm1188, %v3894, %v3904
      %v3907 = vshrl.u32 %v3881, 16
      %v3909 = vrot.slane %v3907, 7
      %v3910 = vshll.u32 %v3881, 16
      %v3912 = vor.u32 %v3909, %v3910
      %v3914 = vshrl.u32 %v3882, 16
      %v3916 = vrot.slane %v3914, 7
      %v3917 = vshll.u32 %v3882, 16
      %v3919 = vor.u32 %v3916, %v3917
      %v3920 = vsel %vm1188, %v3909, %v3919
      %v3922 = vshrl.u32 %v3883, 16
      %v3924 = vrot.slane %v3922, 7
      %v3925 = vshll.u32 %v3883, 16
      %v3927 = vor.u32 %v3924, %v3925
      %v3929 = vshrl.u32 %v3884, 16
      %v3931 = vrot.slane %v3929, 7
      %v3932 = vshll.u32 %v3884, 16
      %v3934 = vor.u32 %v3931, %v3932
      %v3935 = vsel %vm1188, %v3924, %v3934
      %v3937 = vshrl.u32 %v3885, 16
      %v3939 = vrot.slane %v3937, 7
      %v3940 = vshll.u32 %v3885, 16
      %v3942 = vor.u32 %v3939, %v3940
      %v3944 = vshrl.u32 %v3886, 16
      %v3946 = vrot.slane %v3944, 7
      %v3947 = vshll.u32 %v3886, 16
      %v3949 = vor.u32 %v3946, %v3947
      %v3950 = vsel %vm1188, %v3939, %v3949
      %v3952 = vshrl.u32 %v3887, 16
      %v3954 = vrot.slane %v3952, 7
      %v3955 = vshll.u32 %v3887, 16
      %v3957 = vor.u32 %v3954, %v3955
      %v3959 = vshrl.u32 %v3888, 16
      %v3961 = vrot.slane %v3959, 7
      %v3962 = vshll.u32 %v3888, 16
      %v3964 = vor.u32 %v3961, %v3962
      %v3965 = vsel %vm1188, %v3954, %v3964
      %v3967 = vshrl.u32 %v3889, 16
      %v3969 = vrot.slane %v3967, 7
      %v3970 = vshll.u32 %v3889, 16
      %v3972 = vor.u32 %v3969, %v3970
      %v3974 = vshrl.u32 %v3890, 16
      %v3976 = vrot.slane %v3974, 7
      %v3977 = vshll.u32 %v3890, 16
      %v3979 = vor.u32 %v3976, %v3977
      %v3980 = vsel %vm1188, %v3969, %v3979
      %v3993 = vld [vmem:[#allocation2] sm:$0xff]
      %v3994 = vsel %vm1259, %v3897, %v3993
      %3995 = vst [vmem:[#allocation2] sm:$0xff] %v3994
      %3996 = vst [vmem:[#allocation2 + $0x8] sm:$0xff] %v3905
      %v3997 = vld [vmem:[#allocation2 + $0x10] sm:$0xff]
      %v3998 = vsel %vm1259, %v3912, %v3997
      %3999 = vst [vmem:[#allocation2 + $0x10] sm:$0xff] %v3998
      %4000 = vst [vmem:[#allocation2 + $0x18] sm:$0xff] %v3920
      %v4001 = vld [vmem:[#allocation2 + $0x20] sm:$0xff]
      %v4002 = vsel %vm1259, %v3927, %v4001
      %4003 = vst [vmem:[#allocation2 + $0x20] sm:$0xff] %v4002
      %4004 = vst [vmem:[#allocation2 + $0x28] sm:$0xff] %v3935
      %v4005 = vld [vmem:[#allocation2 + $0x30] sm:$0xff]
      %v4006 = vsel %vm1259, %v3942, %v4005
      %4007 = vst [vmem:[#allocation2 + $0x30] sm:$0xff] %v4006
      %4008 = vst [vmem:[#allocation2 + $0x38] sm:$0xff] %v3950
      %v4009 = vld [vmem:[#allocation2 + $0x40] sm:$0xff]
      %v4010 = vsel %vm1259, %v3957, %v4009
      %4011 = vst [vmem:[#allocation2 + $0x40] sm:$0xff] %v4010
      %4012 = vst [vmem:[#allocation2 + $0x48] sm:$0xff] %v3965
      %v4013 = vld [vmem:[#allocation2 + $0x50] sm:$0xff]
      %v4014 = vsel %vm1259, %v3972, %v4013
      %4015 = vst [vmem:[#allocation2 + $0x50] sm:$0xff] %v4014
      %4016 = vst [vmem:[#allocation2 + $0x58] sm:$0xff] %v3980
      %v4017 = vld [vmem:[#allocation2] sm:$0x1]
      %v4018 = vsel %vm1417, 0, %v4017
      %4019 = vst [vmem:[#allocation2] sm:$0x1] %v4018
      %v4020 = vld [vmem:[#allocation2 + $0x10] sm:$0x1]
      %v4021 = vsel %vm1417, 0, %v4020
      %4022 = vst [vmem:[#allocation2 + $0x10] sm:$0x1] %v4021
      %v4023 = vld [vmem:[#allocation2 + $0x20] sm:$0x1]
      %v4024 = vsel %vm1417, 0, %v4023
      %4025 = vst [vmem:[#allocation2 + $0x20] sm:$0x1] %v4024
      %v4026 = vld [vmem:[#allocation2 + $0x30] sm:$0x1]
      %v4027 = vsel %vm1417, 0, %v4026
      %4028 = vst [vmem:[#allocation2 + $0x30] sm:$0x1] %v4027
      %v4029 = vld [vmem:[#allocation2 + $0x40] sm:$0x1]
      %v4030 = vsel %vm1417, 0, %v4029
      %4031 = vst [vmem:[#allocation2 + $0x40] sm:$0x1] %v4030
      %v4032 = vld [vmem:[#allocation2 + $0x50] sm:$0x1]
      %v4033 = vsel %vm1417, 0, %v4032
      %4034 = vst [vmem:[#allocation2 + $0x50] sm:$0x1] %v4033
      %v4035 = vld [vmem:[#allocation2] sm:$0xff]
      %v4036 = vld [vmem:[#allocation2 + $0x8] sm:$0xff]
      %v4037 = vld [vmem:[#allocation2 + $0x10] sm:$0xff]
      %v4038 = vld [vmem:[#allocation2 + $0x18] sm:$0xff]
      %v4039 = vld [vmem:[#allocation2 + $0x20] sm:$0xff]
      %v4040 = vld [vmem:[#allocation2 + $0x28] sm:$0xff]
      %v4041 = vld [vmem:[#allocation2 + $0x30] sm:$0xff]
      %v4042 = vld [vmem:[#allocation2 + $0x38] sm:$0xff]
      %v4043 = vld [vmem:[%s4] sm:$0xf]
      %v4044 = vld [vmem:[%s4 + $0x4] sm:$0xf]
      %v4045 = vld [vmem:[%s4 + $0x8] sm:$0xf]
      %v4046 = vld [vmem:[%s4 + $0xc] sm:$0xf]
      %v4047 = vld [vmem:[%s4 + $0x10] sm:$0xf]
      %v4048 = vld [vmem:[%s4 + $0x14] sm:$0xf]
      %v4049 = vld [vmem:[%s4 + $0x18] sm:$0xf]
      %v4050 = vld [vmem:[%s4 + $0x1c] sm:$0xf]
      %v4051 = vld [vmem:[%s4 + $0x20] sm:$0xf]
      %v4052 = vld [vmem:[%s4 + $0x24] sm:$0xf]
      %v4053 = vld [vmem:[%s4 + $0x28] sm:$0xf]
      %v4054 = vld [vmem:[%s4 + $0x2c] sm:$0xf]
      %v4055 = vld [vmem:[%s4 + $0x30] sm:$0xf]
      %v4056 = vld [vmem:[%s4 + $0x34] sm:$0xf]
      %v4057 = vld [vmem:[%s4 + $0x38] sm:$0xf]
      %v4058 = vld [vmem:[%s4 + $0x3c] sm:$0xf]
      %v4075 = vunpack.c.l.b16 %v4043
      %v4076 = vunpack.c.l.b16 %v4044
      %v4077 = vunpack.c.l.b16 %v4045
      %v4078 = vunpack.c.l.b16 %v4046
      %v4079 = vunpack.c.l.b16 %v4047
      %v4080 = vunpack.c.l.b16 %v4048
      %v4081 = vunpack.c.l.b16 %v4049
      %v4082 = vunpack.c.l.b16 %v4050
      %v4083 = vunpack.c.l.b16 %v4051
      %v4084 = vunpack.c.l.b16 %v4052
      %v4085 = vunpack.c.l.b16 %v4053
      %v4086 = vunpack.c.l.b16 %v4054
      %v4087 = vunpack.c.l.b16 %v4055
      %v4088 = vunpack.c.l.b16 %v4056
      %v4089 = vunpack.c.l.b16 %v4057
      %v4090 = vunpack.c.l.b16 %v4058
      %v4091 = vpack.c.b16 %v4076, %v4075
      %v4092 = vpack.c.b16 %v4078, %v4077
      %v4093 = vpack.c.b16 %v4080, %v4079
      %v4094 = vpack.c.b16 %v4082, %v4081
      %v4095 = vpack.c.b16 %v4084, %v4083
      %v4096 = vpack.c.b16 %v4086, %v4085
      %v4097 = vpack.c.b16 %v4088, %v4087
      %v4098 = vpack.c.b16 %v4090, %v4089
      %4107 = vmatprep.subr.bf16.mxu0 0
      %4108 = vmatpush1.bf16.msra.mxu0 %v4091
      %4109 = vmatprep.subr.bf16.mxu0 0
      %4110 = vmatpush1.bf16.msra.mxu0 %v4092
      %4111 = vmatprep.subr.bf16.mxu0 0
      %4112 = vmatpush1.bf16.msra.mxu0 %v4093
      %4113 = vmatprep.subr.bf16.mxu0 0
      %4114 = vmatpush1.bf16.msra.mxu0 %v4094
      %4115 = vmatprep.subr.bf16.mxu0 0
      %4116 = vmatpush1.bf16.msra.mxu0 %v4095
      %4117 = vmatprep.subr.bf16.mxu0 0
      %4118 = vmatpush1.bf16.msra.mxu0 %v4096
      %4119 = vmatprep.subr.bf16.mxu0 0
      %4120 = vmatpush1.bf16.msra.mxu0 %v4097
      %4121 = vmatprep.subr.bf16.mxu0 0
      %4122 = vmatpush1.bf16.msra.mxu0 %v4098
      %4123 = vmatprep.subr.bf16.mxu0 0
      %4124 = vmatpush1.bf16.msra.mxu0 0
      %4125 = vmatprep.subr.bf16.mxu0 0
      %4126 = vmatpush1.bf16.msra.mxu0 0
      %4127 = vmatprep.subr.bf16.mxu0 0
      %4128 = vmatpush1.bf16.msra.mxu0 0
      %4129 = vmatprep.subr.bf16.mxu0 0
      %4130 = vmatpush1.bf16.msra.mxu0 0
      %4131 = vmatprep.subr.bf16.mxu0 0
      %4132 = vmatpush1.bf16.msra.mxu0 0
      %4133 = vmatprep.subr.bf16.mxu0 0
      %4134 = vmatpush1.bf16.msra.mxu0 0
      %4135 = vmatprep.subr.bf16.mxu0 0
      %4136 = vmatpush1.bf16.msra.mxu0 0
      %4137 = vmatprep.subr.bf16.mxu0 0
      %4138 = vmatpush1.bf16.msra.mxu0 0
      %4139 = vmatprep.mubr.bf16.mxu0 0
      %4140 = vmatmul.mubr.bf16.gmra.mrb[0].mxu0 %v4035
      %v4141 = vpop.f32.mrb[0].mxu0
      %v4142 = vadd.f32 0.0, %v4141
      %v4143 = vpop.f32.mrb[0].mxu0
      %v4144 = vpop.f32.mrb[0].mxu0
      %v4145 = vadd.f32 0.0, %v4144
      %v4146 = vpop.f32.mrb[0].mxu0
      %4147 = vmatprep.mubr.bf16.mxu0 0
      %4148 = vmatmul.mubr.bf16.gmra.mrb[0].mxu0 %v4036
      %v4149 = vpop.f32.mrb[0].mxu0
      %v4150 = vadd.f32 0.0, %v4149
      %v4151 = vpop.f32.mrb[0].mxu0
      %v4152 = vpop.f32.mrb[0].mxu0
      %v4153 = vadd.f32 0.0, %v4152
      %v4154 = vpop.f32.mrb[0].mxu0
      %4155 = vmatprep.mubr.bf16.mxu0 0
      %4156 = vmatmul.mubr.bf16.gmra.mrb[0].mxu0 %v4037
      %v4157 = vpop.f32.mrb[0].mxu0
      %v4158 = vadd.f32 0.0, %v4157
      %v4159 = vpop.f32.mrb[0].mxu0
      %v4160 = vpop.f32.mrb[0].mxu0
      %v4161 = vadd.f32 0.0, %v4160
      %v4162 = vpop.f32.mrb[0].mxu0
      %4163 = vmatprep.mubr.bf16.mxu0 0
      %4164 = vmatmul.mubr.bf16.gmra.mrb[0].mxu0 %v4038
      %v4165 = vpop.f32.mrb[0].mxu0
      %v4166 = vadd.f32 0.0, %v4165
      %v4167 = vpop.f32.mrb[0].mxu0
      %v4168 = vpop.f32.mrb[0].mxu0
      %v4169 = vadd.f32 0.0, %v4168
      %v4170 = vpop.f32.mrb[0].mxu0
      %4171 = vmatprep.mubr.bf16.mxu0 0
      %4172 = vmatmul.mubr.bf16.gmra.mrb[0].mxu0 %v4039
      %v4173 = vpop.f32.mrb[0].mxu0
      %v4174 = vadd.f32 0.0, %v4173
      %v4175 = vpop.f32.mrb[0].mxu0
      %v4176 = vpop.f32.mrb[0].mxu0
      %v4177 = vadd.f32 0.0, %v4176
      %v4178 = vpop.f32.mrb[0].mxu0
      %4179 = vmatprep.mubr.bf16.mxu0 0
      %4180 = vmatmul.mubr.bf16.gmra.mrb[0].mxu0 %v4040
      %v4181 = vpop.f32.mrb[0].mxu0
      %v4182 = vadd.f32 0.0, %v4181
      %v4183 = vpop.f32.mrb[0].mxu0
      %v4184 = vpop.f32.mrb[0].mxu0
      %v4185 = vadd.f32 0.0, %v4184
      %v4186 = vpop.f32.mrb[0].mxu0
      %4187 = vmatprep.mubr.bf16.mxu0 0
      %4188 = vmatmul.mubr.bf16.gmra.mrb[0].mxu0 %v4041
      %v4189 = vpop.f32.mrb[0].mxu0
      %v4190 = vadd.f32 0.0, %v4189
      %v4191 = vpop.f32.mrb[0].mxu0
      %v4192 = vpop.f32.mrb[0].mxu0
      %v4193 = vadd.f32 0.0, %v4192
      %v4194 = vpop.f32.mrb[0].mxu0
      %4195 = vmatprep.mubr.bf16.mxu0 0
      %4196 = vmatmul.mubr.bf16.gmra.mrb[0].mxu0 %v4042
      %v4197 = vpop.f32.mrb[0].mxu0
      %v4198 = vadd.f32 0.0, %v4197
      %v4199 = vpop.f32.mrb[0].mxu0
      %v4200 = vpop.f32.mrb[0].mxu0
      %v4201 = vadd.f32 0.0, %v4200
      %v4202 = vpop.f32.mrb[0].mxu0
      %4203 = vdwg.mxu0
      %v4204 = vadd.f32 %v3863, %v4142
      %v4205 = vadd.f32 %v3864, %v4145
      %v4206 = vadd.f32 %v3865, %v4150
      %v4207 = vadd.f32 %v3866, %v4153
      %v4208 = vadd.f32 %v3867, %v4158
      %v4209 = vadd.f32 %v3868, %v4161
      %v4210 = vadd.f32 %v3869, %v4166
      %v4211 = vadd.f32 %v3870, %v4169
      %v4212 = vadd.f32 %v3871, %v4174
      %v4213 = vadd.f32 %v3872, %v4177
      %v4214 = vadd.f32 %v3873, %v4182
      %v4215 = vadd.f32 %v3874, %v4185
      %v4216 = vadd.f32 %v3875, %v4190
      %v4217 = vadd.f32 %v3876, %v4193
      %v4218 = vadd.f32 %v3877, %v4198
      %v4219 = vadd.f32 %v3878, %v4201
      %v4220 = vld [vmem:[%s517] sm:$0xff]
      %v4221 = vld [vmem:[%s517 + $0x8] sm:$0xff]
      %v4222 = vld [vmem:[%s517 + $0x10] sm:$0xff]
      %v4223 = vld [vmem:[%s517 + $0x18] sm:$0xff]
      %v4224 = vld [vmem:[%s517 + $0x20] sm:$0xff]
      %v4225 = vld [vmem:[%s517 + $0x28] sm:$0xff]
      %v4226 = vld [vmem:[%s517 + $0x30] sm:$0xff]
      %v4227 = vld [vmem:[%s517 + $0x38] sm:$0xff]
      %s4228 = scalar_lea.vmem %s4, 192
      %v4229 = vld [vmem:[%s4228] sm:$0xf]
      %v4230 = vld [vmem:[%s4228 + $0x4] sm:$0xf]
      %v4231 = vld [vmem:[%s4228 + $0x8] sm:$0xf]
      %v4232 = vld [vmem:[%s4228 + $0xc] sm:$0xf]
      %v4233 = vld [vmem:[%s4228 + $0x10] sm:$0xf]
      %v4234 = vld [vmem:[%s4228 + $0x14] sm:$0xf]
      %v4235 = vld [vmem:[%s4228 + $0x18] sm:$0xf]
      %v4236 = vld [vmem:[%s4228 + $0x1c] sm:$0xf]
      %v4237 = vld [vmem:[%s4228 + $0x20] sm:$0xf]
      %v4238 = vld [vmem:[%s4228 + $0x24] sm:$0xf]
      %v4239 = vld [vmem:[%s4228 + $0x28] sm:$0xf]
      %v4240 = vld [vmem:[%s4228 + $0x2c] sm:$0xf]
      %v4241 = vld [vmem:[%s4228 + $0x30] sm:$0xf]
      %v4242 = vld [vmem:[%s4228 + $0x34] sm:$0xf]
      %v4243 = vld [vmem:[%s4228 + $0x38] sm:$0xf]
      %v4244 = vld [vmem:[%s4228 + $0x3c] sm:$0xf]
      %v4261 = vunpack.c.l.b16 %v4229
      %v4262 = vunpack.c.l.b16 %v4230
      %v4263 = vunpack.c.l.b16 %v4231
      %v4264 = vunpack.c.l.b16 %v4232
      %v4265 = vunpack.c.l.b16 %v4233
      %v4266 = vunpack.c.l.b16 %v4234
      %v4267 = vunpack.c.l.b16 %v4235
      %v4268 = vunpack.c.l.b16 %v4236
      %v4269 = vunpack.c.l.b16 %v4237
      %v4270 = vunpack.c.l.b16 %v4238
      %v4271 = vunpack.c.l.b16 %v4239
      %v4272 = vunpack.c.l.b16 %v4240
      %v4273 = vunpack.c.l.b16 %v4241
      %v4274 = vunpack.c.l.b16 %v4242
      %v4275 = vunpack.c.l.b16 %v4243
      %v4276 = vunpack.c.l.b16 %v4244
      %v4277 = vpack.c.b16 %v4262, %v4261
      %v4278 = vpack.c.b16 %v4264, %v4263
      %v4279 = vpack.c.b16 %v4266, %v4265
      %v4280 = vpack.c.b16 %v4268, %v4267
      %v4281 = vpack.c.b16 %v4270, %v4269
      %v4282 = vpack.c.b16 %v4272, %v4271
      %v4283 = vpack.c.b16 %v4274, %v4273
      %v4284 = vpack.c.b16 %v4276, %v4275
      %4293 = vmatprep.subr.bf16.mxu0 0
      %4294 = vmatpush1.bf16.msra.mxu0 %v4277
      %4295 = vmatprep.subr.bf16.mxu0 0
      %4296 = vmatpush1.bf16.msra.mxu0 %v4278
      %4297 = vmatprep.subr.bf16.mxu0 0
      %4298 = vmatpush1.bf16.msra.mxu0 %v4279
      %4299 = vmatprep.subr.bf16.mxu0 0
      %4300 = vmatpush1.bf16.msra.mxu0 %v4280
      %4301 = vmatprep.subr.bf16.mxu0 0
      %4302 = vmatpush1.bf16.msra.mxu0 %v4281
      %4303 = vmatprep.subr.bf16.mxu0 0
      %4304 = vmatpush1.bf16.msra.mxu0 %v4282
      %4305 = vmatprep.subr.bf16.mxu0 0
      %4306 = vmatpush1.bf16.msra.mxu0 %v4283
      %4307 = vmatprep.subr.bf16.mxu0 0
      %4308 = vmatpush1.bf16.msra.mxu0 %v4284
      %4309 = vmatprep.subr.bf16.mxu0 0
      %4310 = vmatpush1.bf16.msra.mxu0 0
      %4311 = vmatprep.subr.bf16.mxu0 0
      %4312 = vmatpush1.bf16.msra.mxu0 0
      %4313 = vmatprep.subr.bf16.mxu0 0
      %4314 = vmatpush1.bf16.msra.mxu0 0
      %4315 = vmatprep.subr.bf16.mxu0 0
      %4316 = vmatpush1.bf16.msra.mxu0 0
      %4317 = vmatprep.subr.bf16.mxu0 0
      %4318 = vmatpush1.bf16.msra.mxu0 0
      %4319 = vmatprep.subr.bf16.mxu0 0
      %4320 = vmatpush1.bf16.msra.mxu0 0
      %4321 = vmatprep.subr.bf16.mxu0 0
      %4322 = vmatpush1.bf16.msra.mxu0 0
      %4323 = vmatprep.subr.bf16.mxu0 0
      %4324 = vmatpush1.bf16.msra.mxu0 0
      %4325 = vmatprep.mubr.bf16.mxu0 0
      %4326 = vmatmul.mubr.bf16.gmra.mrb[0].mxu0 %v4220
      %v4327 = vpop.f32.mrb[0].mxu0
      %v4328 = vadd.f32 0.0, %v4327
      %v4329 = vpop.f32.mrb[0].mxu0
      %v4330 = vpop.f32.mrb[0].mxu0
      %v4331 = vadd.f32 0.0, %v4330
      %v4332 = vpop.f32.mrb[0].mxu0
      %4333 = vmatprep.mubr.bf16.mxu0 0
      %4334 = vmatmul.mubr.bf16.gmra.mrb[0].mxu0 %v4221
      %v4335 = vpop.f32.mrb[0].mxu0
      %v4336 = vadd.f32 0.0, %v4335
      %v4337 = vpop.f32.mrb[0].mxu0
      %v4338 = vpop.f32.mrb[0].mxu0
      %v4339 = vadd.f32 0.0, %v4338
      %v4340 = vpop.f32.mrb[0].mxu0
      %4341 = vmatprep.mubr.bf16.mxu0 0
      %4342 = vmatmul.mubr.bf16.gmra.mrb[0].mxu0 %v4222
      %v4343 = vpop.f32.mrb[0].mxu0
      %v4344 = vadd.f32 0.0, %v4343
      %v4345 = vpop.f32.mrb[0].mxu0
      %v4346 = vpop.f32.mrb[0].mxu0
      %v4347 = vadd.f32 0.0, %v4346
      %v4348 = vpop.f32.mrb[0].mxu0
      %4349 = vmatprep.mubr.bf16.mxu0 0
      %4350 = vmatmul.mubr.bf16.gmra.mrb[0].mxu0 %v4223
      %v4351 = vpop.f32.mrb[0].mxu0
      %v4352 = vadd.f32 0.0, %v4351
      %v4353 = vpop.f32.mrb[0].mxu0
      %v4354 = vpop.f32.mrb[0].mxu0
      %v4355 = vadd.f32 0.0, %v4354
      %v4356 = vpop.f32.mrb[0].mxu0
      %4357 = vmatprep.mubr.bf16.mxu0 0
      %4358 = vmatmul.mubr.bf16.gmra.mrb[0].mxu0 %v4224
      %v4359 = vpop.f32.mrb[0].mxu0
      %v4360 = vadd.f32 0.0, %v4359
      %v4361 = vpop.f32.mrb[0].mxu0
      %v4362 = vpop.f32.mrb[0].mxu0
      %v4363 = vadd.f32 0.0, %v4362
      %v4364 = vpop.f32.mrb[0].mxu0
      %4365 = vmatprep.mubr.bf16.mxu0 0
      %4366 = vmatmul.mubr.bf16.gmra.mrb[0].mxu0 %v4225
      %v4367 = vpop.f32.mrb[0].mxu0
      %v4368 = vadd.f32 0.0, %v4367
      %v4369 = vpop.f32.mrb[0].mxu0
      %v4370 = vpop.f32.mrb[0].mxu0
      %v4371 = vadd.f32 0.0, %v4370
      %v4372 = vpop.f32.mrb[0].mxu0
      %4373 = vmatprep.mubr.bf16.mxu0 0
      %4374 = vmatmul.mubr.bf16.gmra.mrb[0].mxu0 %v4226
      %v4375 = vpop.f32.mrb[0].mxu0
      %v4376 = vadd.f32 0.0, %v4375
      %v4377 = vpop.f32.mrb[0].mxu0
      %v4378 = vpop.f32.mrb[0].mxu0
      %v4379 = vadd.f32 0.0, %v4378
      %v4380 = vpop.f32.mrb[0].mxu0
      %4381 = vmatprep.mubr.bf16.mxu0 0
      %4382 = vmatmul.mubr.bf16.gmra.mrb[0].mxu0 %v4227
      %v4383 = vpop.f32.mrb[0].mxu0
      %v4384 = vadd.f32 0.0, %v4383
      %v4385 = vpop.f32.mrb[0].mxu0
      %v4386 = vpop.f32.mrb[0].mxu0
      %v4387 = vadd.f32 0.0, %v4386
      %v4388 = vpop.f32.mrb[0].mxu0
      %4389 = vdwg.mxu0
      %v4390 = vadd.f32 %v4204, %v4328
      %v4391 = vadd.f32 %v4205, %v4331
      %v4392 = vadd.f32 %v4206, %v4336
      %v4393 = vadd.f32 %v4207, %v4339
      %v4394 = vadd.f32 %v4208, %v4344
      %v4395 = vadd.f32 %v4209, %v4347
      %v4396 = vadd.f32 %v4210, %v4352
      %v4397 = vadd.f32 %v4211, %v4355
      %v4398 = vadd.f32 %v4212, %v4360
      %v4399 = vadd.f32 %v4213, %v4363
      %v4400 = vadd.f32 %v4214, %v4368
      %v4401 = vadd.f32 %v4215, %v4371
      %v4402 = vadd.f32 %v4216, %v4376
      %v4403 = vadd.f32 %v4217, %v4379
      %v4404 = vadd.f32 %v4218, %v4384
      %v4405 = vadd.f32 %v4219, %v4387
      %v4406 = vld [vmem:[%s901] sm:$0xff]
      %v4407 = vld [vmem:[%s901 + $0x8] sm:$0xff]
      %v4408 = vld [vmem:[%s901 + $0x10] sm:$0xff]
      %v4409 = vld [vmem:[%s901 + $0x18] sm:$0xff]
      %v4410 = vld [vmem:[%s901 + $0x20] sm:$0xff]
      %v4411 = vld [vmem:[%s901 + $0x28] sm:$0xff]
      %v4412 = vld [vmem:[%s901 + $0x30] sm:$0xff]
      %v4413 = vld [vmem:[%s901 + $0x38] sm:$0xff]
      %s4414 = scalar_lea.vmem %s4, 384
      %v4415 = vld [vmem:[%s4414] sm:$0xf]
      %v4416 = vld [vmem:[%s4414 + $0x4] sm:$0xf]
      %v4417 = vld [vmem:[%s4414 + $0x8] sm:$0xf]
      %v4418 = vld [vmem:[%s4414 + $0xc] sm:$0xf]
      %v4419 = vld [vmem:[%s4414 + $0x10] sm:$0xf]
      %v4420 = vld [vmem:[%s4414 + $0x14] sm:$0xf]
      %v4421 = vld [vmem:[%s4414 + $0x18] sm:$0xf]
      %v4422 = vld [vmem:[%s4414 + $0x1c] sm:$0xf]
      %v4423 = vld [vmem:[%s4414 + $0x20] sm:$0xf]
      %v4424 = vld [vmem:[%s4414 + $0x24] sm:$0xf]
      %v4425 = vld [vmem:[%s4414 + $0x28] sm:$0xf]
      %v4426 = vld [vmem:[%s4414 + $0x2c] sm:$0xf]
      %v4427 = vld [vmem:[%s4414 + $0x30] sm:$0xf]
      %v4428 = vld [vmem:[%s4414 + $0x34] sm:$0xf]
      %v4429 = vld [vmem:[%s4414 + $0x38] sm:$0xf]
      %v4430 = vld [vmem:[%s4414 + $0x3c] sm:$0xf]
      %v4447 = vunpack.c.l.b16 %v4415
      %v4448 = vunpack.c.l.b16 %v4416
      %v4449 = vunpack.c.l.b16 %v4417
      %v4450 = vunpack.c.l.b16 %v4418
      %v4451 = vunpack.c.l.b16 %v4419
      %v4452 = vunpack.c.l.b16 %v4420
      %v4453 = vunpack.c.l.b16 %v4421
      %v4454 = vunpack.c.l.b16 %v4422
      %v4455 = vunpack.c.l.b16 %v4423
      %v4456 = vunpack.c.l.b16 %v4424
      %v4457 = vunpack.c.l.b16 %v4425
      %v4458 = vunpack.c.l.b16 %v4426
      %v4459 = vunpack.c.l.b16 %v4427
      %v4460 = vunpack.c.l.b16 %v4428
      %v4461 = vunpack.c.l.b16 %v4429
      %v4462 = vunpack.c.l.b16 %v4430
      %v4463 = vpack.c.b16 %v4448, %v4447
      %v4464 = vpack.c.b16 %v4450, %v4449
      %v4465 = vpack.c.b16 %v4452, %v4451
      %v4466 = vpack.c.b16 %v4454, %v4453
      %v4467 = vpack.c.b16 %v4456, %v4455
      %v4468 = vpack.c.b16 %v4458, %v4457
      %v4469 = vpack.c.b16 %v4460, %v4459
      %v4470 = vpack.c.b16 %v4462, %v4461
      %4479 = vmatprep.subr.bf16.mxu0 0
      %4480 = vmatpush1.bf16.msra.mxu0 %v4463
      %4481 = vmatprep.subr.bf16.mxu0 0
      %4482 = vmatpush1.bf16.msra.mxu0 %v4464
      %4483 = vmatprep.subr.bf16.mxu0 0
      %4484 = vmatpush1.bf16.msra.mxu0 %v4465
      %4485 = vmatprep.subr.bf16.mxu0 0
      %4486 = vmatpush1.bf16.msra.mxu0 %v4466
      %4487 = vmatprep.subr.bf16.mxu0 0
      %4488 = vmatpush1.bf16.msra.mxu0 %v4467
      %4489 = vmatprep.subr.bf16.mxu0 0
      %4490 = vmatpush1.bf16.msra.mxu0 %v4468
      %4491 = vmatprep.subr.bf16.mxu0 0
      %4492 = vmatpush1.bf16.msra.mxu0 %v4469
      %4493 = vmatprep.subr.bf16.mxu0 0
      %4494 = vmatpush1.bf16.msra.mxu0 %v4470
      %4495 = vmatprep.subr.bf16.mxu0 0
      %4496 = vmatpush1.bf16.msra.mxu0 0
      %4497 = vmatprep.subr.bf16.mxu0 0
      %4498 = vmatpush1.bf16.msra.mxu0 0
      %4499 = vmatprep.subr.bf16.mxu0 0
      %4500 = vmatpush1.bf16.msra.mxu0 0
      %4501 = vmatprep.subr.bf16.mxu0 0
      %4502 = vmatpush1.bf16.msra.mxu0 0
      %4503 = vmatprep.subr.bf16.mxu0 0
      %4504 = vmatpush1.bf16.msra.mxu0 0
      %4505 = vmatprep.subr.bf16.mxu0 0
      %4506 = vmatpush1.bf16.msra.mxu0 0
      %4507 = vmatprep.subr.bf16.mxu0 0
      %4508 = vmatpush1.bf16.msra.mxu0 0
      %4509 = vmatprep.subr.bf16.mxu0 0
      %4510 = vmatpush1.bf16.msra.mxu0 0
      %4511 = vmatprep.mubr.bf16.mxu0 0
      %4512 = vmatmul.mubr.bf16.gmra.mrb[0].mxu0 %v4406
      %v4513 = vpop.f32.mrb[0].mxu0
      %v4514 = vadd.f32 0.0, %v4513
      %v4515 = vpop.f32.mrb[0].mxu0
      %v4516 = vpop.f32.mrb[0].mxu0
      %v4517 = vadd.f32 0.0, %v4516
      %v4518 = vpop.f32.mrb[0].mxu0
      %4519 = vmatprep.mubr.bf16.mxu0 0
      %4520 = vmatmul.mubr.bf16.gmra.mrb[0].mxu0 %v4407
      %v4521 = vpop.f32.mrb[0].mxu0
      %v4522 = vadd.f32 0.0, %v4521
      %v4523 = vpop.f32.mrb[0].mxu0
      %v4524 = vpop.f32.mrb[0].mxu0
      %v4525 = vadd.f32 0.0, %v4524
      %v4526 = vpop.f32.mrb[0].mxu0
      %4527 = vmatprep.mubr.bf16.mxu0 0
      %4528 = vmatmul.mubr.bf16.gmra.mrb[0].mxu0 %v4408
      %v4529 = vpop.f32.mrb[0].mxu0
      %v4530 = vadd.f32 0.0, %v4529
      %v4531 = vpop.f32.mrb[0].mxu0
      %v4532 = vpop.f32.mrb[0].mxu0
      %v4533 = vadd.f32 0.0, %v4532
      %v4534 = vpop.f32.mrb[0].mxu0
      %4535 = vmatprep.mubr.bf16.mxu0 0
      %4536 = vmatmul.mubr.bf16.gmra.mrb[0].mxu0 %v4409
      %v4537 = vpop.f32.mrb[0].mxu0
      %v4538 = vadd.f32 0.0, %v4537
      %v4539 = vpop.f32.mrb[0].mxu0
      %v4540 = vpop.f32.mrb[0].mxu0
      %v4541 = vadd.f32 0.0, %v4540
      %v4542 = vpop.f32.mrb[0].mxu0
      %4543 = vmatprep.mubr.bf16.mxu0 0
      %4544 = vmatmul.mubr.bf16.gmra.mrb[0].mxu0 %v4410
      %v4545 = vpop.f32.mrb[0].mxu0
      %v4546 = vadd.f32 0.0, %v4545
      %v4547 = vpop.f32.mrb[0].mxu0
      %v4548 = vpop.f32.mrb[0].mxu0
      %v4549 = vadd.f32 0.0, %v4548
      %v4550 = vpop.f32.mrb[0].mxu0
      %4551 = vmatprep.mubr.bf16.mxu0 0
      %4552 = vmatmul.mubr.bf16.gmra.mrb[0].mxu0 %v4411
      %v4553 = vpop.f32.mrb[0].mxu0
      %v4554 = vadd.f32 0.0, %v4553
      %v4555 = vpop.f32.mrb[0].mxu0
      %v4556 = vpop.f32.mrb[0].mxu0
      %v4557 = vadd.f32 0.0, %v4556
      %v4558 = vpop.f32.mrb[0].mxu0
      %4559 = vmatprep.mubr.bf16.mxu0 0
      %4560 = vmatmul.mubr.bf16.gmra.mrb[0].mxu0 %v4412
      %v4561 = vpop.f32.mrb[0].mxu0
      %v4562 = vadd.f32 0.0, %v4561
      %v4563 = vpop.f32.mrb[0].mxu0
      %v4564 = vpop.f32.mrb[0].mxu0
      %v4565 = vadd.f32 0.0, %v4564
      %v4566 = vpop.f32.mrb[0].mxu0
      %4567 = vmatprep.mubr.bf16.mxu0 0
      %4568 = vmatmul.mubr.bf16.gmra.mrb[0].mxu0 %v4413
      %v4569 = vpop.f32.mrb[0].mxu0
      %v4570 = vadd.f32 0.0, %v4569
      %v4571 = vpop.f32.mrb[0].mxu0
      %v4572 = vpop.f32.mrb[0].mxu0
      %v4573 = vadd.f32 0.0, %v4572
      %v4574 = vpop.f32.mrb[0].mxu0
      %4575 = vdwg.mxu0
      %v4576 = vadd.f32 %v4390, %v4514
      %v4577 = vadd.f32 %v4391, %v4517
      %v4578 = vadd.f32 %v4392, %v4522
      %v4579 = vadd.f32 %v4393, %v4525
      %v4580 = vadd.f32 %v4394, %v4530
      %v4581 = vadd.f32 %v4395, %v4533
      %v4582 = vadd.f32 %v4396, %v4538
      %v4583 = vadd.f32 %v4397, %v4541
      %v4584 = vadd.f32 %v4398, %v4546
      %v4585 = vadd.f32 %v4399, %v4549
      %v4586 = vadd.f32 %v4400, %v4554
      %v4587 = vadd.f32 %v4401, %v4557
      %v4588 = vadd.f32 %v4402, %v4562
      %v4589 = vadd.f32 %v4403, %v4565
      %v4590 = vadd.f32 %v4404, %v4570
      %v4591 = vadd.f32 %v4405, %v4573
      %v4592 = vld [vmem:[#allocation3] sm:$0xff]
      %v4593 = vld [vmem:[#allocation3 + $0x8] sm:$0xff]
      %v4594 = vld [vmem:[#allocation3 + $0x10] sm:$0xff]
      %v4595 = vld [vmem:[#allocation3 + $0x18] sm:$0xff]
      %v4596 = vld [vmem:[#allocation3 + $0x20] sm:$0xff]
      %v4597 = vld [vmem:[#allocation3 + $0x28] sm:$0xff]
      %v4598 = vld [vmem:[#allocation3 + $0x30] sm:$0xff]
      %v4599 = vld [vmem:[#allocation3 + $0x38] sm:$0xff]
      %v4600 = vld [vmem:[#allocation3 + $0x40] sm:$0xff]
      %v4601 = vld [vmem:[#allocation3 + $0x48] sm:$0xff]
      %v4602 = vld [vmem:[#allocation3 + $0x50] sm:$0xff]
      %v4603 = vld [vmem:[#allocation3 + $0x58] sm:$0xff]
      %v4605 = vshrl.u32 %v4592, 16
      %v4607 = vshll.u32 %v4592, 16
      %v4609 = vrot.slane %v4607, 1
      %v4610 = vor.u32 %v4605, %v4609
      %v4612 = vshll.u32 %v4593, 16
      %v4614 = vrot.slane %v4612, 1
      %v4615 = vsel %vm2187, %v4610, %v4614
      %v4616 = vshrl.u32 %v4593, 16
      %v4618 = vor.u32 %v4616, %v4614
      %v4620 = vshrl.u32 %v4594, 16
      %v4622 = vshll.u32 %v4594, 16
      %v4624 = vrot.slane %v4622, 1
      %v4625 = vor.u32 %v4620, %v4624
      %v4627 = vshll.u32 %v4595, 16
      %v4629 = vrot.slane %v4627, 1
      %v4630 = vsel %vm2187, %v4625, %v4629
      %v4631 = vshrl.u32 %v4595, 16
      %v4633 = vor.u32 %v4631, %v4629
      %v4635 = vshrl.u32 %v4596, 16
      %v4637 = vshll.u32 %v4596, 16
      %v4639 = vrot.slane %v4637, 1
      %v4640 = vor.u32 %v4635, %v4639
      %v4642 = vshll.u32 %v4597, 16
      %v4644 = vrot.slane %v4642, 1
      %v4645 = vsel %vm2187, %v4640, %v4644
      %v4646 = vshrl.u32 %v4597, 16
      %v4648 = vor.u32 %v4646, %v4644
      %v4650 = vshrl.u32 %v4598, 16
      %v4652 = vshll.u32 %v4598, 16
      %v4654 = vrot.slane %v4652, 1
      %v4655 = vor.u32 %v4650, %v4654
      %v4657 = vshll.u32 %v4599, 16
      %v4659 = vrot.slane %v4657, 1
      %v4660 = vsel %vm2187, %v4655, %v4659
      %v4661 = vshrl.u32 %v4599, 16
      %v4663 = vor.u32 %v4661, %v4659
      %v4665 = vshrl.u32 %v4600, 16
      %v4667 = vshll.u32 %v4600, 16
      %v4669 = vrot.slane %v4667, 1
      %v4670 = vor.u32 %v4665, %v4669
      %v4672 = vshll.u32 %v4601, 16
      %v4674 = vrot.slane %v4672, 1
      %v4675 = vsel %vm2187, %v4670, %v4674
      %v4676 = vshrl.u32 %v4601, 16
      %v4678 = vor.u32 %v4676, %v4674
      %v4680 = vshrl.u32 %v4602, 16
      %v4682 = vshll.u32 %v4602, 16
      %v4684 = vrot.slane %v4682, 1
      %v4685 = vor.u32 %v4680, %v4684
      %v4687 = vshll.u32 %v4603, 16
      %v4689 = vrot.slane %v4687, 1
      %v4690 = vsel %vm2187, %v4685, %v4689
      %v4691 = vshrl.u32 %v4603, 16
      %v4693 = vor.u32 %v4691, %v4689
      %4706 = vst [vmem:[#allocation2] sm:$0xff] %v4615
      %v4707 = vld [vmem:[#allocation2 + $0x8] sm:$0xff]
      %v4708 = vsel %vm2257, %v4618, %v4707
      %4709 = vst [vmem:[#allocation2 + $0x8] sm:$0xff] %v4708
      %4710 = vst [vmem:[#allocation2 + $0x10] sm:$0xff] %v4630
      %v4711 = vld [vmem:[#allocation2 + $0x18] sm:$0xff]
      %v4712 = vsel %vm2257, %v4633, %v4711
      %4713 = vst [vmem:[#allocation2 + $0x18] sm:$0xff] %v4712
      %4714 = vst [vmem:[#allocation2 + $0x20] sm:$0xff] %v4645
      %v4715 = vld [vmem:[#allocation2 + $0x28] sm:$0xff]
      %v4716 = vsel %vm2257, %v4648, %v4715
      %4717 = vst [vmem:[#allocation2 + $0x28] sm:$0xff] %v4716
      %4718 = vst [vmem:[#allocation2 + $0x30] sm:$0xff] %v4660
      %v4719 = vld [vmem:[#allocation2 + $0x38] sm:$0xff]
      %v4720 = vsel %vm2257, %v4663, %v4719
      %4721 = vst [vmem:[#allocation2 + $0x38] sm:$0xff] %v4720
      %4722 = vst [vmem:[#allocation2 + $0x40] sm:$0xff] %v4675
      %v4723 = vld [vmem:[#allocation2 + $0x48] sm:$0xff]
      %v4724 = vsel %vm2257, %v4678, %v4723
      %4725 = vst [vmem:[#allocation2 + $0x48] sm:$0xff] %v4724
      %4726 = vst [vmem:[#allocation2 + $0x50] sm:$0xff] %v4690
      %v4727 = vld [vmem:[#allocation2 + $0x58] sm:$0xff]
      %v4728 = vsel %vm2257, %v4693, %v4727
      %4729 = vst [vmem:[#allocation2 + $0x58] sm:$0xff] %v4728
      %v4730 = vld [vmem:[#allocation2 + $0x8] sm:$0x80]
      %v4731 = vsel %vm2415, 0, %v4730
      %4732 = vst [vmem:[#allocation2 + $0x8] sm:$0x80] %v4731
      %v4733 = vld [vmem:[#allocation2 + $0x18] sm:$0x80]
      %v4734 = vsel %vm2415, 0, %v4733
      %4735 = vst [vmem:[#allocation2 + $0x18] sm:$0x80] %v4734
      %v4736 = vld [vmem:[#allocation2 + $0x28] sm:$0x80]
      %v4737 = vsel %vm2415, 0, %v4736
      %4738 = vst [vmem:[#allocation2 + $0x28] sm:$0x80] %v4737
      %v4739 = vld [vmem:[#allocation2 + $0x38] sm:$0x80]
      %v4740 = vsel %vm2415, 0, %v4739
      %4741 = vst [vmem:[#allocation2 + $0x38] sm:$0x80] %v4740
      %v4742 = vld [vmem:[#allocation2 + $0x48] sm:$0x80]
      %v4743 = vsel %vm2415, 0, %v4742
      %4744 = vst [vmem:[#allocation2 + $0x48] sm:$0x80] %v4743
      %v4745 = vld [vmem:[#allocation2 + $0x58] sm:$0x80]
      %v4746 = vsel %vm2415, 0, %v4745
      %4747 = vst [vmem:[#allocation2 + $0x58] sm:$0x80] %v4746
      %v4748 = vld [vmem:[#allocation2] sm:$0xff]
      %v4749 = vld [vmem:[#allocation2 + $0x8] sm:$0xff]
      %v4750 = vld [vmem:[#allocation2 + $0x10] sm:$0xff]
      %v4751 = vld [vmem:[#allocation2 + $0x18] sm:$0xff]
      %v4752 = vld [vmem:[#allocation2 + $0x20] sm:$0xff]
      %v4753 = vld [vmem:[#allocation2 + $0x28] sm:$0xff]
      %v4754 = vld [vmem:[#allocation2 + $0x30] sm:$0xff]
      %v4755 = vld [vmem:[#allocation2 + $0x38] sm:$0xff]
      %s4756 = scalar_lea.vmem %s4, 128
      %v4757 = vld [vmem:[%s4756] sm:$0xf]
      %v4758 = vld [vmem:[%s4756 + $0x4] sm:$0xf]
      %v4759 = vld [vmem:[%s4756 + $0x8] sm:$0xf]
      %v4760 = vld [vmem:[%s4756 + $0xc] sm:$0xf]
      %v4761 = vld [vmem:[%s4756 + $0x10] sm:$0xf]
      %v4762 = vld [vmem:[%s4756 + $0x14] sm:$0xf]
      %v4763 = vld [vmem:[%s4756 + $0x18] sm:$0xf]
      %v4764 = vld [vmem:[%s4756 + $0x1c] sm:$0xf]
      %v4765 = vld [vmem:[%s4756 + $0x20] sm:$0xf]
      %v4766 = vld [vmem:[%s4756 + $0x24] sm:$0xf]
      %v4767 = vld [vmem:[%s4756 + $0x28] sm:$0xf]
      %v4768 = vld [vmem:[%s4756 + $0x2c] sm:$0xf]
      %v4769 = vld [vmem:[%s4756 + $0x30] sm:$0xf]
      %v4770 = vld [vmem:[%s4756 + $0x34] sm:$0xf]
      %v4771 = vld [vmem:[%s4756 + $0x38] sm:$0xf]
      %v4772 = vld [vmem:[%s4756 + $0x3c] sm:$0xf]
      %v4789 = vunpack.c.l.b16 %v4757
      %v4790 = vunpack.c.l.b16 %v4758
      %v4791 = vunpack.c.l.b16 %v4759
      %v4792 = vunpack.c.l.b16 %v4760
      %v4793 = vunpack.c.l.b16 %v4761
      %v4794 = vunpack.c.l.b16 %v4762
      %v4795 = vunpack.c.l.b16 %v4763
      %v4796 = vunpack.c.l.b16 %v4764
      %v4797 = vunpack.c.l.b16 %v4765
      %v4798 = vunpack.c.l.b16 %v4766
      %v4799 = vunpack.c.l.b16 %v4767
      %v4800 = vunpack.c.l.b16 %v4768
      %v4801 = vunpack.c.l.b16 %v4769
      %v4802 = vunpack.c.l.b16 %v4770
      %v4803 = vunpack.c.l.b16 %v4771
      %v4804 = vunpack.c.l.b16 %v4772
      %v4805 = vpack.c.b16 %v4790, %v4789
      %v4806 = vpack.c.b16 %v4792, %v4791
      %v4807 = vpack.c.b16 %v4794, %v4793
      %v4808 = vpack.c.b16 %v4796, %v4795
      %v4809 = vpack.c.b16 %v4798, %v4797
      %v4810 = vpack.c.b16 %v4800, %v4799
      %v4811 = vpack.c.b16 %v4802, %v4801
      %v4812 = vpack.c.b16 %v4804, %v4803
      %4821 = vmatprep.subr.bf16.mxu0 0
      %4822 = vmatpush1.bf16.msra.mxu0 %v4805
      %4823 = vmatprep.subr.bf16.mxu0 0
      %4824 = vmatpush1.bf16.msra.mxu0 %v4806
      %4825 = vmatprep.subr.bf16.mxu0 0
      %4826 = vmatpush1.bf16.msra.mxu0 %v4807
      %4827 = vmatprep.subr.bf16.mxu0 0
      %4828 = vmatpush1.bf16.msra.mxu0 %v4808
      %4829 = vmatprep.subr.bf16.mxu0 0
      %4830 = vmatpush1.bf16.msra.mxu0 %v4809
      %4831 = vmatprep.subr.bf16.mxu0 0
      %4832 = vmatpush1.bf16.msra.mxu0 %v4810
      %4833 = vmatprep.subr.bf16.mxu0 0
      %4834 = vmatpush1.bf16.msra.mxu0 %v4811
      %4835 = vmatprep.subr.bf16.mxu0 0
      %4836 = vmatpush1.bf16.msra.mxu0 %v4812
      %4837 = vmatprep.subr.bf16.mxu0 0
      %4838 = vmatpush1.bf16.msra.mxu0 0
      %4839 = vmatprep.subr.bf16.mxu0 0
      %4840 = vmatpush1.bf16.msra.mxu0 0
      %4841 = vmatprep.subr.bf16.mxu0 0
      %4842 = vmatpush1.bf16.msra.mxu0 0
      %4843 = vmatprep.subr.bf16.mxu0 0
      %4844 = vmatpush1.bf16.msra.mxu0 0
      %4845 = vmatprep.subr.bf16.mxu0 0
      %4846 = vmatpush1.bf16.msra.mxu0 0
      %4847 = vmatprep.subr.bf16.mxu0 0
      %4848 = vmatpush1.bf16.msra.mxu0 0
      %4849 = vmatprep.subr.bf16.mxu0 0
      %4850 = vmatpush1.bf16.msra.mxu0 0
      %4851 = vmatprep.subr.bf16.mxu0 0
      %4852 = vmatpush1.bf16.msra.mxu0 0
      %4853 = vmatprep.mubr.bf16.mxu0 0
      %4854 = vmatmul.mubr.bf16.gmra.mrb[0].mxu0 %v4748
      %v4855 = vpop.f32.mrb[0].mxu0
      %v4856 = vadd.f32 0.0, %v4855
      %v4857 = vpop.f32.mrb[0].mxu0
      %v4858 = vpop.f32.mrb[0].mxu0
      %v4859 = vadd.f32 0.0, %v4858
      %v4860 = vpop.f32.mrb[0].mxu0
      %4861 = vmatprep.mubr.bf16.mxu0 0
      %4862 = vmatmul.mubr.bf16.gmra.mrb[0].mxu0 %v4749
      %v4863 = vpop.f32.mrb[0].mxu0
      %v4864 = vadd.f32 0.0, %v4863
      %v4865 = vpop.f32.mrb[0].mxu0
      %v4866 = vpop.f32.mrb[0].mxu0
      %v4867 = vadd.f32 0.0, %v4866
      %v4868 = vpop.f32.mrb[0].mxu0
      %4869 = vmatprep.mubr.bf16.mxu0 0
      %4870 = vmatmul.mubr.bf16.gmra.mrb[0].mxu0 %v4750
      %v4871 = vpop.f32.mrb[0].mxu0
      %v4872 = vadd.f32 0.0, %v4871
      %v4873 = vpop.f32.mrb[0].mxu0
      %v4874 = vpop.f32.mrb[0].mxu0
      %v4875 = vadd.f32 0.0, %v4874
      %v4876 = vpop.f32.mrb[0].mxu0
      %4877 = vmatprep.mubr.bf16.mxu0 0
      %4878 = vmatmul.mubr.bf16.gmra.mrb[0].mxu0 %v4751
      %v4879 = vpop.f32.mrb[0].mxu0
      %v4880 = vadd.f32 0.0, %v4879
      %v4881 = vpop.f32.mrb[0].mxu0
      %v4882 = vpop.f32.mrb[0].mxu0
      %v4883 = vadd.f32 0.0, %v4882
      %v4884 = vpop.f32.mrb[0].mxu0
      %4885 = vmatprep.mubr.bf16.mxu0 0
      %4886 = vmatmul.mubr.bf16.gmra.mrb[0].mxu0 %v4752
      %v4887 = vpop.f32.mrb[0].mxu0
      %v4888 = vadd.f32 0.0, %v4887
      %v4889 = vpop.f32.mrb[0].mxu0
      %v4890 = vpop.f32.mrb[0].mxu0
      %v4891 = vadd.f32 0.0, %v4890
      %v4892 = vpop.f32.mrb[0].mxu0
      %4893 = vmatprep.mubr.bf16.mxu0 0
      %4894 = vmatmul.mubr.bf16.gmra.mrb[0].mxu0 %v4753
      %v4895 = vpop.f32.mrb[0].mxu0
      %v4896 = vadd.f32 0.0, %v4895
      %v4897 = vpop.f32.mrb[0].mxu0
      %v4898 = vpop.f32.mrb[0].mxu0
      %v4899 = vadd.f32 0.0, %v4898
      %v4900 = vpop.f32.mrb[0].mxu0
      %4901 = vmatprep.mubr.bf16.mxu0 0
      %4902 = vmatmul.mubr.bf16.gmra.mrb[0].mxu0 %v4754
      %v4903 = vpop.f32.mrb[0].mxu0
      %v4904 = vadd.f32 0.0, %v4903
      %v4905 = vpop.f32.mrb[0].mxu0
      %v4906 = vpop.f32.mrb[0].mxu0
      %v4907 = vadd.f32 0.0, %v4906
      %v4908 = vpop.f32.mrb[0].mxu0
      %4909 = vmatprep.mubr.bf16.mxu0 0
      %4910 = vmatmul.mubr.bf16.gmra.mrb[0].mxu0 %v4755
      %v4911 = vpop.f32.mrb[0].mxu0
      %v4912 = vadd.f32 0.0, %v4911
      %v4913 = vpop.f32.mrb[0].mxu0
      %v4914 = vpop.f32.mrb[0].mxu0
      %v4915 = vadd.f32 0.0, %v4914
      %v4916 = vpop.f32.mrb[0].mxu0
      %4917 = vdwg.mxu0
      %v4918 = vadd.f32 %v4576, %v4856
      %v4919 = vadd.f32 %v4577, %v4859
      %v4920 = vadd.f32 %v4578, %v4864
      %v4921 = vadd.f32 %v4579, %v4867
      %v4922 = vadd.f32 %v4580, %v4872
      %v4923 = vadd.f32 %v4581, %v4875
      %v4924 = vadd.f32 %v4582, %v4880
      %v4925 = vadd.f32 %v4583, %v4883
      %v4926 = vadd.f32 %v4584, %v4888
      %v4927 = vadd.f32 %v4585, %v4891
      %v4928 = vadd.f32 %v4586, %v4896
      %v4929 = vadd.f32 %v4587, %v4899
      %v4930 = vadd.f32 %v4588, %v4904
      %v4931 = vadd.f32 %v4589, %v4907
      %v4932 = vadd.f32 %v4590, %v4912
      %v4933 = vadd.f32 %v4591, %v4915
      %v4934 = vld [vmem:[%s517] sm:$0xff]
      %v4935 = vld [vmem:[%s517 + $0x8] sm:$0xff]
      %v4936 = vld [vmem:[%s517 + $0x10] sm:$0xff]
      %v4937 = vld [vmem:[%s517 + $0x18] sm:$0xff]
      %v4938 = vld [vmem:[%s517 + $0x20] sm:$0xff]
      %v4939 = vld [vmem:[%s517 + $0x28] sm:$0xff]
      %v4940 = vld [vmem:[%s517 + $0x30] sm:$0xff]
      %v4941 = vld [vmem:[%s517 + $0x38] sm:$0xff]
      %s4942 = scalar_lea.vmem %s4, 320
      %v4943 = vld [vmem:[%s4942] sm:$0xf]
      %v4944 = vld [vmem:[%s4942 + $0x4] sm:$0xf]
      %v4945 = vld [vmem:[%s4942 + $0x8] sm:$0xf]
      %v4946 = vld [vmem:[%s4942 + $0xc] sm:$0xf]
      %v4947 = vld [vmem:[%s4942 + $0x10] sm:$0xf]
      %v4948 = vld [vmem:[%s4942 + $0x14] sm:$0xf]
      %v4949 = vld [vmem:[%s4942 + $0x18] sm:$0xf]
      %v4950 = vld [vmem:[%s4942 + $0x1c] sm:$0xf]
      %v4951 = vld [vmem:[%s4942 + $0x20] sm:$0xf]
      %v4952 = vld [vmem:[%s4942 + $0x24] sm:$0xf]
      %v4953 = vld [vmem:[%s4942 + $0x28] sm:$0xf]
      %v4954 = vld [vmem:[%s4942 + $0x2c] sm:$0xf]
      %v4955 = vld [vmem:[%s4942 + $0x30] sm:$0xf]
      %v4956 = vld [vmem:[%s4942 + $0x34] sm:$0xf]
      %v4957 = vld [vmem:[%s4942 + $0x38] sm:$0xf]
      %v4958 = vld [vmem:[%s4942 + $0x3c] sm:$0xf]
      %v4975 = vunpack.c.l.b16 %v4943
      %v4976 = vunpack.c.l.b16 %v4944
      %v4977 = vunpack.c.l.b16 %v4945
      %v4978 = vunpack.c.l.b16 %v4946
      %v4979 = vunpack.c.l.b16 %v4947
      %v4980 = vunpack.c.l.b16 %v4948
      %v4981 = vunpack.c.l.b16 %v4949
      %v4982 = vunpack.c.l.b16 %v4950
      %v4983 = vunpack.c.l.b16 %v4951
      %v4984 = vunpack.c.l.b16 %v4952
      %v4985 = vunpack.c.l.b16 %v4953
      %v4986 = vunpack.c.l.b16 %v4954
      %v4987 = vunpack.c.l.b16 %v4955
      %v4988 = vunpack.c.l.b16 %v4956
      %v4989 = vunpack.c.l.b16 %v4957
      %v4990 = vunpack.c.l.b16 %v4958
      %v4991 = vpack.c.b16 %v4976, %v4975
      %v4992 = vpack.c.b16 %v4978, %v4977
      %v4993 = vpack.c.b16 %v4980, %v4979
      %v4994 = vpack.c.b16 %v4982, %v4981
      %v4995 = vpack.c.b16 %v4984, %v4983
      %v4996 = vpack.c.b16 %v4986, %v4985
      %v4997 = vpack.c.b16 %v4988, %v4987
      %v4998 = vpack.c.b16 %v4990, %v4989
      %5007 = vmatprep.subr.bf16.mxu0 0
      %5008 = vmatpush1.bf16.msra.mxu0 %v4991
      %5009 = vmatprep.subr.bf16.mxu0 0
      %5010 = vmatpush1.bf16.msra.mxu0 %v4992
      %5011 = vmatprep.subr.bf16.mxu0 0
      %5012 = vmatpush1.bf16.msra.mxu0 %v4993
      %5013 = vmatprep.subr.bf16.mxu0 0
      %5014 = vmatpush1.bf16.msra.mxu0 %v4994
      %5015 = vmatprep.subr.bf16.mxu0 0
      %5016 = vmatpush1.bf16.msra.mxu0 %v4995
      %5017 = vmatprep.subr.bf16.mxu0 0
      %5018 = vmatpush1.bf16.msra.mxu0 %v4996
      %5019 = vmatprep.subr.bf16.mxu0 0
      %5020 = vmatpush1.bf16.msra.mxu0 %v4997
      %5021 = vmatprep.subr.bf16.mxu0 0
      %5022 = vmatpush1.bf16.msra.mxu0 %v4998
      %5023 = vmatprep.subr.bf16.mxu0 0
      %5024 = vmatpush1.bf16.msra.mxu0 0
      %5025 = vmatprep.subr.bf16.mxu0 0
      %5026 = vmatpush1.bf16.msra.mxu0 0
      %5027 = vmatprep.subr.bf16.mxu0 0
      %5028 = vmatpush1.bf16.msra.mxu0 0
      %5029 = vmatprep.subr.bf16.mxu0 0
      %5030 = vmatpush1.bf16.msra.mxu0 0
      %5031 = vmatprep.subr.bf16.mxu0 0
      %5032 = vmatpush1.bf16.msra.mxu0 0
      %5033 = vmatprep.subr.bf16.mxu0 0
      %5034 = vmatpush1.bf16.msra.mxu0 0
      %5035 = vmatprep.subr.bf16.mxu0 0
      %5036 = vmatpush1.bf16.msra.mxu0 0
      %5037 = vmatprep.subr.bf16.mxu0 0
      %5038 = vmatpush1.bf16.msra.mxu0 0
      %5039 = vmatprep.mubr.bf16.mxu0 0
      %5040 = vmatmul.mubr.bf16.gmra.mrb[0].mxu0 %v4934
      %v5041 = vpop.f32.mrb[0].mxu0
      %v5042 = vadd.f32 0.0, %v5041
      %v5043 = vpop.f32.mrb[0].mxu0
      %v5044 = vpop.f32.mrb[0].mxu0
      %v5045 = vadd.f32 0.0, %v5044
      %v5046 = vpop.f32.mrb[0].mxu0
      %5047 = vmatprep.mubr.bf16.mxu0 0
      %5048 = vmatmul.mubr.bf16.gmra.mrb[0].mxu0 %v4935
      %v5049 = vpop.f32.mrb[0].mxu0
      %v5050 = vadd.f32 0.0, %v5049
      %v5051 = vpop.f32.mrb[0].mxu0
      %v5052 = vpop.f32.mrb[0].mxu0
      %v5053 = vadd.f32 0.0, %v5052
      %v5054 = vpop.f32.mrb[0].mxu0
      %5055 = vmatprep.mubr.bf16.mxu0 0
      %5056 = vmatmul.mubr.bf16.gmra.mrb[0].mxu0 %v4936
      %v5057 = vpop.f32.mrb[0].mxu0
      %v5058 = vadd.f32 0.0, %v5057
      %v5059 = vpop.f32.mrb[0].mxu0
      %v5060 = vpop.f32.mrb[0].mxu0
      %v5061 = vadd.f32 0.0, %v5060
      %v5062 = vpop.f32.mrb[0].mxu0
      %5063 = vmatprep.mubr.bf16.mxu0 0
      %5064 = vmatmul.mubr.bf16.gmra.mrb[0].mxu0 %v4937
      %v5065 = vpop.f32.mrb[0].mxu0
      %v5066 = vadd.f32 0.0, %v5065
      %v5067 = vpop.f32.mrb[0].mxu0
      %v5068 = vpop.f32.mrb[0].mxu0
      %v5069 = vadd.f32 0.0, %v5068
      %v5070 = vpop.f32.mrb[0].mxu0
      %5071 = vmatprep.mubr.bf16.mxu0 0
      %5072 = vmatmul.mubr.bf16.gmra.mrb[0].mxu0 %v4938
      %v5073 = vpop.f32.mrb[0].mxu0
      %v5074 = vadd.f32 0.0, %v5073
      %v5075 = vpop.f32.mrb[0].mxu0
      %v5076 = vpop.f32.mrb[0].mxu0
      %v5077 = vadd.f32 0.0, %v5076
      %v5078 = vpop.f32.mrb[0].mxu0
      %5079 = vmatprep.mubr.bf16.mxu0 0
      %5080 = vmatmul.mubr.bf16.gmra.mrb[0].mxu0 %v4939
      %v5081 = vpop.f32.mrb[0].mxu0
      %v5082 = vadd.f32 0.0, %v5081
      %v5083 = vpop.f32.mrb[0].mxu0
      %v5084 = vpop.f32.mrb[0].mxu0
      %v5085 = vadd.f32 0.0, %v5084
      %v5086 = vpop.f32.mrb[0].mxu0
      %5087 = vmatprep.mubr.bf16.mxu0 0
      %5088 = vmatmul.mubr.bf16.gmra.mrb[0].mxu0 %v4940
      %v5089 = vpop.f32.mrb[0].mxu0
      %v5090 = vadd.f32 0.0, %v5089
      %v5091 = vpop.f32.mrb[0].mxu0
      %v5092 = vpop.f32.mrb[0].mxu0
      %v5093 = vadd.f32 0.0, %v5092
      %v5094 = vpop.f32.mrb[0].mxu0
      %5095 = vmatprep.mubr.bf16.mxu0 0
      %5096 = vmatmul.mubr.bf16.gmra.mrb[0].mxu0 %v4941
      %v5097 = vpop.f32.mrb[0].mxu0
      %v5098 = vadd.f32 0.0, %v5097
      %v5099 = vpop.f32.mrb[0].mxu0
      %v5100 = vpop.f32.mrb[0].mxu0
      %v5101 = vadd.f32 0.0, %v5100
      %v5102 = vpop.f32.mrb[0].mxu0
      %5103 = vdwg.mxu0
      %v5104 = vadd.f32 %v4918, %v5042
      %v5105 = vadd.f32 %v4919, %v5045
      %v5106 = vadd.f32 %v4920, %v5050
      %v5107 = vadd.f32 %v4921, %v5053
      %v5108 = vadd.f32 %v4922, %v5058
      %v5109 = vadd.f32 %v4923, %v5061
      %v5110 = vadd.f32 %v4924, %v5066
      %v5111 = vadd.f32 %v4925, %v5069
      %v5112 = vadd.f32 %v4926, %v5074
      %v5113 = vadd.f32 %v4927, %v5077
      %v5114 = vadd.f32 %v4928, %v5082
      %v5115 = vadd.f32 %v4929, %v5085
      %v5116 = vadd.f32 %v4930, %v5090
      %v5117 = vadd.f32 %v4931, %v5093
      %v5118 = vadd.f32 %v4932, %v5098
      %v5119 = vadd.f32 %v4933, %v5101
      %v5120 = vld [vmem:[%s901] sm:$0xff]
      %v5121 = vld [vmem:[%s901 + $0x8] sm:$0xff]
      %v5122 = vld [vmem:[%s901 + $0x10] sm:$0xff]
      %v5123 = vld [vmem:[%s901 + $0x18] sm:$0xff]
      %v5124 = vld [vmem:[%s901 + $0x20] sm:$0xff]
      %v5125 = vld [vmem:[%s901 + $0x28] sm:$0xff]
      %v5126 = vld [vmem:[%s901 + $0x30] sm:$0xff]
      %v5127 = vld [vmem:[%s901 + $0x38] sm:$0xff]
      %s5128 = scalar_lea.vmem %s4, 512
      %v5129 = vld [vmem:[%s5128] sm:$0xf]
      %v5130 = vld [vmem:[%s5128 + $0x4] sm:$0xf]
      %v5131 = vld [vmem:[%s5128 + $0x8] sm:$0xf]
      %v5132 = vld [vmem:[%s5128 + $0xc] sm:$0xf]
      %v5133 = vld [vmem:[%s5128 + $0x10] sm:$0xf]
      %v5134 = vld [vmem:[%s5128 + $0x14] sm:$0xf]
      %v5135 = vld [vmem:[%s5128 + $0x18] sm:$0xf]
      %v5136 = vld [vmem:[%s5128 + $0x1c] sm:$0xf]
      %v5137 = vld [vmem:[%s5128 + $0x20] sm:$0xf]
      %v5138 = vld [vmem:[%s5128 + $0x24] sm:$0xf]
      %v5139 = vld [vmem:[%s5128 + $0x28] sm:$0xf]
      %v5140 = vld [vmem:[%s5128 + $0x2c] sm:$0xf]
      %v5141 = vld [vmem:[%s5128 + $0x30] sm:$0xf]
      %v5142 = vld [vmem:[%s5128 + $0x34] sm:$0xf]
      %v5143 = vld [vmem:[%s5128 + $0x38] sm:$0xf]
      %v5144 = vld [vmem:[%s5128 + $0x3c] sm:$0xf]
      %v5161 = vunpack.c.l.b16 %v5129
      %v5162 = vunpack.c.l.b16 %v5130
      %v5163 = vunpack.c.l.b16 %v5131
      %v5164 = vunpack.c.l.b16 %v5132
      %v5165 = vunpack.c.l.b16 %v5133
      %v5166 = vunpack.c.l.b16 %v5134
      %v5167 = vunpack.c.l.b16 %v5135
      %v5168 = vunpack.c.l.b16 %v5136
      %v5169 = vunpack.c.l.b16 %v5137
      %v5170 = vunpack.c.l.b16 %v5138
      %v5171 = vunpack.c.l.b16 %v5139
      %v5172 = vunpack.c.l.b16 %v5140
      %v5173 = vunpack.c.l.b16 %v5141
      %v5174 = vunpack.c.l.b16 %v5142
      %v5175 = vunpack.c.l.b16 %v5143
      %v5176 = vunpack.c.l.b16 %v5144
      %v5177 = vpack.c.b16 %v5162, %v5161
      %v5178 = vpack.c.b16 %v5164, %v5163
      %v5179 = vpack.c.b16 %v5166, %v5165
      %v5180 = vpack.c.b16 %v5168, %v5167
      %v5181 = vpack.c.b16 %v5170, %v5169
      %v5182 = vpack.c.b16 %v5172, %v5171
      %v5183 = vpack.c.b16 %v5174, %v5173
      %v5184 = vpack.c.b16 %v5176, %v5175
      %5193 = vmatprep.subr.bf16.mxu0 0
      %5194 = vmatpush1.bf16.msra.mxu0 %v5177
      %5195 = vmatprep.subr.bf16.mxu0 0
      %5196 = vmatpush1.bf16.msra.mxu0 %v5178
      %5197 = vmatprep.subr.bf16.mxu0 0
      %5198 = vmatpush1.bf16.msra.mxu0 %v5179
      %5199 = vmatprep.subr.bf16.mxu0 0
      %5200 = vmatpush1.bf16.msra.mxu0 %v5180
      %5201 = vmatprep.subr.bf16.mxu0 0
      %5202 = vmatpush1.bf16.msra.mxu0 %v5181
      %5203 = vmatprep.subr.bf16.mxu0 0
      %5204 = vmatpush1.bf16.msra.mxu0 %v5182
      %5205 = vmatprep.subr.bf16.mxu0 0
      %5206 = vmatpush1.bf16.msra.mxu0 %v5183
      %5207 = vmatprep.subr.bf16.mxu0 0
      %5208 = vmatpush1.bf16.msra.mxu0 %v5184
      %5209 = vmatprep.subr.bf16.mxu0 0
      %5210 = vmatpush1.bf16.msra.mxu0 0
      %5211 = vmatprep.subr.bf16.mxu0 0
      %5212 = vmatpush1.bf16.msra.mxu0 0
      %5213 = vmatprep.subr.bf16.mxu0 0
      %5214 = vmatpush1.bf16.msra.mxu0 0
      %5215 = vmatprep.subr.bf16.mxu0 0
      %5216 = vmatpush1.bf16.msra.mxu0 0
      %5217 = vmatprep.subr.bf16.mxu0 0
      %5218 = vmatpush1.bf16.msra.mxu0 0
      %5219 = vmatprep.subr.bf16.mxu0 0
      %5220 = vmatpush1.bf16.msra.mxu0 0
      %5221 = vmatprep.subr.bf16.mxu0 0
      %5222 = vmatpush1.bf16.msra.mxu0 0
      %5223 = vmatprep.subr.bf16.mxu0 0
      %5224 = vmatpush1.bf16.msra.mxu0 0
      %5225 = vmatprep.mubr.bf16.mxu0 0
      %5226 = vmatmul.mubr.bf16.gmra.mrb[0].mxu0 %v5120
      %v5227 = vpop.f32.mrb[0].mxu0
      %v5228 = vadd.f32 0.0, %v5227
      %v5229 = vpop.f32.mrb[0].mxu0
      %v5230 = vpop.f32.mrb[0].mxu0
      %v5231 = vadd.f32 0.0, %v5230
      %v5232 = vpop.f32.mrb[0].mxu0
      %5233 = vmatprep.mubr.bf16.mxu0 0
      %5234 = vmatmul.mubr.bf16.gmra.mrb[0].mxu0 %v5121
      %v5235 = vpop.f32.mrb[0].mxu0
      %v5236 = vadd.f32 0.0, %v5235
      %v5237 = vpop.f32.mrb[0].mxu0
      %v5238 = vpop.f32.mrb[0].mxu0
      %v5239 = vadd.f32 0.0, %v5238
      %v5240 = vpop.f32.mrb[0].mxu0
      %5241 = vmatprep.mubr.bf16.mxu0 0
      %5242 = vmatmul.mubr.bf16.gmra.mrb[0].mxu0 %v5122
      %v5243 = vpop.f32.mrb[0].mxu0
      %v5244 = vadd.f32 0.0, %v5243
      %v5245 = vpop.f32.mrb[0].mxu0
      %v5246 = vpop.f32.mrb[0].mxu0
      %v5247 = vadd.f32 0.0, %v5246
      %v5248 = vpop.f32.mrb[0].mxu0
      %5249 = vmatprep.mubr.bf16.mxu0 0
      %5250 = vmatmul.mubr.bf16.gmra.mrb[0].mxu0 %v5123
      %v5251 = vpop.f32.mrb[0].mxu0
      %v5252 = vadd.f32 0.0, %v5251
      %v5253 = vpop.f32.mrb[0].mxu0
      %v5254 = vpop.f32.mrb[0].mxu0
      %v5255 = vadd.f32 0.0, %v5254
      %v5256 = vpop.f32.mrb[0].mxu0
      %5257 = vmatprep.mubr.bf16.mxu0 0
      %5258 = vmatmul.mubr.bf16.gmra.mrb[0].mxu0 %v5124
      %v5259 = vpop.f32.mrb[0].mxu0
      %v5260 = vadd.f32 0.0, %v5259
      %v5261 = vpop.f32.mrb[0].mxu0
      %v5262 = vpop.f32.mrb[0].mxu0
      %v5263 = vadd.f32 0.0, %v5262
      %v5264 = vpop.f32.mrb[0].mxu0
      %5265 = vmatprep.mubr.bf16.mxu0 0
      %5266 = vmatmul.mubr.bf16.gmra.mrb[0].mxu0 %v5125
      %v5267 = vpop.f32.mrb[0].mxu0
      %v5268 = vadd.f32 0.0, %v5267
      %v5269 = vpop.f32.mrb[0].mxu0
      %v5270 = vpop.f32.mrb[0].mxu0
      %v5271 = vadd.f32 0.0, %v5270
      %v5272 = vpop.f32.mrb[0].mxu0
      %5273 = vmatprep.mubr.bf16.mxu0 0
      %5274 = vmatmul.mubr.bf16.gmra.mrb[0].mxu0 %v5126
      %v5275 = vpop.f32.mrb[0].mxu0
      %v5276 = vadd.f32 0.0, %v5275
      %v5277 = vpop.f32.mrb[0].mxu0
      %v5278 = vpop.f32.mrb[0].mxu0
      %v5279 = vadd.f32 0.0, %v5278
      %v5280 = vpop.f32.mrb[0].mxu0
      %5281 = vmatprep.mubr.bf16.mxu0 0
      %5282 = vmatmul.mubr.bf16.gmra.mrb[0].mxu0 %v5127
      %v5283 = vpop.f32.mrb[0].mxu0
      %v5284 = vadd.f32 0.0, %v5283
      %v5285 = vpop.f32.mrb[0].mxu0
      %v5286 = vpop.f32.mrb[0].mxu0
      %v5287 = vadd.f32 0.0, %v5286
      %v5288 = vpop.f32.mrb[0].mxu0
      %5289 = vdwg.mxu0
      %v5290 = vadd.f32 %v5104, %v5228
      %v5291 = vadd.f32 %v5105, %v5231
      %v5292 = vadd.f32 %v5106, %v5236
      %v5293 = vadd.f32 %v5107, %v5239
      %v5294 = vadd.f32 %v5108, %v5244
      %v5295 = vadd.f32 %v5109, %v5247
      %v5296 = vadd.f32 %v5110, %v5252
      %v5297 = vadd.f32 %v5111, %v5255
      %v5298 = vadd.f32 %v5112, %v5260
      %v5299 = vadd.f32 %v5113, %v5263
      %v5300 = vadd.f32 %v5114, %v5268
      %v5301 = vadd.f32 %v5115, %v5271
      %v5302 = vadd.f32 %v5116, %v5276
      %v5303 = vadd.f32 %v5117, %v5279
      %v5304 = vadd.f32 %v5118, %v5284
      %v5305 = vadd.f32 %v5119, %v5287
      %v5306 = vld [vmem:[%s5] sm:$0x1]
      %v5308 = vlaneseq
      %v5309 = vshrl.u32 %v5308, 7
      %v5310 = vsub.s32 0, %v5309
      %v5311 = vrot.slane %v5306, %v5310
      %v5313 = vadd.f32 %v5290, %v5311
      %v5314 = vadd.f32 %v5291, %v5311
      %v5315 = vadd.f32 %v5292, %v5311
      %v5316 = vadd.f32 %v5293, %v5311
      %v5317 = vadd.f32 %v5294, %v5311
      %v5318 = vadd.f32 %v5295, %v5311
      %v5319 = vadd.f32 %v5296, %v5311
      %v5320 = vadd.f32 %v5297, %v5311
      %v5321 = vadd.f32 %v5298, %v5311
      %v5322 = vadd.f32 %v5299, %v5311
      %v5323 = vadd.f32 %v5300, %v5311
      %v5324 = vadd.f32 %v5301, %v5311
      %v5325 = vadd.f32 %v5302, %v5311
      %v5326 = vadd.f32 %v5303, %v5311
      %v5327 = vadd.f32 %v5304, %v5311
      %v5328 = vadd.f32 %v5305, %v5311
      %v5329 = vmax.f32 %v5313, 0.0
      %v5330 = vmax.f32 %v5314, 0.0
      %v5331 = vmax.f32 %v5315, 0.0
      %v5332 = vmax.f32 %v5316, 0.0
      %v5333 = vmax.f32 %v5317, 0.0
      %v5334 = vmax.f32 %v5318, 0.0
      %v5335 = vmax.f32 %v5319, 0.0
      %v5336 = vmax.f32 %v5320, 0.0
      %v5337 = vmax.f32 %v5321, 0.0
      %v5338 = vmax.f32 %v5322, 0.0
      %v5339 = vmax.f32 %v5323, 0.0
      %v5340 = vmax.f32 %v5324, 0.0
      %v5341 = vmax.f32 %v5325, 0.0
      %v5342 = vmax.f32 %v5326, 0.0
      %v5343 = vmax.f32 %v5327, 0.0
      %v5344 = vmax.f32 %v5328, 0.0
      %v5345 = vpack.c.bf16 %v5330, %v5329
      %v5346 = vpack.c.bf16 %v5332, %v5331
      %v5347 = vpack.c.bf16 %v5334, %v5333
      %v5348 = vpack.c.bf16 %v5336, %v5335
      %v5349 = vpack.c.bf16 %v5338, %v5337
      %v5350 = vpack.c.bf16 %v5340, %v5339
      %v5351 = vpack.c.bf16 %v5342, %v5341
      %v5352 = vpack.c.bf16 %v5344, %v5343
      %v5361 = vunpack.c.l.b16 %v5345
      %v5362 = vunpack.c.h.b16 %v5345
      %v5363 = vunpack.c.l.b16 %v5346
      %v5364 = vunpack.c.h.b16 %v5346
      %v5365 = vunpack.c.l.b16 %v5347
      %v5366 = vunpack.c.h.b16 %v5347
      %v5367 = vunpack.c.l.b16 %v5348
      %v5368 = vunpack.c.h.b16 %v5348
      %v5369 = vunpack.c.l.b16 %v5349
      %v5370 = vunpack.c.h.b16 %v5349
      %v5371 = vunpack.c.l.b16 %v5350
      %v5372 = vunpack.c.h.b16 %v5350
      %v5373 = vunpack.c.l.b16 %v5351
      %v5374 = vunpack.c.h.b16 %v5351
      %v5375 = vunpack.c.l.b16 %v5352
      %v5376 = vunpack.c.h.b16 %v5352
      %v5377 = vpack.c.b16 %v5361, %v5361
      %v5378 = vpack.c.b16 %v5362, %v5362
      %v5379 = vpack.c.b16 %v5363, %v5363
      %v5380 = vpack.c.b16 %v5364, %v5364
      %v5381 = vpack.c.b16 %v5365, %v5365
      %v5382 = vpack.c.b16 %v5366, %v5366
      %v5383 = vpack.c.b16 %v5367, %v5367
      %v5384 = vpack.c.b16 %v5368, %v5368
      %v5385 = vpack.c.b16 %v5369, %v5369
      %v5386 = vpack.c.b16 %v5370, %v5370
      %v5387 = vpack.c.b16 %v5371, %v5371
      %v5388 = vpack.c.b16 %v5372, %v5372
      %v5389 = vpack.c.b16 %v5373, %v5373
      %v5390 = vpack.c.b16 %v5374, %v5374
      %v5391 = vpack.c.b16 %v5375, %v5375
      %v5392 = vpack.c.b16 %v5376, %v5376
      %5409 = vst [vmem:[%s340] sm:$0xf] %v5377
      %5410 = vst [vmem:[%s340 + $0x4] sm:$0xf] %v5378
      %5411 = vst [vmem:[%s340 + $0x8] sm:$0xf] %v5379
      %5412 = vst [vmem:[%s340 + $0xc] sm:$0xf] %v5380
      %5413 = vst [vmem:[%s340 + $0x10] sm:$0xf] %v5381
      %5414 = vst [vmem:[%s340 + $0x14] sm:$0xf] %v5382
      %5415 = vst [vmem:[%s340 + $0x18] sm:$0xf] %v5383
      %5416 = vst [vmem:[%s340 + $0x1c] sm:$0xf] %v5384
      %5417 = vst [vmem:[%s340 + $0x20] sm:$0xf] %v5385
      %5418 = vst [vmem:[%s340 + $0x24] sm:$0xf] %v5386
      %5419 = vst [vmem:[%s340 + $0x28] sm:$0xf] %v5387
      %5420 = vst [vmem:[%s340 + $0x2c] sm:$0xf] %v5388
      %5421 = vst [vmem:[%s340 + $0x30] sm:$0xf] %v5389
      %5422 = vst [vmem:[%s340 + $0x34] sm:$0xf] %v5390
      %5423 = vst [vmem:[%s340 + $0x38] sm:$0xf] %v5391
      %5424 = vst [vmem:[%s340 + $0x3c] sm:$0xf] %v5392
      %s5425 = smul.u32 4, %s22
      %p5426 = scmp.lt.s32.totalorder %s21, 1
      %s5427 = scalar_select %p5426, %s21, 1
      %p5428 = scmp.lt.s32.totalorder %s5425, 15
      %s5429 = scalar_select %p5428, %s5425, 15
      %s5430 = smul.addr %s5429, 4
      %s5431 = smul.addr %s5427, 64
      %s5432 = sadd.s32 %s5430, %s5431
      %s5433 = smul.addr %s5432, 4
      %s5434 = scalar_lea.vmem %s6, %s5433
      // Predicated region
      $region45: #{_double_conv_impl.1} parent=43 // pred_check
        %p5435 = pneg %p191
      $region46: #{_double_conv_impl.1} parent=43 // pred_check_branch
        %5437 = sbr.rel (%p5435) target = $region48
      $region47: #{_double_conv_impl.1} parent=43 // pred_region
        %s5438 = smul.u32 4, %s22
      $region48: #{_double_conv_impl.1} parent=43 // pred_fallthru
        _
    $region44: #{_double_conv_impl.1} parent=5 // pred_fallthru
      _
    %p5439 = scmp.le.s32.totalorder 2, %s12
    // Predicated region
    $region49: #{_double_conv_impl.1} parent=5 // pred_check
      %p5440 = pneg %p5439
    $region50: #{_double_conv_impl.1} parent=5 // pred_check_branch
      %5442 = sbr.rel (%p5440) target = $region52
    $region51: #{_double_conv_impl.1} parent=5 // pred_region
      %s5443 = ssub.s32 %s12, 2
      // Predicated region
      $region53: #{_double_conv_impl.1} parent=51 // pred_check
        %p5444 = pneg %p197
      $region54: #{_double_conv_impl.1} parent=51 // pred_check_branch
        %5446 = sbr.rel (%p5444) target = $region56
      $region55: #{_double_conv_impl.1} parent=51 // pred_region
        %s5447 = smul.u32 4, %s24
        %p5448 = scmp.lt.s32.totalorder %s23, 1
        %s5449 = scalar_select %p5448, %s23, 1
        %p5450 = scmp.lt.s32.totalorder %s5447, 15
        %s5451 = scalar_select %p5450, %s5447, 15
        %s5452 = smul.addr %s5451, 4
        %s5453 = smul.addr %s5449, 64
        %s5454 = sadd.s32 %s5452, %s5453
        %s5455 = smul.addr %s5454, 4
        %s5456 = scalar_lea.vmem %s6, %s5455
      $region56: #{_double_conv_impl.1} parent=51 // pred_fallthru
        _
    $region52: #{_double_conv_impl.1} parent=5 // pred_fallthru
      _
  $region6: #{_double_conv_impl.1} parent=0 // loop_footer
    %s16 = sadd.s32 1, %s12
  $region7: #{_double_conv_impl.1} parent=0 // loop_footer_branch
    %11 = sbr.rel target = $region3
  $region8: #{_double_conv_impl.1} parent=0 // loop_exit
    _

// kernel: _double_conv_impl.1
$region0: #{_double_conv_impl.1}
  #allocation0 [shape = 'u32[]', space=smem, size = 0x4, offset = 0x4, fixed_abs, tag = 'smem constant byte address 0x4 - core index']
  #allocation1 [shape = 'u32[144,128]{1,0:T(1,128)}', space=vmem, size = 0x12000, scoped, tag = 'internal scratch']
  #allocation2 [shape = 'bf16[8,32,128]{2,1,0:T(16,128)(2,1)}', space=vmem, size = 0x10000, scoped, tag = 'scratch operand']
  #allocation3 [shape = 'bf16[6,32,128]{2,1,0:T(16,128)(2,1)}', space=vmem, size = 0xc000, scoped, tag = 'scratch operand']
  %s0 = inlined_call_operand.vmem [shape: bf16[2,20,32,128], index: 0, kind: input, shape index: {}, may-alias: {0,1}]
  %s1 = inlined_call_operand.vmem [shape: bf16[2,20,32,128], index: 1, kind: input, shape index: {}, may-alias: {0,1}]
  %s2 = inlined_call_operand.vmem [shape: bf16[3,3,128,128], index: 2, kind: input, shape index: {}]
  %s3 = inlined_call_operand.vmem [shape: f32[1,128], index: 3, kind: input, shape index: {}]
  %s4 = inlined_call_operand.vmem [shape: bf16[3,3,128,128], index: 4, kind: input, shape index: {}]
  %s5 = inlined_call_operand.vmem [shape: f32[1,128], index: 5, kind: input, shape index: {}]
  %s6 = inlined_call_operand.vmem [shape: bf16[2,16,32,128], index: 6, kind: output, shape index: {}]
  %s7 = sld [smem:[#allocation0]]
  $region57: #{_double_conv_impl.1} parent=0
    _
  %s9 = ssub.s32 1, %s7
  %s10 = scalar_select 0, %s9, %s7
  loop: start=0, step=1, limit=10
  $region2: #{_double_conv_impl.1} parent=0 // loop_pre_header
    _
  $region3: #{_double_conv_impl.1} parent=0 // loop_header
    %s12 = sphi 0, %s16
    %p13 = scmp.ge.s32.totalorder %s12, 10
    %s19 = sphi 0, %s31
    %s20 = sphi 0, %s27
    %s21 = sphi 0, %s19
    %s22 = sphi 0, %s20
    %s23 = sphi 0, %s21
    %s24 = sphi 0, %s22
    %s36 = sphi 0, %s38
    %s39 = sphi 0, %s36
    %s40 = sphi 0, %s39
    %s56 = sphi 0, %s40
    %s66 = sphi 0, %s68
    %s69 = sphi 0, %s66
    %s70 = sphi 0, %s69
    %s86 = sphi 0, %s70
    %s90 = sphi 0, %s90
    %s92 = sphi 0, %s90
    %s93 = sphi 0, %s92
    %s107 = sphi 0, %s93
    %s111 = sphi 0, %s111
    %s113 = sphi 0, %s111
    %s114 = sphi 0, %s113
    %s128 = sphi 0, %s114
    %s132 = sphi 0, %s132
    %s134 = sphi 0, %s132
    %s135 = sphi 0, %s134
    %s149 = sphi 0, %s135
    %s153 = sphi 0, %s153
    %s155 = sphi 0, %s153
    %s156 = sphi 0, %s155
    %s170 = sphi 0, %s156
    %s178 = sphi 0, %s180
    %s181 = sphi 0, %s178
    %s182 = sphi 0, %s181
    %s198 = sphi 0, %s182
  $region4: #{_double_conv_impl.1} parent=0 // loop_header_branch
    %15 = sbr.rel (%p13) target = $region8
  $region5: #{_double_conv_impl.1} parent=0 // loop_body
    %s17 = ssub.s32 %s12, 1
    %s18 = ssub.s32 %s12, 2
    %s25 = sadd.s32 1, %s20
    %p26 = scmp.ge.s32.totalorder %s25, 4
    %s27 = scalar_select %p26, 0, %s25
    %s28 = sadd.s32 1, %s19
    %s29 = scalar_select %p26, %s28, %s19
    %p30 = scmp.ge.s32.totalorder %s29, 2
    %s31 = scalar_select %p30, 0, %s29
    %s32 = ssub.s32 %s19, %s31
    %s33 = ssub.s32 %s20, %s27
    %s34 = sor.u32 %s32, %s33
    %p35 = scmp.eq.s32.totalorder %s34, 0
    %s37 = sadd.s32 %s36, 1
    %s38 = scalar_select %p35, %s36, %s37
    %p41 = pneg %p35
    %p42 = scmp.eq.s32.totalorder %s12, 7
    %p43 = por %p41, %p42
    %p44 = scmp.ne.s32.totalorder %s36, %s39
    %p45 = scmp.eq.s32.totalorder %s12, 0
    %p46 = por %p44, %p45
    %p47 = scmp.ne.s32.totalorder %s36, %s39
    %p48 = scmp.eq.s32.totalorder %s17, 7
    %p49 = por %p47, %p48
    %p50 = scmp.ne.s32.totalorder %s39, %s40
    %p51 = scmp.eq.s32.totalorder %s17, 0
    %p52 = por %p50, %p51
    %p53 = scmp.ne.s32.totalorder %s39, %s40
    %p54 = scmp.eq.s32.totalorder %s18, 7
    %p55 = por %p53, %p54
    %p57 = scmp.ne.s32.totalorder %s40, %s56
    %p58 = scmp.eq.s32.totalorder %s18, 0
    %p59 = por %p57, %p58
    %s60 = sadd.s32 %s20, 1
    %s61 = sadd.s32 %s27, 1
    %s62 = ssub.s32 %s19, %s31
    %s63 = ssub.s32 %s60, %s61
    %s64 = sor.u32 %s62, %s63
    %p65 = scmp.eq.s32.totalorder %s64, 0
    %s67 = sadd.s32 %s66, 1
    %s68 = scalar_select %p65, %s66, %s67
    %p71 = pneg %p65
    %p72 = scmp.eq.s32.totalorder %s12, 7
    %p73 = por %p71, %p72
    %p74 = scmp.ne.s32.totalorder %s66, %s69
    %p75 = scmp.eq.s32.totalorder %s12, 0
    %p76 = por %p74, %p75
    %p77 = scmp.ne.s32.totalorder %s66, %s69
    %p78 = scmp.eq.s32.totalorder %s17, 7
    %p79 = por %p77, %p78
    %p80 = scmp.ne.s32.totalorder %s69, %s70
    %p81 = scmp.eq.s32.totalorder %s17, 0
    %p82 = por %p80, %p81
    %p83 = scmp.ne.s32.totalorder %s69, %s70
    %p84 = scmp.eq.s32.totalorder %s18, 7
    %p85 = por %p83, %p84
    %p87 = scmp.ne.s32.totalorder %s70, %s86
    %p88 = scmp.eq.s32.totalorder %s18, 0
    %p89 = por %p87, %p88
    %s91 = sadd.s32 %s90, 1
    %p94 = scmp.eq.s32.totalorder %s12, 7
    %p95 = scmp.ne.s32.totalorder %s90, %s92
    %p96 = scmp.eq.s32.totalorder %s12, 0
    %p97 = por %p95, %p96
    %p98 = scmp.ne.s32.totalorder %s90, %s92
    %p99 = scmp.eq.s32.totalorder %s17, 7
    %p100 = por %p98, %p99
    %p101 = scmp.ne.s32.totalorder %s92, %s93
    %p102 = scmp.eq.s32.totalorder %s17, 0
    %p103 = por %p101, %p102
    %p104 = scmp.ne.s32.totalorder %s92, %s93
    %p105 = scmp.eq.s32.totalorder %s18, 7
    %p106 = por %p104, %p105
    %p108 = scmp.ne.s32.totalorder %s93, %s107
    %p109 = scmp.eq.s32.totalorder %s18, 0
    %p110 = por %p108, %p109
    %s112 = sadd.s32 %s111, 1
    %p115 = scmp.eq.s32.totalorder %s12, 7
    %p116 = scmp.ne.s32.totalorder %s111, %s113
    %p117 = scmp.eq.s32.totalorder %s12, 0
    %p118 = por %p116, %p117
    %p119 = scmp.ne.s32.totalorder %s111, %s113
    %p120 = scmp.eq.s32.totalorder %s17, 7
    %p121 = por %p119, %p120
    %p122 = scmp.ne.s32.totalorder %s113, %s114
    %p123 = scmp.eq.s32.totalorder %s17, 0
    %p124 = por %p122, %p123
    %p125 = scmp.ne.s32.totalorder %s113, %s114
    %p126 = scmp.eq.s32.totalorder %s18, 7
    %p127 = por %p125, %p126
    %p129 = scmp.ne.s32.totalorder %s114, %s128
    %p130 = scmp.eq.s32.totalorder %s18, 0
    %p131 = por %p129, %p130
    %s133 = sadd.s32 %s132, 1
    %p136 = scmp.eq.s32.totalorder %s12, 7
    %p137 = scmp.ne.s32.totalorder %s132, %s134
    %p138 = scmp.eq.s32.totalorder %s12, 0
    %p139 = por %p137, %p138
    %p140 = scmp.ne.s32.totalorder %s132, %s134
    %p141 = scmp.eq.s32.totalorder %s17, 7
    %p142 = por %p140, %p141
    %p143 = scmp.ne.s32.totalorder %s134, %s135
    %p144 = scmp.eq.s32.totalorder %s17, 0
    %p145 = por %p143, %p144
    %p146 = scmp.ne.s32.totalorder %s134, %s135
    %p147 = scmp.eq.s32.totalorder %s18, 7
    %p148 = por %p146, %p147
    %p150 = scmp.ne.s32.totalorder %s135, %s149
    %p151 = scmp.eq.s32.totalorder %s18, 0
    %p152 = por %p150, %p151
    %s154 = sadd.s32 %s153, 1
    %p157 = scmp.eq.s32.totalorder %s12, 7
    %p158 = scmp.ne.s32.totalorder %s153, %s155
    %p159 = scmp.eq.s32.totalorder %s12, 0
    %p160 = por %p158, %p159
    %p161 = scmp.ne.s32.totalorder %s153, %s155
    %p162 = scmp.eq.s32.totalorder %s17, 7
    %p163 = por %p161, %p162
    %p164 = scmp.ne.s32.totalorder %s155, %s156
    %p165 = scmp.eq.s32.totalorder %s17, 0
    %p166 = por %p164, %p165
    %p167 = scmp.ne.s32.totalorder %s155, %s156
    %p168 = scmp.eq.s32.totalorder %s18, 7
    %p169 = por %p167, %p168
    %p171 = scmp.ne.s32.totalorder %s156, %s170
    %p172 = scmp.eq.s32.totalorder %s18, 0
    %p173 = por %p171, %p172
    %s174 = ssub.s32 %s19, %s31
    %s175 = ssub.s32 %s20, %s27
    %s176 = sor.u32 %s174, %s175
    %p177 = scmp.eq.s32.totalorder %s176, 0
    %s179 = sadd.s32 %s178, 1
    %s180 = scalar_select %p177, %s178, %s179
    %p183 = pneg %p177
    %p184 = scmp.eq.s32.totalorder %s12, 7
    %p185 = por %p183, %p184
    %p186 = scmp.ne.s32.totalorder %s178, %s181
    %p187 = scmp.eq.s32.totalorder %s12, 0
    %p188 = por %p186, %p187
    %p189 = scmp.ne.s32.totalorder %s178, %s181
    %p190 = scmp.eq.s32.totalorder %s17, 7
    %p191 = por %p189, %p190
    %p192 = scmp.ne.s32.totalorder %s181, %s182
    %p193 = scmp.eq.s32.totalorder %s17, 0
    %p194 = por %p192, %p193
    %p195 = scmp.ne.s32.totalorder %s181, %s182
    %p196 = scmp.eq.s32.totalorder %s18, 7
    %p197 = por %p195, %p196
    %p199 = scmp.ne.s32.totalorder %s182, %s198
    %p200 = scmp.eq.s32.totalorder %s18, 0
    %p201 = por %p199, %p200
    %p202 = scmp.le.s32.totalorder 1, %s12
    %p203 = scmp.lt.s32.totalorder %s12, 9
    %p204 = pnand %p202, %p203
    %p205 = pneg %p204
    // Predicated region
    $region9: #{_double_conv_impl.1} parent=5 // pred_check
      _
    $region10: #{_double_conv_impl.1} parent=5 // pred_check_branch
      %207 = sbr.rel (%p204) target = $region12
    $region11: #{_double_conv_impl.1} parent=5 // pred_region
      %s208 = ssub.s32 %s12, 1
      // Predicated region
      $region13: #{_double_conv_impl.1} parent=11 // pred_check
        %p209 = pneg %p103
      $region14: #{_double_conv_impl.1} parent=11 // pred_check_branch
        %211 = sbr.rel (%p209) target = $region16
      $region15: #{_double_conv_impl.1} parent=11 // pred_region
        _
      $region16: #{_double_conv_impl.1} parent=11 // pred_fallthru
        _
      // Predicated region
      $region17: #{_double_conv_impl.1} parent=11 // pred_check
        %p212 = pneg %p124
      $region18: #{_double_conv_impl.1} parent=11 // pred_check_branch
        %214 = sbr.rel (%p212) target = $region20
      $region19: #{_double_conv_impl.1} parent=11 // pred_region
        _
      $region20: #{_double_conv_impl.1} parent=11 // pred_fallthru
        _
      // Predicated region
      $region21: #{_double_conv_impl.1} parent=11 // pred_check
        %p215 = pneg %p145
      $region22: #{_double_conv_impl.1} parent=11 // pred_check_branch
        %217 = sbr.rel (%p215) target = $region24
      $region23: #{_double_conv_impl.1} parent=11 // pred_region
        _
      $region24: #{_double_conv_impl.1} parent=11 // pred_fallthru
        _
      // Predicated region
      $region25: #{_double_conv_impl.1} parent=11 // pred_check
        %p218 = pneg %p166
      $region26: #{_double_conv_impl.1} parent=11 // pred_check_branch
        %220 = sbr.rel (%p218) target = $region28
      $region27: #{_double_conv_impl.1} parent=11 // pred_region
        _
      $region28: #{_double_conv_impl.1} parent=11 // pred_fallthru
        _
    $region12: #{_double_conv_impl.1} parent=5 // pred_fallthru
      _
    %p221 = scmp.lt.s32.totalorder %s12, 8
    // Predicated region
    $region29: #{_double_conv_impl.1} parent=5 // pred_check
      %p222 = pneg %p221
    $region30: #{_double_conv_impl.1} parent=5 // pred_check_branch
      %224 = sbr.rel (%p222) target = $region32
    $region31: #{_double_conv_impl.1} parent=5 // pred_region
      // Predicated region
      $region33: #{_double_conv_impl.1} parent=31 // pred_check
        %p225 = pneg %p46
      $region34: #{_double_conv_impl.1} parent=31 // pred_check_branch
        %227 = sbr.rel (%p225) target = $region36
      $region35: #{_double_conv_impl.1} parent=31 // pred_region
        %s228 = smul.u32 4, %s20
        %p229 = scmp.lt.s32.totalorder %s19, 1
        %s230 = scalar_select %p229, %s19, 1
        %p231 = scmp.lt.s32.totalorder %s228, 19
        %s232 = scalar_select %p231, %s228, 19
        %s233 = smul.addr %s232, 4
        %s234 = smul.addr %s230, 80
        %s235 = sadd.s32 %s233, %s234
        %s236 = smul.addr %s235, 4
        %s237 = scalar_lea.vmem %s0, %s236
        %s238 = smul.u32 4, %s20
      $region36: #{_double_conv_impl.1} parent=31 // pred_fallthru
        _
      // Predicated region
      $region37: #{_double_conv_impl.1} parent=31 // pred_check
        %p239 = pneg %p76
      $region38: #{_double_conv_impl.1} parent=31 // pred_check_branch
        %241 = sbr.rel (%p239) target = $region40
      $region39: #{_double_conv_impl.1} parent=31 // pred_region
        %s242 = sadd.s32 %s20, 1
        %s243 = smul.u32 4, %s242
        %p244 = scmp.lt.s32.totalorder %s19, 1
        %s245 = scalar_select %p244, %s19, 1
        %p246 = scmp.lt.s32.totalorder %s243, 19
        %s247 = scalar_select %p246, %s243, 19
        %s248 = smul.addr %s247, 4
        %s249 = smul.addr %s245, 80
        %s250 = sadd.s32 %s248, %s249
        %s251 = smul.addr %s250, 4
        %s252 = scalar_lea.vmem %s1, %s251
        %s253 = sadd.s32 %s20, 1
        %s254 = smul.u32 4, %s253
      $region40: #{_double_conv_impl.1} parent=31 // pred_fallthru
        _
    $region32: #{_double_conv_impl.1} parent=5 // pred_fallthru
      _
    %p255 = scmp.le.s32.totalorder 1, %s12
    %p256 = scmp.lt.s32.totalorder %s12, 9
    %p257 = pnand %p255, %p256
    %p258 = pneg %p257
    // Predicated region
    $region41: #{_double_conv_impl.1} parent=5 // pred_check
      _
    $region42: #{_double_conv_impl.1} parent=5 // pred_check_branch
      %260 = sbr.rel (%p257) target = $region44
    $region43: #{_double_conv_impl.1} parent=5 // pred_region
      %s261 = ssub.s32 %s12, 1
      %s262 = smul.u32 4, %s22
      %p263 = scmp.lt.s32.totalorder %s21, 1
      %s264 = scalar_select %p263, %s21, 1
      %p265 = scmp.lt.s32.totalorder %s262, 19
      %s266 = scalar_select %p265, %s262, 19
      %s267 = smul.addr %s266, 4
      %s268 = smul.addr %s264, 80
      %s269 = sadd.s32 %s267, %s268
      %s270 = smul.addr %s269, 4
      %s271 = scalar_lea.vmem %s0, %s270
      %p272 = pneg %p52
      %p273 = pneg %p49
      %s274 = sadd.s32 %s22, 1
      %s275 = smul.u32 4, %s274
      %p276 = scmp.lt.s32.totalorder %s21, 1
      %s277 = scalar_select %p276, %s21, 1
      %p278 = scmp.lt.s32.totalorder %s275, 19
      %s279 = scalar_select %p278, %s275, 19
      %s280 = smul.addr %s279, 4
      %s281 = smul.addr %s277, 80
      %s282 = sadd.s32 %s280, %s281
      %s283 = smul.addr %s282, 4
      %s284 = scalar_lea.vmem %s1, %s283
      %p285 = pneg %p82
      %p286 = pneg %p79
      %p287 = pneg %p103
      %p288 = pneg %p100
      %p289 = pneg %p124
      %p290 = pneg %p121
      %p291 = pneg %p145
      %p292 = pneg %p142
      %p293 = pneg %p166
      %p294 = pneg %p163
      %p295 = pneg %p194
      %p296 = pneg %p191
      %s297 = smul.u32 4, %s22
      %p298 = scmp.lt.s32.totalorder %s21, 1
      %s299 = scalar_select %p298, %s21, 1
      %p300 = scmp.lt.s32.totalorder %s297, 15
      %s301 = scalar_select %p300, %s297, 15
      %s302 = smul.addr %s301, 4
      %s303 = smul.addr %s299, 64
      %s304 = sadd.s32 %s302, %s303
      %s305 = smul.addr %s304, 4
      %s306 = scalar_lea.vmem %s6, %s305
      %s307 = smul.u32 4, %s22
      %p308 = scmp.lt.s32.totalorder %s21, 1
      %s309 = scalar_select %p308, %s21, 1
      %p310 = scmp.lt.s32.totalorder %s307, 19
      %s311 = scalar_select %p310, %s307, 19
      %s312 = smul.addr %s311, 4
      %s313 = smul.addr %s309, 80
      %s314 = sadd.s32 %s312, %s313
      %s315 = smul.addr %s314, 4
      %s316 = scalar_lea.vmem %s0, %s315
      %s317 = smul.u32 4, %s22
      %s318 = sadd.s32 %s22, 1
      %s319 = smul.u32 4, %s318
      %p320 = scmp.lt.s32.totalorder %s21, 1
      %s321 = scalar_select %p320, %s21, 1
      %p322 = scmp.lt.s32.totalorder %s319, 19
      %s323 = scalar_select %p322, %s319, 19
      %s324 = smul.addr %s323, 4
      %s325 = smul.addr %s321, 80
      %s326 = sadd.s32 %s324, %s325
      %s327 = smul.addr %s326, 4
      %s328 = scalar_lea.vmem %s1, %s327
      %s329 = sadd.s32 %s22, 1
      %s330 = smul.u32 4, %s329
      %s331 = smul.u32 4, %s22
      %p332 = scmp.lt.s32.totalorder %s21, 1
      %s333 = scalar_select %p332, %s21, 1
      %p334 = scmp.lt.s32.totalorder %s331, 15
      %s335 = scalar_select %p334, %s331, 15
      %s336 = smul.addr %s335, 4
      %s337 = smul.addr %s333, 64
      %s338 = sadd.s32 %s336, %s337
      %s339 = smul.addr %s338, 4
      %s340 = scalar_lea.vmem %s6, %s339
      %s341 = smul.u32 4, %s22
      %v343 = vld [vmem:[%s316] sm:$0xf]
      %v344 = vld [vmem:[%s316 + $0x4] sm:$0xf]
      %v345 = vld [vmem:[%s316 + $0x8] sm:$0xf]
      %v346 = vld [vmem:[%s316 + $0xc] sm:$0xf]
      %v347 = vld [vmem:[%s316 + $0x10] sm:$0xf]
      %v348 = vld [vmem:[%s316 + $0x14] sm:$0xf]
      %v349 = vld [vmem:[%s316 + $0x18] sm:$0xf]
      %v350 = vld [vmem:[%s316 + $0x1c] sm:$0xf]
      %v351 = vld [vmem:[%s316 + $0x20] sm:$0xf]
      %v352 = vld [vmem:[%s316 + $0x24] sm:$0xf]
      %v353 = vld [vmem:[%s316 + $0x28] sm:$0xf]
      %v354 = vld [vmem:[%s316 + $0x2c] sm:$0xf]
      %v355 = vld [vmem:[%s316 + $0x30] sm:$0xf]
      %v356 = vld [vmem:[%s316 + $0x34] sm:$0xf]
      %v357 = vld [vmem:[%s316 + $0x38] sm:$0xf]
      %v358 = vld [vmem:[%s316 + $0x3c] sm:$0xf]
      %v375 = vunpack.c.l.b16 %v343
      %v376 = vunpack.c.l.b16 %v344
      %v377 = vunpack.c.l.b16 %v345
      %v378 = vunpack.c.l.b16 %v346
      %v379 = vunpack.c.l.b16 %v347
      %v380 = vunpack.c.l.b16 %v348
      %v381 = vunpack.c.l.b16 %v349
      %v382 = vunpack.c.l.b16 %v350
      %v383 = vunpack.c.l.b16 %v351
      %v384 = vunpack.c.l.b16 %v352
      %v385 = vunpack.c.l.b16 %v353
      %v386 = vunpack.c.l.b16 %v354
      %v387 = vunpack.c.l.b16 %v355
      %v388 = vunpack.c.l.b16 %v356
      %v389 = vunpack.c.l.b16 %v357
      %v390 = vunpack.c.l.b16 %v358
      %v391 = vpack.c.b16 %v376, %v375
      %v392 = vpack.c.b16 %v378, %v377
      %v393 = vpack.c.b16 %v380, %v379
      %v394 = vpack.c.b16 %v382, %v381
      %v395 = vpack.c.b16 %v384, %v383
      %v396 = vpack.c.b16 %v386, %v385
      %v397 = vpack.c.b16 %v388, %v387
      %v398 = vpack.c.b16 %v390, %v389
      %407 = vst [vmem:[#allocation2] sm:$0xff] %v391
      %408 = vst [vmem:[#allocation2 + $0x8] sm:$0xff] %v392
      %409 = vst [vmem:[#allocation2 + $0x10] sm:$0xff] %v393
      %410 = vst [vmem:[#allocation2 + $0x18] sm:$0xff] %v394
      %411 = vst [vmem:[#allocation2 + $0x20] sm:$0xff] %v395
      %412 = vst [vmem:[#allocation2 + $0x28] sm:$0xff] %v396
      %413 = vst [vmem:[#allocation2 + $0x30] sm:$0xff] %v397
      %414 = vst [vmem:[#allocation2 + $0x38] sm:$0xff] %v398
      %v415 = vld [vmem:[%s328] sm:$0xf]
      %v416 = vld [vmem:[%s328 + $0x4] sm:$0xf]
      %v417 = vld [vmem:[%s328 + $0x8] sm:$0xf]
      %v418 = vld [vmem:[%s328 + $0xc] sm:$0xf]
      %v419 = vld [vmem:[%s328 + $0x10] sm:$0xf]
      %v420 = vld [vmem:[%s328 + $0x14] sm:$0xf]
      %v421 = vld [vmem:[%s328 + $0x18] sm:$0xf]
      %v422 = vld [vmem:[%s328 + $0x1c] sm:$0xf]
      %v423 = vld [vmem:[%s328 + $0x20] sm:$0xf]
      %v424 = vld [vmem:[%s328 + $0x24] sm:$0xf]
      %v425 = vld [vmem:[%s328 + $0x28] sm:$0xf]
      %v426 = vld [vmem:[%s328 + $0x2c] sm:$0xf]
      %v427 = vld [vmem:[%s328 + $0x30] sm:$0xf]
      %v428 = vld [vmem:[%s328 + $0x34] sm:$0xf]
      %v429 = vld [vmem:[%s328 + $0x38] sm:$0xf]
      %v430 = vld [vmem:[%s328 + $0x3c] sm:$0xf]
      %v447 = vunpack.c.l.b16 %v415
      %v448 = vunpack.c.l.b16 %v416
      %v449 = vunpack.c.l.b16 %v417
      %v450 = vunpack.c.l.b16 %v418
      %v451 = vunpack.c.l.b16 %v419
      %v452 = vunpack.c.l.b16 %v420
      %v453 = vunpack.c.l.b16 %v421
      %v454 = vunpack.c.l.b16 %v422
      %v455 = vunpack.c.l.b16 %v423
      %v456 = vunpack.c.l.b16 %v424
      %v457 = vunpack.c.l.b16 %v425
      %v458 = vunpack.c.l.b16 %v426
      %v459 = vunpack.c.l.b16 %v427
      %v460 = vunpack.c.l.b16 %v428
      %v461 = vunpack.c.l.b16 %v429
      %v462 = vunpack.c.l.b16 %v430
      %v463 = vpack.c.b16 %v448, %v447
      %v464 = vpack.c.b16 %v450, %v449
      %v465 = vpack.c.b16 %v452, %v451
      %v466 = vpack.c.b16 %v454, %v453
      %v467 = vpack.c.b16 %v456, %v455
      %v468 = vpack.c.b16 %v458, %v457
      %v469 = vpack.c.b16 %v460, %v459
      %v470 = vpack.c.b16 %v462, %v461
      %s479 = scalar_lea.vmem [#allocation2], 64
      %480 = vst [vmem:[%s479] sm:$0xff] %v463
      %481 = vst [vmem:[%s479 + $0x8] sm:$0xff] %v464
      %482 = vst [vmem:[%s479 + $0x10] sm:$0xff] %v465
      %483 = vst [vmem:[%s479 + $0x18] sm:$0xff] %v466
      %484 = vst [vmem:[%s479 + $0x20] sm:$0xff] %v467
      %485 = vst [vmem:[%s479 + $0x28] sm:$0xff] %v468
      %486 = vst [vmem:[%s479 + $0x30] sm:$0xff] %v469
      %487 = vst [vmem:[%s479 + $0x38] sm:$0xff] %v470
      %v488 = vld [vmem:[#allocation2] sm:$0xff]
      %v489 = vld [vmem:[#allocation2 + $0x8] sm:$0xff]
      %v490 = vld [vmem:[#allocation2 + $0x10] sm:$0xff]
      %v491 = vld [vmem:[#allocation2 + $0x18] sm:$0xff]
      %v492 = vld [vmem:[#allocation2 + $0x20] sm:$0xff]
      %v493 = vld [vmem:[#allocation2 + $0x28] sm:$0xff]
      %v494 = vld [vmem:[#allocation2 + $0x30] sm:$0xff]
      %v495 = vld [vmem:[#allocation2 + $0x38] sm:$0xff]
      %v496 = vld [vmem:[#allocation2 + $0x40] sm:$0xff]
      %v497 = vld [vmem:[#allocation2 + $0x48] sm:$0xff]
      %v498 = vld [vmem:[#allocation2 + $0x50] sm:$0xff]
      %v499 = vld [vmem:[#allocation2 + $0x58] sm:$0xff]
      %s500 = scalar_lea.vmem %s2, 64
      %v501 = vld [vmem:[%s500] sm:$0xf]
      %v502 = vld [vmem:[%s500 + $0x4] sm:$0xf]
      %v503 = vld [vmem:[%s500 + $0x8] sm:$0xf]
      %v504 = vld [vmem:[%s500 + $0xc] sm:$0xf]
      %v505 = vld [vmem:[%s500 + $0x10] sm:$0xf]
      %v506 = vld [vmem:[%s500 + $0x14] sm:$0xf]
      %v507 = vld [vmem:[%s500 + $0x18] sm:$0xf]
      %v508 = vld [vmem:[%s500 + $0x1c] sm:$0xf]
      %v509 = vld [vmem:[%s500 + $0x20] sm:$0xf]
      %v510 = vld [vmem:[%s500 + $0x24] sm:$0xf]
      %v511 = vld [vmem:[%s500 + $0x28] sm:$0xf]
      %v512 = vld [vmem:[%s500 + $0x2c] sm:$0xf]
      %v513 = vld [vmem:[%s500 + $0x30] sm:$0xf]
      %v514 = vld [vmem:[%s500 + $0x34] sm:$0xf]
      %v515 = vld [vmem:[%s500 + $0x38] sm:$0xf]
      %v516 = vld [vmem:[%s500 + $0x3c] sm:$0xf]
      %s517 = scalar_lea.vmem [#allocation2], 16
      %v518 = vld [vmem:[%s517] sm:$0xff]
      %v519 = vld [vmem:[%s517 + $0x8] sm:$0xff]
      %v520 = vld [vmem:[%s517 + $0x10] sm:$0xff]
      %v521 = vld [vmem:[%s517 + $0x18] sm:$0xff]
      %v522 = vld [vmem:[%s517 + $0x20] sm:$0xff]
      %v523 = vld [vmem:[%s517 + $0x28] sm:$0xff]
      %v524 = vld [vmem:[%s517 + $0x30] sm:$0xff]
      %v525 = vld [vmem:[%s517 + $0x38] sm:$0xff]
      %v526 = vld [vmem:[%s517 + $0x40] sm:$0xff]
      %v527 = vld [vmem:[%s517 + $0x48] sm:$0xff]
      %v528 = vld [vmem:[%s517 + $0x50] sm:$0xff]
      %v529 = vld [vmem:[%s517 + $0x58] sm:$0xff]
      %s530 = scalar_lea.vmem %s2, 256
      %v531 = vld [vmem:[%s530] sm:$0xf]
      %v532 = vld [vmem:[%s530 + $0x4] sm:$0xf]
      %v533 = vld [vmem:[%s530 + $0x8] sm:$0xf]
      %v534 = vld [vmem:[%s530 + $0xc] sm:$0xf]
      %v535 = vld [vmem:[%s530 + $0x10] sm:$0xf]
      %v536 = vld [vmem:[%s530 + $0x14] sm:$0xf]
      %v537 = vld [vmem:[%s530 + $0x18] sm:$0xf]
      %v538 = vld [vmem:[%s530 + $0x1c] sm:$0xf]
      %v539 = vld [vmem:[%s530 + $0x20] sm:$0xf]
      %v540 = vld [vmem:[%s530 + $0x24] sm:$0xf]
      %v541 = vld [vmem:[%s530 + $0x28] sm:$0xf]
      %v542 = vld [vmem:[%s530 + $0x2c] sm:$0xf]
      %v543 = vld [vmem:[%s530 + $0x30] sm:$0xf]
      %v544 = vld [vmem:[%s530 + $0x34] sm:$0xf]
      %v545 = vld [vmem:[%s530 + $0x38] sm:$0xf]
      %v546 = vld [vmem:[%s530 + $0x3c] sm:$0xf]
      %v563 = vunpack.c.l.b16 %v531
      %v564 = vunpack.c.l.b16 %v532
      %v565 = vunpack.c.l.b16 %v533
      %v566 = vunpack.c.l.b16 %v534
      %v567 = vunpack.c.l.b16 %v535
      %v568 = vunpack.c.l.b16 %v536
      %v569 = vunpack.c.l.b16 %v537
      %v570 = vunpack.c.l.b16 %v538
      %v571 = vunpack.c.l.b16 %v539
      %v572 = vunpack.c.l.b16 %v540
      %v573 = vunpack.c.l.b16 %v541
      %v574 = vunpack.c.l.b16 %v542
      %v575 = vunpack.c.l.b16 %v543
      %v576 = vunpack.c.l.b16 %v544
      %v577 = vunpack.c.l.b16 %v545
      %v578 = vunpack.c.l.b16 %v546
      %v579 = vpack.c.b16 %v564, %v563
      %v580 = vpack.c.b16 %v566, %v565
      %v581 = vpack.c.b16 %v568, %v567
      %v582 = vpack.c.b16 %v570, %v569
      %v583 = vpack.c.b16 %v572, %v571
      %v584 = vpack.c.b16 %v574, %v573
      %v585 = vpack.c.b16 %v576, %v575
      %v586 = vpack.c.b16 %v578, %v577
      %595 = vmatprep.subr.bf16.mxu0 0
      %596 = vmatpush1.bf16.msra.mxu0 %v579
      %597 = vmatprep.subr.bf16.mxu0 0
      %598 = vmatpush1.bf16.msra.mxu0 %v580
      %599 = vmatprep.subr.bf16.mxu0 0
      %600 = vmatpush1.bf16.msra.mxu0 %v581
      %601 = vmatprep.subr.bf16.mxu0 0
      %602 = vmatpush1.bf16.msra.mxu0 %v582
      %603 = vmatprep.subr.bf16.mxu0 0
      %604 = vmatpush1.bf16.msra.mxu0 %v583
      %605 = vmatprep.subr.bf16.mxu0 0
      %606 = vmatpush1.bf16.msra.mxu0 %v584
      %607 = vmatprep.subr.bf16.mxu0 0
      %608 = vmatpush1.bf16.msra.mxu0 %v585
      %609 = vmatprep.subr.bf16.mxu0 0
      %610 = vmatpush1.bf16.msra.mxu0 %v586
      %611 = vmatprep.subr.bf16.mxu0 0
      %612 = vmatpush1.bf16.msra.mxu0 0
      %613 = vmatprep.subr.bf16.mxu0 0
      %614 = vmatpush1.bf16.msra.mxu0 0
      %615 = vmatprep.subr.bf16.mxu0 0
      %616 = vmatpush1.bf16.msra.mxu0 0
      %617 = vmatprep.subr.bf16.mxu0 0
      %618 = vmatpush1.bf16.msra.mxu0 0
      %619 = vmatprep.subr.bf16.mxu0 0
      %620 = vmatpush1.bf16.msra.mxu0 0
      %621 = vmatprep.subr.bf16.mxu0 0
      %622 = vmatpush1.bf16.msra.mxu0 0
      %623 = vmatprep.subr.bf16.mxu0 0
      %624 = vmatpush1.bf16.msra.mxu0 0
      %625 = vmatprep.subr.bf16.mxu0 0
      %626 = vmatpush1.bf16.msra.mxu0 0
      %627 = vmatprep.mubr.bf16.mxu0 0
      %628 = vmatmul.mubr.bf16.gmra.mrb[0].mxu0 %v518
      %v629 = vpop.f32.mrb[0].mxu0
      %v630 = vadd.f32 0.0, %v629
      %v631 = vpop.f32.mrb[0].mxu0
      %v632 = vpop.f32.mrb[0].mxu0
      %v633 = vadd.f32 0.0, %v632
      %v634 = vpop.f32.mrb[0].mxu0
      %635 = vmatprep.mubr.bf16.mxu0 0
      %636 = vmatmul.mubr.bf16.gmra.mrb[0].mxu0 %v519
      %v637 = vpop.f32.mrb[0].mxu0
      %v638 = vadd.f32 0.0, %v637
      %v639 = vpop.f32.mrb[0].mxu0
      %v640 = vpop.f32.mrb[0].mxu0
      %v641 = vadd.f32 0.0, %v640
      %v642 = vpop.f32.mrb[0].mxu0
      %643 = vmatprep.mubr.bf16.mxu0 0
      %644 = vmatmul.mubr.bf16.gmra.mrb[0].mxu0 %v520
      %v645 = vpop.f32.mrb[0].mxu0
      %v646 = vadd.f32 0.0, %v645
      %v647 = vpop.f32.mrb[0].mxu0
      %v648 = vpop.f32.mrb[0].mxu0
      %v649 = vadd.f32 0.0, %v648
      %v650 = vpop.f32.mrb[0].mxu0
      %651 = vmatprep.mubr.bf16.mxu0 0
      %652 = vmatmul.mubr.bf16.gmra.mrb[0].mxu0 %v521
      %v653 = vpop.f32.mrb[0].mxu0
      %v654 = vadd.f32 0.0, %v653
      %v655 = vpop.f32.mrb[0].mxu0
      %v656 = vpop.f32.mrb[0].mxu0
      %v657 = vadd.f32 0.0, %v656
      %v658 = vpop.f32.mrb[0].mxu0
      %659 = vmatprep.mubr.bf16.mxu0 0
      %660 = vmatmul.mubr.bf16.gmra.mrb[0].mxu0 %v522
      %v661 = vpop.f32.mrb[0].mxu0
      %v662 = vadd.f32 0.0, %v661
      %v663 = vpop.f32.mrb[0].mxu0
      %v664 = vpop.f32.mrb[0].mxu0
      %v665 = vadd.f32 0.0, %v664
      %v666 = vpop.f32.mrb[0].mxu0
      %667 = vmatprep.mubr.bf16.mxu0 0
      %668 = vmatmul.mubr.bf16.gmra.mrb[0].mxu0 %v523
      %v669 = vpop.f32.mrb[0].mxu0
      %v670 = vadd.f32 0.0, %v669
      %v671 = vpop.f32.mrb[0].mxu0
      %v672 = vpop.f32.mrb[0].mxu0
      %v673 = vadd.f32 0.0, %v672
      %v674 = vpop.f32.mrb[0].mxu0
      %675 = vmatprep.mubr.bf16.mxu0 0
      %676 = vmatmul.mubr.bf16.gmra.mrb[0].mxu0 %v524
      %v677 = vpop.f32.mrb[0].mxu0
      %v678 = vadd.f32 0.0, %v677
      %v679 = vpop.f32.mrb[0].mxu0
      %v680 = vpop.f32.mrb[0].mxu0
      %v681 = vadd.f32 0.0, %v680
      %v682 = vpop.f32.mrb[0].mxu0
      %683 = vmatprep.mubr.bf16.mxu0 0
      %684 = vmatmul.mubr.bf16.gmra.mrb[0].mxu0 %v525
      %v685 = vpop.f32.mrb[0].mxu0
      %v686 = vadd.f32 0.0, %v685
      %v687 = vpop.f32.mrb[0].mxu0
      %v688 = vpop.f32.mrb[0].mxu0
      %v689 = vadd.f32 0.0, %v688
      %v690 = vpop.f32.mrb[0].mxu0
      %691 = vmatprep.mubr.bf16.mxu0 0
      %692 = vmatmul.mubr.bf16.gmra.mrb[0].mxu0 %v526
      %v693 = vpop.f32.mrb[0].mxu0
      %v694 = vadd.f32 0.0, %v693
      %v695 = vpop.f32.mrb[0].mxu0
      %v696 = vpop.f32.mrb[0].mxu0
      %v697 = vadd.f32 0.0, %v696
      %v698 = vpop.f32.mrb[0].mxu0
      %699 = vmatprep.mubr.bf16.mxu0 0
      %700 = vmatmul.mubr.bf16.gmra.mrb[0].mxu0 %v527
      %v701 = vpop.f32.mrb[0].mxu0
      %v702 = vadd.f32 0.0, %v701
      %v703 = vpop.f32.mrb[0].mxu0
      %v704 = vpop.f32.mrb[0].mxu0
      %v705 = vadd.f32 0.0, %v704
      %v706 = vpop.f32.mrb[0].mxu0
      %707 = vmatprep.mubr.bf16.mxu0 0
      %708 = vmatmul.mubr.bf16.gmra.mrb[0].mxu0 %v528
      %v709 = vpop.f32.mrb[0].mxu0
      %v710 = vadd.f32 0.0, %v709
      %v711 = vpop.f32.mrb[0].mxu0
      %v712 = vpop.f32.mrb[0].mxu0
      %v713 = vadd.f32 0.0, %v712
      %v714 = vpop.f32.mrb[0].mxu0
      %715 = vmatprep.mubr.bf16.mxu0 0
      %716 = vmatmul.mubr.bf16.gmra.mrb[0].mxu0 %v529
      %v717 = vpop.f32.mrb[0].mxu0
      %v718 = vadd.f32 0.0, %v717
      %v719 = vpop.f32.mrb[0].mxu0
      %v720 = vpop.f32.mrb[0].mxu0
      %v721 = vadd.f32 0.0, %v720
      %v722 = vpop.f32.mrb[0].mxu0
      %723 = vdwg.mxu0
      %v740 = vunpack.c.l.b16 %v501
      %v741 = vunpack.c.l.b16 %v502
      %v742 = vunpack.c.l.b16 %v503
      %v743 = vunpack.c.l.b16 %v504
      %v744 = vunpack.c.l.b16 %v505
      %v745 = vunpack.c.l.b16 %v506
      %v746 = vunpack.c.l.b16 %v507
      %v747 = vunpack.c.l.b16 %v508
      %v748 = vunpack.c.l.b16 %v509
      %v749 = vunpack.c.l.b16 %v510
      %v750 = vunpack.c.l.b16 %v511
      %v751 = vunpack.c.l.b16 %v512
      %v752 = vunpack.c.l.b16 %v513
      %v753 = vunpack.c.l.b16 %v514
      %v754 = vunpack.c.l.b16 %v515
      %v755 = vunpack.c.l.b16 %v516
      %v756 = vpack.c.b16 %v741, %v740
      %v757 = vpack.c.b16 %v743, %v742
      %v758 = vpack.c.b16 %v745, %v744
      %v759 = vpack.c.b16 %v747, %v746
      %v760 = vpack.c.b16 %v749, %v748
      %v761 = vpack.c.b16 %v751, %v750
      %v762 = vpack.c.b16 %v753, %v752
      %v763 = vpack.c.b16 %v755, %v754
      %772 = vmatprep.subr.bf16.mxu0 0
      %773 = vmatpush1.bf16.msra.mxu0 %v756
      %774 = vmatprep.subr.bf16.mxu0 0
      %775 = vmatpush1.bf16.msra.mxu0 %v757
      %776 = vmatprep.subr.bf16.mxu0 0
      %777 = vmatpush1.bf16.msra.mxu0 %v758
      %778 = vmatprep.subr.bf16.mxu0 0
      %779 = vmatpush1.bf16.msra.mxu0 %v759
      %780 = vmatprep.subr.bf16.mxu0 0
      %781 = vmatpush1.bf16.msra.mxu0 %v760
      %782 = vmatprep.subr.bf16.mxu0 0
      %783 = vmatpush1.bf16.msra.mxu0 %v761
      %784 = vmatprep.subr.bf16.mxu0 0
      %785 = vmatpush1.bf16.msra.mxu0 %v762
      %786 = vmatprep.subr.bf16.mxu0 0
      %787 = vmatpush1.bf16.msra.mxu0 %v763
      %788 = vmatprep.subr.bf16.mxu0 0
      %789 = vmatpush1.bf16.msra.mxu0 0
      %790 = vmatprep.subr.bf16.mxu0 0
      %791 = vmatpush1.bf16.msra.mxu0 0
      %792 = vmatprep.subr.bf16.mxu0 0
      %793 = vmatpush1.bf16.msra.mxu0 0
      %794 = vmatprep.subr.bf16.mxu0 0
      %795 = vmatpush1.bf16.msra.mxu0 0
      %796 = vmatprep.subr.bf16.mxu0 0
      %797 = vmatpush1.bf16.msra.mxu0 0
      %798 = vmatprep.subr.bf16.mxu0 0
      %799 = vmatpush1.bf16.msra.mxu0 0
      %800 = vmatprep.subr.bf16.mxu0 0
      %801 = vmatpush1.bf16.msra.mxu0 0
      %802 = vmatprep.subr.bf16.mxu0 0
      %803 = vmatpush1.bf16.msra.mxu0 0
      %804 = vmatprep.mubr.bf16.mxu0 0
      %805 = vmatmul.mubr.bf16.gmra.mrb[0].mxu0 %v488
      %v806 = vpop.f32.mrb[0].mxu0
      %v807 = vadd.f32 %v630, %v806
      %v808 = vpop.f32.mrb[0].mxu0
      %v809 = vpop.f32.mrb[0].mxu0
      %v810 = vadd.f32 %v633, %v809
      %v811 = vpop.f32.mrb[0].mxu0
      %812 = vmatprep.mubr.bf16.mxu0 0
      %813 = vmatmul.mubr.bf16.gmra.mrb[0].mxu0 %v489
      %v814 = vpop.f32.mrb[0].mxu0
      %v815 = vadd.f32 %v638, %v814
      %v816 = vpop.f32.mrb[0].mxu0
      %v817 = vpop.f32.mrb[0].mxu0
      %v818 = vadd.f32 %v641, %v817
      %v819 = vpop.f32.mrb[0].mxu0
      %820 = vmatprep.mubr.bf16.mxu0 0
      %821 = vmatmul.mubr.bf16.gmra.mrb[0].mxu0 %v490
      %v822 = vpop.f32.mrb[0].mxu0
      %v823 = vadd.f32 %v646, %v822
      %v824 = vpop.f32.mrb[0].mxu0
      %v825 = vpop.f32.mrb[0].mxu0
      %v826 = vadd.f32 %v649, %v825
      %v827 = vpop.f32.mrb[0].mxu0
      %828 = vmatprep.mubr.bf16.mxu0 0
      %829 = vmatmul.mubr.bf16.gmra.mrb[0].mxu0 %v491
      %v830 = vpop.f32.mrb[0].mxu0
      %v831 = vadd.f32 %v654, %v830
      %v832 = vpop.f32.mrb[0].mxu0
      %v833 = vpop.f32.mrb[0].mxu0
      %v834 = vadd.f32 %v657, %v833
      %v835 = vpop.f32.mrb[0].mxu0
      %836 = vmatprep.mubr.bf16.mxu0 0
      %837 = vmatmul.mubr.bf16.gmra.mrb[0].mxu0 %v492
      %v838 = vpop.f32.mrb[0].mxu0
      %v839 = vadd.f32 %v662, %v838
      %v840 = vpop.f32.mrb[0].mxu0
      %v841 = vpop.f32.mrb[0].mxu0
      %v842 = vadd.f32 %v665, %v841
      %v843 = vpop.f32.mrb[0].mxu0
      %844 = vmatprep.mubr.bf16.mxu0 0
      %845 = vmatmul.mubr.bf16.gmra.mrb[0].mxu0 %v493
      %v846 = vpop.f32.mrb[0].mxu0
      %v847 = vadd.f32 %v670, %v846
      %v848 = vpop.f32.mrb[0].mxu0
      %v849 = vpop.f32.mrb[0].mxu0
      %v850 = vadd.f32 %v673, %v849
      %v851 = vpop.f32.mrb[0].mxu0
      %852 = vmatprep.mubr.bf16.mxu0 0
      %853 = vmatmul.mubr.bf16.gmra.mrb[0].mxu0 %v494
      %v854 = vpop.f32.mrb[0].mxu0
      %v855 = vadd.f32 %v678, %v854
      %v856 = vpop.f32.mrb[0].mxu0
      %v857 = vpop.f32.mrb[0].mxu0
      %v858 = vadd.f32 %v681, %v857
      %v859 = vpop.f32.mrb[0].mxu0
      %860 = vmatprep.mubr.bf16.mxu0 0
      %861 = vmatmul.mubr.bf16.gmra.mrb[0].mxu0 %v495
      %v862 = vpop.f32.mrb[0].mxu0
      %v863 = vadd.f32 %v686, %v862
      %v864 = vpop.f32.mrb[0].mxu0
      %v865 = vpop.f32.mrb[0].mxu0
      %v866 = vadd.f32 %v689, %v865
      %v867 = vpop.f32.mrb[0].mxu0
      %868 = vmatprep.mubr.bf16.mxu0 0
      %869 = vmatmul.mubr.bf16.gmra.mrb[0].mxu0 %v496
      %v870 = vpop.f32.mrb[0].mxu0
      %v871 = vadd.f32 %v694, %v870
      %v872 = vpop.f32.mrb[0].mxu0
      %v873 = vpop.f32.mrb[0].mxu0
      %v874 = vadd.f32 %v697, %v873
      %v875 = vpop.f32.mrb[0].mxu0
      %876 = vmatprep.mubr.bf16.mxu0 0
      %877 = vmatmul.mubr.bf16.gmra.mrb[0].mxu0 %v497
      %v878 = vpop.f32.mrb[0].mxu0
      %v879 = vadd.f32 %v702, %v878
      %v880 = vpop.f32.mrb[0].mxu0
      %v881 = vpop.f32.mrb[0].mxu0
      %v882 = vadd.f32 %v705, %v881
      %v883 = vpop.f32.mrb[0].mxu0
      %884 = vmatprep.mubr.bf16.mxu0 0
      %885 = vmatmul.mubr.bf16.gmra.mrb[0].mxu0 %v498
      %v886 = vpop.f32.mrb[0].mxu0
      %v887 = vadd.f32 %v710, %v886
      %v888 = vpop.f32.mrb[0].mxu0
      %v889 = vpop.f32.mrb[0].mxu0
      %v890 = vadd.f32 %v713, %v889
      %v891 = vpop.f32.mrb[0].mxu0
      %892 = vmatprep.mubr.bf16.mxu0 0
      %893 = vmatmul.mubr.bf16.gmra.mrb[0].mxu0 %v499
      %v894 = vpop.f32.mrb[0].mxu0
      %v895 = vadd.f32 %v718, %v894
      %v896 = vpop.f32.mrb[0].mxu0
      %v897 = vpop.f32.mrb[0].mxu0
      %v898 = vadd.f32 %v721, %v897
      %v899 = vpop.f32.mrb[0].mxu0
      %900 = vdwg.mxu0
      %s901 = scalar_lea.vmem [#allocation2], 32
      %v902 = vld [vmem:[%s901] sm:$0xff]
      %v903 = vld [vmem:[%s901 + $0x8] sm:$0xff]
      %v904 = vld [vmem:[%s901 + $0x10] sm:$0xff]
      %v905 = vld [vmem:[%s901 + $0x18] sm:$0xff]
      %v906 = vld [vmem:[%s901 + $0x20] sm:$0xff]
      %v907 = vld [vmem:[%s901 + $0x28] sm:$0xff]
      %v908 = vld [vmem:[%s901 + $0x30] sm:$0xff]
      %v909 = vld [vmem:[%s901 + $0x38] sm:$0xff]
      %v910 = vld [vmem:[%s901 + $0x40] sm:$0xff]
      %v911 = vld [vmem:[%s901 + $0x48] sm:$0xff]
      %v912 = vld [vmem:[%s901 + $0x50] sm:$0xff]
      %v913 = vld [vmem:[%s901 + $0x58] sm:$0xff]
      %s914 = scalar_lea.vmem %s2, 448
      %v915 = vld [vmem:[%s914] sm:$0xf]
      %v916 = vld [vmem:[%s914 + $0x4] sm:$0xf]
      %v917 = vld [vmem:[%s914 + $0x8] sm:$0xf]
      %v918 = vld [vmem:[%s914 + $0xc] sm:$0xf]
      %v919 = vld [vmem:[%s914 + $0x10] sm:$0xf]
      %v920 = vld [vmem:[%s914 + $0x14] sm:$0xf]
      %v921 = vld [vmem:[%s914 + $0x18] sm:$0xf]
      %v922 = vld [vmem:[%s914 + $0x1c] sm:$0xf]
      %v923 = vld [vmem:[%s914 + $0x20] sm:$0xf]
      %v924 = vld [vmem:[%s914 + $0x24] sm:$0xf]
      %v925 = vld [vmem:[%s914 + $0x28] sm:$0xf]
      %v926 = vld [vmem:[%s914 + $0x2c] sm:$0xf]
      %v927 = vld [vmem:[%s914 + $0x30] sm:$0xf]
      %v928 = vld [vmem:[%s914 + $0x34] sm:$0xf]
      %v929 = vld [vmem:[%s914 + $0x38] sm:$0xf]
      %v930 = vld [vmem:[%s914 + $0x3c] sm:$0xf]
      %v947 = vunpack.c.l.b16 %v915
      %v948 = vunpack.c.l.b16 %v916
      %v949 = vunpack.c.l.b16 %v917
      %v950 = vunpack.c.l.b16 %v918
      %v951 = vunpack.c.l.b16 %v919
      %v952 = vunpack.c.l.b16 %v920
      %v953 = vunpack.c.l.b16 %v921
      %v954 = vunpack.c.l.b16 %v922
      %v955 = vunpack.c.l.b16 %v923
      %v956 = vunpack.c.l.b16 %v924
      %v957 = vunpack.c.l.b16 %v925
      %v958 = vunpack.c.l.b16 %v926
      %v959 = vunpack.c.l.b16 %v927
      %v960 = vunpack.c.l.b16 %v928
      %v961 = vunpack.c.l.b16 %v929
      %v962 = vunpack.c.l.b16 %v930
      %v963 = vpack.c.b16 %v948, %v947
      %v964 = vpack.c.b16 %v950, %v949
      %v965 = vpack.c.b16 %v952, %v951
      %v966 = vpack.c.b16 %v954, %v953
      %v967 = vpack.c.b16 %v956, %v955
      %v968 = vpack.c.b16 %v958, %v957
      %v969 = vpack.c.b16 %v960, %v959
      %v970 = vpack.c.b16 %v962, %v961
      %979 = vmatprep.subr.bf16.mxu0 0
      %980 = vmatpush1.bf16.msra.mxu0 %v963
      %981 = vmatprep.subr.bf16.mxu0 0
      %982 = vmatpush1.bf16.msra.mxu0 %v964
      %983 = vmatprep.subr.bf16.mxu0 0
      %984 = vmatpush1.bf16.msra.mxu0 %v965
      %985 = vmatprep.subr.bf16.mxu0 0
      %986 = vmatpush1.bf16.msra.mxu0 %v966
      %987 = vmatprep.subr.bf16.mxu0 0
      %988 = vmatpush1.bf16.msra.mxu0 %v967
      %989 = vmatprep.subr.bf16.mxu0 0
      %990 = vmatpush1.bf16.msra.mxu0 %v968
      %991 = vmatprep.subr.bf16.mxu0 0
      %992 = vmatpush1.bf16.msra.mxu0 %v969
      %993 = vmatprep.subr.bf16.mxu0 0
      %994 = vmatpush1.bf16.msra.mxu0 %v970
      %995 = vmatprep.subr.bf16.mxu0 0
      %996 = vmatpush1.bf16.msra.mxu0 0
      %997 = vmatprep.subr.bf16.mxu0 0
      %998 = vmatpush1.bf16.msra.mxu0 0
      %999 = vmatprep.subr.bf16.mxu0 0
      %1000 = vmatpush1.bf16.msra.mxu0 0
      %1001 = vmatprep.subr.bf16.mxu0 0
      %1002 = vmatpush1.bf16.msra.mxu0 0
      %1003 = vmatprep.subr.bf16.mxu0 0
      %1004 = vmatpush1.bf16.msra.mxu0 0
      %1005 = vmatprep.subr.bf16.mxu0 0
      %1006 = vmatpush1.bf16.msra.mxu0 0
      %1007 = vmatprep.subr.bf16.mxu0 0
      %1008 = vmatpush1.bf16.msra.mxu0 0
      %1009 = vmatprep.subr.bf16.mxu0 0
      %1010 = vmatpush1.bf16.msra.mxu0 0
      %1011 = vmatprep.mubr.bf16.mxu0 0
      %1012 = vmatmul.mubr.bf16.gmra.mrb[0].mxu0 %v902
      %v1013 = vpop.f32.mrb[0].mxu0
      %v1014 = vadd.f32 0.0, %v1013
      %v1015 = vpop.f32.mrb[0].mxu0
      %v1016 = vpop.f32.mrb[0].mxu0
      %v1017 = vadd.f32 0.0, %v1016
      %v1018 = vpop.f32.mrb[0].mxu0
      %1019 = vmatprep.mubr.bf16.mxu0 0
      %1020 = vmatmul.mubr.bf16.gmra.mrb[0].mxu0 %v903
      %v1021 = vpop.f32.mrb[0].mxu0
      %v1022 = vadd.f32 0.0, %v1021
      %v1023 = vpop.f32.mrb[0].mxu0
      %v1024 = vpop.f32.mrb[0].mxu0
      %v1025 = vadd.f32 0.0, %v1024
      %v1026 = vpop.f32.mrb[0].mxu0
      %1027 = vmatprep.mubr.bf16.mxu0 0
      %1028 = vmatmul.mubr.bf16.gmra.mrb[0].mxu0 %v904
      %v1029 = vpop.f32.mrb[0].mxu0
      %v1030 = vadd.f32 0.0, %v1029
      %v1031 = vpop.f32.mrb[0].mxu0
      %v1032 = vpop.f32.mrb[0].mxu0
      %v1033 = vadd.f32 0.0, %v1032
      %v1034 = vpop.f32.mrb[0].mxu0
      %1035 = vmatprep.mubr.bf16.mxu0 0
      %1036 = vmatmul.mubr.bf16.gmra.mrb[0].mxu0 %v905
      %v1037 = vpop.f32.mrb[0].mxu0
      %v1038 = vadd.f32 0.0, %v1037
      %v1039 = vpop.f32.mrb[0].mxu0
      %v1040 = vpop.f32.mrb[0].mxu0
      %v1041 = vadd.f32 0.0, %v1040
      %v1042 = vpop.f32.mrb[0].mxu0
      %1043 = vmatprep.mubr.bf16.mxu0 0
      %1044 = vmatmul.mubr.bf16.gmra.mrb[0].mxu0 %v906
      %v1045 = vpop.f32.mrb[0].mxu0
      %v1046 = vadd.f32 0.0, %v1045
      %v1047 = vpop.f32.mrb[0].mxu0
      %v1048 = vpop.f32.mrb[0].mxu0
      %v1049 = vadd.f32 0.0, %v1048
      %v1050 = vpop.f32.mrb[0].mxu0
      %1051 = vmatprep.mubr.bf16.mxu0 0
      %1052 = vmatmul.mubr.bf16.gmra.mrb[0].mxu0 %v907
      %v1053 = vpop.f32.mrb[0].mxu0
      %v1054 = vadd.f32 0.0, %v1053
      %v1055 = vpop.f32.mrb[0].mxu0
      %v1056 = vpop.f32.mrb[0].mxu0
      %v1057 = vadd.f32 0.0, %v1056
      %v1058 = vpop.f32.mrb[0].mxu0
      %1059 = vmatprep.mubr.bf16.mxu0 0
      %1060 = vmatmul.mubr.bf16.gmra.mrb[0].mxu0 %v908
      %v1061 = vpop.f32.mrb[0].mxu0
      %v1062 = vadd.f32 0.0, %v1061
      %v1063 = vpop.f32.mrb[0].mxu0
      %v1064 = vpop.f32.mrb[0].mxu0
      %v1065 = vadd.f32 0.0, %v1064
      %v1066 = vpop.f32.mrb[0].mxu0
      %1067 = vmatprep.mubr.bf16.mxu0 0
      %1068 = vmatmul.mubr.bf16.gmra.mrb[0].mxu0 %v909
      %v1069 = vpop.f32.mrb[0].mxu0
      %v1070 = vadd.f32 0.0, %v1069
      %v1071 = vpop.f32.mrb[0].mxu0
      %v1072 = vpop.f32.mrb[0].mxu0
      %v1073 = vadd.f32 0.0, %v1072
      %v1074 = vpop.f32.mrb[0].mxu0
      %1075 = vmatprep.mubr.bf16.mxu0 0
      %1076 = vmatmul.mubr.bf16.gmra.mrb[0].mxu0 %v910
      %v1077 = vpop.f32.mrb[0].mxu0
      %v1078 = vadd.f32 0.0, %v1077
      %v1079 = vpop.f32.mrb[0].mxu0
      %v1080 = vpop.f32.mrb[0].mxu0
      %v1081 = vadd.f32 0.0, %v1080
      %v1082 = vpop.f32.mrb[0].mxu0
      %1083 = vmatprep.mubr.bf16.mxu0 0
      %1084 = vmatmul.mubr.bf16.gmra.mrb[0].mxu0 %v911
      %v1085 = vpop.f32.mrb[0].mxu0
      %v1086 = vadd.f32 0.0, %v1085
      %v1087 = vpop.f32.mrb[0].mxu0
      %v1088 = vpop.f32.mrb[0].mxu0
      %v1089 = vadd.f32 0.0, %v1088
      %v1090 = vpop.f32.mrb[0].mxu0
      %1091 = vmatprep.mubr.bf16.mxu0 0
      %1092 = vmatmul.mubr.bf16.gmra.mrb[0].mxu0 %v912
      %v1093 = vpop.f32.mrb[0].mxu0
      %v1094 = vadd.f32 0.0, %v1093
      %v1095 = vpop.f32.mrb[0].mxu0
      %v1096 = vpop.f32.mrb[0].mxu0
      %v1097 = vadd.f32 0.0, %v1096
      %v1098 = vpop.f32.mrb[0].mxu0
      %1099 = vmatprep.mubr.bf16.mxu0 0
      %1100 = vmatmul.mubr.bf16.gmra.mrb[0].mxu0 %v913
      %v1101 = vpop.f32.mrb[0].mxu0
      %v1102 = vadd.f32 0.0, %v1101
      %v1103 = vpop.f32.mrb[0].mxu0
      %v1104 = vpop.f32.mrb[0].mxu0
      %v1105 = vadd.f32 0.0, %v1104
      %v1106 = vpop.f32.mrb[0].mxu0
      %1107 = vdwg.mxu0
      %v1108 = vadd.f32 %v807, %v1014
      %v1109 = vadd.f32 %v810, %v1017
      %v1110 = vadd.f32 %v815, %v1022
      %v1111 = vadd.f32 %v818, %v1025
      %v1112 = vadd.f32 %v823, %v1030
      %v1113 = vadd.f32 %v826, %v1033
      %v1114 = vadd.f32 %v831, %v1038
      %v1115 = vadd.f32 %v834, %v1041
      %v1116 = vadd.f32 %v839, %v1046
      %v1117 = vadd.f32 %v842, %v1049
      %v1118 = vadd.f32 %v847, %v1054
      %v1119 = vadd.f32 %v850, %v1057
      %v1120 = vadd.f32 %v855, %v1062
      %v1121 = vadd.f32 %v858, %v1065
      %v1122 = vadd.f32 %v863, %v1070
      %v1123 = vadd.f32 %v866, %v1073
      %v1124 = vadd.f32 %v871, %v1078
      %v1125 = vadd.f32 %v874, %v1081
      %v1126 = vadd.f32 %v879, %v1086
      %v1127 = vadd.f32 %v882, %v1089
      %v1128 = vadd.f32 %v887, %v1094
      %v1129 = vadd.f32 %v890, %v1097
      %v1130 = vadd.f32 %v895, %v1102
      %v1131 = vadd.f32 %v898, %v1105
      %v1132 = vld [vmem:[%s316] sm:$0xf]
      %v1133 = vld [vmem:[%s316 + $0x4] sm:$0xf]
      %v1134 = vld [vmem:[%s316 + $0x8] sm:$0xf]
      %v1135 = vld [vmem:[%s316 + $0xc] sm:$0xf]
      %v1136 = vld [vmem:[%s316 + $0x10] sm:$0xf]
      %v1137 = vld [vmem:[%s316 + $0x14] sm:$0xf]
      %v1138 = vld [vmem:[%s316 + $0x18] sm:$0xf]
      %v1139 = vld [vmem:[%s316 + $0x1c] sm:$0xf]
      %v1140 = vld [vmem:[%s316 + $0x20] sm:$0xf]
      %v1141 = vld [vmem:[%s316 + $0x24] sm:$0xf]
      %v1142 = vld [vmem:[%s316 + $0x28] sm:$0xf]
      %v1143 = vld [vmem:[%s316 + $0x2c] sm:$0xf]
      %v1144 = vld [vmem:[%s316 + $0x30] sm:$0xf]
      %v1145 = vld [vmem:[%s316 + $0x34] sm:$0xf]
      %v1146 = vld [vmem:[%s316 + $0x38] sm:$0xf]
      %v1147 = vld [vmem:[%s316 + $0x3c] sm:$0xf]
      %v1164 = vunpack.c.l.b16 %v1132
      %v1165 = vunpack.c.l.b16 %v1133
      %v1166 = vunpack.c.l.b16 %v1134
      %v1167 = vunpack.c.l.b16 %v1135
      %v1168 = vunpack.c.l.b16 %v1136
      %v1169 = vunpack.c.l.b16 %v1137
      %v1170 = vunpack.c.l.b16 %v1138
      %v1171 = vunpack.c.l.b16 %v1139
      %v1172 = vunpack.c.l.b16 %v1140
      %v1173 = vunpack.c.l.b16 %v1141
      %v1174 = vunpack.c.l.b16 %v1142
      %v1175 = vunpack.c.l.b16 %v1143
      %v1176 = vunpack.c.l.b16 %v1144
      %v1177 = vunpack.c.l.b16 %v1145
      %v1178 = vunpack.c.l.b16 %v1146
      %v1179 = vunpack.c.l.b16 %v1147
      %v1180 = vpack.c.b16 %v1165, %v1164
      %v1181 = vpack.c.b16 %v1167, %v1166
      %v1182 = vpack.c.b16 %v1169, %v1168
      %v1183 = vpack.c.b16 %v1171, %v1170
      %v1184 = vpack.c.b16 %v1173, %v1172
      %v1185 = vpack.c.b16 %v1175, %v1174
      %v1186 = vpack.c.b16 %v1177, %v1176
      %v1187 = vpack.c.b16 %v1179, %v1178
      %vm1188 = vsmask.f32 256
      %v1190 = vshrl.u32 %v1180, 16
      %v1192 = vrot.slane %v1190, 7
      %v1193 = vshll.u32 %v1180, 16
      %v1195 = vor.u32 %v1192, %v1193
      %v1197 = vshrl.u32 %v1181, 16
      %v1199 = vrot.slane %v1197, 7
      %v1200 = vshll.u32 %v1181, 16
      %v1202 = vor.u32 %v1199, %v1200
      %v1203 = vsel %vm1188, %v1192, %v1202
      %v1205 = vshrl.u32 %v1182, 16
      %v1207 = vrot.slane %v1205, 7
      %v1208 = vshll.u32 %v1182, 16
      %v1210 = vor.u32 %v1207, %v1208
      %v1212 = vshrl.u32 %v1183, 16
      %v1214 = vrot.slane %v1212, 7
      %v1215 = vshll.u32 %v1183, 16
      %v1217 = vor.u32 %v1214, %v1215
      %v1218 = vsel %vm1188, %v1207, %v1217
      %v1220 = vshrl.u32 %v1184, 16
      %v1222 = vrot.slane %v1220, 7
      %v1223 = vshll.u32 %v1184, 16
      %v1225 = vor.u32 %v1222, %v1223
      %v1227 = vshrl.u32 %v1185, 16
      %v1229 = vrot.slane %v1227, 7
      %v1230 = vshll.u32 %v1185, 16
      %v1232 = vor.u32 %v1229, %v1230
      %v1233 = vsel %vm1188, %v1222, %v1232
      %v1235 = vshrl.u32 %v1186, 16
      %v1237 = vrot.slane %v1235, 7
      %v1238 = vshll.u32 %v1186, 16
      %v1240 = vor.u32 %v1237, %v1238
      %v1242 = vshrl.u32 %v1187, 16
      %v1244 = vrot.slane %v1242, 7
      %v1245 = vshll.u32 %v1187, 16
      %v1247 = vor.u32 %v1244, %v1245
      %v1248 = vsel %vm1188, %v1237, %v1247
      %vm1257 = vcmask 1047552
      %vm1258 = vsmask.f32 7938
      %vm1259 = vmand %vm1257, %vm1258
      %v1260 = vld [vmem:[#allocation2] sm:$0xff]
      %v1261 = vsel %vm1259, %v1195, %v1260
      %1262 = vst [vmem:[#allocation2] sm:$0xff] %v1261
      %1263 = vst [vmem:[#allocation2 + $0x8] sm:$0xff] %v1203
      %v1264 = vld [vmem:[#allocation2 + $0x10] sm:$0xff]
      %v1265 = vsel %vm1259, %v1210, %v1264
      %1266 = vst [vmem:[#allocation2 + $0x10] sm:$0xff] %v1265
      %1267 = vst [vmem:[#allocation2 + $0x18] sm:$0xff] %v1218
      %v1268 = vld [vmem:[#allocation2 + $0x20] sm:$0xff]
      %v1269 = vsel %vm1259, %v1225, %v1268
      %1270 = vst [vmem:[#allocation2 + $0x20] sm:$0xff] %v1269
      %1271 = vst [vmem:[#allocation2 + $0x28] sm:$0xff] %v1233
      %v1272 = vld [vmem:[#allocation2 + $0x30] sm:$0xff]
      %v1273 = vsel %vm1259, %v1240, %v1272
      %1274 = vst [vmem:[#allocation2 + $0x30] sm:$0xff] %v1273
      %1275 = vst [vmem:[#allocation2 + $0x38] sm:$0xff] %v1248
      %v1276 = vld [vmem:[%s328] sm:$0xf]
      %v1277 = vld [vmem:[%s328 + $0x4] sm:$0xf]
      %v1278 = vld [vmem:[%s328 + $0x8] sm:$0xf]
      %v1279 = vld [vmem:[%s328 + $0xc] sm:$0xf]
      %v1280 = vld [vmem:[%s328 + $0x10] sm:$0xf]
      %v1281 = vld [vmem:[%s328 + $0x14] sm:$0xf]
      %v1282 = vld [vmem:[%s328 + $0x18] sm:$0xf]
      %v1283 = vld [vmem:[%s328 + $0x1c] sm:$0xf]
      %v1284 = vld [vmem:[%s328 + $0x20] sm:$0xf]
      %v1285 = vld [vmem:[%s328 + $0x24] sm:$0xf]
      %v1286 = vld [vmem:[%s328 + $0x28] sm:$0xf]
      %v1287 = vld [vmem:[%s328 + $0x2c] sm:$0xf]
      %v1288 = vld [vmem:[%s328 + $0x30] sm:$0xf]
      %v1289 = vld [vmem:[%s328 + $0x34] sm:$0xf]
      %v1290 = vld [vmem:[%s328 + $0x38] sm:$0xf]
      %v1291 = vld [vmem:[%s328 + $0x3c] sm:$0xf]
      %v1308 = vunpack.c.l.b16 %v1276
      %v1309 = vunpack.c.l.b16 %v1277
      %v1310 = vunpack.c.l.b16 %v1278
      %v1311 = vunpack.c.l.b16 %v1279
      %v1312 = vunpack.c.l.b16 %v1280
      %v1313 = vunpack.c.l.b16 %v1281
      %v1314 = vunpack.c.l.b16 %v1282
      %v1315 = vunpack.c.l.b16 %v1283
      %v1316 = vunpack.c.l.b16 %v1284
      %v1317 = vunpack.c.l.b16 %v1285
      %v1318 = vunpack.c.l.b16 %v1286
      %v1319 = vunpack.c.l.b16 %v1287
      %v1320 = vunpack.c.l.b16 %v1288
      %v1321 = vunpack.c.l.b16 %v1289
      %v1322 = vunpack.c.l.b16 %v1290
      %v1323 = vunpack.c.l.b16 %v1291
      %v1324 = vpack.c.b16 %v1309, %v1308
      %v1325 = vpack.c.b16 %v1311, %v1310
      %v1326 = vpack.c.b16 %v1313, %v1312
      %v1327 = vpack.c.b16 %v1315, %v1314
      %v1328 = vpack.c.b16 %v1317, %v1316
      %v1329 = vpack.c.b16 %v1319, %v1318
      %v1330 = vpack.c.b16 %v1321, %v1320
      %v1331 = vpack.c.b16 %v1323, %v1322
      %v1333 = vshrl.u32 %v1324, 16
      %v1335 = vrot.slane %v1333, 7
      %v1336 = vshll.u32 %v1324, 16
      %v1338 = vor.u32 %v1335, %v1336
      %v1340 = vshrl.u32 %v1325, 16
      %v1342 = vrot.slane %v1340, 7
      %v1343 = vshll.u32 %v1325, 16
      %v1345 = vor.u32 %v1342, %v1343
      %v1346 = vsel %vm1188, %v1335, %v1345
      %v1348 = vshrl.u32 %v1326, 16
      %v1350 = vrot.slane %v1348, 7
      %v1351 = vshll.u32 %v1326, 16
      %v1353 = vor.u32 %v1350, %v1351
      %v1355 = vshrl.u32 %v1327, 16
      %v1357 = vrot.slane %v1355, 7
      %v1358 = vshll.u32 %v1327, 16
      %v1360 = vor.u32 %v1357, %v1358
      %v1361 = vsel %vm1188, %v1350, %v1360
      %v1363 = vshrl.u32 %v1328, 16
      %v1365 = vrot.slane %v1363, 7
      %v1366 = vshll.u32 %v1328, 16
      %v1368 = vor.u32 %v1365, %v1366
      %v1370 = vshrl.u32 %v1329, 16
      %v1372 = vrot.slane %v1370, 7
      %v1373 = vshll.u32 %v1329, 16
      %v1375 = vor.u32 %v1372, %v1373
      %v1376 = vsel %vm1188, %v1365, %v1375
      %v1378 = vshrl.u32 %v1330, 16
      %v1380 = vrot.slane %v1378, 7
      %v1381 = vshll.u32 %v1330, 16
      %v1383 = vor.u32 %v1380, %v1381
      %v1385 = vshrl.u32 %v1331, 16
      %v1387 = vrot.slane %v1385, 7
      %v1388 = vshll.u32 %v1331, 16
      %v1390 = vor.u32 %v1387, %v1388
      %v1391 = vsel %vm1188, %v1380, %v1390
      %v1400 = vld [vmem:[%s479] sm:$0xff]
      %v1401 = vsel %vm1259, %v1338, %v1400
      %1402 = vst [vmem:[%s479] sm:$0xff] %v1401
      %1403 = vst [vmem:[%s479 + $0x8] sm:$0xff] %v1346
      %v1404 = vld [vmem:[%s479 + $0x10] sm:$0xff]
      %v1405 = vsel %vm1259, %v1353, %v1404
      %1406 = vst [vmem:[%s479 + $0x10] sm:$0xff] %v1405
      %1407 = vst [vmem:[%s479 + $0x18] sm:$0xff] %v1361
      %v1408 = vld [vmem:[%s479 + $0x20] sm:$0xff]
      %v1409 = vsel %vm1259, %v1368, %v1408
      %1410 = vst [vmem:[%s479 + $0x20] sm:$0xff] %v1409
      %1411 = vst [vmem:[%s479 + $0x28] sm:$0xff] %v1376
      %v1412 = vld [vmem:[%s479 + $0x30] sm:$0xff]
      %v1413 = vsel %vm1259, %v1383, %v1412
      %1414 = vst [vmem:[%s479 + $0x30] sm:$0xff] %v1413
      %1415 = vst [vmem:[%s479 + $0x38] sm:$0xff] %v1391
      %vm1416 = vcmask 1040384
      %vm1417 = vmand %vm1416, %vm1188
      %v1418 = vld [vmem:[#allocation2] sm:$0x1]
      %v1419 = vsel %vm1417, 0, %v1418
      %1420 = vst [vmem:[#allocation2] sm:$0x1] %v1419
      %v1421 = vld [vmem:[#allocation2 + $0x10] sm:$0x1]
      %v1422 = vsel %vm1417, 0, %v1421
      %1423 = vst [vmem:[#allocation2 + $0x10] sm:$0x1] %v1422
      %v1424 = vld [vmem:[#allocation2 + $0x20] sm:$0x1]
      %v1425 = vsel %vm1417, 0, %v1424
      %1426 = vst [vmem:[#allocation2 + $0x20] sm:$0x1] %v1425
      %v1427 = vld [vmem:[#allocation2 + $0x30] sm:$0x1]
      %v1428 = vsel %vm1417, 0, %v1427
      %1429 = vst [vmem:[#allocation2 + $0x30] sm:$0x1] %v1428
      %v1430 = vld [vmem:[#allocation2 + $0x40] sm:$0x1]
      %v1431 = vsel %vm1417, 0, %v1430
      %1432 = vst [vmem:[#allocation2 + $0x40] sm:$0x1] %v1431
      %v1433 = vld [vmem:[#allocation2 + $0x50] sm:$0x1]
      %v1434 = vsel %vm1417, 0, %v1433
      %1435 = vst [vmem:[#allocation2 + $0x50] sm:$0x1] %v1434
      %v1436 = vld [vmem:[#allocation2 + $0x60] sm:$0x1]
      %v1437 = vsel %vm1417, 0, %v1436
      %1438 = vst [vmem:[#allocation2 + $0x60] sm:$0x1] %v1437
      %v1439 = vld [vmem:[#allocation2 + $0x70] sm:$0x1]
      %v1440 = vsel %vm1417, 0, %v1439
      %1441 = vst [vmem:[#allocation2 + $0x70] sm:$0x1] %v1440
      %v1442 = vld [vmem:[#allocation2] sm:$0xff]
      %v1443 = vld [vmem:[#allocation2 + $0x8] sm:$0xff]
      %v1444 = vld [vmem:[#allocation2 + $0x10] sm:$0xff]
      %v1445 = vld [vmem:[#allocation2 + $0x18] sm:$0xff]
      %v1446 = vld [vmem:[#allocation2 + $0x20] sm:$0xff]
      %v1447 = vld [vmem:[#allocation2 + $0x28] sm:$0xff]
      %v1448 = vld [vmem:[#allocation2 + $0x30] sm:$0xff]
      %v1449 = vld [vmem:[#allocation2 + $0x38] sm:$0xff]
      %v1450 = vld [vmem:[#allocation2 + $0x40] sm:$0xff]
      %v1451 = vld [vmem:[#allocation2 + $0x48] sm:$0xff]
      %v1452 = vld [vmem:[#allocation2 + $0x50] sm:$0xff]
      %v1453 = vld [vmem:[#allocation2 + $0x58] sm:$0xff]
      %v1454 = vld [vmem:[%s2] sm:$0xf]
      %v1455 = vld [vmem:[%s2 + $0x4] sm:$0xf]
      %v1456 = vld [vmem:[%s2 + $0x8] sm:$0xf]
      %v1457 = vld [vmem:[%s2 + $0xc] sm:$0xf]
      %v1458 = vld [vmem:[%s2 + $0x10] sm:$0xf]
      %v1459 = vld [vmem:[%s2 + $0x14] sm:$0xf]
      %v1460 = vld [vmem:[%s2 + $0x18] sm:$0xf]
      %v1461 = vld [vmem:[%s2 + $0x1c] sm:$0xf]
      %v1462 = vld [vmem:[%s2 + $0x20] sm:$0xf]
      %v1463 = vld [vmem:[%s2 + $0x24] sm:$0xf]
      %v1464 = vld [vmem:[%s2 + $0x28] sm:$0xf]
      %v1465 = vld [vmem:[%s2 + $0x2c] sm:$0xf]
      %v1466 = vld [vmem:[%s2 + $0x30] sm:$0xf]
      %v1467 = vld [vmem:[%s2 + $0x34] sm:$0xf]
      %v1468 = vld [vmem:[%s2 + $0x38] sm:$0xf]
      %v1469 = vld [vmem:[%s2 + $0x3c] sm:$0xf]
      %v1486 = vunpack.c.l.b16 %v1454
      %v1487 = vunpack.c.l.b16 %v1455
      %v1488 = vunpack.c.l.b16 %v1456
      %v1489 = vunpack.c.l.b16 %v1457
      %v1490 = vunpack.c.l.b16 %v1458
      %v1491 = vunpack.c.l.b16 %v1459
      %v1492 = vunpack.c.l.b16 %v1460
      %v1493 = vunpack.c.l.b16 %v1461
      %v1494 = vunpack.c.l.b16 %v1462
      %v1495 = vunpack.c.l.b16 %v1463
      %v1496 = vunpack.c.l.b16 %v1464
      %v1497 = vunpack.c.l.b16 %v1465
      %v1498 = vunpack.c.l.b16 %v1466
      %v1499 = vunpack.c.l.b16 %v1467
      %v1500 = vunpack.c.l.b16 %v1468
      %v1501 = vunpack.c.l.b16 %v1469
      %v1502 = vpack.c.b16 %v1487, %v1486
      %v1503 = vpack.c.b16 %v1489, %v1488
      %v1504 = vpack.c.b16 %v1491, %v1490
      %v1505 = vpack.c.b16 %v1493, %v1492
      %v1506 = vpack.c.b16 %v1495, %v1494
      %v1507 = vpack.c.b16 %v1497, %v1496
      %v1508 = vpack.c.b16 %v1499, %v1498
      %v1509 = vpack.c.b16 %v1501, %v1500
      %1518 = vmatprep.subr.bf16.mxu0 0
      %1519 = vmatpush1.bf16.msra.mxu0 %v1502
      %1520 = vmatprep.subr.bf16.mxu0 0
      %1521 = vmatpush1.bf16.msra.mxu0 %v1503
      %1522 = vmatprep.subr.bf16.mxu0 0
      %1523 = vmatpush1.bf16.msra.mxu0 %v1504
      %1524 = vmatprep.subr.bf16.mxu0 0
      %1525 = vmatpush1.bf16.msra.mxu0 %v1505
      %1526 = vmatprep.subr.bf16.mxu0 0
      %1527 = vmatpush1.bf16.msra.mxu0 %v1506
      %1528 = vmatprep.subr.bf16.mxu0 0
      %1529 = vmatpush1.bf16.msra.mxu0 %v1507
      %1530 = vmatprep.subr.bf16.mxu0 0
      %1531 = vmatpush1.bf16.msra.mxu0 %v1508
      %1532 = vmatprep.subr.bf16.mxu0 0
      %1533 = vmatpush1.bf16.msra.mxu0 %v1509
      %1534 = vmatprep.subr.bf16.mxu0 0
      %1535 = vmatpush1.bf16.msra.mxu0 0
      %1536 = vmatprep.subr.bf16.mxu0 0
      %1537 = vmatpush1.bf16.msra.mxu0 0
      %1538 = vmatprep.subr.bf16.mxu0 0
      %1539 = vmatpush1.bf16.msra.mxu0 0
      %1540 = vmatprep.subr.bf16.mxu0 0
      %1541 = vmatpush1.bf16.msra.mxu0 0
      %1542 = vmatprep.subr.bf16.mxu0 0
      %1543 = vmatpush1.bf16.msra.mxu0 0
      %1544 = vmatprep.subr.bf16.mxu0 0
      %1545 = vmatpush1.bf16.msra.mxu0 0
      %1546 = vmatprep.subr.bf16.mxu0 0
      %1547 = vmatpush1.bf16.msra.mxu0 0
      %1548 = vmatprep.subr.bf16.mxu0 0
      %1549 = vmatpush1.bf16.msra.mxu0 0
      %1550 = vmatprep.mubr.bf16.mxu0 0
      %1551 = vmatmul.mubr.bf16.gmra.mrb[0].mxu0 %v1442
      %v1552 = vpop.f32.mrb[0].mxu0
      %v1553 = vadd.f32 0.0, %v1552
      %v1554 = vpop.f32.mrb[0].mxu0
      %v1555 = vpop.f32.mrb[0].mxu0
      %v1556 = vadd.f32 0.0, %v1555
      %v1557 = vpop.f32.mrb[0].mxu0
      %1558 = vmatprep.mubr.bf16.mxu0 0
      %1559 = vmatmul.mubr.bf16.gmra.mrb[0].mxu0 %v1443
      %v1560 = vpop.f32.mrb[0].mxu0
      %v1561 = vadd.f32 0.0, %v1560
      %v1562 = vpop.f32.mrb[0].mxu0
      %v1563 = vpop.f32.mrb[0].mxu0
      %v1564 = vadd.f32 0.0, %v1563
      %v1565 = vpop.f32.mrb[0].mxu0
      %1566 = vmatprep.mubr.bf16.mxu0 0
      %1567 = vmatmul.mubr.bf16.gmra.mrb[0].mxu0 %v1444
      %v1568 = vpop.f32.mrb[0].mxu0
      %v1569 = vadd.f32 0.0, %v1568
      %v1570 = vpop.f32.mrb[0].mxu0
      %v1571 = vpop.f32.mrb[0].mxu0
      %v1572 = vadd.f32 0.0, %v1571
      %v1573 = vpop.f32.mrb[0].mxu0
      %1574 = vmatprep.mubr.bf16.mxu0 0
      %1575 = vmatmul.mubr.bf16.gmra.mrb[0].mxu0 %v1445
      %v1576 = vpop.f32.mrb[0].mxu0
      %v1577 = vadd.f32 0.0, %v1576
      %v1578 = vpop.f32.mrb[0].mxu0
      %v1579 = vpop.f32.mrb[0].mxu0
      %v1580 = vadd.f32 0.0, %v1579
      %v1581 = vpop.f32.mrb[0].mxu0
      %1582 = vmatprep.mubr.bf16.mxu0 0
      %1583 = vmatmul.mubr.bf16.gmra.mrb[0].mxu0 %v1446
      %v1584 = vpop.f32.mrb[0].mxu0
      %v1585 = vadd.f32 0.0, %v1584
      %v1586 = vpop.f32.mrb[0].mxu0
      %v1587 = vpop.f32.mrb[0].mxu0
      %v1588 = vadd.f32 0.0, %v1587
      %v1589 = vpop.f32.mrb[0].mxu0
      %1590 = vmatprep.mubr.bf16.mxu0 0
      %1591 = vmatmul.mubr.bf16.gmra.mrb[0].mxu0 %v1447
      %v1592 = vpop.f32.mrb[0].mxu0
      %v1593 = vadd.f32 0.0, %v1592
      %v1594 = vpop.f32.mrb[0].mxu0
      %v1595 = vpop.f32.mrb[0].mxu0
      %v1596 = vadd.f32 0.0, %v1595
      %v1597 = vpop.f32.mrb[0].mxu0
      %1598 = vmatprep.mubr.bf16.mxu0 0
      %1599 = vmatmul.mubr.bf16.gmra.mrb[0].mxu0 %v1448
      %v1600 = vpop.f32.mrb[0].mxu0
      %v1601 = vadd.f32 0.0, %v1600
      %v1602 = vpop.f32.mrb[0].mxu0
      %v1603 = vpop.f32.mrb[0].mxu0
      %v1604 = vadd.f32 0.0, %v1603
      %v1605 = vpop.f32.mrb[0].mxu0
      %1606 = vmatprep.mubr.bf16.mxu0 0
      %1607 = vmatmul.mubr.bf16.gmra.mrb[0].mxu0 %v1449
      %v1608 = vpop.f32.mrb[0].mxu0
      %v1609 = vadd.f32 0.0, %v1608
      %v1610 = vpop.f32.mrb[0].mxu0
      %v1611 = vpop.f32.mrb[0].mxu0
      %v1612 = vadd.f32 0.0, %v1611
      %v1613 = vpop.f32.mrb[0].mxu0
      %1614 = vmatprep.mubr.bf16.mxu0 0
      %1615 = vmatmul.mubr.bf16.gmra.mrb[0].mxu0 %v1450
      %v1616 = vpop.f32.mrb[0].mxu0
      %v1617 = vadd.f32 0.0, %v1616
      %v1618 = vpop.f32.mrb[0].mxu0
      %v1619 = vpop.f32.mrb[0].mxu0
      %v1620 = vadd.f32 0.0, %v1619
      %v1621 = vpop.f32.mrb[0].mxu0
      %1622 = vmatprep.mubr.bf16.mxu0 0
      %1623 = vmatmul.mubr.bf16.gmra.mrb[0].mxu0 %v1451
      %v1624 = vpop.f32.mrb[0].mxu0
      %v1625 = vadd.f32 0.0, %v1624
      %v1626 = vpop.f32.mrb[0].mxu0
      %v1627 = vpop.f32.mrb[0].mxu0
      %v1628 = vadd.f32 0.0, %v1627
      %v1629 = vpop.f32.mrb[0].mxu0
      %1630 = vmatprep.mubr.bf16.mxu0 0
      %1631 = vmatmul.mubr.bf16.gmra.mrb[0].mxu0 %v1452
      %v1632 = vpop.f32.mrb[0].mxu0
      %v1633 = vadd.f32 0.0, %v1632
      %v1634 = vpop.f32.mrb[0].mxu0
      %v1635 = vpop.f32.mrb[0].mxu0
      %v1636 = vadd.f32 0.0, %v1635
      %v1637 = vpop.f32.mrb[0].mxu0
      %1638 = vmatprep.mubr.bf16.mxu0 0
      %1639 = vmatmul.mubr.bf16.gmra.mrb[0].mxu0 %v1453
      %v1640 = vpop.f32.mrb[0].mxu0
      %v1641 = vadd.f32 0.0, %v1640
      %v1642 = vpop.f32.mrb[0].mxu0
      %v1643 = vpop.f32.mrb[0].mxu0
      %v1644 = vadd.f32 0.0, %v1643
      %v1645 = vpop.f32.mrb[0].mxu0
      %1646 = vdwg.mxu0
      %v1647 = vadd.f32 %v1108, %v1553
      %v1648 = vadd.f32 %v1109, %v1556
      %v1649 = vadd.f32 %v1110, %v1561
      %v1650 = vadd.f32 %v1111, %v1564
      %v1651 = vadd.f32 %v1112, %v1569
      %v1652 = vadd.f32 %v1113, %v1572
      %v1653 = vadd.f32 %v1114, %v1577
      %v1654 = vadd.f32 %v1115, %v1580
      %v1655 = vadd.f32 %v1116, %v1585
      %v1656 = vadd.f32 %v1117, %v1588
      %v1657 = vadd.f32 %v1118, %v1593
      %v1658 = vadd.f32 %v1119, %v1596
      %v1659 = vadd.f32 %v1120, %v1601
      %v1660 = vadd.f32 %v1121, %v1604
      %v1661 = vadd.f32 %v1122, %v1609
      %v1662 = vadd.f32 %v1123, %v1612
      %v1663 = vadd.f32 %v1124, %v1617
      %v1664 = vadd.f32 %v1125, %v1620
      %v1665 = vadd.f32 %v1126, %v1625
      %v1666 = vadd.f32 %v1127, %v1628
      %v1667 = vadd.f32 %v1128, %v1633
      %v1668 = vadd.f32 %v1129, %v1636
      %v1669 = vadd.f32 %v1130, %v1641
      %v1670 = vadd.f32 %v1131, %v1644
      %v1671 = vld [vmem:[%s517] sm:$0xff]
      %v1672 = vld [vmem:[%s517 + $0x8] sm:$0xff]
      %v1673 = vld [vmem:[%s517 + $0x10] sm:$0xff]
      %v1674 = vld [vmem:[%s517 + $0x18] sm:$0xff]
      %v1675 = vld [vmem:[%s517 + $0x20] sm:$0xff]
      %v1676 = vld [vmem:[%s517 + $0x28] sm:$0xff]
      %v1677 = vld [vmem:[%s517 + $0x30] sm:$0xff]
      %v1678 = vld [vmem:[%s517 + $0x38] sm:$0xff]
      %v1679 = vld [vmem:[%s517 + $0x40] sm:$0xff]
      %v1680 = vld [vmem:[%s517 + $0x48] sm:$0xff]
      %v1681 = vld [vmem:[%s517 + $0x50] sm:$0xff]
      %v1682 = vld [vmem:[%s517 + $0x58] sm:$0xff]
      %s1683 = scalar_lea.vmem %s2, 192
      %v1684 = vld [vmem:[%s1683] sm:$0xf]
      %v1685 = vld [vmem:[%s1683 + $0x4] sm:$0xf]
      %v1686 = vld [vmem:[%s1683 + $0x8] sm:$0xf]
      %v1687 = vld [vmem:[%s1683 + $0xc] sm:$0xf]
      %v1688 = vld [vmem:[%s1683 + $0x10] sm:$0xf]
      %v1689 = vld [vmem:[%s1683 + $0x14] sm:$0xf]
      %v1690 = vld [vmem:[%s1683 + $0x18] sm:$0xf]
      %v1691 = vld [vmem:[%s1683 + $0x1c] sm:$0xf]
      %v1692 = vld [vmem:[%s1683 + $0x20] sm:$0xf]
      %v1693 = vld [vmem:[%s1683 + $0x24] sm:$0xf]
      %v1694 = vld [vmem:[%s1683 + $0x28] sm:$0xf]
      %v1695 = vld [vmem:[%s1683 + $0x2c] sm:$0xf]
      %v1696 = vld [vmem:[%s1683 + $0x30] sm:$0xf]
      %v1697 = vld [vmem:[%s1683 + $0x34] sm:$0xf]
      %v1698 = vld [vmem:[%s1683 + $0x38] sm:$0xf]
      %v1699 = vld [vmem:[%s1683 + $0x3c] sm:$0xf]
      %v1716 = vunpack.c.l.b16 %v1684
      %v1717 = vunpack.c.l.b16 %v1685
      %v1718 = vunpack.c.l.b16 %v1686
      %v1719 = vunpack.c.l.b16 %v1687
      %v1720 = vunpack.c.l.b16 %v1688
      %v1721 = vunpack.c.l.b16 %v1689
      %v1722 = vunpack.c.l.b16 %v1690
      %v1723 = vunpack.c.l.b16 %v1691
      %v1724 = vunpack.c.l.b16 %v1692
      %v1725 = vunpack.c.l.b16 %v1693
      %v1726 = vunpack.c.l.b16 %v1694
      %v1727 = vunpack.c.l.b16 %v1695
      %v1728 = vunpack.c.l.b16 %v1696
      %v1729 = vunpack.c.l.b16 %v1697
      %v1730 = vunpack.c.l.b16 %v1698
      %v1731 = vunpack.c.l.b16 %v1699
      %v1732 = vpack.c.b16 %v1717, %v1716
      %v1733 = vpack.c.b16 %v1719, %v1718
      %v1734 = vpack.c.b16 %v1721, %v1720
      %v1735 = vpack.c.b16 %v1723, %v1722
      %v1736 = vpack.c.b16 %v1725, %v1724
      %v1737 = vpack.c.b16 %v1727, %v1726
      %v1738 = vpack.c.b16 %v1729, %v1728
      %v1739 = vpack.c.b16 %v1731, %v1730
      %1748 = vmatprep.subr.bf16.mxu0 0
      %1749 = vmatpush1.bf16.msra.mxu0 %v1732
      %1750 = vmatprep.subr.bf16.mxu0 0
      %1751 = vmatpush1.bf16.msra.mxu0 %v1733
      %1752 = vmatprep.subr.bf16.mxu0 0
      %1753 = vmatpush1.bf16.msra.mxu0 %v1734
      %1754 = vmatprep.subr.bf16.mxu0 0
      %1755 = vmatpush1.bf16.msra.mxu0 %v1735
      %1756 = vmatprep.subr.bf16.mxu0 0
      %1757 = vmatpush1.bf16.msra.mxu0 %v1736
      %1758 = vmatprep.subr.bf16.mxu0 0
      %1759 = vmatpush1.bf16.msra.mxu0 %v1737
      %1760 = vmatprep.subr.bf16.mxu0 0
      %1761 = vmatpush1.bf16.msra.mxu0 %v1738
      %1762 = vmatprep.subr.bf16.mxu0 0
      %1763 = vmatpush1.bf16.msra.mxu0 %v1739
      %1764 = vmatprep.subr.bf16.mxu0 0
      %1765 = vmatpush1.bf16.msra.mxu0 0
      %1766 = vmatprep.subr.bf16.mxu0 0
      %1767 = vmatpush1.bf16.msra.mxu0 0
      %1768 = vmatprep.subr.bf16.mxu0 0
      %1769 = vmatpush1.bf16.msra.mxu0 0
      %1770 = vmatprep.subr.bf16.mxu0 0
      %1771 = vmatpush1.bf16.msra.mxu0 0
      %1772 = vmatprep.subr.bf16.mxu0 0
      %1773 = vmatpush1.bf16.msra.mxu0 0
      %1774 = vmatprep.subr.bf16.mxu0 0
      %1775 = vmatpush1.bf16.msra.mxu0 0
      %1776 = vmatprep.subr.bf16.mxu0 0
      %1777 = vmatpush1.bf16.msra.mxu0 0
      %1778 = vmatprep.subr.bf16.mxu0 0
      %1779 = vmatpush1.bf16.msra.mxu0 0
      %1780 = vmatprep.mubr.bf16.mxu0 0
      %1781 = vmatmul.mubr.bf16.gmra.mrb[0].mxu0 %v1671
      %v1782 = vpop.f32.mrb[0].mxu0
      %v1783 = vadd.f32 0.0, %v1782
      %v1784 = vpop.f32.mrb[0].mxu0
      %v1785 = vpop.f32.mrb[0].mxu0
      %v1786 = vadd.f32 0.0, %v1785
      %v1787 = vpop.f32.mrb[0].mxu0
      %1788 = vmatprep.mubr.bf16.mxu0 0
      %1789 = vmatmul.mubr.bf16.gmra.mrb[0].mxu0 %v1672
      %v1790 = vpop.f32.mrb[0].mxu0
      %v1791 = vadd.f32 0.0, %v1790
      %v1792 = vpop.f32.mrb[0].mxu0
      %v1793 = vpop.f32.mrb[0].mxu0
      %v1794 = vadd.f32 0.0, %v1793
      %v1795 = vpop.f32.mrb[0].mxu0
      %1796 = vmatprep.mubr.bf16.mxu0 0
      %1797 = vmatmul.mubr.bf16.gmra.mrb[0].mxu0 %v1673
      %v1798 = vpop.f32.mrb[0].mxu0
      %v1799 = vadd.f32 0.0, %v1798
      %v1800 = vpop.f32.mrb[0].mxu0
      %v1801 = vpop.f32.mrb[0].mxu0
      %v1802 = vadd.f32 0.0, %v1801
      %v1803 = vpop.f32.mrb[0].mxu0
      %1804 = vmatprep.mubr.bf16.mxu0 0
      %1805 = vmatmul.mubr.bf16.gmra.mrb[0].mxu0 %v1674
      %v1806 = vpop.f32.mrb[0].mxu0
      %v1807 = vadd.f32 0.0, %v1806
      %v1808 = vpop.f32.mrb[0].mxu0
      %v1809 = vpop.f32.mrb[0].mxu0
      %v1810 = vadd.f32 0.0, %v1809
      %v1811 = vpop.f32.mrb[0].mxu0
      %1812 = vmatprep.mubr.bf16.mxu0 0
      %1813 = vmatmul.mubr.bf16.gmra.mrb[0].mxu0 %v1675
      %v1814 = vpop.f32.mrb[0].mxu0
      %v1815 = vadd.f32 0.0, %v1814
      %v1816 = vpop.f32.mrb[0].mxu0
      %v1817 = vpop.f32.mrb[0].mxu0
      %v1818 = vadd.f32 0.0, %v1817
      %v1819 = vpop.f32.mrb[0].mxu0
      %1820 = vmatprep.mubr.bf16.mxu0 0
      %1821 = vmatmul.mubr.bf16.gmra.mrb[0].mxu0 %v1676
      %v1822 = vpop.f32.mrb[0].mxu0
      %v1823 = vadd.f32 0.0, %v1822
      %v1824 = vpop.f32.mrb[0].mxu0
      %v1825 = vpop.f32.mrb[0].mxu0
      %v1826 = vadd.f32 0.0, %v1825
      %v1827 = vpop.f32.mrb[0].mxu0
      %1828 = vmatprep.mubr.bf16.mxu0 0
      %1829 = vmatmul.mubr.bf16.gmra.mrb[0].mxu0 %v1677
      %v1830 = vpop.f32.mrb[0].mxu0
      %v1831 = vadd.f32 0.0, %v1830
      %v1832 = vpop.f32.mrb[0].mxu0
      %v1833 = vpop.f32.mrb[0].mxu0
      %v1834 = vadd.f32 0.0, %v1833
      %v1835 = vpop.f32.mrb[0].mxu0
      %1836 = vmatprep.mubr.bf16.mxu0 0
      %1837 = vmatmul.mubr.bf16.gmra.mrb[0].mxu0 %v1678
      %v1838 = vpop.f32.mrb[0].mxu0
      %v1839 = vadd.f32 0.0, %v1838
      %v1840 = vpop.f32.mrb[0].mxu0
      %v1841 = vpop.f32.mrb[0].mxu0
      %v1842 = vadd.f32 0.0, %v1841
      %v1843 = vpop.f32.mrb[0].mxu0
      %1844 = vmatprep.mubr.bf16.mxu0 0
      %1845 = vmatmul.mubr.bf16.gmra.mrb[0].mxu0 %v1679
      %v1846 = vpop.f32.mrb[0].mxu0
      %v1847 = vadd.f32 0.0, %v1846
      %v1848 = vpop.f32.mrb[0].mxu0
      %v1849 = vpop.f32.mrb[0].mxu0
      %v1850 = vadd.f32 0.0, %v1849
      %v1851 = vpop.f32.mrb[0].mxu0
      %1852 = vmatprep.mubr.bf16.mxu0 0
      %1853 = vmatmul.mubr.bf16.gmra.mrb[0].mxu0 %v1680
      %v1854 = vpop.f32.mrb[0].mxu0
      %v1855 = vadd.f32 0.0, %v1854
      %v1856 = vpop.f32.mrb[0].mxu0
      %v1857 = vpop.f32.mrb[0].mxu0
      %v1858 = vadd.f32 0.0, %v1857
      %v1859 = vpop.f32.mrb[0].mxu0
      %1860 = vmatprep.mubr.bf16.mxu0 0
      %1861 = vmatmul.mubr.bf16.gmra.mrb[0].mxu0 %v1681
      %v1862 = vpop.f32.mrb[0].mxu0
      %v1863 = vadd.f32 0.0, %v1862
      %v1864 = vpop.f32.mrb[0].mxu0
      %v1865 = vpop.f32.mrb[0].mxu0
      %v1866 = vadd.f32 0.0, %v1865
      %v1867 = vpop.f32.mrb[0].mxu0
      %1868 = vmatprep.mubr.bf16.mxu0 0
      %1869 = vmatmul.mubr.bf16.gmra.mrb[0].mxu0 %v1682
      %v1870 = vpop.f32.mrb[0].mxu0
      %v1871 = vadd.f32 0.0, %v1870
      %v1872 = vpop.f32.mrb[0].mxu0
      %v1873 = vpop.f32.mrb[0].mxu0
      %v1874 = vadd.f32 0.0, %v1873
      %v1875 = vpop.f32.mrb[0].mxu0
      %1876 = vdwg.mxu0
      %v1877 = vadd.f32 %v1647, %v1783
      %v1878 = vadd.f32 %v1648, %v1786
      %v1879 = vadd.f32 %v1649, %v1791
      %v1880 = vadd.f32 %v1650, %v1794
      %v1881 = vadd.f32 %v1651, %v1799
      %v1882 = vadd.f32 %v1652, %v1802
      %v1883 = vadd.f32 %v1653, %v1807
      %v1884 = vadd.f32 %v1654, %v1810
      %v1885 = vadd.f32 %v1655, %v1815
      %v1886 = vadd.f32 %v1656, %v1818
      %v1887 = vadd.f32 %v1657, %v1823
      %v1888 = vadd.f32 %v1658, %v1826
      %v1889 = vadd.f32 %v1659, %v1831
      %v1890 = vadd.f32 %v1660, %v1834
      %v1891 = vadd.f32 %v1661, %v1839
      %v1892 = vadd.f32 %v1662, %v1842
      %v1893 = vadd.f32 %v1663, %v1847
      %v1894 = vadd.f32 %v1664, %v1850
      %v1895 = vadd.f32 %v1665, %v1855
      %v1896 = vadd.f32 %v1666, %v1858
      %v1897 = vadd.f32 %v1667, %v1863
      %v1898 = vadd.f32 %v1668, %v1866
      %v1899 = vadd.f32 %v1669, %v1871
      %v1900 = vadd.f32 %v1670, %v1874
      %v1901 = vld [vmem:[%s901] sm:$0xff]
      %v1902 = vld [vmem:[%s901 + $0x8] sm:$0xff]
      %v1903 = vld [vmem:[%s901 + $0x10] sm:$0xff]
      %v1904 = vld [vmem:[%s901 + $0x18] sm:$0xff]
      %v1905 = vld [vmem:[%s901 + $0x20] sm:$0xff]
      %v1906 = vld [vmem:[%s901 + $0x28] sm:$0xff]
      %v1907 = vld [vmem:[%s901 + $0x30] sm:$0xff]
      %v1908 = vld [vmem:[%s901 + $0x38] sm:$0xff]
      %v1909 = vld [vmem:[%s901 + $0x40] sm:$0xff]
      %v1910 = vld [vmem:[%s901 + $0x48] sm:$0xff]
      %v1911 = vld [vmem:[%s901 + $0x50] sm:$0xff]
      %v1912 = vld [vmem:[%s901 + $0x58] sm:$0xff]
      %s1913 = scalar_lea.vmem %s2, 384
      %v1914 = vld [vmem:[%s1913] sm:$0xf]
      %v1915 = vld [vmem:[%s1913 + $0x4] sm:$0xf]
      %v1916 = vld [vmem:[%s1913 + $0x8] sm:$0xf]
      %v1917 = vld [vmem:[%s1913 + $0xc] sm:$0xf]
      %v1918 = vld [vmem:[%s1913 + $0x10] sm:$0xf]
      %v1919 = vld [vmem:[%s1913 + $0x14] sm:$0xf]
      %v1920 = vld [vmem:[%s1913 + $0x18] sm:$0xf]
      %v1921 = vld [vmem:[%s1913 + $0x1c] sm:$0xf]
      %v1922 = vld [vmem:[%s1913 + $0x20] sm:$0xf]
      %v1923 = vld [vmem:[%s1913 + $0x24] sm:$0xf]
      %v1924 = vld [vmem:[%s1913 + $0x28] sm:$0xf]
      %v1925 = vld [vmem:[%s1913 + $0x2c] sm:$0xf]
      %v1926 = vld [vmem:[%s1913 + $0x30] sm:$0xf]
      %v1927 = vld [vmem:[%s1913 + $0x34] sm:$0xf]
      %v1928 = vld [vmem:[%s1913 + $0x38] sm:$0xf]
      %v1929 = vld [vmem:[%s1913 + $0x3c] sm:$0xf]
      %v1946 = vunpack.c.l.b16 %v1914
      %v1947 = vunpack.c.l.b16 %v1915
      %v1948 = vunpack.c.l.b16 %v1916
      %v1949 = vunpack.c.l.b16 %v1917
      %v1950 = vunpack.c.l.b16 %v1918
      %v1951 = vunpack.c.l.b16 %v1919
      %v1952 = vunpack.c.l.b16 %v1920
      %v1953 = vunpack.c.l.b16 %v1921
      %v1954 = vunpack.c.l.b16 %v1922
      %v1955 = vunpack.c.l.b16 %v1923
      %v1956 = vunpack.c.l.b16 %v1924
      %v1957 = vunpack.c.l.b16 %v1925
      %v1958 = vunpack.c.l.b16 %v1926
      %v1959 = vunpack.c.l.b16 %v1927
      %v1960 = vunpack.c.l.b16 %v1928
      %v1961 = vunpack.c.l.b16 %v1929
      %v1962 = vpack.c.b16 %v1947, %v1946
      %v1963 = vpack.c.b16 %v1949, %v1948
      %v1964 = vpack.c.b16 %v1951, %v1950
      %v1965 = vpack.c.b16 %v1953, %v1952
      %v1966 = vpack.c.b16 %v1955, %v1954
      %v1967 = vpack.c.b16 %v1957, %v1956
      %v1968 = vpack.c.b16 %v1959, %v1958
      %v1969 = vpack.c.b16 %v1961, %v1960
      %1978 = vmatprep.subr.bf16.mxu0 0
      %1979 = vmatpush1.bf16.msra.mxu0 %v1962
      %1980 = vmatprep.subr.bf16.mxu0 0
      %1981 = vmatpush1.bf16.msra.mxu0 %v1963
      %1982 = vmatprep.subr.bf16.mxu0 0
      %1983 = vmatpush1.bf16.msra.mxu0 %v1964
      %1984 = vmatprep.subr.bf16.mxu0 0
      %1985 = vmatpush1.bf16.msra.mxu0 %v1965
      %1986 = vmatprep.subr.bf16.mxu0 0
      %1987 = vmatpush1.bf16.msra.mxu0 %v1966
      %1988 = vmatprep.subr.bf16.mxu0 0
      %1989 = vmatpush1.bf16.msra.mxu0 %v1967
      %1990 = vmatprep.subr.bf16.mxu0 0
      %1991 = vmatpush1.bf16.msra.mxu0 %v1968
      %1992 = vmatprep.subr.bf16.mxu0 0
      %1993 = vmatpush1.bf16.msra.mxu0 %v1969
      %1994 = vmatprep.subr.bf16.mxu0 0
      %1995 = vmatpush1.bf16.msra.mxu0 0
      %1996 = vmatprep.subr.bf16.mxu0 0
      %1997 = vmatpush1.bf16.msra.mxu0 0
      %1998 = vmatprep.subr.bf16.mxu0 0
      %1999 = vmatpush1.bf16.msra.mxu0 0
      %2000 = vmatprep.subr.bf16.mxu0 0
      %2001 = vmatpush1.bf16.msra.mxu0 0
      %2002 = vmatprep.subr.bf16.mxu0 0
      %2003 = vmatpush1.bf16.msra.mxu0 0
      %2004 = vmatprep.subr.bf16.mxu0 0
      %2005 = vmatpush1.bf16.msra.mxu0 0
      %2006 = vmatprep.subr.bf16.mxu0 0
      %2007 = vmatpush1.bf16.msra.mxu0 0
      %2008 = vmatprep.subr.bf16.mxu0 0
      %2009 = vmatpush1.bf16.msra.mxu0 0
      %2010 = vmatprep.mubr.bf16.mxu0 0
      %2011 = vmatmul.mubr.bf16.gmra.mrb[0].mxu0 %v1901
      %v2012 = vpop.f32.mrb[0].mxu0
      %v2013 = vadd.f32 0.0, %v2012
      %v2014 = vpop.f32.mrb[0].mxu0
      %v2015 = vpop.f32.mrb[0].mxu0
      %v2016 = vadd.f32 0.0, %v2015
      %v2017 = vpop.f32.mrb[0].mxu0
      %2018 = vmatprep.mubr.bf16.mxu0 0
      %2019 = vmatmul.mubr.bf16.gmra.mrb[0].mxu0 %v1902
      %v2020 = vpop.f32.mrb[0].mxu0
      %v2021 = vadd.f32 0.0, %v2020
      %v2022 = vpop.f32.mrb[0].mxu0
      %v2023 = vpop.f32.mrb[0].mxu0
      %v2024 = vadd.f32 0.0, %v2023
      %v2025 = vpop.f32.mrb[0].mxu0
      %2026 = vmatprep.mubr.bf16.mxu0 0
      %2027 = vmatmul.mubr.bf16.gmra.mrb[0].mxu0 %v1903
      %v2028 = vpop.f32.mrb[0].mxu0
      %v2029 = vadd.f32 0.0, %v2028
      %v2030 = vpop.f32.mrb[0].mxu0
      %v2031 = vpop.f32.mrb[0].mxu0
      %v2032 = vadd.f32 0.0, %v2031
      %v2033 = vpop.f32.mrb[0].mxu0
      %2034 = vmatprep.mubr.bf16.mxu0 0
      %2035 = vmatmul.mubr.bf16.gmra.mrb[0].mxu0 %v1904
      %v2036 = vpop.f32.mrb[0].mxu0
      %v2037 = vadd.f32 0.0, %v2036
      %v2038 = vpop.f32.mrb[0].mxu0
      %v2039 = vpop.f32.mrb[0].mxu0
      %v2040 = vadd.f32 0.0, %v2039
      %v2041 = vpop.f32.mrb[0].mxu0
      %2042 = vmatprep.mubr.bf16.mxu0 0
      %2043 = vmatmul.mubr.bf16.gmra.mrb[0].mxu0 %v1905
      %v2044 = vpop.f32.mrb[0].mxu0
      %v2045 = vadd.f32 0.0, %v2044
      %v2046 = vpop.f32.mrb[0].mxu0
      %v2047 = vpop.f32.mrb[0].mxu0
      %v2048 = vadd.f32 0.0, %v2047
      %v2049 = vpop.f32.mrb[0].mxu0
      %2050 = vmatprep.mubr.bf16.mxu0 0
      %2051 = vmatmul.mubr.bf16.gmra.mrb[0].mxu0 %v1906
      %v2052 = vpop.f32.mrb[0].mxu0
      %v2053 = vadd.f32 0.0, %v2052
      %v2054 = vpop.f32.mrb[0].mxu0
      %v2055 = vpop.f32.mrb[0].mxu0
      %v2056 = vadd.f32 0.0, %v2055
      %v2057 = vpop.f32.mrb[0].mxu0
      %2058 = vmatprep.mubr.bf16.mxu0 0
      %2059 = vmatmul.mubr.bf16.gmra.mrb[0].mxu0 %v1907
      %v2060 = vpop.f32.mrb[0].mxu0
      %v2061 = vadd.f32 0.0, %v2060
      %v2062 = vpop.f32.mrb[0].mxu0
      %v2063 = vpop.f32.mrb[0].mxu0
      %v2064 = vadd.f32 0.0, %v2063
      %v2065 = vpop.f32.mrb[0].mxu0
      %2066 = vmatprep.mubr.bf16.mxu0 0
      %2067 = vmatmul.mubr.bf16.gmra.mrb[0].mxu0 %v1908
      %v2068 = vpop.f32.mrb[0].mxu0
      %v2069 = vadd.f32 0.0, %v2068
      %v2070 = vpop.f32.mrb[0].mxu0
      %v2071 = vpop.f32.mrb[0].mxu0
      %v2072 = vadd.f32 0.0, %v2071
      %v2073 = vpop.f32.mrb[0].mxu0
      %2074 = vmatprep.mubr.bf16.mxu0 0
      %2075 = vmatmul.mubr.bf16.gmra.mrb[0].mxu0 %v1909
      %v2076 = vpop.f32.mrb[0].mxu0
      %v2077 = vadd.f32 0.0, %v2076
      %v2078 = vpop.f32.mrb[0].mxu0
      %v2079 = vpop.f32.mrb[0].mxu0
      %v2080 = vadd.f32 0.0, %v2079
      %v2081 = vpop.f32.mrb[0].mxu0
      %2082 = vmatprep.mubr.bf16.mxu0 0
      %2083 = vmatmul.mubr.bf16.gmra.mrb[0].mxu0 %v1910
      %v2084 = vpop.f32.mrb[0].mxu0
      %v2085 = vadd.f32 0.0, %v2084
      %v2086 = vpop.f32.mrb[0].mxu0
      %v2087 = vpop.f32.mrb[0].mxu0
      %v2088 = vadd.f32 0.0, %v2087
      %v2089 = vpop.f32.mrb[0].mxu0
      %2090 = vmatprep.mubr.bf16.mxu0 0
      %2091 = vmatmul.mubr.bf16.gmra.mrb[0].mxu0 %v1911
      %v2092 = vpop.f32.mrb[0].mxu0
      %v2093 = vadd.f32 0.0, %v2092
      %v2094 = vpop.f32.mrb[0].mxu0
      %v2095 = vpop.f32.mrb[0].mxu0
      %v2096 = vadd.f32 0.0, %v2095
      %v2097 = vpop.f32.mrb[0].mxu0
      %2098 = vmatprep.mubr.bf16.mxu0 0
      %2099 = vmatmul.mubr.bf16.gmra.mrb[0].mxu0 %v1912
      %v2100 = vpop.f32.mrb[0].mxu0
      %v2101 = vadd.f32 0.0, %v2100
      %v2102 = vpop.f32.mrb[0].mxu0
      %v2103 = vpop.f32.mrb[0].mxu0
      %v2104 = vadd.f32 0.0, %v2103
      %v2105 = vpop.f32.mrb[0].mxu0
      %2106 = vdwg.mxu0
      %v2107 = vadd.f32 %v1877, %v2013
      %v2108 = vadd.f32 %v1878, %v2016
      %v2109 = vadd.f32 %v1879, %v2021
      %v2110 = vadd.f32 %v1880, %v2024
      %v2111 = vadd.f32 %v1881, %v2029
      %v2112 = vadd.f32 %v1882, %v2032
      %v2113 = vadd.f32 %v1883, %v2037
      %v2114 = vadd.f32 %v1884, %v2040
      %v2115 = vadd.f32 %v1885, %v2045
      %v2116 = vadd.f32 %v1886, %v2048
      %v2117 = vadd.f32 %v1887, %v2053
      %v2118 = vadd.f32 %v1888, %v2056
      %v2119 = vadd.f32 %v1889, %v2061
      %v2120 = vadd.f32 %v1890, %v2064
      %v2121 = vadd.f32 %v1891, %v2069
      %v2122 = vadd.f32 %v1892, %v2072
      %v2123 = vadd.f32 %v1893, %v2077
      %v2124 = vadd.f32 %v1894, %v2080
      %v2125 = vadd.f32 %v1895, %v2085
      %v2126 = vadd.f32 %v1896, %v2088
      %v2127 = vadd.f32 %v1897, %v2093
      %v2128 = vadd.f32 %v1898, %v2096
      %v2129 = vadd.f32 %v1899, %v2101
      %v2130 = vadd.f32 %v1900, %v2104
      %v2131 = vld [vmem:[%s316] sm:$0xf]
      %v2132 = vld [vmem:[%s316 + $0x4] sm:$0xf]
      %v2133 = vld [vmem:[%s316 + $0x8] sm:$0xf]
      %v2134 = vld [vmem:[%s316 + $0xc] sm:$0xf]
      %v2135 = vld [vmem:[%s316 + $0x10] sm:$0xf]
      %v2136 = vld [vmem:[%s316 + $0x14] sm:$0xf]
      %v2137 = vld [vmem:[%s316 + $0x18] sm:$0xf]
      %v2138 = vld [vmem:[%s316 + $0x1c] sm:$0xf]
      %v2139 = vld [vmem:[%s316 + $0x20] sm:$0xf]
      %v2140 = vld [vmem:[%s316 + $0x24] sm:$0xf]
      %v2141 = vld [vmem:[%s316 + $0x28] sm:$0xf]
      %v2142 = vld [vmem:[%s316 + $0x2c] sm:$0xf]
      %v2143 = vld [vmem:[%s316 + $0x30] sm:$0xf]
      %v2144 = vld [vmem:[%s316 + $0x34] sm:$0xf]
      %v2145 = vld [vmem:[%s316 + $0x38] sm:$0xf]
      %v2146 = vld [vmem:[%s316 + $0x3c] sm:$0xf]
      %v2163 = vunpack.c.l.b16 %v2131
      %v2164 = vunpack.c.l.b16 %v2132
      %v2165 = vunpack.c.l.b16 %v2133
      %v2166 = vunpack.c.l.b16 %v2134
      %v2167 = vunpack.c.l.b16 %v2135
      %v2168 = vunpack.c.l.b16 %v2136
      %v2169 = vunpack.c.l.b16 %v2137
      %v2170 = vunpack.c.l.b16 %v2138
      %v2171 = vunpack.c.l.b16 %v2139
      %v2172 = vunpack.c.l.b16 %v2140
      %v2173 = vunpack.c.l.b16 %v2141
      %v2174 = vunpack.c.l.b16 %v2142
      %v2175 = vunpack.c.l.b16 %v2143
      %v2176 = vunpack.c.l.b16 %v2144
      %v2177 = vunpack.c.l.b16 %v2145
      %v2178 = vunpack.c.l.b16 %v2146
      %v2179 = vpack.c.b16 %v2164, %v2163
      %v2180 = vpack.c.b16 %v2166, %v2165
      %v2181 = vpack.c.b16 %v2168, %v2167
      %v2182 = vpack.c.b16 %v2170, %v2169
      %v2183 = vpack.c.b16 %v2172, %v2171
      %v2184 = vpack.c.b16 %v2174, %v2173
      %v2185 = vpack.c.b16 %v2176, %v2175
      %v2186 = vpack.c.b16 %v2178, %v2177
      %vm2187 = vsmask.f32 7424
      %v2189 = vshrl.u32 %v2179, 16
      %v2191 = vshll.u32 %v2179, 16
      %v2193 = vrot.slane %v2191, 1
      %v2194 = vor.u32 %v2189, %v2193
      %v2196 = vshll.u32 %v2180, 16
      %v2198 = vrot.slane %v2196, 1
      %v2199 = vsel %vm2187, %v2194, %v2198
      %v2200 = vshrl.u32 %v2180, 16
      %v2202 = vor.u32 %v2200, %v2198
      %v2204 = vshrl.u32 %v2181, 16
      %v2206 = vshll.u32 %v2181, 16
      %v2208 = vrot.slane %v2206, 1
      %v2209 = vor.u32 %v2204, %v2208
      %v2211 = vshll.u32 %v2182, 16
      %v2213 = vrot.slane %v2211, 1
      %v2214 = vsel %vm2187, %v2209, %v2213
      %v2215 = vshrl.u32 %v2182, 16
      %v2217 = vor.u32 %v2215, %v2213
      %v2219 = vshrl.u32 %v2183, 16
      %v2221 = vshll.u32 %v2183, 16
      %v2223 = vrot.slane %v2221, 1
      %v2224 = vor.u32 %v2219, %v2223
      %v2226 = vshll.u32 %v2184, 16
      %v2228 = vrot.slane %v2226, 1
      %v2229 = vsel %vm2187, %v2224, %v2228
      %v2230 = vshrl.u32 %v2184, 16
      %v2232 = vor.u32 %v2230, %v2228
      %v2234 = vshrl.u32 %v2185, 16
      %v2236 = vshll.u32 %v2185, 16
      %v2238 = vrot.slane %v2236, 1
      %v2239 = vor.u32 %v2234, %v2238
      %v2241 = vshll.u32 %v2186, 16
      %v2243 = vrot.slane %v2241, 1
      %v2244 = vsel %vm2187, %v2239, %v2243
      %v2245 = vshrl.u32 %v2186, 16
      %v2247 = vor.u32 %v2245, %v2243
      %2256 = vst [vmem:[#allocation2] sm:$0xff] %v2199
      %vm2257 = vmand %vm1257, %vm2187
      %v2258 = vld [vmem:[#allocation2 + $0x8] sm:$0xff]
      %v2259 = vsel %vm2257, %v2202, %v2258
      %2260 = vst [vmem:[#allocation2 + $0x8] sm:$0xff] %v2259
      %2261 = vst [vmem:[#allocation2 + $0x10] sm:$0xff] %v2214
      %v2262 = vld [vmem:[#allocation2 + $0x18] sm:$0xff]
      %v2263 = vsel %vm2257, %v2217, %v2262
      %2264 = vst [vmem:[#allocation2 + $0x18] sm:$0xff] %v2263
      %2265 = vst [vmem:[#allocation2 + $0x20] sm:$0xff] %v2229
      %v2266 = vld [vmem:[#allocation2 + $0x28] sm:$0xff]
      %v2267 = vsel %vm2257, %v2232, %v2266
      %2268 = vst [vmem:[#allocation2 + $0x28] sm:$0xff] %v2267
      %2269 = vst [vmem:[#allocation2 + $0x30] sm:$0xff] %v2244
      %v2270 = vld [vmem:[#allocation2 + $0x38] sm:$0xff]
      %v2271 = vsel %vm2257, %v2247, %v2270
      %2272 = vst [vmem:[#allocation2 + $0x38] sm:$0xff] %v2271
      %v2273 = vld [vmem:[%s328] sm:$0xf]
      %v2274 = vld [vmem:[%s328 + $0x4] sm:$0xf]
      %v2275 = vld [vmem:[%s328 + $0x8] sm:$0xf]
      %v2276 = vld [vmem:[%s328 + $0xc] sm:$0xf]
      %v2277 = vld [vmem:[%s328 + $0x10] sm:$0xf]
      %v2278 = vld [vmem:[%s328 + $0x14] sm:$0xf]
      %v2279 = vld [vmem:[%s328 + $0x18] sm:$0xf]
      %v2280 = vld [vmem:[%s328 + $0x1c] sm:$0xf]
      %v2281 = vld [vmem:[%s328 + $0x20] sm:$0xf]
      %v2282 = vld [vmem:[%s328 + $0x24] sm:$0xf]
      %v2283 = vld [vmem:[%s328 + $0x28] sm:$0xf]
      %v2284 = vld [vmem:[%s328 + $0x2c] sm:$0xf]
      %v2285 = vld [vmem:[%s328 + $0x30] sm:$0xf]
      %v2286 = vld [vmem:[%s328 + $0x34] sm:$0xf]
      %v2287 = vld [vmem:[%s328 + $0x38] sm:$0xf]
      %v2288 = vld [vmem:[%s328 + $0x3c] sm:$0xf]
      %v2305 = vunpack.c.l.b16 %v2273
      %v2306 = vunpack.c.l.b16 %v2274
      %v2307 = vunpack.c.l.b16 %v2275
      %v2308 = vunpack.c.l.b16 %v2276
      %v2309 = vunpack.c.l.b16 %v2277
      %v2310 = vunpack.c.l.b16 %v2278
      %v2311 = vunpack.c.l.b16 %v2279
      %v2312 = vunpack.c.l.b16 %v2280
      %v2313 = vunpack.c.l.b16 %v2281
      %v2314 = vunpack.c.l.b16 %v2282
      %v2315 = vunpack.c.l.b16 %v2283
      %v2316 = vunpack.c.l.b16 %v2284
      %v2317 = vunpack.c.l.b16 %v2285
      %v2318 = vunpack.c.l.b16 %v2286
      %v2319 = vunpack.c.l.b16 %v2287
      %v2320 = vunpack.c.l.b16 %v2288
      %v2321 = vpack.c.b16 %v2306, %v2305
      %v2322 = vpack.c.b16 %v2308, %v2307
      %v2323 = vpack.c.b16 %v2310, %v2309
      %v2324 = vpack.c.b16 %v2312, %v2311
      %v2325 = vpack.c.b16 %v2314, %v2313
      %v2326 = vpack.c.b16 %v2316, %v2315
      %v2327 = vpack.c.b16 %v2318, %v2317
      %v2328 = vpack.c.b16 %v2320, %v2319
      %v2330 = vshrl.u32 %v2321, 16
      %v2332 = vshll.u32 %v2321, 16
      %v2334 = vrot.slane %v2332, 1
      %v2335 = vor.u32 %v2330, %v2334
      %v2337 = vshll.u32 %v2322, 16
      %v2339 = vrot.slane %v2337, 1
      %v2340 = vsel %vm2187, %v2335, %v2339
      %v2341 = vshrl.u32 %v2322, 16
      %v2343 = vor.u32 %v2341, %v2339
      %v2345 = vshrl.u32 %v2323, 16
      %v2347 = vshll.u32 %v2323, 16
      %v2349 = vrot.slane %v2347, 1
      %v2350 = vor.u32 %v2345, %v2349
      %v2352 = vshll.u32 %v2324, 16
      %v2354 = vrot.slane %v2352, 1
      %v2355 = vsel %vm2187, %v2350, %v2354
      %v2356 = vshrl.u32 %v2324, 16
      %v2358 = vor.u32 %v2356, %v2354
      %v2360 = vshrl.u32 %v2325, 16
      %v2362 = vshll.u32 %v2325, 16
      %v2364 = vrot.slane %v2362, 1
      %v2365 = vor.u32 %v2360, %v2364
      %v2367 = vshll.u32 %v2326, 16
      %v2369 = vrot.slane %v2367, 1
      %v2370 = vsel %vm2187, %v2365, %v2369
      %v2371 = vshrl.u32 %v2326, 16
      %v2373 = vor.u32 %v2371, %v2369
      %v2375 = vshrl.u32 %v2327, 16
      %v2377 = vshll.u32 %v2327, 16
      %v2379 = vrot.slane %v2377, 1
      %v2380 = vor.u32 %v2375, %v2379
      %v2382 = vshll.u32 %v2328, 16
      %v2384 = vrot.slane %v2382, 1
      %v2385 = vsel %vm2187, %v2380, %v2384
      %v2386 = vshrl.u32 %v2328, 16
      %v2388 = vor.u32 %v2386, %v2384
      %2397 = vst [vmem:[%s479] sm:$0xff] %v2340
      %v2398 = vld [vmem:[%s479 + $0x8] sm:$0xff]
      %v2399 = vsel %vm2257, %v2343, %v2398
      %2400 = vst [vmem:[%s479 + $0x8] sm:$0xff] %v2399
      %2401 = vst [vmem:[%s479 + $0x10] sm:$0xff] %v2355
      %v2402 = vld [vmem:[%s479 + $0x18] sm:$0xff]
      %v2403 = vsel %vm2257, %v2358, %v2402
      %2404 = vst [vmem:[%s479 + $0x18] sm:$0xff] %v2403
      %2405 = vst [vmem:[%s479 + $0x20] sm:$0xff] %v2370
      %v2406 = vld [vmem:[%s479 + $0x28] sm:$0xff]
      %v2407 = vsel %vm2257, %v2373, %v2406
      %2408 = vst [vmem:[%s479 + $0x28] sm:$0xff] %v2407
      %2409 = vst [vmem:[%s479 + $0x30] sm:$0xff] %v2385
      %v2410 = vld [vmem:[%s479 + $0x38] sm:$0xff]
      %v2411 = vsel %vm2257, %v2388, %v2410
      %2412 = vst [vmem:[%s479 + $0x38] sm:$0xff] %v2411
      %vm2413 = vcmask 1047559
      %vm2414 = vsmask.f32 7966
      %vm2415 = vmand %vm2413, %vm2414
      %v2416 = vld [vmem:[#allocation2 + $0x8] sm:$0x80]
      %v2417 = vsel %vm2415, 0, %v2416
      %2418 = vst [vmem:[#allocation2 + $0x8] sm:$0x80] %v2417
      %v2419 = vld [vmem:[#allocation2 + $0x18] sm:$0x80]
      %v2420 = vsel %vm2415, 0, %v2419
      %2421 = vst [vmem:[#allocation2 + $0x18] sm:$0x80] %v2420
      %v2422 = vld [vmem:[#allocation2 + $0x28] sm:$0x80]
      %v2423 = vsel %vm2415, 0, %v2422
      %2424 = vst [vmem:[#allocation2 + $0x28] sm:$0x80] %v2423
      %v2425 = vld [vmem:[#allocation2 + $0x38] sm:$0x80]
      %v2426 = vsel %vm2415, 0, %v2425
      %2427 = vst [vmem:[#allocation2 + $0x38] sm:$0x80] %v2426
      %v2428 = vld [vmem:[#allocation2 + $0x48] sm:$0x80]
      %v2429 = vsel %vm2415, 0, %v2428
      %2430 = vst [vmem:[#allocation2 + $0x48] sm:$0x80] %v2429
      %v2431 = vld [vmem:[#allocation2 + $0x58] sm:$0x80]
      %v2432 = vsel %vm2415, 0, %v2431
      %2433 = vst [vmem:[#allocation2 + $0x58] sm:$0x80] %v2432
      %v2434 = vld [vmem:[#allocation2 + $0x68] sm:$0x80]
      %v2435 = vsel %vm2415, 0, %v2434
      %2436 = vst [vmem:[#allocation2 + $0x68] sm:$0x80] %v2435
      %v2437 = vld [vmem:[#allocation2 + $0x78] sm:$0x80]
      %v2438 = vsel %vm2415, 0, %v2437
      %2439 = vst [vmem:[#allocation2 + $0x78] sm:$0x80] %v2438
      %v2440 = vld [vmem:[#allocation2] sm:$0xff]
      %v2441 = vld [vmem:[#allocation2 + $0x8] sm:$0xff]
      %v2442 = vld [vmem:[#allocation2 + $0x10] sm:$0xff]
      %v2443 = vld [vmem:[#allocation2 + $0x18] sm:$0xff]
      %v2444 = vld [vmem:[#allocation2 + $0x20] sm:$0xff]
      %v2445 = vld [vmem:[#allocation2 + $0x28] sm:$0xff]
      %v2446 = vld [vmem:[#allocation2 + $0x30] sm:$0xff]
      %v2447 = vld [vmem:[#allocation2 + $0x38] sm:$0xff]
      %v2448 = vld [vmem:[#allocation2 + $0x40] sm:$0xff]
      %v2449 = vld [vmem:[#allocation2 + $0x48] sm:$0xff]
      %v2450 = vld [vmem:[#allocation2 + $0x50] sm:$0xff]
      %v2451 = vld [vmem:[#allocation2 + $0x58] sm:$0xff]
      %s2452 = scalar_lea.vmem %s2, 128
      %v2453 = vld [vmem:[%s2452] sm:$0xf]
      %v2454 = vld [vmem:[%s2452 + $0x4] sm:$0xf]
      %v2455 = vld [vmem:[%s2452 + $0x8] sm:$0xf]
      %v2456 = vld [vmem:[%s2452 + $0xc] sm:$0xf]
      %v2457 = vld [vmem:[%s2452 + $0x10] sm:$0xf]
      %v2458 = vld [vmem:[%s2452 + $0x14] sm:$0xf]
      %v2459 = vld [vmem:[%s2452 + $0x18] sm:$0xf]
      %v2460 = vld [vmem:[%s2452 + $0x1c] sm:$0xf]
      %v2461 = vld [vmem:[%s2452 + $0x20] sm:$0xf]
      %v2462 = vld [vmem:[%s2452 + $0x24] sm:$0xf]
      %v2463 = vld [vmem:[%s2452 + $0x28] sm:$0xf]
      %v2464 = vld [vmem:[%s2452 + $0x2c] sm:$0xf]
      %v2465 = vld [vmem:[%s2452 + $0x30] sm:$0xf]
      %v2466 = vld [vmem:[%s2452 + $0x34] sm:$0xf]
      %v2467 = vld [vmem:[%s2452 + $0x38] sm:$0xf]
      %v2468 = vld [vmem:[%s2452 + $0x3c] sm:$0xf]
      %v2485 = vunpack.c.l.b16 %v2453
      %v2486 = vunpack.c.l.b16 %v2454
      %v2487 = vunpack.c.l.b16 %v2455
      %v2488 = vunpack.c.l.b16 %v2456
      %v2489 = vunpack.c.l.b16 %v2457
      %v2490 = vunpack.c.l.b16 %v2458
      %v2491 = vunpack.c.l.b16 %v2459
      %v2492 = vunpack.c.l.b16 %v2460
      %v2493 = vunpack.c.l.b16 %v2461
      %v2494 = vunpack.c.l.b16 %v2462
      %v2495 = vunpack.c.l.b16 %v2463
      %v2496 = vunpack.c.l.b16 %v2464
      %v2497 = vunpack.c.l.b16 %v2465
      %v2498 = vunpack.c.l.b16 %v2466
      %v2499 = vunpack.c.l.b16 %v2467
      %v2500 = vunpack.c.l.b16 %v2468
      %v2501 = vpack.c.b16 %v2486, %v2485
      %v2502 = vpack.c.b16 %v2488, %v2487
      %v2503 = vpack.c.b16 %v2490, %v2489
      %v2504 = vpack.c.b16 %v2492, %v2491
      %v2505 = vpack.c.b16 %v2494, %v2493
      %v2506 = vpack.c.b16 %v2496, %v2495
      %v2507 = vpack.c.b16 %v2498, %v2497
      %v2508 = vpack.c.b16 %v2500, %v2499
      %2517 = vmatprep.subr.bf16.mxu0 0
      %2518 = vmatpush1.bf16.msra.mxu0 %v2501
      %2519 = vmatprep.subr.bf16.mxu0 0
      %2520 = vmatpush1.bf16.msra.mxu0 %v2502
      %2521 = vmatprep.subr.bf16.mxu0 0
      %2522 = vmatpush1.bf16.msra.mxu0 %v2503
      %2523 = vmatprep.subr.bf16.mxu0 0
      %2524 = vmatpush1.bf16.msra.mxu0 %v2504
      %2525 = vmatprep.subr.bf16.mxu0 0
      %2526 = vmatpush1.bf16.msra.mxu0 %v2505
      %2527 = vmatprep.subr.bf16.mxu0 0
      %2528 = vmatpush1.bf16.msra.mxu0 %v2506
      %2529 = vmatprep.subr.bf16.mxu0 0
      %2530 = vmatpush1.bf16.msra.mxu0 %v2507
      %2531 = vmatprep.subr.bf16.mxu0 0
      %2532 = vmatpush1.bf16.msra.mxu0 %v2508
      %2533 = vmatprep.subr.bf16.mxu0 0
      %2534 = vmatpush1.bf16.msra.mxu0 0
      %2535 = vmatprep.subr.bf16.mxu0 0
      %2536 = vmatpush1.bf16.msra.mxu0 0
      %2537 = vmatprep.subr.bf16.mxu0 0
      %2538 = vmatpush1.bf16.msra.mxu0 0
      %2539 = vmatprep.subr.bf16.mxu0 0
      %2540 = vmatpush1.bf16.msra.mxu0 0
      %2541 = vmatprep.subr.bf16.mxu0 0
      %2542 = vmatpush1.bf16.msra.mxu0 0
      %2543 = vmatprep.subr.bf16.mxu0 0
      %2544 = vmatpush1.bf16.msra.mxu0 0
      %2545 = vmatprep.subr.bf16.mxu0 0
      %2546 = vmatpush1.bf16.msra.mxu0 0
      %2547 = vmatprep.subr.bf16.mxu0 0
      %2548 = vmatpush1.bf16.msra.mxu0 0
      %2549 = vmatprep.mubr.bf16.mxu0 0
      %2550 = vmatmul.mubr.bf16.gmra.mrb[0].mxu0 %v2440
      %v2551 = vpop.f32.mrb[0].mxu0
      %v2552 = vadd.f32 0.0, %v2551
      %v2553 = vpop.f32.mrb[0].mxu0
      %v2554 = vpop.f32.mrb[0].mxu0
      %v2555 = vadd.f32 0.0, %v2554
      %v2556 = vpop.f32.mrb[0].mxu0
      %2557 = vmatprep.mubr.bf16.mxu0 0
      %2558 = vmatmul.mubr.bf16.gmra.mrb[0].mxu0 %v2441
      %v2559 = vpop.f32.mrb[0].mxu0
      %v2560 = vadd.f32 0.0, %v2559
      %v2561 = vpop.f32.mrb[0].mxu0
      %v2562 = vpop.f32.mrb[0].mxu0
      %v2563 = vadd.f32 0.0, %v2562
      %v2564 = vpop.f32.mrb[0].mxu0
      %2565 = vmatprep.mubr.bf16.mxu0 0
      %2566 = vmatmul.mubr.bf16.gmra.mrb[0].mxu0 %v2442
      %v2567 = vpop.f32.mrb[0].mxu0
      %v2568 = vadd.f32 0.0, %v2567
      %v2569 = vpop.f32.mrb[0].mxu0
      %v2570 = vpop.f32.mrb[0].mxu0
      %v2571 = vadd.f32 0.0, %v2570
      %v2572 = vpop.f32.mrb[0].mxu0
      %2573 = vmatprep.mubr.bf16.mxu0 0
      %2574 = vmatmul.mubr.bf16.gmra.mrb[0].mxu0 %v2443
      %v2575 = vpop.f32.mrb[0].mxu0
      %v2576 = vadd.f32 0.0, %v2575
      %v2577 = vpop.f32.mrb[0].mxu0
      %v2578 = vpop.f32.mrb[0].mxu0
      %v2579 = vadd.f32 0.0, %v2578
      %v2580 = vpop.f32.mrb[0].mxu0
      %2581 = vmatprep.mubr.bf16.mxu0 0
      %2582 = vmatmul.mubr.bf16.gmra.mrb[0].mxu0 %v2444
      %v2583 = vpop.f32.mrb[0].mxu0
      %v2584 = vadd.f32 0.0, %v2583
      %v2585 = vpop.f32.mrb[0].mxu0
      %v2586 = vpop.f32.mrb[0].mxu0
      %v2587 = vadd.f32 0.0, %v2586
      %v2588 = vpop.f32.mrb[0].mxu0
      %2589 = vmatprep.mubr.bf16.mxu0 0
      %2590 = vmatmul.mubr.bf16.gmra.mrb[0].mxu0 %v2445
      %v2591 = vpop.f32.mrb[0].mxu0
      %v2592 = vadd.f32 0.0, %v2591
      %v2593 = vpop.f32.mrb[0].mxu0
      %v2594 = vpop.f32.mrb[0].mxu0
      %v2595 = vadd.f32 0.0, %v2594
      %v2596 = vpop.f32.mrb[0].mxu0
      %2597 = vmatprep.mubr.bf16.mxu0 0
      %2598 = vmatmul.mubr.bf16.gmra.mrb[0].mxu0 %v2446
      %v2599 = vpop.f32.mrb[0].mxu0
      %v2600 = vadd.f32 0.0, %v2599
      %v2601 = vpop.f32.mrb[0].mxu0
      %v2602 = vpop.f32.mrb[0].mxu0
      %v2603 = vadd.f32 0.0, %v2602
      %v2604 = vpop.f32.mrb[0].mxu0
      %2605 = vmatprep.mubr.bf16.mxu0 0
      %2606 = vmatmul.mubr.bf16.gmra.mrb[0].mxu0 %v2447
      %v2607 = vpop.f32.mrb[0].mxu0
      %v2608 = vadd.f32 0.0, %v2607
      %v2609 = vpop.f32.mrb[0].mxu0
      %v2610 = vpop.f32.mrb[0].mxu0
      %v2611 = vadd.f32 0.0, %v2610
      %v2612 = vpop.f32.mrb[0].mxu0
      %2613 = vmatprep.mubr.bf16.mxu0 0
      %2614 = vmatmul.mubr.bf16.gmra.mrb[0].mxu0 %v2448
      %v2615 = vpop.f32.mrb[0].mxu0
      %v2616 = vadd.f32 0.0, %v2615
      %v2617 = vpop.f32.mrb[0].mxu0
      %v2618 = vpop.f32.mrb[0].mxu0
      %v2619 = vadd.f32 0.0, %v2618
      %v2620 = vpop.f32.mrb[0].mxu0
      %2621 = vmatprep.mubr.bf16.mxu0 0
      %2622 = vmatmul.mubr.bf16.gmra.mrb[0].mxu0 %v2449
      %v2623 = vpop.f32.mrb[0].mxu0
      %v2624 = vadd.f32 0.0, %v2623
      %v2625 = vpop.f32.mrb[0].mxu0
      %v2626 = vpop.f32.mrb[0].mxu0
      %v2627 = vadd.f32 0.0, %v2626
      %v2628 = vpop.f32.mrb[0].mxu0
      %2629 = vmatprep.mubr.bf16.mxu0 0
      %2630 = vmatmul.mubr.bf16.gmra.mrb[0].mxu0 %v2450
      %v2631 = vpop.f32.mrb[0].mxu0
      %v2632 = vadd.f32 0.0, %v2631
      %v2633 = vpop.f32.mrb[0].mxu0
      %v2634 = vpop.f32.mrb[0].mxu0
      %v2635 = vadd.f32 0.0, %v2634
      %v2636 = vpop.f32.mrb[0].mxu0
      %2637 = vmatprep.mubr.bf16.mxu0 0
      %2638 = vmatmul.mubr.bf16.gmra.mrb[0].mxu0 %v2451
      %v2639 = vpop.f32.mrb[0].mxu0
      %v2640 = vadd.f32 0.0, %v2639
      %v2641 = vpop.f32.mrb[0].mxu0
      %v2642 = vpop.f32.mrb[0].mxu0
      %v2643 = vadd.f32 0.0, %v2642
      %v2644 = vpop.f32.mrb[0].mxu0
      %2645 = vdwg.mxu0
      %v2646 = vadd.f32 %v2107, %v2552
      %v2647 = vadd.f32 %v2108, %v2555
      %v2648 = vadd.f32 %v2109, %v2560
      %v2649 = vadd.f32 %v2110, %v2563
      %v2650 = vadd.f32 %v2111, %v2568
      %v2651 = vadd.f32 %v2112, %v2571
      %v2652 = vadd.f32 %v2113, %v2576
      %v2653 = vadd.f32 %v2114, %v2579
      %v2654 = vadd.f32 %v2115, %v2584
      %v2655 = vadd.f32 %v2116, %v2587
      %v2656 = vadd.f32 %v2117, %v2592
      %v2657 = vadd.f32 %v2118, %v2595
      %v2658 = vadd.f32 %v2119, %v2600
      %v2659 = vadd.f32 %v2120, %v2603
      %v2660 = vadd.f32 %v2121, %v2608
      %v2661 = vadd.f32 %v2122, %v2611
      %v2662 = vadd.f32 %v2123, %v2616
      %v2663 = vadd.f32 %v2124, %v2619
      %v2664 = vadd.f32 %v2125, %v2624
      %v2665 = vadd.f32 %v2126, %v2627
      %v2666 = vadd.f32 %v2127, %v2632
      %v2667 = vadd.f32 %v2128, %v2635
      %v2668 = vadd.f32 %v2129, %v2640
      %v2669 = vadd.f32 %v2130, %v2643
      %v2670 = vld [vmem:[%s517] sm:$0xff]
      %v2671 = vld [vmem:[%s517 + $0x8] sm:$0xff]
      %v2672 = vld [vmem:[%s517 + $0x10] sm:$0xff]
      %v2673 = vld [vmem:[%s517 + $0x18] sm:$0xff]
      %v2674 = vld [vmem:[%s517 + $0x20] sm:$0xff]
      %v2675 = vld [vmem:[%s517 + $0x28] sm:$0xff]
      %v2676 = vld [vmem:[%s517 + $0x30] sm:$0xff]
      %v2677 = vld [vmem:[%s517 + $0x38] sm:$0xff]
      %v2678 = vld [vmem:[%s517 + $0x40] sm:$0xff]
      %v2679 = vld [vmem:[%s517 + $0x48] sm:$0xff]
      %v2680 = vld [vmem:[%s517 + $0x50] sm:$0xff]
      %v2681 = vld [vmem:[%s517 + $0x58] sm:$0xff]
      %s2682 = scalar_lea.vmem %s2, 320
      %v2683 = vld [vmem:[%s2682] sm:$0xf]
      %v2684 = vld [vmem:[%s2682 + $0x4] sm:$0xf]
      %v2685 = vld [vmem:[%s2682 + $0x8] sm:$0xf]
      %v2686 = vld [vmem:[%s2682 + $0xc] sm:$0xf]
      %v2687 = vld [vmem:[%s2682 + $0x10] sm:$0xf]
      %v2688 = vld [vmem:[%s2682 + $0x14] sm:$0xf]
      %v2689 = vld [vmem:[%s2682 + $0x18] sm:$0xf]
      %v2690 = vld [vmem:[%s2682 + $0x1c] sm:$0xf]
      %v2691 = vld [vmem:[%s2682 + $0x20] sm:$0xf]
      %v2692 = vld [vmem:[%s2682 + $0x24] sm:$0xf]
      %v2693 = vld [vmem:[%s2682 + $0x28] sm:$0xf]
      %v2694 = vld [vmem:[%s2682 + $0x2c] sm:$0xf]
      %v2695 = vld [vmem:[%s2682 + $0x30] sm:$0xf]
      %v2696 = vld [vmem:[%s2682 + $0x34] sm:$0xf]
      %v2697 = vld [vmem:[%s2682 + $0x38] sm:$0xf]
      %v2698 = vld [vmem:[%s2682 + $0x3c] sm:$0xf]
      %v2715 = vunpack.c.l.b16 %v2683
      %v2716 = vunpack.c.l.b16 %v2684
      %v2717 = vunpack.c.l.b16 %v2685
      %v2718 = vunpack.c.l.b16 %v2686
      %v2719 = vunpack.c.l.b16 %v2687
      %v2720 = vunpack.c.l.b16 %v2688
      %v2721 = vunpack.c.l.b16 %v2689
      %v2722 = vunpack.c.l.b16 %v2690
      %v2723 = vunpack.c.l.b16 %v2691
      %v2724 = vunpack.c.l.b16 %v2692
      %v2725 = vunpack.c.l.b16 %v2693
      %v2726 = vunpack.c.l.b16 %v2694
      %v2727 = vunpack.c.l.b16 %v2695
      %v2728 = vunpack.c.l.b16 %v2696
      %v2729 = vunpack.c.l.b16 %v2697
      %v2730 = vunpack.c.l.b16 %v2698
      %v2731 = vpack.c.b16 %v2716, %v2715
      %v2732 = vpack.c.b16 %v2718, %v2717
      %v2733 = vpack.c.b16 %v2720, %v2719
      %v2734 = vpack.c.b16 %v2722, %v2721
      %v2735 = vpack.c.b16 %v2724, %v2723
      %v2736 = vpack.c.b16 %v2726, %v2725
      %v2737 = vpack.c.b16 %v2728, %v2727
      %v2738 = vpack.c.b16 %v2730, %v2729
      %2747 = vmatprep.subr.bf16.mxu0 0
      %2748 = vmatpush1.bf16.msra.mxu0 %v2731
      %2749 = vmatprep.subr.bf16.mxu0 0
      %2750 = vmatpush1.bf16.msra.mxu0 %v2732
      %2751 = vmatprep.subr.bf16.mxu0 0
      %2752 = vmatpush1.bf16.msra.mxu0 %v2733
      %2753 = vmatprep.subr.bf16.mxu0 0
      %2754 = vmatpush1.bf16.msra.mxu0 %v2734
      %2755 = vmatprep.subr.bf16.mxu0 0
      %2756 = vmatpush1.bf16.msra.mxu0 %v2735
      %2757 = vmatprep.subr.bf16.mxu0 0
      %2758 = vmatpush1.bf16.msra.mxu0 %v2736
      %2759 = vmatprep.subr.bf16.mxu0 0
      %2760 = vmatpush1.bf16.msra.mxu0 %v2737
      %2761 = vmatprep.subr.bf16.mxu0 0
      %2762 = vmatpush1.bf16.msra.mxu0 %v2738
      %2763 = vmatprep.subr.bf16.mxu0 0
      %2764 = vmatpush1.bf16.msra.mxu0 0
      %2765 = vmatprep.subr.bf16.mxu0 0
      %2766 = vmatpush1.bf16.msra.mxu0 0
      %2767 = vmatprep.subr.bf16.mxu0 0
      %2768 = vmatpush1.bf16.msra.mxu0 0
      %2769 = vmatprep.subr.bf16.mxu0 0
      %2770 = vmatpush1.bf16.msra.mxu0 0
      %2771 = vmatprep.subr.bf16.mxu0 0
      %2772 = vmatpush1.bf16.msra.mxu0 0
      %2773 = vmatprep.subr.bf16.mxu0 0
      %2774 = vmatpush1.bf16.msra.mxu0 0
      %2775 = vmatprep.subr.bf16.mxu0 0
      %2776 = vmatpush1.bf16.msra.mxu0 0
      %2777 = vmatprep.subr.bf16.mxu0 0
      %2778 = vmatpush1.bf16.msra.mxu0 0
      %2779 = vmatprep.mubr.bf16.mxu0 0
      %2780 = vmatmul.mubr.bf16.gmra.mrb[0].mxu0 %v2670
      %v2781 = vpop.f32.mrb[0].mxu0
      %v2782 = vadd.f32 0.0, %v2781
      %v2783 = vpop.f32.mrb[0].mxu0
      %v2784 = vpop.f32.mrb[0].mxu0
      %v2785 = vadd.f32 0.0, %v2784
      %v2786 = vpop.f32.mrb[0].mxu0
      %2787 = vmatprep.mubr.bf16.mxu0 0
      %2788 = vmatmul.mubr.bf16.gmra.mrb[0].mxu0 %v2671
      %v2789 = vpop.f32.mrb[0].mxu0
      %v2790 = vadd.f32 0.0, %v2789
      %v2791 = vpop.f32.mrb[0].mxu0
      %v2792 = vpop.f32.mrb[0].mxu0
      %v2793 = vadd.f32 0.0, %v2792
      %v2794 = vpop.f32.mrb[0].mxu0
      %2795 = vmatprep.mubr.bf16.mxu0 0
      %2796 = vmatmul.mubr.bf16.gmra.mrb[0].mxu0 %v2672
      %v2797 = vpop.f32.mrb[0].mxu0
      %v2798 = vadd.f32 0.0, %v2797
      %v2799 = vpop.f32.mrb[0].mxu0
      %v2800 = vpop.f32.mrb[0].mxu0
      %v2801 = vadd.f32 0.0, %v2800
      %v2802 = vpop.f32.mrb[0].mxu0
      %2803 = vmatprep.mubr.bf16.mxu0 0
      %2804 = vmatmul.mubr.bf16.gmra.mrb[0].mxu0 %v2673
      %v2805 = vpop.f32.mrb[0].mxu0
      %v2806 = vadd.f32 0.0, %v2805
      %v2807 = vpop.f32.mrb[0].mxu0
      %v2808 = vpop.f32.mrb[0].mxu0
      %v2809 = vadd.f32 0.0, %v2808
      %v2810 = vpop.f32.mrb[0].mxu0
      %2811 = vmatprep.mubr.bf16.mxu0 0
      %2812 = vmatmul.mubr.bf16.gmra.mrb[0].mxu0 %v2674
      %v2813 = vpop.f32.mrb[0].mxu0
      %v2814 = vadd.f32 0.0, %v2813
      %v2815 = vpop.f32.mrb[0].mxu0
      %v2816 = vpop.f32.mrb[0].mxu0
      %v2817 = vadd.f32 0.0, %v2816
      %v2818 = vpop.f32.mrb[0].mxu0
      %2819 = vmatprep.mubr.bf16.mxu0 0
      %2820 = vmatmul.mubr.bf16.gmra.mrb[0].mxu0 %v2675
      %v2821 = vpop.f32.mrb[0].mxu0
      %v2822 = vadd.f32 0.0, %v2821
      %v2823 = vpop.f32.mrb[0].mxu0
      %v2824 = vpop.f32.mrb[0].mxu0
      %v2825 = vadd.f32 0.0, %v2824
      %v2826 = vpop.f32.mrb[0].mxu0
      %2827 = vmatprep.mubr.bf16.mxu0 0
      %2828 = vmatmul.mubr.bf16.gmra.mrb[0].mxu0 %v2676
      %v2829 = vpop.f32.mrb[0].mxu0
      %v2830 = vadd.f32 0.0, %v2829
      %v2831 = vpop.f32.mrb[0].mxu0
      %v2832 = vpop.f32.mrb[0].mxu0
      %v2833 = vadd.f32 0.0, %v2832
      %v2834 = vpop.f32.mrb[0].mxu0
      %2835 = vmatprep.mubr.bf16.mxu0 0
      %2836 = vmatmul.mubr.bf16.gmra.mrb[0].mxu0 %v2677
      %v2837 = vpop.f32.mrb[0].mxu0
      %v2838 = vadd.f32 0.0, %v2837
      %v2839 = vpop.f32.mrb[0].mxu0
      %v2840 = vpop.f32.mrb[0].mxu0
      %v2841 = vadd.f32 0.0, %v2840
      %v2842 = vpop.f32.mrb[0].mxu0
      %2843 = vmatprep.mubr.bf16.mxu0 0
      %2844 = vmatmul.mubr.bf16.gmra.mrb[0].mxu0 %v2678
      %v2845 = vpop.f32.mrb[0].mxu0
      %v2846 = vadd.f32 0.0, %v2845
      %v2847 = vpop.f32.mrb[0].mxu0
      %v2848 = vpop.f32.mrb[0].mxu0
      %v2849 = vadd.f32 0.0, %v2848
      %v2850 = vpop.f32.mrb[0].mxu0
      %2851 = vmatprep.mubr.bf16.mxu0 0
      %2852 = vmatmul.mubr.bf16.gmra.mrb[0].mxu0 %v2679
      %v2853 = vpop.f32.mrb[0].mxu0
      %v2854 = vadd.f32 0.0, %v2853
      %v2855 = vpop.f32.mrb[0].mxu0
      %v2856 = vpop.f32.mrb[0].mxu0
      %v2857 = vadd.f32 0.0, %v2856
      %v2858 = vpop.f32.mrb[0].mxu0
      %2859 = vmatprep.mubr.bf16.mxu0 0
      %2860 = vmatmul.mubr.bf16.gmra.mrb[0].mxu0 %v2680
      %v2861 = vpop.f32.mrb[0].mxu0
      %v2862 = vadd.f32 0.0, %v2861
      %v2863 = vpop.f32.mrb[0].mxu0
      %v2864 = vpop.f32.mrb[0].mxu0
      %v2865 = vadd.f32 0.0, %v2864
      %v2866 = vpop.f32.mrb[0].mxu0
      %2867 = vmatprep.mubr.bf16.mxu0 0
      %2868 = vmatmul.mubr.bf16.gmra.mrb[0].mxu0 %v2681
      %v2869 = vpop.f32.mrb[0].mxu0
      %v2870 = vadd.f32 0.0, %v2869
      %v2871 = vpop.f32.mrb[0].mxu0
      %v2872 = vpop.f32.mrb[0].mxu0
      %v2873 = vadd.f32 0.0, %v2872
      %v2874 = vpop.f32.mrb[0].mxu0
      %2875 = vdwg.mxu0
      %v2876 = vadd.f32 %v2646, %v2782
      %v2877 = vadd.f32 %v2647, %v2785
      %v2878 = vadd.f32 %v2648, %v2790
      %v2879 = vadd.f32 %v2649, %v2793
      %v2880 = vadd.f32 %v2650, %v2798
      %v2881 = vadd.f32 %v2651, %v2801
      %v2882 = vadd.f32 %v2652, %v2806
      %v2883 = vadd.f32 %v2653, %v2809
      %v2884 = vadd.f32 %v2654, %v2814
      %v2885 = vadd.f32 %v2655, %v2817
      %v2886 = vadd.f32 %v2656, %v2822
      %v2887 = vadd.f32 %v2657, %v2825
      %v2888 = vadd.f32 %v2658, %v2830
      %v2889 = vadd.f32 %v2659, %v2833
      %v2890 = vadd.f32 %v2660, %v2838
      %v2891 = vadd.f32 %v2661, %v2841
      %v2892 = vadd.f32 %v2662, %v2846
      %v2893 = vadd.f32 %v2663, %v2849
      %v2894 = vadd.f32 %v2664, %v2854
      %v2895 = vadd.f32 %v2665, %v2857
      %v2896 = vadd.f32 %v2666, %v2862
      %v2897 = vadd.f32 %v2667, %v2865
      %v2898 = vadd.f32 %v2668, %v2870
      %v2899 = vadd.f32 %v2669, %v2873
      %v2900 = vld [vmem:[%s901] sm:$0xff]
      %v2901 = vld [vmem:[%s901 + $0x8] sm:$0xff]
      %v2902 = vld [vmem:[%s901 + $0x10] sm:$0xff]
      %v2903 = vld [vmem:[%s901 + $0x18] sm:$0xff]
      %v2904 = vld [vmem:[%s901 + $0x20] sm:$0xff]
      %v2905 = vld [vmem:[%s901 + $0x28] sm:$0xff]
      %v2906 = vld [vmem:[%s901 + $0x30] sm:$0xff]
      %v2907 = vld [vmem:[%s901 + $0x38] sm:$0xff]
      %v2908 = vld [vmem:[%s901 + $0x40] sm:$0xff]
      %v2909 = vld [vmem:[%s901 + $0x48] sm:$0xff]
      %v2910 = vld [vmem:[%s901 + $0x50] sm:$0xff]
      %v2911 = vld [vmem:[%s901 + $0x58] sm:$0xff]
      %s2912 = scalar_lea.vmem %s2, 512
      %v2913 = vld [vmem:[%s2912] sm:$0xf]
      %v2914 = vld [vmem:[%s2912 + $0x4] sm:$0xf]
      %v2915 = vld [vmem:[%s2912 + $0x8] sm:$0xf]
      %v2916 = vld [vmem:[%s2912 + $0xc] sm:$0xf]
      %v2917 = vld [vmem:[%s2912 + $0x10] sm:$0xf]
      %v2918 = vld [vmem:[%s2912 + $0x14] sm:$0xf]
      %v2919 = vld [vmem:[%s2912 + $0x18] sm:$0xf]
      %v2920 = vld [vmem:[%s2912 + $0x1c] sm:$0xf]
      %v2921 = vld [vmem:[%s2912 + $0x20] sm:$0xf]
      %v2922 = vld [vmem:[%s2912 + $0x24] sm:$0xf]
      %v2923 = vld [vmem:[%s2912 + $0x28] sm:$0xf]
      %v2924 = vld [vmem:[%s2912 + $0x2c] sm:$0xf]
      %v2925 = vld [vmem:[%s2912 + $0x30] sm:$0xf]
      %v2926 = vld [vmem:[%s2912 + $0x34] sm:$0xf]
      %v2927 = vld [vmem:[%s2912 + $0x38] sm:$0xf]
      %v2928 = vld [vmem:[%s2912 + $0x3c] sm:$0xf]
      %v2945 = vunpack.c.l.b16 %v2913
      %v2946 = vunpack.c.l.b16 %v2914
      %v2947 = vunpack.c.l.b16 %v2915
      %v2948 = vunpack.c.l.b16 %v2916
      %v2949 = vunpack.c.l.b16 %v2917
      %v2950 = vunpack.c.l.b16 %v2918
      %v2951 = vunpack.c.l.b16 %v2919
      %v2952 = vunpack.c.l.b16 %v2920
      %v2953 = vunpack.c.l.b16 %v2921
      %v2954 = vunpack.c.l.b16 %v2922
      %v2955 = vunpack.c.l.b16 %v2923
      %v2956 = vunpack.c.l.b16 %v2924
      %v2957 = vunpack.c.l.b16 %v2925
      %v2958 = vunpack.c.l.b16 %v2926
      %v2959 = vunpack.c.l.b16 %v2927
      %v2960 = vunpack.c.l.b16 %v2928
      %v2961 = vpack.c.b16 %v2946, %v2945
      %v2962 = vpack.c.b16 %v2948, %v2947
      %v2963 = vpack.c.b16 %v2950, %v2949
      %v2964 = vpack.c.b16 %v2952, %v2951
      %v2965 = vpack.c.b16 %v2954, %v2953
      %v2966 = vpack.c.b16 %v2956, %v2955
      %v2967 = vpack.c.b16 %v2958, %v2957
      %v2968 = vpack.c.b16 %v2960, %v2959
      %2977 = vmatprep.subr.bf16.mxu0 0
      %2978 = vmatpush1.bf16.msra.mxu0 %v2961
      %2979 = vmatprep.subr.bf16.mxu0 0
      %2980 = vmatpush1.bf16.msra.mxu0 %v2962
      %2981 = vmatprep.subr.bf16.mxu0 0
      %2982 = vmatpush1.bf16.msra.mxu0 %v2963
      %2983 = vmatprep.subr.bf16.mxu0 0
      %2984 = vmatpush1.bf16.msra.mxu0 %v2964
      %2985 = vmatprep.subr.bf16.mxu0 0
      %2986 = vmatpush1.bf16.msra.mxu0 %v2965
      %2987 = vmatprep.subr.bf16.mxu0 0
      %2988 = vmatpush1.bf16.msra.mxu0 %v2966
      %2989 = vmatprep.subr.bf16.mxu0 0
      %2990 = vmatpush1.bf16.msra.mxu0 %v2967
      %2991 = vmatprep.subr.bf16.mxu0 0
      %2992 = vmatpush1.bf16.msra.mxu0 %v2968
      %2993 = vmatprep.subr.bf16.mxu0 0
      %2994 = vmatpush1.bf16.msra.mxu0 0
      %2995 = vmatprep.subr.bf16.mxu0 0
      %2996 = vmatpush1.bf16.msra.mxu0 0
      %2997 = vmatprep.subr.bf16.mxu0 0
      %2998 = vmatpush1.bf16.msra.mxu0 0
      %2999 = vmatprep.subr.bf16.mxu0 0
      %3000 = vmatpush1.bf16.msra.mxu0 0
      %3001 = vmatprep.subr.bf16.mxu0 0
      %3002 = vmatpush1.bf16.msra.mxu0 0
      %3003 = vmatprep.subr.bf16.mxu0 0
      %3004 = vmatpush1.bf16.msra.mxu0 0
      %3005 = vmatprep.subr.bf16.mxu0 0
      %3006 = vmatpush1.bf16.msra.mxu0 0
      %3007 = vmatprep.subr.bf16.mxu0 0
      %3008 = vmatpush1.bf16.msra.mxu0 0
      %3009 = vmatprep.mubr.bf16.mxu0 0
      %3010 = vmatmul.mubr.bf16.gmra.mrb[0].mxu0 %v2900
      %v3011 = vpop.f32.mrb[0].mxu0
      %v3012 = vadd.f32 0.0, %v3011
      %v3013 = vpop.f32.mrb[0].mxu0
      %v3014 = vpop.f32.mrb[0].mxu0
      %v3015 = vadd.f32 0.0, %v3014
      %v3016 = vpop.f32.mrb[0].mxu0
      %3017 = vmatprep.mubr.bf16.mxu0 0
      %3018 = vmatmul.mubr.bf16.gmra.mrb[0].mxu0 %v2901
      %v3019 = vpop.f32.mrb[0].mxu0
      %v3020 = vadd.f32 0.0, %v3019
      %v3021 = vpop.f32.mrb[0].mxu0
      %v3022 = vpop.f32.mrb[0].mxu0
      %v3023 = vadd.f32 0.0, %v3022
      %v3024 = vpop.f32.mrb[0].mxu0
      %3025 = vmatprep.mubr.bf16.mxu0 0
      %3026 = vmatmul.mubr.bf16.gmra.mrb[0].mxu0 %v2902
      %v3027 = vpop.f32.mrb[0].mxu0
      %v3028 = vadd.f32 0.0, %v3027
      %v3029 = vpop.f32.mrb[0].mxu0
      %v3030 = vpop.f32.mrb[0].mxu0
      %v3031 = vadd.f32 0.0, %v3030
      %v3032 = vpop.f32.mrb[0].mxu0
      %3033 = vmatprep.mubr.bf16.mxu0 0
      %3034 = vmatmul.mubr.bf16.gmra.mrb[0].mxu0 %v2903
      %v3035 = vpop.f32.mrb[0].mxu0
      %v3036 = vadd.f32 0.0, %v3035
      %v3037 = vpop.f32.mrb[0].mxu0
      %v3038 = vpop.f32.mrb[0].mxu0
      %v3039 = vadd.f32 0.0, %v3038
      %v3040 = vpop.f32.mrb[0].mxu0
      %3041 = vmatprep.mubr.bf16.mxu0 0
      %3042 = vmatmul.mubr.bf16.gmra.mrb[0].mxu0 %v2904
      %v3043 = vpop.f32.mrb[0].mxu0
      %v3044 = vadd.f32 0.0, %v3043
      %v3045 = vpop.f32.mrb[0].mxu0
      %v3046 = vpop.f32.mrb[0].mxu0
      %v3047 = vadd.f32 0.0, %v3046
      %v3048 = vpop.f32.mrb[0].mxu0
      %3049 = vmatprep.mubr.bf16.mxu0 0
      %3050 = vmatmul.mubr.bf16.gmra.mrb[0].mxu0 %v2905
      %v3051 = vpop.f32.mrb[0].mxu0
      %v3052 = vadd.f32 0.0, %v3051
      %v3053 = vpop.f32.mrb[0].mxu0
      %v3054 = vpop.f32.mrb[0].mxu0
      %v3055 = vadd.f32 0.0, %v3054
      %v3056 = vpop.f32.mrb[0].mxu0
      %3057 = vmatprep.mubr.bf16.mxu0 0
      %3058 = vmatmul.mubr.bf16.gmra.mrb[0].mxu0 %v2906
      %v3059 = vpop.f32.mrb[0].mxu0
      %v3060 = vadd.f32 0.0, %v3059
      %v3061 = vpop.f32.mrb[0].mxu0
      %v3062 = vpop.f32.mrb[0].mxu0
      %v3063 = vadd.f32 0.0, %v3062
      %v3064 = vpop.f32.mrb[0].mxu0
      %3065 = vmatprep.mubr.bf16.mxu0 0
      %3066 = vmatmul.mubr.bf16.gmra.mrb[0].mxu0 %v2907
      %v3067 = vpop.f32.mrb[0].mxu0
      %v3068 = vadd.f32 0.0, %v3067
      %v3069 = vpop.f32.mrb[0].mxu0
      %v3070 = vpop.f32.mrb[0].mxu0
      %v3071 = vadd.f32 0.0, %v3070
      %v3072 = vpop.f32.mrb[0].mxu0
      %3073 = vmatprep.mubr.bf16.mxu0 0
      %3074 = vmatmul.mubr.bf16.gmra.mrb[0].mxu0 %v2908
      %v3075 = vpop.f32.mrb[0].mxu0
      %v3076 = vadd.f32 0.0, %v3075
      %v3077 = vpop.f32.mrb[0].mxu0
      %v3078 = vpop.f32.mrb[0].mxu0
      %v3079 = vadd.f32 0.0, %v3078
      %v3080 = vpop.f32.mrb[0].mxu0
      %3081 = vmatprep.mubr.bf16.mxu0 0
      %3082 = vmatmul.mubr.bf16.gmra.mrb[0].mxu0 %v2909
      %v3083 = vpop.f32.mrb[0].mxu0
      %v3084 = vadd.f32 0.0, %v3083
      %v3085 = vpop.f32.mrb[0].mxu0
      %v3086 = vpop.f32.mrb[0].mxu0
      %v3087 = vadd.f32 0.0, %v3086
      %v3088 = vpop.f32.mrb[0].mxu0
      %3089 = vmatprep.mubr.bf16.mxu0 0
      %3090 = vmatmul.mubr.bf16.gmra.mrb[0].mxu0 %v2910
      %v3091 = vpop.f32.mrb[0].mxu0
      %v3092 = vadd.f32 0.0, %v3091
      %v3093 = vpop.f32.mrb[0].mxu0
      %v3094 = vpop.f32.mrb[0].mxu0
      %v3095 = vadd.f32 0.0, %v3094
      %v3096 = vpop.f32.mrb[0].mxu0
      %3097 = vmatprep.mubr.bf16.mxu0 0
      %3098 = vmatmul.mubr.bf16.gmra.mrb[0].mxu0 %v2911
      %v3099 = vpop.f32.mrb[0].mxu0
      %v3100 = vadd.f32 0.0, %v3099
      %v3101 = vpop.f32.mrb[0].mxu0
      %v3102 = vpop.f32.mrb[0].mxu0
      %v3103 = vadd.f32 0.0, %v3102
      %v3104 = vpop.f32.mrb[0].mxu0
      %3105 = vdwg.mxu0
      %v3106 = vadd.f32 %v2876, %v3012
      %v3107 = vadd.f32 %v2877, %v3015
      %v3108 = vadd.f32 %v2878, %v3020
      %v3109 = vadd.f32 %v2879, %v3023
      %v3110 = vadd.f32 %v2880, %v3028
      %v3111 = vadd.f32 %v2881, %v3031
      %v3112 = vadd.f32 %v2882, %v3036
      %v3113 = vadd.f32 %v2883, %v3039
      %v3114 = vadd.f32 %v2884, %v3044
      %v3115 = vadd.f32 %v2885, %v3047
      %v3116 = vadd.f32 %v2886, %v3052
      %v3117 = vadd.f32 %v2887, %v3055
      %v3118 = vadd.f32 %v2888, %v3060
      %v3119 = vadd.f32 %v2889, %v3063
      %v3120 = vadd.f32 %v2890, %v3068
      %v3121 = vadd.f32 %v2891, %v3071
      %v3122 = vadd.f32 %v2892, %v3076
      %v3123 = vadd.f32 %v2893, %v3079
      %v3124 = vadd.f32 %v2894, %v3084
      %v3125 = vadd.f32 %v2895, %v3087
      %v3126 = vadd.f32 %v2896, %v3092
      %v3127 = vadd.f32 %v2897, %v3095
      %v3128 = vadd.f32 %v2898, %v3100
      %v3129 = vadd.f32 %v2899, %v3103
      %v3130 = vld [vmem:[%s3] sm:$0x1]
      %v3132 = vlaneseq
      %v3133 = vshrl.u32 %v3132, 7
      %v3134 = vsub.s32 0, %v3133
      %v3135 = vrot.slane %v3130, %v3134
      %v3137 = vadd.f32 %v3106, %v3135
      %v3138 = vadd.f32 %v3107, %v3135
      %v3139 = vadd.f32 %v3108, %v3135
      %v3140 = vadd.f32 %v3109, %v3135
      %v3141 = vadd.f32 %v3110, %v3135
      %v3142 = vadd.f32 %v3111, %v3135
      %v3143 = vadd.f32 %v3112, %v3135
      %v3144 = vadd.f32 %v3113, %v3135
      %v3145 = vadd.f32 %v3114, %v3135
      %v3146 = vadd.f32 %v3115, %v3135
      %v3147 = vadd.f32 %v3116, %v3135
      %v3148 = vadd.f32 %v3117, %v3135
      %v3149 = vadd.f32 %v3118, %v3135
      %v3150 = vadd.f32 %v3119, %v3135
      %v3151 = vadd.f32 %v3120, %v3135
      %v3152 = vadd.f32 %v3121, %v3135
      %v3153 = vadd.f32 %v3122, %v3135
      %v3154 = vadd.f32 %v3123, %v3135
      %v3155 = vadd.f32 %v3124, %v3135
      %v3156 = vadd.f32 %v3125, %v3135
      %v3157 = vadd.f32 %v3126, %v3135
      %v3158 = vadd.f32 %v3127, %v3135
      %v3159 = vadd.f32 %v3128, %v3135
      %v3160 = vadd.f32 %v3129, %v3135
      %v3161 = vmax.f32 %v3137, 0.0
      %v3162 = vmax.f32 %v3138, 0.0
      %v3163 = vmax.f32 %v3139, 0.0
      %v3164 = vmax.f32 %v3140, 0.0
      %v3165 = vmax.f32 %v3141, 0.0
      %v3166 = vmax.f32 %v3142, 0.0
      %v3167 = vmax.f32 %v3143, 0.0
      %v3168 = vmax.f32 %v3144, 0.0
      %v3169 = vmax.f32 %v3145, 0.0
      %v3170 = vmax.f32 %v3146, 0.0
      %v3171 = vmax.f32 %v3147, 0.0
      %v3172 = vmax.f32 %v3148, 0.0
      %v3173 = vmax.f32 %v3149, 0.0
      %v3174 = vmax.f32 %v3150, 0.0
      %v3175 = vmax.f32 %v3151, 0.0
      %v3176 = vmax.f32 %v3152, 0.0
      %v3177 = vmax.f32 %v3153, 0.0
      %v3178 = vmax.f32 %v3154, 0.0
      %v3179 = vmax.f32 %v3155, 0.0
      %v3180 = vmax.f32 %v3156, 0.0
      %v3181 = vmax.f32 %v3157, 0.0
      %v3182 = vmax.f32 %v3158, 0.0
      %v3183 = vmax.f32 %v3159, 0.0
      %v3184 = vmax.f32 %v3160, 0.0
      %v3185 = vlaneseq
      %v3186 = vshrl.u32 %v3185, 7
      %v3187 = vadd.s32 %v3186, 8
      %v3188 = vadd.s32 %v3186, 16
      %v3189 = vadd.s32 %v3186, 24
      %s3190 = smul.u32 %s22, 4
      %v3191 = vstv %s3190
      %v3192 = vadd.s32 %v3191, 2
      %v3193 = vadd.s32 %v3191, 3
      %v3194 = vadd.s32 %v3191, 4
      %v3195 = vadd.s32 %v3191, 5
      %v3196 = vsub.s32 %v3191, 1
      %v3197 = vsub.s32 %v3192, 1
      %v3198 = vsub.s32 %v3193, 1
      %v3199 = vsub.s32 %v3194, 1
      %v3200 = vsub.s32 %v3195, 1
      %vm3201 = vcmp.ge.s32.totalorder %v3196, 0
      %vm3202 = vcmp.ge.s32.totalorder %v3191, 0
      %vm3203 = vcmp.ge.s32.totalorder %v3197, 0
      %vm3204 = vcmp.ge.s32.totalorder %v3198, 0
      %vm3205 = vcmp.ge.s32.totalorder %v3199, 0
      %vm3206 = vcmp.ge.s32.totalorder %v3200, 0
      %vm3207 = vcmp.le.s32.totalorder %v3196, 15
      %vm3208 = vcmp.le.s32.totalorder %v3191, 15
      %vm3209 = vcmp.le.s32.totalorder %v3197, 15
      %vm3210 = vcmp.le.s32.totalorder %v3198, 15
      %vm3211 = vcmp.le.s32.totalorder %v3199, 15
      %vm3212 = vcmp.le.s32.totalorder %v3200, 15
      %vm3213 = vmand %vm3201, %vm3207
      %vm3214 = vmand %vm3202, %vm3208
      %vm3215 = vmand %vm3203, %vm3209
      %vm3216 = vmand %vm3204, %vm3210
      %vm3217 = vmand %vm3205, %vm3211
      %vm3218 = vmand %vm3206, %vm3212
      %vm3219 = vcmp.ge.s32.totalorder %v3186, 1
      %vm3220 = vcmp.ge.s32.totalorder %v3187, 1
      %vm3221 = vcmp.ge.s32.totalorder %v3188, 1
      %vm3222 = vcmp.ge.s32.totalorder %v3189, 1
      %vm3223 = vcmp.le.s32.totalorder %v3186, 16
      %vm3224 = vcmp.le.s32.totalorder %v3187, 16
      %vm3225 = vcmp.le.s32.totalorder %v3188, 16
      %vm3226 = vcmp.le.s32.totalorder %v3189, 16
      %vm3227 = vmand %vm3219, %vm3223
      %vm3228 = vmand %vm3220, %vm3224
      %vm3229 = vmand %vm3221, %vm3225
      %vm3230 = vmand %vm3222, %vm3226
      %vm3231 = vmand %vm3213, %vm3227
      %vm3232 = vmand %vm3213, %vm3228
      %vm3233 = vmand %vm3213, %vm3229
      %vm3234 = vmand %vm3213, %vm3230
      %vm3235 = vmand %vm3214, %vm3227
      %vm3236 = vmand %vm3214, %vm3228
      %vm3237 = vmand %vm3214, %vm3229
      %vm3238 = vmand %vm3214, %vm3230
      %vm3239 = vmand %vm3215, %vm3227
      %vm3240 = vmand %vm3215, %vm3228
      %vm3241 = vmand %vm3215, %vm3229
      %vm3242 = vmand %vm3215, %vm3230
      %vm3243 = vmand %vm3216, %vm3227
      %vm3244 = vmand %vm3216, %vm3228
      %vm3245 = vmand %vm3216, %vm3229
      %vm3246 = vmand %vm3216, %vm3230
      %vm3247 = vmand %vm3217, %vm3227
      %vm3248 = vmand %vm3217, %vm3228
      %vm3249 = vmand %vm3217, %vm3229
      %vm3250 = vmand %vm3217, %vm3230
      %vm3251 = vmand %vm3218, %vm3227
      %vm3252 = vmand %vm3218, %vm3228
      %vm3253 = vmand %vm3218, %vm3229
      %vm3254 = vmand %vm3218, %vm3230
      %v3255 = vsel %vm3231, 1, 0
      %v3256 = vsel %vm3232, 1, 0
      %v3257 = vsel %vm3233, 1, 0
      %v3258 = vsel %vm3234, 1, 0
      %v3259 = vsel %vm3235, 1, 0
      %v3260 = vsel %vm3236, 1, 0
      %v3261 = vsel %vm3237, 1, 0
      %v3262 = vsel %vm3238, 1, 0
      %v3263 = vsel %vm3239, 1, 0
      %v3264 = vsel %vm3240, 1, 0
      %v3265 = vsel %vm3241, 1, 0
      %v3266 = vsel %vm3242, 1, 0
      %v3267 = vsel %vm3243, 1, 0
      %v3268 = vsel %vm3244, 1, 0
      %v3269 = vsel %vm3245, 1, 0
      %v3270 = vsel %vm3246, 1, 0
      %v3271 = vsel %vm3247, 1, 0
      %v3272 = vsel %vm3248, 1, 0
      %v3273 = vsel %vm3249, 1, 0
      %v3274 = vsel %vm3250, 1, 0
      %v3275 = vsel %vm3251, 1, 0
      %v3276 = vsel %vm3252, 1, 0
      %v3277 = vsel %vm3253, 1, 0
      %v3278 = vsel %vm3254, 1, 0
      %vm3279 = vcmp.eq.s32.totalorder %v3255, 1
      %vm3280 = vcmp.eq.s32.totalorder %v3256, 1
      %vm3281 = vcmp.eq.s32.totalorder %v3257, 1
      %vm3282 = vcmp.eq.s32.totalorder %v3258, 1
      %vm3283 = vcmp.eq.s32.totalorder %v3259, 1
      %vm3284 = vcmp.eq.s32.totalorder %v3260, 1
      %vm3285 = vcmp.eq.s32.totalorder %v3261, 1
      %vm3286 = vcmp.eq.s32.totalorder %v3262, 1
      %vm3287 = vcmp.eq.s32.totalorder %v3263, 1
      %vm3288 = vcmp.eq.s32.totalorder %v3264, 1
      %vm3289 = vcmp.eq.s32.totalorder %v3265, 1
      %vm3290 = vcmp.eq.s32.totalorder %v3266, 1
      %vm3291 = vcmp.eq.s32.totalorder %v3267, 1
      %vm3292 = vcmp.eq.s32.totalorder %v3268, 1
      %vm3293 = vcmp.eq.s32.totalorder %v3269, 1
      %vm3294 = vcmp.eq.s32.totalorder %v3270, 1
      %vm3295 = vcmp.eq.s32.totalorder %v3271, 1
      %vm3296 = vcmp.eq.s32.totalorder %v3272, 1
      %vm3297 = vcmp.eq.s32.totalorder %v3273, 1
      %vm3298 = vcmp.eq.s32.totalorder %v3274, 1
      %vm3299 = vcmp.eq.s32.totalorder %v3275, 1
      %vm3300 = vcmp.eq.s32.totalorder %v3276, 1
      %vm3301 = vcmp.eq.s32.totalorder %v3277, 1
      %vm3302 = vcmp.eq.s32.totalorder %v3278, 1
      %v3303 = vsel %vm3279, %v3161, 0.0
      %v3304 = vsel %vm3280, %v3162, 0.0
      %v3305 = vsel %vm3281, %v3163, 0.0
      %v3306 = vsel %vm3282, %v3164, 0.0
      %v3307 = vsel %vm3283, %v3165, 0.0
      %v3308 = vsel %vm3284, %v3166, 0.0
      %v3309 = vsel %vm3285, %v3167, 0.0
      %v3310 = vsel %vm3286, %v3168, 0.0
      %v3311 = vsel %vm3287, %v3169, 0.0
      %v3312 = vsel %vm3288, %v3170, 0.0
      %v3313 = vsel %vm3289, %v3171, 0.0
      %v3314 = vsel %vm3290, %v3172, 0.0
      %v3315 = vsel %vm3291, %v3173, 0.0
      %v3316 = vsel %vm3292, %v3174, 0.0
      %v3317 = vsel %vm3293, %v3175, 0.0
      %v3318 = vsel %vm3294, %v3176, 0.0
      %v3319 = vsel %vm3295, %v3177, 0.0
      %v3320 = vsel %vm3296, %v3178, 0.0
      %v3321 = vsel %vm3297, %v3179, 0.0
      %v3322 = vsel %vm3298, %v3180, 0.0
      %v3323 = vsel %vm3299, %v3181, 0.0
      %v3324 = vsel %vm3300, %v3182, 0.0
      %v3325 = vsel %vm3301, %v3183, 0.0
      %v3326 = vsel %vm3302, %v3184, 0.0
      %v3327 = vpack.c.bf16 %v3304, %v3303
      %v3328 = vpack.c.bf16 %v3306, %v3305
      %v3329 = vpack.c.bf16 %v3308, %v3307
      %v3330 = vpack.c.bf16 %v3310, %v3309
      %v3331 = vpack.c.bf16 %v3312, %v3311
      %v3332 = vpack.c.bf16 %v3314, %v3313
      %v3333 = vpack.c.bf16 %v3316, %v3315
      %v3334 = vpack.c.bf16 %v3318, %v3317
      %v3335 = vpack.c.bf16 %v3320, %v3319
      %v3336 = vpack.c.bf16 %v3322, %v3321
      %v3337 = vpack.c.bf16 %v3324, %v3323
      %v3338 = vpack.c.bf16 %v3326, %v3325
      %3339 = vst [vmem:[#allocation3] sm:$0xff] %v3327
      %3340 = vst [vmem:[#allocation3 + $0x8] sm:$0xff] %v3328
      %3341 = vst [vmem:[#allocation3 + $0x10] sm:$0xff] %v3329
      %3342 = vst [vmem:[#allocation3 + $0x18] sm:$0xff] %v3330
      %3343 = vst [vmem:[#allocation3 + $0x20] sm:$0xff] %v3331
      %3344 = vst [vmem:[#allocation3 + $0x28] sm:$0xff] %v3332
      %3345 = vst [vmem:[#allocation3 + $0x30] sm:$0xff] %v3333
      %3346 = vst [vmem:[#allocation3 + $0x38] sm:$0xff] %v3334
      %3347 = vst [vmem:[#allocation3 + $0x40] sm:$0xff] %v3335
      %3348 = vst [vmem:[#allocation3 + $0x48] sm:$0xff] %v3336
      %3349 = vst [vmem:[#allocation3 + $0x50] sm:$0xff] %v3337
      %3350 = vst [vmem:[#allocation3 + $0x58] sm:$0xff] %v3338
      %v3351 = vld [vmem:[#allocation3] sm:$0xff]
      %v3352 = vld [vmem:[#allocation3 + $0x8] sm:$0xff]
      %v3353 = vld [vmem:[#allocation3 + $0x10] sm:$0xff]
      %v3354 = vld [vmem:[#allocation3 + $0x18] sm:$0xff]
      %v3355 = vld [vmem:[#allocation3 + $0x20] sm:$0xff]
      %v3356 = vld [vmem:[#allocation3 + $0x28] sm:$0xff]
      %v3357 = vld [vmem:[#allocation3 + $0x30] sm:$0xff]
      %v3358 = vld [vmem:[#allocation3 + $0x38] sm:$0xff]
      %s3359 = scalar_lea.vmem %s4, 64
      %v3360 = vld [vmem:[%s3359] sm:$0xf]
      %v3361 = vld [vmem:[%s3359 + $0x4] sm:$0xf]
      %v3362 = vld [vmem:[%s3359 + $0x8] sm:$0xf]
      %v3363 = vld [vmem:[%s3359 + $0xc] sm:$0xf]
      %v3364 = vld [vmem:[%s3359 + $0x10] sm:$0xf]
      %v3365 = vld [vmem:[%s3359 + $0x14] sm:$0xf]
      %v3366 = vld [vmem:[%s3359 + $0x18] sm:$0xf]
      %v3367 = vld [vmem:[%s3359 + $0x1c] sm:$0xf]
      %v3368 = vld [vmem:[%s3359 + $0x20] sm:$0xf]
      %v3369 = vld [vmem:[%s3359 + $0x24] sm:$0xf]
      %v3370 = vld [vmem:[%s3359 + $0x28] sm:$0xf]
      %v3371 = vld [vmem:[%s3359 + $0x2c] sm:$0xf]
      %v3372 = vld [vmem:[%s3359 + $0x30] sm:$0xf]
      %v3373 = vld [vmem:[%s3359 + $0x34] sm:$0xf]
      %v3374 = vld [vmem:[%s3359 + $0x38] sm:$0xf]
      %v3375 = vld [vmem:[%s3359 + $0x3c] sm:$0xf]
      %s3376 = scalar_lea.vmem [#allocation3], 16
      %v3377 = vld [vmem:[%s3376] sm:$0xff]
      %v3378 = vld [vmem:[%s3376 + $0x8] sm:$0xff]
      %v3379 = vld [vmem:[%s3376 + $0x10] sm:$0xff]
      %v3380 = vld [vmem:[%s3376 + $0x18] sm:$0xff]
      %v3381 = vld [vmem:[%s3376 + $0x20] sm:$0xff]
      %v3382 = vld [vmem:[%s3376 + $0x28] sm:$0xff]
      %v3383 = vld [vmem:[%s3376 + $0x30] sm:$0xff]
      %v3384 = vld [vmem:[%s3376 + $0x38] sm:$0xff]
      %s3385 = scalar_lea.vmem %s4, 256
      %v3386 = vld [vmem:[%s3385] sm:$0xf]
      %v3387 = vld [vmem:[%s3385 + $0x4] sm:$0xf]
      %v3388 = vld [vmem:[%s3385 + $0x8] sm:$0xf]
      %v3389 = vld [vmem:[%s3385 + $0xc] sm:$0xf]
      %v3390 = vld [vmem:[%s3385 + $0x10] sm:$0xf]
      %v3391 = vld [vmem:[%s3385 + $0x14] sm:$0xf]
      %v3392 = vld [vmem:[%s3385 + $0x18] sm:$0xf]
      %v3393 = vld [vmem:[%s3385 + $0x1c] sm:$0xf]
      %v3394 = vld [vmem:[%s3385 + $0x20] sm:$0xf]
      %v3395 = vld [vmem:[%s3385 + $0x24] sm:$0xf]
      %v3396 = vld [vmem:[%s3385 + $0x28] sm:$0xf]
      %v3397 = vld [vmem:[%s3385 + $0x2c] sm:$0xf]
      %v3398 = vld [vmem:[%s3385 + $0x30] sm:$0xf]
      %v3399 = vld [vmem:[%s3385 + $0x34] sm:$0xf]
      %v3400 = vld [vmem:[%s3385 + $0x38] sm:$0xf]
      %v3401 = vld [vmem:[%s3385 + $0x3c] sm:$0xf]
      %v3418 = vunpack.c.l.b16 %v3386
      %v3419 = vunpack.c.l.b16 %v3387
      %v3420 = vunpack.c.l.b16 %v3388
      %v3421 = vunpack.c.l.b16 %v3389
      %v3422 = vunpack.c.l.b16 %v3390
      %v3423 = vunpack.c.l.b16 %v3391
      %v3424 = vunpack.c.l.b16 %v3392
      %v3425 = vunpack.c.l.b16 %v3393
      %v3426 = vunpack.c.l.b16 %v3394
      %v3427 = vunpack.c.l.b16 %v3395
      %v3428 = vunpack.c.l.b16 %v3396
      %v3429 = vunpack.c.l.b16 %v3397
      %v3430 = vunpack.c.l.b16 %v3398
      %v3431 = vunpack.c.l.b16 %v3399
      %v3432 = vunpack.c.l.b16 %v3400
      %v3433 = vunpack.c.l.b16 %v3401
      %v3434 = vpack.c.b16 %v3419, %v3418
      %v3435 = vpack.c.b16 %v3421, %v3420
      %v3436 = vpack.c.b16 %v3423, %v3422
      %v3437 = vpack.c.b16 %v3425, %v3424
      %v3438 = vpack.c.b16 %v3427, %v3426
      %v3439 = vpack.c.b16 %v3429, %v3428
      %v3440 = vpack.c.b16 %v3431, %v3430
      %v3441 = vpack.c.b16 %v3433, %v3432
      %3450 = vmatprep.subr.bf16.mxu0 0
      %3451 = vmatpush1.bf16.msra.mxu0 %v3434
      %3452 = vmatprep.subr.bf16.mxu0 0
      %3453 = vmatpush1.bf16.msra.mxu0 %v3435
      %3454 = vmatprep.subr.bf16.mxu0 0
      %3455 = vmatpush1.bf16.msra.mxu0 %v3436
      %3456 = vmatprep.subr.bf16.mxu0 0
      %3457 = vmatpush1.bf16.msra.mxu0 %v3437
      %3458 = vmatprep.subr.bf16.mxu0 0
      %3459 = vmatpush1.bf16.msra.mxu0 %v3438
      %3460 = vmatprep.subr.bf16.mxu0 0
      %3461 = vmatpush1.bf16.msra.mxu0 %v3439
      %3462 = vmatprep.subr.bf16.mxu0 0
      %3463 = vmatpush1.bf16.msra.mxu0 %v3440
      %3464 = vmatprep.subr.bf16.mxu0 0
      %3465 = vmatpush1.bf16.msra.mxu0 %v3441
      %3466 = vmatprep.subr.bf16.mxu0 0
      %3467 = vmatpush1.bf16.msra.mxu0 0
      %3468 = vmatprep.subr.bf16.mxu0 0
      %3469 = vmatpush1.bf16.msra.mxu0 0
      %3470 = vmatprep.subr.bf16.mxu0 0
      %3471 = vmatpush1.bf16.msra.mxu0 0
      %3472 = vmatprep.subr.bf16.mxu0 0
      %3473 = vmatpush1.bf16.msra.mxu0 0
      %3474 = vmatprep.subr.bf16.mxu0 0
      %3475 = vmatpush1.bf16.msra.mxu0 0
      %3476 = vmatprep.subr.bf16.mxu0 0
      %3477 = vmatpush1.bf16.msra.mxu0 0
      %3478 = vmatprep.subr.bf16.mxu0 0
      %3479 = vmatpush1.bf16.msra.mxu0 0
      %3480 = vmatprep.subr.bf16.mxu0 0
      %3481 = vmatpush1.bf16.msra.mxu0 0
      %3482 = vmatprep.mubr.bf16.mxu0 0
      %3483 = vmatmul.mubr.bf16.gmra.mrb[0].mxu0 %v3377
      %v3484 = vpop.f32.mrb[0].mxu0
      %v3485 = vadd.f32 0.0, %v3484
      %v3486 = vpop.f32.mrb[0].mxu0
      %v3487 = vpop.f32.mrb[0].mxu0
      %v3488 = vadd.f32 0.0, %v3487
      %v3489 = vpop.f32.mrb[0].mxu0
      %3490 = vmatprep.mubr.bf16.mxu0 0
      %3491 = vmatmul.mubr.bf16.gmra.mrb[0].mxu0 %v3378
      %v3492 = vpop.f32.mrb[0].mxu0
      %v3493 = vadd.f32 0.0, %v3492
      %v3494 = vpop.f32.mrb[0].mxu0
      %v3495 = vpop.f32.mrb[0].mxu0
      %v3496 = vadd.f32 0.0, %v3495
      %v3497 = vpop.f32.mrb[0].mxu0
      %3498 = vmatprep.mubr.bf16.mxu0 0
      %3499 = vmatmul.mubr.bf16.gmra.mrb[0].mxu0 %v3379
      %v3500 = vpop.f32.mrb[0].mxu0
      %v3501 = vadd.f32 0.0, %v3500
      %v3502 = vpop.f32.mrb[0].mxu0
      %v3503 = vpop.f32.mrb[0].mxu0
      %v3504 = vadd.f32 0.0, %v3503
      %v3505 = vpop.f32.mrb[0].mxu0
      %3506 = vmatprep.mubr.bf16.mxu0 0
      %3507 = vmatmul.mubr.bf16.gmra.mrb[0].mxu0 %v3380
      %v3508 = vpop.f32.mrb[0].mxu0
      %v3509 = vadd.f32 0.0, %v3508
      %v3510 = vpop.f32.mrb[0].mxu0
      %v3511 = vpop.f32.mrb[0].mxu0
      %v3512 = vadd.f32 0.0, %v3511
      %v3513 = vpop.f32.mrb[0].mxu0
      %3514 = vmatprep.mubr.bf16.mxu0 0
      %3515 = vmatmul.mubr.bf16.gmra.mrb[0].mxu0 %v3381
      %v3516 = vpop.f32.mrb[0].mxu0
      %v3517 = vadd.f32 0.0, %v3516
      %v3518 = vpop.f32.mrb[0].mxu0
      %v3519 = vpop.f32.mrb[0].mxu0
      %v3520 = vadd.f32 0.0, %v3519
      %v3521 = vpop.f32.mrb[0].mxu0
      %3522 = vmatprep.mubr.bf16.mxu0 0
      %3523 = vmatmul.mubr.bf16.gmra.mrb[0].mxu0 %v3382
      %v3524 = vpop.f32.mrb[0].mxu0
      %v3525 = vadd.f32 0.0, %v3524
      %v3526 = vpop.f32.mrb[0].mxu0
      %v3527 = vpop.f32.mrb[0].mxu0
      %v3528 = vadd.f32 0.0, %v3527
      %v3529 = vpop.f32.mrb[0].mxu0
      %3530 = vmatprep.mubr.bf16.mxu0 0
      %3531 = vmatmul.mubr.bf16.gmra.mrb[0].mxu0 %v3383
      %v3532 = vpop.f32.mrb[0].mxu0
      %v3533 = vadd.f32 0.0, %v3532
      %v3534 = vpop.f32.mrb[0].mxu0
      %v3535 = vpop.f32.mrb[0].mxu0
      %v3536 = vadd.f32 0.0, %v3535
      %v3537 = vpop.f32.mrb[0].mxu0
      %3538 = vmatprep.mubr.bf16.mxu0 0
      %3539 = vmatmul.mubr.bf16.gmra.mrb[0].mxu0 %v3384
      %v3540 = vpop.f32.mrb[0].mxu0
      %v3541 = vadd.f32 0.0, %v3540
      %v3542 = vpop.f32.mrb[0].mxu0
      %v3543 = vpop.f32.mrb[0].mxu0
      %v3544 = vadd.f32 0.0, %v3543
      %v3545 = vpop.f32.mrb[0].mxu0
      %3546 = vdwg.mxu0
      %v3563 = vunpack.c.l.b16 %v3360
      %v3564 = vunpack.c.l.b16 %v3361
      %v3565 = vunpack.c.l.b16 %v3362
      %v3566 = vunpack.c.l.b16 %v3363
      %v3567 = vunpack.c.l.b16 %v3364
      %v3568 = vunpack.c.l.b16 %v3365
      %v3569 = vunpack.c.l.b16 %v3366
      %v3570 = vunpack.c.l.b16 %v3367
      %v3571 = vunpack.c.l.b16 %v3368
      %v3572 = vunpack.c.l.b16 %v3369
      %v3573 = vunpack.c.l.b16 %v3370
      %v3574 = vunpack.c.l.b16 %v3371
      %v3575 = vunpack.c.l.b16 %v3372
      %v3576 = vunpack.c.l.b16 %v3373
      %v3577 = vunpack.c.l.b16 %v3374
      %v3578 = vunpack.c.l.b16 %v3375
      %v3579 = vpack.c.b16 %v3564, %v3563
      %v3580 = vpack.c.b16 %v3566, %v3565
      %v3581 = vpack.c.b16 %v3568, %v3567
      %v3582 = vpack.c.b16 %v3570, %v3569
      %v3583 = vpack.c.b16 %v3572, %v3571
      %v3584 = vpack.c.b16 %v3574, %v3573
      %v3585 = vpack.c.b16 %v3576, %v3575
      %v3586 = vpack.c.b16 %v3578, %v3577
      %3595 = vmatprep.subr.bf16.mxu0 0
      %3596 = vmatpush1.bf16.msra.mxu0 %v3579
      %3597 = vmatprep.subr.bf16.mxu0 0
      %3598 = vmatpush1.bf16.msra.mxu0 %v3580
      %3599 = vmatprep.subr.bf16.mxu0 0
      %3600 = vmatpush1.bf16.msra.mxu0 %v3581
      %3601 = vmatprep.subr.bf16.mxu0 0
      %3602 = vmatpush1.bf16.msra.mxu0 %v3582
      %3603 = vmatprep.subr.bf16.mxu0 0
      %3604 = vmatpush1.bf16.msra.mxu0 %v3583
      %3605 = vmatprep.subr.bf16.mxu0 0
      %3606 = vmatpush1.bf16.msra.mxu0 %v3584
      %3607 = vmatprep.subr.bf16.mxu0 0
      %3608 = vmatpush1.bf16.msra.mxu0 %v3585
      %3609 = vmatprep.subr.bf16.mxu0 0
      %3610 = vmatpush1.bf16.msra.mxu0 %v3586
      %3611 = vmatprep.subr.bf16.mxu0 0
      %3612 = vmatpush1.bf16.msra.mxu0 0
      %3613 = vmatprep.subr.bf16.mxu0 0
      %3614 = vmatpush1.bf16.msra.mxu0 0
      %3615 = vmatprep.subr.bf16.mxu0 0
      %3616 = vmatpush1.bf16.msra.mxu0 0
      %3617 = vmatprep.subr.bf16.mxu0 0
      %3618 = vmatpush1.bf16.msra.mxu0 0
      %3619 = vmatprep.subr.bf16.mxu0 0
      %3620 = vmatpush1.bf16.msra.mxu0 0
      %3621 = vmatprep.subr.bf16.mxu0 0
      %3622 = vmatpush1.bf16.msra.mxu0 0
      %3623 = vmatprep.subr.bf16.mxu0 0
      %3624 = vmatpush1.bf16.msra.mxu0 0
      %3625 = vmatprep.subr.bf16.mxu0 0
      %3626 = vmatpush1.bf16.msra.mxu0 0
      %3627 = vmatprep.mubr.bf16.mxu0 0
      %3628 = vmatmul.mubr.bf16.gmra.mrb[0].mxu0 %v3351
      %v3629 = vpop.f32.mrb[0].mxu0
      %v3630 = vadd.f32 %v3485, %v3629
      %v3631 = vpop.f32.mrb[0].mxu0
      %v3632 = vpop.f32.mrb[0].mxu0
      %v3633 = vadd.f32 %v3488, %v3632
      %v3634 = vpop.f32.mrb[0].mxu0
      %3635 = vmatprep.mubr.bf16.mxu0 0
      %3636 = vmatmul.mubr.bf16.gmra.mrb[0].mxu0 %v3352
      %v3637 = vpop.f32.mrb[0].mxu0
      %v3638 = vadd.f32 %v3493, %v3637
      %v3639 = vpop.f32.mrb[0].mxu0
      %v3640 = vpop.f32.mrb[0].mxu0
      %v3641 = vadd.f32 %v3496, %v3640
      %v3642 = vpop.f32.mrb[0].mxu0
      %3643 = vmatprep.mubr.bf16.mxu0 0
      %3644 = vmatmul.mubr.bf16.gmra.mrb[0].mxu0 %v3353
      %v3645 = vpop.f32.mrb[0].mxu0
      %v3646 = vadd.f32 %v3501, %v3645
      %v3647 = vpop.f32.mrb[0].mxu0
      %v3648 = vpop.f32.mrb[0].mxu0
      %v3649 = vadd.f32 %v3504, %v3648
      %v3650 = vpop.f32.mrb[0].mxu0
      %3651 = vmatprep.mubr.bf16.mxu0 0
      %3652 = vmatmul.mubr.bf16.gmra.mrb[0].mxu0 %v3354
      %v3653 = vpop.f32.mrb[0].mxu0
      %v3654 = vadd.f32 %v3509, %v3653
      %v3655 = vpop.f32.mrb[0].mxu0
      %v3656 = vpop.f32.mrb[0].mxu0
      %v3657 = vadd.f32 %v3512, %v3656
      %v3658 = vpop.f32.mrb[0].mxu0
      %3659 = vmatprep.mubr.bf16.mxu0 0
      %3660 = vmatmul.mubr.bf16.gmra.mrb[0].mxu0 %v3355
      %v3661 = vpop.f32.mrb[0].mxu0
      %v3662 = vadd.f32 %v3517, %v3661
      %v3663 = vpop.f32.mrb[0].mxu0
      %v3664 = vpop.f32.mrb[0].mxu0
      %v3665 = vadd.f32 %v3520, %v3664
      %v3666 = vpop.f32.mrb[0].mxu0
      %3667 = vmatprep.mubr.bf16.mxu0 0
      %3668 = vmatmul.mubr.bf16.gmra.mrb[0].mxu0 %v3356
      %v3669 = vpop.f32.mrb[0].mxu0
      %v3670 = vadd.f32 %v3525, %v3669
      %v3671 = vpop.f32.mrb[0].mxu0
      %v3672 = vpop.f32.mrb[0].mxu0
      %v3673 = vadd.f32 %v3528, %v3672
      %v3674 = vpop.f32.mrb[0].mxu0
      %3675 = vmatprep.mubr.bf16.mxu0 0
      %3676 = vmatmul.mubr.bf16.gmra.mrb[0].mxu0 %v3357
      %v3677 = vpop.f32.mrb[0].mxu0
      %v3678 = vadd.f32 %v3533, %v3677
      %v3679 = vpop.f32.mrb[0].mxu0
      %v3680 = vpop.f32.mrb[0].mxu0
      %v3681 = vadd.f32 %v3536, %v3680
      %v3682 = vpop.f32.mrb[0].mxu0
      %3683 = vmatprep.mubr.bf16.mxu0 0
      %3684 = vmatmul.mubr.bf16.gmra.mrb[0].mxu0 %v3358
      %v3685 = vpop.f32.mrb[0].mxu0
      %v3686 = vadd.f32 %v3541, %v3685
      %v3687 = vpop.f32.mrb[0].mxu0
      %v3688 = vpop.f32.mrb[0].mxu0
      %v3689 = vadd.f32 %v3544, %v3688
      %v3690 = vpop.f32.mrb[0].mxu0
      %3691 = vdwg.mxu0
      %s3692 = scalar_lea.vmem [#allocation3], 32
      %v3693 = vld [vmem:[%s3692] sm:$0xff]
      %v3694 = vld [vmem:[%s3692 + $0x8] sm:$0xff]
      %v3695 = vld [vmem:[%s3692 + $0x10] sm:$0xff]
      %v3696 = vld [vmem:[%s3692 + $0x18] sm:$0xff]
      %v3697 = vld [vmem:[%s3692 + $0x20] sm:$0xff]
      %v3698 = vld [vmem:[%s3692 + $0x28] sm:$0xff]
      %v3699 = vld [vmem:[%s3692 + $0x30] sm:$0xff]
      %v3700 = vld [vmem:[%s3692 + $0x38] sm:$0xff]
      %s3701 = scalar_lea.vmem %s4, 448
      %v3702 = vld [vmem:[%s3701] sm:$0xf]
      %v3703 = vld [vmem:[%s3701 + $0x4] sm:$0xf]
      %v3704 = vld [vmem:[%s3701 + $0x8] sm:$0xf]
      %v3705 = vld [vmem:[%s3701 + $0xc] sm:$0xf]
      %v3706 = vld [vmem:[%s3701 + $0x10] sm:$0xf]
      %v3707 = vld [vmem:[%s3701 + $0x14] sm:$0xf]
      %v3708 = vld [vmem:[%s3701 + $0x18] sm:$0xf]
      %v3709 = vld [vmem:[%s3701 + $0x1c] sm:$0xf]
      %v3710 = vld [vmem:[%s3701 + $0x20] sm:$0xf]
      %v3711 = vld [vmem:[%s3701 + $0x24] sm:$0xf]
      %v3712 = vld [vmem:[%s3701 + $0x28] sm:$0xf]
      %v3713 = vld [vmem:[%s3701 + $0x2c] sm:$0xf]
      %v3714 = vld [vmem:[%s3701 + $0x30] sm:$0xf]
      %v3715 = vld [vmem:[%s3701 + $0x34] sm:$0xf]
      %v3716 = vld [vmem:[%s3701 + $0x38] sm:$0xf]
      %v3717 = vld [vmem:[%s3701 + $0x3c] sm:$0xf]
      %v3734 = vunpack.c.l.b16 %v3702
      %v3735 = vunpack.c.l.b16 %v3703
      %v3736 = vunpack.c.l.b16 %v3704
      %v3737 = vunpack.c.l.b16 %v3705
      %v3738 = vunpack.c.l.b16 %v3706
      %v3739 = vunpack.c.l.b16 %v3707
      %v3740 = vunpack.c.l.b16 %v3708
      %v3741 = vunpack.c.l.b16 %v3709
      %v3742 = vunpack.c.l.b16 %v3710
      %v3743 = vunpack.c.l.b16 %v3711
      %v3744 = vunpack.c.l.b16 %v3712
      %v3745 = vunpack.c.l.b16 %v3713
      %v3746 = vunpack.c.l.b16 %v3714
      %v3747 = vunpack.c.l.b16 %v3715
      %v3748 = vunpack.c.l.b16 %v3716
      %v3749 = vunpack.c.l.b16 %v3717
      %v3750 = vpack.c.b16 %v3735, %v3734
      %v3751 = vpack.c.b16 %v3737, %v3736
      %v3752 = vpack.c.b16 %v3739, %v3738
      %v3753 = vpack.c.b16 %v3741, %v3740
      %v3754 = vpack.c.b16 %v3743, %v3742
      %v3755 = vpack.c.b16 %v3745, %v3744
      %v3756 = vpack.c.b16 %v3747, %v3746
      %v3757 = vpack.c.b16 %v3749, %v3748
      %3766 = vmatprep.subr.bf16.mxu0 0
      %3767 = vmatpush1.bf16.msra.mxu0 %v3750
      %3768 = vmatprep.subr.bf16.mxu0 0
      %3769 = vmatpush1.bf16.msra.mxu0 %v3751
      %3770 = vmatprep.subr.bf16.mxu0 0
      %3771 = vmatpush1.bf16.msra.mxu0 %v3752
      %3772 = vmatprep.subr.bf16.mxu0 0
      %3773 = vmatpush1.bf16.msra.mxu0 %v3753
      %3774 = vmatprep.subr.bf16.mxu0 0
      %3775 = vmatpush1.bf16.msra.mxu0 %v3754
      %3776 = vmatprep.subr.bf16.mxu0 0
      %3777 = vmatpush1.bf16.msra.mxu0 %v3755
      %3778 = vmatprep.subr.bf16.mxu0 0
      %3779 = vmatpush1.bf16.msra.mxu0 %v3756
      %3780 = vmatprep.subr.bf16.mxu0 0
      %3781 = vmatpush1.bf16.msra.mxu0 %v3757
      %3782 = vmatprep.subr.bf16.mxu0 0
      %3783 = vmatpush1.bf16.msra.mxu0 0
      %3784 = vmatprep.subr.bf16.mxu0 0
      %3785 = vmatpush1.bf16.msra.mxu0 0
      %3786 = vmatprep.subr.bf16.mxu0 0
      %3787 = vmatpush1.bf16.msra.mxu0 0
      %3788 = vmatprep.subr.bf16.mxu0 0
      %3789 = vmatpush1.bf16.msra.mxu0 0
      %3790 = vmatprep.subr.bf16.mxu0 0
      %3791 = vmatpush1.bf16.msra.mxu0 0
      %3792 = vmatprep.subr.bf16.mxu0 0
      %3793 = vmatpush1.bf16.msra.mxu0 0
      %3794 = vmatprep.subr.bf16.mxu0 0
      %3795 = vmatpush1.bf16.msra.mxu0 0
      %3796 = vmatprep.subr.bf16.mxu0 0
      %3797 = vmatpush1.bf16.msra.mxu0 0
      %3798 = vmatprep.mubr.bf16.mxu0 0
      %3799 = vmatmul.mubr.bf16.gmra.mrb[0].mxu0 %v3693
      %v3800 = vpop.f32.mrb[0].mxu0
      %v3801 = vadd.f32 0.0, %v3800
      %v3802 = vpop.f32.mrb[0].mxu0
      %v3803 = vpop.f32.mrb[0].mxu0
      %v3804 = vadd.f32 0.0, %v3803
      %v3805 = vpop.f32.mrb[0].mxu0
      %3806 = vmatprep.mubr.bf16.mxu0 0
      %3807 = vmatmul.mubr.bf16.gmra.mrb[0].mxu0 %v3694
      %v3808 = vpop.f32.mrb[0].mxu0
      %v3809 = vadd.f32 0.0, %v3808
      %v3810 = vpop.f32.mrb[0].mxu0
      %v3811 = vpop.f32.mrb[0].mxu0
      %v3812 = vadd.f32 0.0, %v3811
      %v3813 = vpop.f32.mrb[0].mxu0
      %3814 = vmatprep.mubr.bf16.mxu0 0
      %3815 = vmatmul.mubr.bf16.gmra.mrb[0].mxu0 %v3695
      %v3816 = vpop.f32.mrb[0].mxu0
      %v3817 = vadd.f32 0.0, %v3816
      %v3818 = vpop.f32.mrb[0].mxu0
      %v3819 = vpop.f32.mrb[0].mxu0
      %v3820 = vadd.f32 0.0, %v3819
      %v3821 = vpop.f32.mrb[0].mxu0
      %3822 = vmatprep.mubr.bf16.mxu0 0
      %3823 = vmatmul.mubr.bf16.gmra.mrb[0].mxu0 %v3696
      %v3824 = vpop.f32.mrb[0].mxu0
      %v3825 = vadd.f32 0.0, %v3824
      %v3826 = vpop.f32.mrb[0].mxu0
      %v3827 = vpop.f32.mrb[0].mxu0
      %v3828 = vadd.f32 0.0, %v3827
      %v3829 = vpop.f32.mrb[0].mxu0
      %3830 = vmatprep.mubr.bf16.mxu0 0
      %3831 = vmatmul.mubr.bf16.gmra.mrb[0].mxu0 %v3697
      %v3832 = vpop.f32.mrb[0].mxu0
      %v3833 = vadd.f32 0.0, %v3832
      %v3834 = vpop.f32.mrb[0].mxu0
      %v3835 = vpop.f32.mrb[0].mxu0
      %v3836 = vadd.f32 0.0, %v3835
      %v3837 = vpop.f32.mrb[0].mxu0
      %3838 = vmatprep.mubr.bf16.mxu0 0
      %3839 = vmatmul.mubr.bf16.gmra.mrb[0].mxu0 %v3698
      %v3840 = vpop.f32.mrb[0].mxu0
      %v3841 = vadd.f32 0.0, %v3840
      %v3842 = vpop.f32.mrb[0].mxu0
      %v3843 = vpop.f32.mrb[0].mxu0
      %v3844 = vadd.f32 0.0, %v3843
      %v3845 = vpop.f32.mrb[0].mxu0
      %3846 = vmatprep.mubr.bf16.mxu0 0
      %3847 = vmatmul.mubr.bf16.gmra.mrb[0].mxu0 %v3699
      %v3848 = vpop.f32.mrb[0].mxu0
      %v3849 = vadd.f32 0.0, %v3848
      %v3850 = vpop.f32.mrb[0].mxu0
      %v3851 = vpop.f32.mrb[0].mxu0
      %v3852 = vadd.f32 0.0, %v3851
      %v3853 = vpop.f32.mrb[0].mxu0
      %3854 = vmatprep.mubr.bf16.mxu0 0
      %3855 = vmatmul.mubr.bf16.gmra.mrb[0].mxu0 %v3700
      %v3856 = vpop.f32.mrb[0].mxu0
      %v3857 = vadd.f32 0.0, %v3856
      %v3858 = vpop.f32.mrb[0].mxu0
      %v3859 = vpop.f32.mrb[0].mxu0
      %v3860 = vadd.f32 0.0, %v3859
      %v3861 = vpop.f32.mrb[0].mxu0
      %3862 = vdwg.mxu0
      %v3863 = vadd.f32 %v3630, %v3801
      %v3864 = vadd.f32 %v3633, %v3804
      %v3865 = vadd.f32 %v3638, %v3809
      %v3866 = vadd.f32 %v3641, %v3812
      %v3867 = vadd.f32 %v3646, %v3817
      %v3868 = vadd.f32 %v3649, %v3820
      %v3869 = vadd.f32 %v3654, %v3825
      %v3870 = vadd.f32 %v3657, %v3828
      %v3871 = vadd.f32 %v3662, %v3833
      %v3872 = vadd.f32 %v3665, %v3836
      %v3873 = vadd.f32 %v3670, %v3841
      %v3874 = vadd.f32 %v3673, %v3844
      %v3875 = vadd.f32 %v3678, %v3849
      %v3876 = vadd.f32 %v3681, %v3852
      %v3877 = vadd.f32 %v3686, %v3857
      %v3878 = vadd.f32 %v3689, %v3860
      %v3879 = vld [vmem:[#allocation3] sm:$0xff]
      %v3880 = vld [vmem:[#allocation3 + $0x8] sm:$0xff]
      %v3881 = vld [vmem:[#allocation3 + $0x10] sm:$0xff]
      %v3882 = vld [vmem:[#allocation3 + $0x18] sm:$0xff]
      %v3883 = vld [vmem:[#allocation3 + $0x20] sm:$0xff]
      %v3884 = vld [vmem:[#allocation3 + $0x28] sm:$0xff]
      %v3885 = vld [vmem:[#allocation3 + $0x30] sm:$0xff]
      %v3886 = vld [vmem:[#allocation3 + $0x38] sm:$0xff]
      %v3887 = vld [vmem:[#allocation3 + $0x40] sm:$0xff]
      %v3888 = vld [vmem:[#allocation3 + $0x48] sm:$0xff]
      %v3889 = vld [vmem:[#allocation3 + $0x50] sm:$0xff]
      %v3890 = vld [vmem:[#allocation3 + $0x58] sm:$0xff]
      %v3892 = vshrl.u32 %v3879, 16
      %v3894 = vrot.slane %v3892, 7
      %v3895 = vshll.u32 %v3879, 16
      %v3897 = vor.u32 %v3894, %v3895
      %v3899 = vshrl.u32 %v3880, 16
      %v3901 = vrot.slane %v3899, 7
      %v3902 = vshll.u32 %v3880, 16
      %v3904 = vor.u32 %v3901, %v3902
      %v3905 = vsel %vm1188, %v3894, %v3904
      %v3907 = vshrl.u32 %v3881, 16
      %v3909 = vrot.slane %v3907, 7
      %v3910 = vshll.u32 %v3881, 16
      %v3912 = vor.u32 %v3909, %v3910
      %v3914 = vshrl.u32 %v3882, 16
      %v3916 = vrot.slane %v3914, 7
      %v3917 = vshll.u32 %v3882, 16
      %v3919 = vor.u32 %v3916, %v3917
      %v3920 = vsel %vm1188, %v3909, %v3919
      %v3922 = vshrl.u32 %v3883, 16
      %v3924 = vrot.slane %v3922, 7
      %v3925 = vshll.u32 %v3883, 16
      %v3927 = vor.u32 %v3924, %v3925
      %v3929 = vshrl.u32 %v3884, 16
      %v3931 = vrot.slane %v3929, 7
      %v3932 = vshll.u32 %v3884, 16
      %v3934 = vor.u32 %v3931, %v3932
      %v3935 = vsel %vm1188, %v3924, %v3934
      %v3937 = vshrl.u32 %v3885, 16
      %v3939 = vrot.slane %v3937, 7
      %v3940 = vshll.u32 %v3885, 16
      %v3942 = vor.u32 %v3939, %v3940
      %v3944 = vshrl.u32 %v3886, 16
      %v3946 = vrot.slane %v3944, 7
      %v3947 = vshll.u32 %v3886, 16
      %v3949 = vor.u32 %v3946, %v3947
      %v3950 = vsel %vm1188, %v3939, %v3949
      %v3952 = vshrl.u32 %v3887, 16
      %v3954 = vrot.slane %v3952, 7
      %v3955 = vshll.u32 %v3887, 16
      %v3957 = vor.u32 %v3954, %v3955
      %v3959 = vshrl.u32 %v3888, 16
      %v3961 = vrot.slane %v3959, 7
      %v3962 = vshll.u32 %v3888, 16
      %v3964 = vor.u32 %v3961, %v3962
      %v3965 = vsel %vm1188, %v3954, %v3964
      %v3967 = vshrl.u32 %v3889, 16
      %v3969 = vrot.slane %v3967, 7
      %v3970 = vshll.u32 %v3889, 16
      %v3972 = vor.u32 %v3969, %v3970
      %v3974 = vshrl.u32 %v3890, 16
      %v3976 = vrot.slane %v3974, 7
      %v3977 = vshll.u32 %v3890, 16
      %v3979 = vor.u32 %v3976, %v3977
      %v3980 = vsel %vm1188, %v3969, %v3979
      %v3993 = vld [vmem:[#allocation2] sm:$0xff]
      %v3994 = vsel %vm1259, %v3897, %v3993
      %3995 = vst [vmem:[#allocation2] sm:$0xff] %v3994
      %3996 = vst [vmem:[#allocation2 + $0x8] sm:$0xff] %v3905
      %v3997 = vld [vmem:[#allocation2 + $0x10] sm:$0xff]
      %v3998 = vsel %vm1259, %v3912, %v3997
      %3999 = vst [vmem:[#allocation2 + $0x10] sm:$0xff] %v3998
      %4000 = vst [vmem:[#allocation2 + $0x18] sm:$0xff] %v3920
      %v4001 = vld [vmem:[#allocation2 + $0x20] sm:$0xff]
      %v4002 = vsel %vm1259, %v3927, %v4001
      %4003 = vst [vmem:[#allocation2 + $0x20] sm:$0xff] %v4002
      %4004 = vst [vmem:[#allocation2 + $0x28] sm:$0xff] %v3935
      %v4005 = vld [vmem:[#allocation2 + $0x30] sm:$0xff]
      %v4006 = vsel %vm1259, %v3942, %v4005
      %4007 = vst [vmem:[#allocation2 + $0x30] sm:$0xff] %v4006
      %4008 = vst [vmem:[#allocation2 + $0x38] sm:$0xff] %v3950
      %v4009 = vld [vmem:[#allocation2 + $0x40] sm:$0xff]
      %v4010 = vsel %vm1259, %v3957, %v4009
      %4011 = vst [vmem:[#allocation2 + $0x40] sm:$0xff] %v4010
      %4012 = vst [vmem:[#allocation2 + $0x48] sm:$0xff] %v3965
      %v4013 = vld [vmem:[#allocation2 + $0x50] sm:$0xff]
      %v4014 = vsel %vm1259, %v3972, %v4013
      %4015 = vst [vmem:[#allocation2 + $0x50] sm:$0xff] %v4014
      %4016 = vst [vmem:[#allocation2 + $0x58] sm:$0xff] %v3980
      %v4017 = vld [vmem:[#allocation2] sm:$0x1]
      %v4018 = vsel %vm1417, 0, %v4017
      %4019 = vst [vmem:[#allocation2] sm:$0x1] %v4018
      %v4020 = vld [vmem:[#allocation2 + $0x10] sm:$0x1]
      %v4021 = vsel %vm1417, 0, %v4020
      %4022 = vst [vmem:[#allocation2 + $0x10] sm:$0x1] %v4021
      %v4023 = vld [vmem:[#allocation2 + $0x20] sm:$0x1]
      %v4024 = vsel %vm1417, 0, %v4023
      %4025 = vst [vmem:[#allocation2 + $0x20] sm:$0x1] %v4024
      %v4026 = vld [vmem:[#allocation2 + $0x30] sm:$0x1]
      %v4027 = vsel %vm1417, 0, %v4026
      %4028 = vst [vmem:[#allocation2 + $0x30] sm:$0x1] %v4027
      %v4029 = vld [vmem:[#allocation2 + $0x40] sm:$0x1]
      %v4030 = vsel %vm1417, 0, %v4029
      %4031 = vst [vmem:[#allocation2 + $0x40] sm:$0x1] %v4030
      %v4032 = vld [vmem:[#allocation2 + $0x50] sm:$0x1]
      %v4033 = vsel %vm1417, 0, %v4032
      %4034 = vst [vmem:[#allocation2 + $0x50] sm:$0x1] %v4033
      %v4035 = vld [vmem:[#allocation2] sm:$0xff]
      %v4036 = vld [vmem:[#allocation2 + $0x8] sm:$0xff]
      %v4037 = vld [vmem:[#allocation2 + $0x10] sm:$0xff]
      %v4038 = vld [vmem:[#allocation2 + $0x18] sm:$0xff]
      %v4039 = vld [vmem:[#allocation2 + $0x20] sm:$0xff]
      %v4040 = vld [vmem:[#allocation2 + $0x28] sm:$0xff]
      %v4041 = vld [vmem:[#allocation2 + $0x30] sm:$0xff]
      %v4042 = vld [vmem:[#allocation2 + $0x38] sm:$0xff]
      %v4043 = vld [vmem:[%s4] sm:$0xf]
      %v4044 = vld [vmem:[%s4 + $0x4] sm:$0xf]
      %v4045 = vld [vmem:[%s4 + $0x8] sm:$0xf]
      %v4046 = vld [vmem:[%s4 + $0xc] sm:$0xf]
      %v4047 = vld [vmem:[%s4 + $0x10] sm:$0xf]
      %v4048 = vld [vmem:[%s4 + $0x14] sm:$0xf]
      %v4049 = vld [vmem:[%s4 + $0x18] sm:$0xf]
      %v4050 = vld [vmem:[%s4 + $0x1c] sm:$0xf]
      %v4051 = vld [vmem:[%s4 + $0x20] sm:$0xf]
      %v4052 = vld [vmem:[%s4 + $0x24] sm:$0xf]
      %v4053 = vld [vmem:[%s4 + $0x28] sm:$0xf]
      %v4054 = vld [vmem:[%s4 + $0x2c] sm:$0xf]
      %v4055 = vld [vmem:[%s4 + $0x30] sm:$0xf]
      %v4056 = vld [vmem:[%s4 + $0x34] sm:$0xf]
      %v4057 = vld [vmem:[%s4 + $0x38] sm:$0xf]
      %v4058 = vld [vmem:[%s4 + $0x3c] sm:$0xf]
      %v4075 = vunpack.c.l.b16 %v4043
      %v4076 = vunpack.c.l.b16 %v4044
      %v4077 = vunpack.c.l.b16 %v4045
      %v4078 = vunpack.c.l.b16 %v4046
      %v4079 = vunpack.c.l.b16 %v4047
      %v4080 = vunpack.c.l.b16 %v4048
      %v4081 = vunpack.c.l.b16 %v4049
      %v4082 = vunpack.c.l.b16 %v4050
      %v4083 = vunpack.c.l.b16 %v4051
      %v4084 = vunpack.c.l.b16 %v4052
      %v4085 = vunpack.c.l.b16 %v4053
      %v4086 = vunpack.c.l.b16 %v4054
      %v4087 = vunpack.c.l.b16 %v4055
      %v4088 = vunpack.c.l.b16 %v4056
      %v4089 = vunpack.c.l.b16 %v4057
      %v4090 = vunpack.c.l.b16 %v4058
      %v4091 = vpack.c.b16 %v4076, %v4075
      %v4092 = vpack.c.b16 %v4078, %v4077
      %v4093 = vpack.c.b16 %v4080, %v4079
      %v4094 = vpack.c.b16 %v4082, %v4081
      %v4095 = vpack.c.b16 %v4084, %v4083
      %v4096 = vpack.c.b16 %v4086, %v4085
      %v4097 = vpack.c.b16 %v4088, %v4087
      %v4098 = vpack.c.b16 %v4090, %v4089
      %4107 = vmatprep.subr.bf16.mxu0 0
      %4108 = vmatpush1.bf16.msra.mxu0 %v4091
      %4109 = vmatprep.subr.bf16.mxu0 0
      %4110 = vmatpush1.bf16.msra.mxu0 %v4092
      %4111 = vmatprep.subr.bf16.mxu0 0
      %4112 = vmatpush1.bf16.msra.mxu0 %v4093
      %4113 = vmatprep.subr.bf16.mxu0 0
      %4114 = vmatpush1.bf16.msra.mxu0 %v4094
      %4115 = vmatprep.subr.bf16.mxu0 0
      %4116 = vmatpush1.bf16.msra.mxu0 %v4095
      %4117 = vmatprep.subr.bf16.mxu0 0
      %4118 = vmatpush1.bf16.msra.mxu0 %v4096
      %4119 = vmatprep.subr.bf16.mxu0 0
      %4120 = vmatpush1.bf16.msra.mxu0 %v4097
      %4121 = vmatprep.subr.bf16.mxu0 0
      %4122 = vmatpush1.bf16.msra.mxu0 %v4098
      %4123 = vmatprep.subr.bf16.mxu0 0
      %4124 = vmatpush1.bf16.msra.mxu0 0
      %4125 = vmatprep.subr.bf16.mxu0 0
      %4126 = vmatpush1.bf16.msra.mxu0 0
      %4127 = vmatprep.subr.bf16.mxu0 0
      %4128 = vmatpush1.bf16.msra.mxu0 0
      %4129 = vmatprep.subr.bf16.mxu0 0
      %4130 = vmatpush1.bf16.msra.mxu0 0
      %4131 = vmatprep.subr.bf16.mxu0 0
      %4132 = vmatpush1.bf16.msra.mxu0 0
      %4133 = vmatprep.subr.bf16.mxu0 0
      %4134 = vmatpush1.bf16.msra.mxu0 0
      %4135 = vmatprep.subr.bf16.mxu0 0
      %4136 = vmatpush1.bf16.msra.mxu0 0
      %4137 = vmatprep.subr.bf16.mxu0 0
      %4138 = vmatpush1.bf16.msra.mxu0 0
      %4139 = vmatprep.mubr.bf16.mxu0 0
      %4140 = vmatmul.mubr.bf16.gmra.mrb[0].mxu0 %v4035
      %v4141 = vpop.f32.mrb[0].mxu0
      %v4142 = vadd.f32 0.0, %v4141
      %v4143 = vpop.f32.mrb[0].mxu0
      %v4144 = vpop.f32.mrb[0].mxu0
      %v4145 = vadd.f32 0.0, %v4144
      %v4146 = vpop.f32.mrb[0].mxu0
      %4147 = vmatprep.mubr.bf16.mxu0 0
      %4148 = vmatmul.mubr.bf16.gmra.mrb[0].mxu0 %v4036
      %v4149 = vpop.f32.mrb[0].mxu0
      %v4150 = vadd.f32 0.0, %v4149
      %v4151 = vpop.f32.mrb[0].mxu0
      %v4152 = vpop.f32.mrb[0].mxu0
      %v4153 = vadd.f32 0.0, %v4152
      %v4154 = vpop.f32.mrb[0].mxu0
      %4155 = vmatprep.mubr.bf16.mxu0 0
      %4156 = vmatmul.mubr.bf16.gmra.mrb[0].mxu0 %v4037
      %v4157 = vpop.f32.mrb[0].mxu0
      %v4158 = vadd.f32 0.0, %v4157
      %v4159 = vpop.f32.mrb[0].mxu0
      %v4160 = vpop.f32.mrb[0].mxu0
      %v4161 = vadd.f32 0.0, %v4160
      %v4162 = vpop.f32.mrb[0].mxu0
      %4163 = vmatprep.mubr.bf16.mxu0 0
      %4164 = vmatmul.mubr.bf16.gmra.mrb[0].mxu0 %v4038
      %v4165 = vpop.f32.mrb[0].mxu0
      %v4166 = vadd.f32 0.0, %v4165
      %v4167 = vpop.f32.mrb[0].mxu0
      %v4168 = vpop.f32.mrb[0].mxu0
      %v4169 = vadd.f32 0.0, %v4168
      %v4170 = vpop.f32.mrb[0].mxu0
      %4171 = vmatprep.mubr.bf16.mxu0 0
      %4172 = vmatmul.mubr.bf16.gmra.mrb[0].mxu0 %v4039
      %v4173 = vpop.f32.mrb[0].mxu0
      %v4174 = vadd.f32 0.0, %v4173
      %v4175 = vpop.f32.mrb[0].mxu0
      %v4176 = vpop.f32.mrb[0].mxu0
      %v4177 = vadd.f32 0.0, %v4176
      %v4178 = vpop.f32.mrb[0].mxu0
      %4179 = vmatprep.mubr.bf16.mxu0 0
      %4180 = vmatmul.mubr.bf16.gmra.mrb[0].mxu0 %v4040
      %v4181 = vpop.f32.mrb[0].mxu0
      %v4182 = vadd.f32 0.0, %v4181
      %v4183 = vpop.f32.mrb[0].mxu0
      %v4184 = vpop.f32.mrb[0].mxu0
      %v4185 = vadd.f32 0.0, %v4184
      %v4186 = vpop.f32.mrb[0].mxu0
      %4187 = vmatprep.mubr.bf16.mxu0 0
      %4188 = vmatmul.mubr.bf16.gmra.mrb[0].mxu0 %v4041
      %v4189 = vpop.f32.mrb[0].mxu0
      %v4190 = vadd.f32 0.0, %v4189
      %v4191 = vpop.f32.mrb[0].mxu0
      %v4192 = vpop.f32.mrb[0].mxu0
      %v4193 = vadd.f32 0.0, %v4192
      %v4194 = vpop.f32.mrb[0].mxu0
      %4195 = vmatprep.mubr.bf16.mxu0 0
      %4196 = vmatmul.mubr.bf16.gmra.mrb[0].mxu0 %v4042
      %v4197 = vpop.f32.mrb[0].mxu0
      %v4198 = vadd.f32 0.0, %v4197
      %v4199 = vpop.f32.mrb[0].mxu0
      %v4200 = vpop.f32.mrb[0].mxu0
      %v4201 = vadd.f32 0.0, %v4200
      %v4202 = vpop.f32.mrb[0].mxu0
      %4203 = vdwg.mxu0
      %v4204 = vadd.f32 %v3863, %v4142
      %v4205 = vadd.f32 %v3864, %v4145
      %v4206 = vadd.f32 %v3865, %v4150
      %v4207 = vadd.f32 %v3866, %v4153
      %v4208 = vadd.f32 %v3867, %v4158
      %v4209 = vadd.f32 %v3868, %v4161
      %v4210 = vadd.f32 %v3869, %v4166
      %v4211 = vadd.f32 %v3870, %v4169
      %v4212 = vadd.f32 %v3871, %v4174
      %v4213 = vadd.f32 %v3872, %v4177
      %v4214 = vadd.f32 %v3873, %v4182
      %v4215 = vadd.f32 %v3874, %v4185
      %v4216 = vadd.f32 %v3875, %v4190
      %v4217 = vadd.f32 %v3876, %v4193
      %v4218 = vadd.f32 %v3877, %v4198
      %v4219 = vadd.f32 %v3878, %v4201
      %v4220 = vld [vmem:[%s517] sm:$0xff]
      %v4221 = vld [vmem:[%s517 + $0x8] sm:$0xff]
      %v4222 = vld [vmem:[%s517 + $0x10] sm:$0xff]
      %v4223 = vld [vmem:[%s517 + $0x18] sm:$0xff]
      %v4224 = vld [vmem:[%s517 + $0x20] sm:$0xff]
      %v4225 = vld [vmem:[%s517 + $0x28] sm:$0xff]
      %v4226 = vld [vmem:[%s517 + $0x30] sm:$0xff]
      %v4227 = vld [vmem:[%s517 + $0x38] sm:$0xff]
      %s4228 = scalar_lea.vmem %s4, 192
      %v4229 = vld [vmem:[%s4228] sm:$0xf]
      %v4230 = vld [vmem:[%s4228 + $0x4] sm:$0xf]
      %v4231 = vld [vmem:[%s4228 + $0x8] sm:$0xf]
      %v4232 = vld [vmem:[%s4228 + $0xc] sm:$0xf]
      %v4233 = vld [vmem:[%s4228 + $0x10] sm:$0xf]
      %v4234 = vld [vmem:[%s4228 + $0x14] sm:$0xf]
      %v4235 = vld [vmem:[%s4228 + $0x18] sm:$0xf]
      %v4236 = vld [vmem:[%s4228 + $0x1c] sm:$0xf]
      %v4237 = vld [vmem:[%s4228 + $0x20] sm:$0xf]
      %v4238 = vld [vmem:[%s4228 + $0x24] sm:$0xf]
      %v4239 = vld [vmem:[%s4228 + $0x28] sm:$0xf]
      %v4240 = vld [vmem:[%s4228 + $0x2c] sm:$0xf]
      %v4241 = vld [vmem:[%s4228 + $0x30] sm:$0xf]
      %v4242 = vld [vmem:[%s4228 + $0x34] sm:$0xf]
      %v4243 = vld [vmem:[%s4228 + $0x38] sm:$0xf]
      %v4244 = vld [vmem:[%s4228 + $0x3c] sm:$0xf]
      %v4261 = vunpack.c.l.b16 %v4229
      %v4262 = vunpack.c.l.b16 %v4230
      %v4263 = vunpack.c.l.b16 %v4231
      %v4264 = vunpack.c.l.b16 %v4232
      %v4265 = vunpack.c.l.b16 %v4233
      %v4266 = vunpack.c.l.b16 %v4234
      %v4267 = vunpack.c.l.b16 %v4235
      %v4268 = vunpack.c.l.b16 %v4236
      %v4269 = vunpack.c.l.b16 %v4237
      %v4270 = vunpack.c.l.b16 %v4238
      %v4271 = vunpack.c.l.b16 %v4239
      %v4272 = vunpack.c.l.b16 %v4240
      %v4273 = vunpack.c.l.b16 %v4241
      %v4274 = vunpack.c.l.b16 %v4242
      %v4275 = vunpack.c.l.b16 %v4243
      %v4276 = vunpack.c.l.b16 %v4244
      %v4277 = vpack.c.b16 %v4262, %v4261
      %v4278 = vpack.c.b16 %v4264, %v4263
      %v4279 = vpack.c.b16 %v4266, %v4265
      %v4280 = vpack.c.b16 %v4268, %v4267
      %v4281 = vpack.c.b16 %v4270, %v4269
      %v4282 = vpack.c.b16 %v4272, %v4271
      %v4283 = vpack.c.b16 %v4274, %v4273
      %v4284 = vpack.c.b16 %v4276, %v4275
      %4293 = vmatprep.subr.bf16.mxu0 0
      %4294 = vmatpush1.bf16.msra.mxu0 %v4277
      %4295 = vmatprep.subr.bf16.mxu0 0
      %4296 = vmatpush1.bf16.msra.mxu0 %v4278
      %4297 = vmatprep.subr.bf16.mxu0 0
      %4298 = vmatpush1.bf16.msra.mxu0 %v4279
      %4299 = vmatprep.subr.bf16.mxu0 0
      %4300 = vmatpush1.bf16.msra.mxu0 %v4280
      %4301 = vmatprep.subr.bf16.mxu0 0
      %4302 = vmatpush1.bf16.msra.mxu0 %v4281
      %4303 = vmatprep.subr.bf16.mxu0 0
      %4304 = vmatpush1.bf16.msra.mxu0 %v4282
      %4305 = vmatprep.subr.bf16.mxu0 0
      %4306 = vmatpush1.bf16.msra.mxu0 %v4283
      %4307 = vmatprep.subr.bf16.mxu0 0
      %4308 = vmatpush1.bf16.msra.mxu0 %v4284
      %4309 = vmatprep.subr.bf16.mxu0 0
      %4310 = vmatpush1.bf16.msra.mxu0 0
      %4311 = vmatprep.subr.bf16.mxu0 0
      %4312 = vmatpush1.bf16.msra.mxu0 0
      %4313 = vmatprep.subr.bf16.mxu0 0
      %4314 = vmatpush1.bf16.msra.mxu0 0
      %4315 = vmatprep.subr.bf16.mxu0 0
      %4316 = vmatpush1.bf16.msra.mxu0 0
      %4317 = vmatprep.subr.bf16.mxu0 0
      %4318 = vmatpush1.bf16.msra.mxu0 0
      %4319 = vmatprep.subr.bf16.mxu0 0
      %4320 = vmatpush1.bf16.msra.mxu0 0
      %4321 = vmatprep.subr.bf16.mxu0 0
      %4322 = vmatpush1.bf16.msra.mxu0 0
      %4323 = vmatprep.subr.bf16.mxu0 0
      %4324 = vmatpush1.bf16.msra.mxu0 0
      %4325 = vmatprep.mubr.bf16.mxu0 0
      %4326 = vmatmul.mubr.bf16.gmra.mrb[0].mxu0 %v4220
      %v4327 = vpop.f32.mrb[0].mxu0
      %v4328 = vadd.f32 0.0, %v4327
      %v4329 = vpop.f32.mrb[0].mxu0
      %v4330 = vpop.f32.mrb[0].mxu0
      %v4331 = vadd.f32 0.0, %v4330
      %v4332 = vpop.f32.mrb[0].mxu0
      %4333 = vmatprep.mubr.bf16.mxu0 0
      %4334 = vmatmul.mubr.bf16.gmra.mrb[0].mxu0 %v4221
      %v4335 = vpop.f32.mrb[0].mxu0
      %v4336 = vadd.f32 0.0, %v4335
      %v4337 = vpop.f32.mrb[0].mxu0
      %v4338 = vpop.f32.mrb[0].mxu0
      %v4339 = vadd.f32 0.0, %v4338
      %v4340 = vpop.f32.mrb[0].mxu0
      %4341 = vmatprep.mubr.bf16.mxu0 0
      %4342 = vmatmul.mubr.bf16.gmra.mrb[0].mxu0 %v4222
      %v4343 = vpop.f32.mrb[0].mxu0
      %v4344 = vadd.f32 0.0, %v4343
      %v4345 = vpop.f32.mrb[0].mxu0
      %v4346 = vpop.f32.mrb[0].mxu0
      %v4347 = vadd.f32 0.0, %v4346
      %v4348 = vpop.f32.mrb[0].mxu0
      %4349 = vmatprep.mubr.bf16.mxu0 0
      %4350 = vmatmul.mubr.bf16.gmra.mrb[0].mxu0 %v4223
      %v4351 = vpop.f32.mrb[0].mxu0
      %v4352 = vadd.f32 0.0, %v4351
      %v4353 = vpop.f32.mrb[0].mxu0
      %v4354 = vpop.f32.mrb[0].mxu0
      %v4355 = vadd.f32 0.0, %v4354
      %v4356 = vpop.f32.mrb[0].mxu0
      %4357 = vmatprep.mubr.bf16.mxu0 0
      %4358 = vmatmul.mubr.bf16.gmra.mrb[0].mxu0 %v4224
      %v4359 = vpop.f32.mrb[0].mxu0
      %v4360 = vadd.f32 0.0, %v4359
      %v4361 = vpop.f32.mrb[0].mxu0
      %v4362 = vpop.f32.mrb[0].mxu0
      %v4363 = vadd.f32 0.0, %v4362
      %v4364 = vpop.f32.mrb[0].mxu0
      %4365 = vmatprep.mubr.bf16.mxu0 0
      %4366 = vmatmul.mubr.bf16.gmra.mrb[0].mxu0 %v4225
      %v4367 = vpop.f32.mrb[0].mxu0
      %v4368 = vadd.f32 0.0, %v4367
      %v4369 = vpop.f32.mrb[0].mxu0
      %v4370 = vpop.f32.mrb[0].mxu0
      %v4371 = vadd.f32 0.0, %v4370
      %v4372 = vpop.f32.mrb[0].mxu0
      %4373 = vmatprep.mubr.bf16.mxu0 0
      %4374 = vmatmul.mubr.bf16.gmra.mrb[0].mxu0 %v4226
      %v4375 = vpop.f32.mrb[0].mxu0
      %v4376 = vadd.f32 0.0, %v4375
      %v4377 = vpop.f32.mrb[0].mxu0
      %v4378 = vpop.f32.mrb[0].mxu0
      %v4379 = vadd.f32 0.0, %v4378
      %v4380 = vpop.f32.mrb[0].mxu0
      %4381 = vmatprep.mubr.bf16.mxu0 0
      %4382 = vmatmul.mubr.bf16.gmra.mrb[0].mxu0 %v4227
      %v4383 = vpop.f32.mrb[0].mxu0
      %v4384 = vadd.f32 0.0, %v4383
      %v4385 = vpop.f32.mrb[0].mxu0
      %v4386 = vpop.f32.mrb[0].mxu0
      %v4387 = vadd.f32 0.0, %v4386
      %v4388 = vpop.f32.mrb[0].mxu0
      %4389 = vdwg.mxu0
      %v4390 = vadd.f32 %v4204, %v4328
      %v4391 = vadd.f32 %v4205, %v4331
      %v4392 = vadd.f32 %v4206, %v4336
      %v4393 = vadd.f32 %v4207, %v4339
      %v4394 = vadd.f32 %v4208, %v4344
      %v4395 = vadd.f32 %v4209, %v4347
      %v4396 = vadd.f32 %v4210, %v4352
      %v4397 = vadd.f32 %v4211, %v4355
      %v4398 = vadd.f32 %v4212, %v4360
      %v4399 = vadd.f32 %v4213, %v4363
      %v4400 = vadd.f32 %v4214, %v4368
      %v4401 = vadd.f32 %v4215, %v4371
      %v4402 = vadd.f32 %v4216, %v4376
      %v4403 = vadd.f32 %v4217, %v4379
      %v4404 = vadd.f32 %v4218, %v4384
      %v4405 = vadd.f32 %v4219, %v4387
      %v4406 = vld [vmem:[%s901] sm:$0xff]
      %v4407 = vld [vmem:[%s901 + $0x8] sm:$0xff]
      %v4408 = vld [vmem:[%s901 + $0x10] sm:$0xff]
      %v4409 = vld [vmem:[%s901 + $0x18] sm:$0xff]
      %v4410 = vld [vmem:[%s901 + $0x20] sm:$0xff]
      %v4411 = vld [vmem:[%s901 + $0x28] sm:$0xff]
      %v4412 = vld [vmem:[%s901 + $0x30] sm:$0xff]
      %v4413 = vld [vmem:[%s901 + $0x38] sm:$0xff]
      %s4414 = scalar_lea.vmem %s4, 384
      %v4415 = vld [vmem:[%s4414] sm:$0xf]
      %v4416 = vld [vmem:[%s4414 + $0x4] sm:$0xf]
      %v4417 = vld [vmem:[%s4414 + $0x8] sm:$0xf]
      %v4418 = vld [vmem:[%s4414 + $0xc] sm:$0xf]
      %v4419 = vld [vmem:[%s4414 + $0x10] sm:$0xf]
      %v4420 = vld [vmem:[%s4414 + $0x14] sm:$0xf]
      %v4421 = vld [vmem:[%s4414 + $0x18] sm:$0xf]
      %v4422 = vld [vmem:[%s4414 + $0x1c] sm:$0xf]
      %v4423 = vld [vmem:[%s4414 + $0x20] sm:$0xf]
      %v4424 = vld [vmem:[%s4414 + $0x24] sm:$0xf]
      %v4425 = vld [vmem:[%s4414 + $0x28] sm:$0xf]
      %v4426 = vld [vmem:[%s4414 + $0x2c] sm:$0xf]
      %v4427 = vld [vmem:[%s4414 + $0x30] sm:$0xf]
      %v4428 = vld [vmem:[%s4414 + $0x34] sm:$0xf]
      %v4429 = vld [vmem:[%s4414 + $0x38] sm:$0xf]
      %v4430 = vld [vmem:[%s4414 + $0x3c] sm:$0xf]
      %v4447 = vunpack.c.l.b16 %v4415
      %v4448 = vunpack.c.l.b16 %v4416
      %v4449 = vunpack.c.l.b16 %v4417
      %v4450 = vunpack.c.l.b16 %v4418
      %v4451 = vunpack.c.l.b16 %v4419
      %v4452 = vunpack.c.l.b16 %v4420
      %v4453 = vunpack.c.l.b16 %v4421
      %v4454 = vunpack.c.l.b16 %v4422
      %v4455 = vunpack.c.l.b16 %v4423
      %v4456 = vunpack.c.l.b16 %v4424
      %v4457 = vunpack.c.l.b16 %v4425
      %v4458 = vunpack.c.l.b16 %v4426
      %v4459 = vunpack.c.l.b16 %v4427
      %v4460 = vunpack.c.l.b16 %v4428
      %v4461 = vunpack.c.l.b16 %v4429
      %v4462 = vunpack.c.l.b16 %v4430
      %v4463 = vpack.c.b16 %v4448, %v4447
      %v4464 = vpack.c.b16 %v4450, %v4449
      %v4465 = vpack.c.b16 %v4452, %v4451
      %v4466 = vpack.c.b16 %v4454, %v4453
      %v4467 = vpack.c.b16 %v4456, %v4455
      %v4468 = vpack.c.b16 %v4458, %v4457
      %v4469 = vpack.c.b16 %v4460, %v4459
      %v4470 = vpack.c.b16 %v4462, %v4461
      %4479 = vmatprep.subr.bf16.mxu0 0
      %4480 = vmatpush1.bf16.msra.mxu0 %v4463
      %4481 = vmatprep.subr.bf16.mxu0 0
      %4482 = vmatpush1.bf16.msra.mxu0 %v4464
      %4483 = vmatprep.subr.bf16.mxu0 0
      %4484 = vmatpush1.bf16.msra.mxu0 %v4465
      %4485 = vmatprep.subr.bf16.mxu0 0
      %4486 = vmatpush1.bf16.msra.mxu0 %v4466
      %4487 = vmatprep.subr.bf16.mxu0 0
      %4488 = vmatpush1.bf16.msra.mxu0 %v4467
      %4489 = vmatprep.subr.bf16.mxu0 0
      %4490 = vmatpush1.bf16.msra.mxu0 %v4468
      %4491 = vmatprep.subr.bf16.mxu0 0
      %4492 = vmatpush1.bf16.msra.mxu0 %v4469
      %4493 = vmatprep.subr.bf16.mxu0 0
      %4494 = vmatpush1.bf16.msra.mxu0 %v4470
      %4495 = vmatprep.subr.bf16.mxu0 0
      %4496 = vmatpush1.bf16.msra.mxu0 0
      %4497 = vmatprep.subr.bf16.mxu0 0
      %4498 = vmatpush1.bf16.msra.mxu0 0
      %4499 = vmatprep.subr.bf16.mxu0 0
      %4500 = vmatpush1.bf16.msra.mxu0 0
      %4501 = vmatprep.subr.bf16.mxu0 0
      %4502 = vmatpush1.bf16.msra.mxu0 0
      %4503 = vmatprep.subr.bf16.mxu0 0
      %4504 = vmatpush1.bf16.msra.mxu0 0
      %4505 = vmatprep.subr.bf16.mxu0 0
      %4506 = vmatpush1.bf16.msra.mxu0 0
      %4507 = vmatprep.subr.bf16.mxu0 0
      %4508 = vmatpush1.bf16.msra.mxu0 0
      %4509 = vmatprep.subr.bf16.mxu0 0
      %4510 = vmatpush1.bf16.msra.mxu0 0
      %4511 = vmatprep.mubr.bf16.mxu0 0
      %4512 = vmatmul.mubr.bf16.gmra.mrb[0].mxu0 %v4406
      %v4513 = vpop.f32.mrb[0].mxu0
      %v4514 = vadd.f32 0.0, %v4513
      %v4515 = vpop.f32.mrb[0].mxu0
      %v4516 = vpop.f32.mrb[0].mxu0
      %v4517 = vadd.f32 0.0, %v4516
      %v4518 = vpop.f32.mrb[0].mxu0
      %4519 = vmatprep.mubr.bf16.mxu0 0
      %4520 = vmatmul.mubr.bf16.gmra.mrb[0].mxu0 %v4407
      %v4521 = vpop.f32.mrb[0].mxu0
      %v4522 = vadd.f32 0.0, %v4521
      %v4523 = vpop.f32.mrb[0].mxu0
      %v4524 = vpop.f32.mrb[0].mxu0
      %v4525 = vadd.f32 0.0, %v4524
      %v4526 = vpop.f32.mrb[0].mxu0
      %4527 = vmatprep.mubr.bf16.mxu0 0
      %4528 = vmatmul.mubr.bf16.gmra.mrb[0].mxu0 %v4408
      %v4529 = vpop.f32.mrb[0].mxu0
      %v4530 = vadd.f32 0.0, %v4529
      %v4531 = vpop.f32.mrb[0].mxu0
      %v4532 = vpop.f32.mrb[0].mxu0
      %v4533 = vadd.f32 0.0, %v4532
      %v4534 = vpop.f32.mrb[0].mxu0
      %4535 = vmatprep.mubr.bf16.mxu0 0
      %4536 = vmatmul.mubr.bf16.gmra.mrb[0].mxu0 %v4409
      %v4537 = vpop.f32.mrb[0].mxu0
      %v4538 = vadd.f32 0.0, %v4537
      %v4539 = vpop.f32.mrb[0].mxu0
      %v4540 = vpop.f32.mrb[0].mxu0
      %v4541 = vadd.f32 0.0, %v4540
      %v4542 = vpop.f32.mrb[0].mxu0
      %4543 = vmatprep.mubr.bf16.mxu0 0
      %4544 = vmatmul.mubr.bf16.gmra.mrb[0].mxu0 %v4410
      %v4545 = vpop.f32.mrb[0].mxu0
      %v4546 = vadd.f32 0.0, %v4545
      %v4547 = vpop.f32.mrb[0].mxu0
      %v4548 = vpop.f32.mrb[0].mxu0
      %v4549 = vadd.f32 0.0, %v4548
      %v4550 = vpop.f32.mrb[0].mxu0
      %4551 = vmatprep.mubr.bf16.mxu0 0
      %4552 = vmatmul.mubr.bf16.gmra.mrb[0].mxu0 %v4411
      %v4553 = vpop.f32.mrb[0].mxu0
      %v4554 = vadd.f32 0.0, %v4553
      %v4555 = vpop.f32.mrb[0].mxu0
      %v4556 = vpop.f32.mrb[0].mxu0
      %v4557 = vadd.f32 0.0, %v4556
      %v4558 = vpop.f32.mrb[0].mxu0
      %4559 = vmatprep.mubr.bf16.mxu0 0
      %4560 = vmatmul.mubr.bf16.gmra.mrb[0].mxu0 %v4412
      %v4561 = vpop.f32.mrb[0].mxu0
      %v4562 = vadd.f32 0.0, %v4561
      %v4563 = vpop.f32.mrb[0].mxu0
      %v4564 = vpop.f32.mrb[0].mxu0
      %v4565 = vadd.f32 0.0, %v4564
      %v4566 = vpop.f32.mrb[0].mxu0
      %4567 = vmatprep.mubr.bf16.mxu0 0
      %4568 = vmatmul.mubr.bf16.gmra.mrb[0].mxu0 %v4413
      %v4569 = vpop.f32.mrb[0].mxu0
      %v4570 = vadd.f32 0.0, %v4569
      %v4571 = vpop.f32.mrb[0].mxu0
      %v4572 = vpop.f32.mrb[0].mxu0
      %v4573 = vadd.f32 0.0, %v4572
      %v4574 = vpop.f32.mrb[0].mxu0
      %4575 = vdwg.mxu0
      %v4576 = vadd.f32 %v4390, %v4514
      %v4577 = vadd.f32 %v4391, %v4517
      %v4578 = vadd.f32 %v4392, %v4522
      %v4579 = vadd.f32 %v4393, %v4525
      %v4580 = vadd.f32 %v4394, %v4530
      %v4581 = vadd.f32 %v4395, %v4533
      %v4582 = vadd.f32 %v4396, %v4538
      %v4583 = vadd.f32 %v4397, %v4541
      %v4584 = vadd.f32 %v4398, %v4546
      %v4585 = vadd.f32 %v4399, %v4549
      %v4586 = vadd.f32 %v4400, %v4554
      %v4587 = vadd.f32 %v4401, %v4557
      %v4588 = vadd.f32 %v4402, %v4562
      %v4589 = vadd.f32 %v4403, %v4565
      %v4590 = vadd.f32 %v4404, %v4570
      %v4591 = vadd.f32 %v4405, %v4573
      %v4592 = vld [vmem:[#allocation3] sm:$0xff]
      %v4593 = vld [vmem:[#allocation3 + $0x8] sm:$0xff]
      %v4594 = vld [vmem:[#allocation3 + $0x10] sm:$0xff]
      %v4595 = vld [vmem:[#allocation3 + $0x18] sm:$0xff]
      %v4596 = vld [vmem:[#allocation3 + $0x20] sm:$0xff]
      %v4597 = vld [vmem:[#allocation3 + $0x28] sm:$0xff]
      %v4598 = vld [vmem:[#allocation3 + $0x30] sm:$0xff]
      %v4599 = vld [vmem:[#allocation3 + $0x38] sm:$0xff]
      %v4600 = vld [vmem:[#allocation3 + $0x40] sm:$0xff]
      %v4601 = vld [vmem:[#allocation3 + $0x48] sm:$0xff]
      %v4602 = vld [vmem:[#allocation3 + $0x50] sm:$0xff]
      %v4603 = vld [vmem:[#allocation3 + $0x58] sm:$0xff]
      %v4605 = vshrl.u32 %v4592, 16
      %v4607 = vshll.u32 %v4592, 16
      %v4609 = vrot.slane %v4607, 1
      %v4610 = vor.u32 %v4605, %v4609
      %v4612 = vshll.u32 %v4593, 16
      %v4614 = vrot.slane %v4612, 1
      %v4615 = vsel %vm2187, %v4610, %v4614
      %v4616 = vshrl.u32 %v4593, 16
      %v4618 = vor.u32 %v4616, %v4614
      %v4620 = vshrl.u32 %v4594, 16
      %v4622 = vshll.u32 %v4594, 16
      %v4624 = vrot.slane %v4622, 1
      %v4625 = vor.u32 %v4620, %v4624
      %v4627 = vshll.u32 %v4595, 16
      %v4629 = vrot.slane %v4627, 1
      %v4630 = vsel %vm2187, %v4625, %v4629
      %v4631 = vshrl.u32 %v4595, 16
      %v4633 = vor.u32 %v4631, %v4629
      %v4635 = vshrl.u32 %v4596, 16
      %v4637 = vshll.u32 %v4596, 16
      %v4639 = vrot.slane %v4637, 1
      %v4640 = vor.u32 %v4635, %v4639
      %v4642 = vshll.u32 %v4597, 16
      %v4644 = vrot.slane %v4642, 1
      %v4645 = vsel %vm2187, %v4640, %v4644
      %v4646 = vshrl.u32 %v4597, 16
      %v4648 = vor.u32 %v4646, %v4644
      %v4650 = vshrl.u32 %v4598, 16
      %v4652 = vshll.u32 %v4598, 16
      %v4654 = vrot.slane %v4652, 1
      %v4655 = vor.u32 %v4650, %v4654
      %v4657 = vshll.u32 %v4599, 16
      %v4659 = vrot.slane %v4657, 1
      %v4660 = vsel %vm2187, %v4655, %v4659
      %v4661 = vshrl.u32 %v4599, 16
      %v4663 = vor.u32 %v4661, %v4659
      %v4665 = vshrl.u32 %v4600, 16
      %v4667 = vshll.u32 %v4600, 16
      %v4669 = vrot.slane %v4667, 1
      %v4670 = vor.u32 %v4665, %v4669
      %v4672 = vshll.u32 %v4601, 16
      %v4674 = vrot.slane %v4672, 1
      %v4675 = vsel %vm2187, %v4670, %v4674
      %v4676 = vshrl.u32 %v4601, 16
      %v4678 = vor.u32 %v4676, %v4674
      %v4680 = vshrl.u32 %v4602, 16
      %v4682 = vshll.u32 %v4602, 16
      %v4684 = vrot.slane %v4682, 1
      %v4685 = vor.u32 %v4680, %v4684
      %v4687 = vshll.u32 %v4603, 16
      %v4689 = vrot.slane %v4687, 1
      %v4690 = vsel %vm2187, %v4685, %v4689
      %v4691 = vshrl.u32 %v4603, 16
      %v4693 = vor.u32 %v4691, %v4689
      %4706 = vst [vmem:[#allocation2] sm:$0xff] %v4615
      %v4707 = vld [vmem:[#allocation2 + $0x8] sm:$0xff]
      %v4708 = vsel %vm2257, %v4618, %v4707
      %4709 = vst [vmem:[#allocation2 + $0x8] sm:$0xff] %v4708
      %4710 = vst [vmem:[#allocation2 + $0x10] sm:$0xff] %v4630
      %v4711 = vld [vmem:[#allocation2 + $0x18] sm:$0xff]
      %v4712 = vsel %vm2257, %v4633, %v4711
      %4713 = vst [vmem:[#allocation2 + $0x18] sm:$0xff] %v4712
      %4714 = vst [vmem:[#allocation2 + $0x20] sm:$0xff] %v4645
      %v4715 = vld [vmem:[#allocation2 + $0x28] sm:$0xff]
      %v4716 = vsel %vm2257, %v4648, %v4715
      %4717 = vst [vmem:[#allocation2 + $0x28] sm:$0xff] %v4716
      %4718 = vst [vmem:[#allocation2 + $0x30] sm:$0xff] %v4660
      %v4719 = vld [vmem:[#allocation2 + $0x38] sm:$0xff]
      %v4720 = vsel %vm2257, %v4663, %v4719
      %4721 = vst [vmem:[#allocation2 + $0x38] sm:$0xff] %v4720
      %4722 = vst [vmem:[#allocation2 + $0x40] sm:$0xff] %v4675
      %v4723 = vld [vmem:[#allocation2 + $0x48] sm:$0xff]
      %v4724 = vsel %vm2257, %v4678, %v4723
      %4725 = vst [vmem:[#allocation2 + $0x48] sm:$0xff] %v4724
      %4726 = vst [vmem:[#allocation2 + $0x50] sm:$0xff] %v4690
      %v4727 = vld [vmem:[#allocation2 + $0x58] sm:$0xff]
      %v4728 = vsel %vm2257, %v4693, %v4727
      %4729 = vst [vmem:[#allocation2 + $0x58] sm:$0xff] %v4728
      %v4730 = vld [vmem:[#allocation2 + $0x8] sm:$0x80]
      %v4731 = vsel %vm2415, 0, %v4730
      %4732 = vst [vmem:[#allocation2 + $0x8] sm:$0x80] %v4731
      %v4733 = vld [vmem:[#allocation2 + $0x18] sm:$0x80]
      %v4734 = vsel %vm2415, 0, %v4733
      %4735 = vst [vmem:[#allocation2 + $0x18] sm:$0x80] %v4734
      %v4736 = vld [vmem:[#allocation2 + $0x28] sm:$0x80]
      %v4737 = vsel %vm2415, 0, %v4736
      %4738 = vst [vmem:[#allocation2 + $0x28] sm:$0x80] %v4737
      %v4739 = vld [vmem:[#allocation2 + $0x38] sm:$0x80]
      %v4740 = vsel %vm2415, 0, %v4739
      %4741 = vst [vmem:[#allocation2 + $0x38] sm:$0x80] %v4740
      %v4742 = vld [vmem:[#allocation2 + $0x48] sm:$0x80]
      %v4743 = vsel %vm2415, 0, %v4742
      %4744 = vst [vmem:[#allocation2 + $0x48] sm:$0x80] %v4743
      %v4745 = vld [vmem:[#allocation2 + $0x58] sm:$0x80]
      %v4746 = vsel %vm2415, 0, %v4745
      %4747 = vst [vmem:[#allocation2 + $0x58] sm:$0x80] %v4746
      %v4748 = vld [vmem:[#allocation2] sm:$0xff]
      %v4749 = vld [vmem:[#allocation2 + $0x8] sm:$0xff]
      %v4750 = vld [vmem:[#allocation2 + $0x10] sm:$0xff]
      %v4751 = vld [vmem:[#allocation2 + $0x18] sm:$0xff]
      %v4752 = vld [vmem:[#allocation2 + $0x20] sm:$0xff]
      %v4753 = vld [vmem:[#allocation2 + $0x28] sm:$0xff]
      %v4754 = vld [vmem:[#allocation2 + $0x30] sm:$0xff]
      %v4755 = vld [vmem:[#allocation2 + $0x38] sm:$0xff]
      %s4756 = scalar_lea.vmem %s4, 128
      %v4757 = vld [vmem:[%s4756] sm:$0xf]
      %v4758 = vld [vmem:[%s4756 + $0x4] sm:$0xf]
      %v4759 = vld [vmem:[%s4756 + $0x8] sm:$0xf]
      %v4760 = vld [vmem:[%s4756 + $0xc] sm:$0xf]
      %v4761 = vld [vmem:[%s4756 + $0x10] sm:$0xf]
      %v4762 = vld [vmem:[%s4756 + $0x14] sm:$0xf]
      %v4763 = vld [vmem:[%s4756 + $0x18] sm:$0xf]
      %v4764 = vld [vmem:[%s4756 + $0x1c] sm:$0xf]
      %v4765 = vld [vmem:[%s4756 + $0x20] sm:$0xf]
      %v4766 = vld [vmem:[%s4756 + $0x24] sm:$0xf]
      %v4767 = vld [vmem:[%s4756 + $0x28] sm:$0xf]
      %v4768 = vld [vmem:[%s4756 + $0x2c] sm:$0xf]
      %v4769 = vld [vmem:[%s4756 + $0x30] sm:$0xf]
      %v4770 = vld [vmem:[%s4756 + $0x34] sm:$0xf]
      %v4771 = vld [vmem:[%s4756 + $0x38] sm:$0xf]
      %v4772 = vld [vmem:[%s4756 + $0x3c] sm:$0xf]
      %v4789 = vunpack.c.l.b16 %v4757
      %v4790 = vunpack.c.l.b16 %v4758
      %v4791 = vunpack.c.l.b16 %v4759
      %v4792 = vunpack.c.l.b16 %v4760
      %v4793 = vunpack.c.l.b16 %v4761
      %v4794 = vunpack.c.l.b16 %v4762
      %v4795 = vunpack.c.l.b16 %v4763
      %v4796 = vunpack.c.l.b16 %v4764
      %v4797 = vunpack.c.l.b16 %v4765
      %v4798 = vunpack.c.l.b16 %v4766
      %v4799 = vunpack.c.l.b16 %v4767
      %v4800 = vunpack.c.l.b16 %v4768
      %v4801 = vunpack.c.l.b16 %v4769
      %v4802 = vunpack.c.l.b16 %v4770
      %v4803 = vunpack.c.l.b16 %v4771
      %v4804 = vunpack.c.l.b16 %v4772
      %v4805 = vpack.c.b16 %v4790, %v4789
      %v4806 = vpack.c.b16 %v4792, %v4791
      %v4807 = vpack.c.b16 %v4794, %v4793
      %v4808 = vpack.c.b16 %v4796, %v4795
      %v4809 = vpack.c.b16 %v4798, %v4797
      %v4810 = vpack.c.b16 %v4800, %v4799
      %v4811 = vpack.c.b16 %v4802, %v4801
      %v4812 = vpack.c.b16 %v4804, %v4803
      %4821 = vmatprep.subr.bf16.mxu0 0
      %4822 = vmatpush1.bf16.msra.mxu0 %v4805
      %4823 = vmatprep.subr.bf16.mxu0 0
      %4824 = vmatpush1.bf16.msra.mxu0 %v4806
      %4825 = vmatprep.subr.bf16.mxu0 0
      %4826 = vmatpush1.bf16.msra.mxu0 %v4807
      %4827 = vmatprep.subr.bf16.mxu0 0
      %4828 = vmatpush1.bf16.msra.mxu0 %v4808
      %4829 = vmatprep.subr.bf16.mxu0 0
      %4830 = vmatpush1.bf16.msra.mxu0 %v4809
      %4831 = vmatprep.subr.bf16.mxu0 0
      %4832 = vmatpush1.bf16.msra.mxu0 %v4810
      %4833 = vmatprep.subr.bf16.mxu0 0
      %4834 = vmatpush1.bf16.msra.mxu0 %v4811
      %4835 = vmatprep.subr.bf16.mxu0 0
      %4836 = vmatpush1.bf16.msra.mxu0 %v4812
      %4837 = vmatprep.subr.bf16.mxu0 0
      %4838 = vmatpush1.bf16.msra.mxu0 0
      %4839 = vmatprep.subr.bf16.mxu0 0
      %4840 = vmatpush1.bf16.msra.mxu0 0
      %4841 = vmatprep.subr.bf16.mxu0 0
      %4842 = vmatpush1.bf16.msra.mxu0 0
      %4843 = vmatprep.subr.bf16.mxu0 0
      %4844 = vmatpush1.bf16.msra.mxu0 0
      %4845 = vmatprep.subr.bf16.mxu0 0
      %4846 = vmatpush1.bf16.msra.mxu0 0
      %4847 = vmatprep.subr.bf16.mxu0 0
      %4848 = vmatpush1.bf16.msra.mxu0 0
      %4849 = vmatprep.subr.bf16.mxu0 0
      %4850 = vmatpush1.bf16.msra.mxu0 0
      %4851 = vmatprep.subr.bf16.mxu0 0
      %4852 = vmatpush1.bf16.msra.mxu0 0
      %4853 = vmatprep.mubr.bf16.mxu0 0
      %4854 = vmatmul.mubr.bf16.gmra.mrb[0].mxu0 %v4748
      %v4855 = vpop.f32.mrb[0].mxu0
      %v4856 = vadd.f32 0.0, %v4855
      %v4857 = vpop.f32.mrb[0].mxu0
      %v4858 = vpop.f32.mrb[0].mxu0
      %v4859 = vadd.f32 0.0, %v4858
      %v4860 = vpop.f32.mrb[0].mxu0
      %4861 = vmatprep.mubr.bf16.mxu0 0
      %4862 = vmatmul.mubr.bf16.gmra.mrb[0].mxu0 %v4749
      %v4863 = vpop.f32.mrb[0].mxu0
      %v4864 = vadd.f32 0.0, %v4863
      %v4865 = vpop.f32.mrb[0].mxu0
      %v4866 = vpop.f32.mrb[0].mxu0
      %v4867 = vadd.f32 0.0, %v4866
      %v4868 = vpop.f32.mrb[0].mxu0
      %4869 = vmatprep.mubr.bf16.mxu0 0
      %4870 = vmatmul.mubr.bf16.gmra.mrb[0].mxu0 %v4750
      %v4871 = vpop.f32.mrb[0].mxu0
      %v4872 = vadd.f32 0.0, %v4871
      %v4873 = vpop.f32.mrb[0].mxu0
      %v4874 = vpop.f32.mrb[0].mxu0
      %v4875 = vadd.f32 0.0, %v4874
      %v4876 = vpop.f32.mrb[0].mxu0
      %4877 = vmatprep.mubr.bf16.mxu0 0
      %4878 = vmatmul.mubr.bf16.gmra.mrb[0].mxu0 %v4751
      %v4879 = vpop.f32.mrb[0].mxu0
      %v4880 = vadd.f32 0.0, %v4879
      %v4881 = vpop.f32.mrb[0].mxu0
      %v4882 = vpop.f32.mrb[0].mxu0
      %v4883 = vadd.f32 0.0, %v4882
      %v4884 = vpop.f32.mrb[0].mxu0
      %4885 = vmatprep.mubr.bf16.mxu0 0
      %4886 = vmatmul.mubr.bf16.gmra.mrb[0].mxu0 %v4752
      %v4887 = vpop.f32.mrb[0].mxu0
      %v4888 = vadd.f32 0.0, %v4887
      %v4889 = vpop.f32.mrb[0].mxu0
      %v4890 = vpop.f32.mrb[0].mxu0
      %v4891 = vadd.f32 0.0, %v4890
      %v4892 = vpop.f32.mrb[0].mxu0
      %4893 = vmatprep.mubr.bf16.mxu0 0
      %4894 = vmatmul.mubr.bf16.gmra.mrb[0].mxu0 %v4753
      %v4895 = vpop.f32.mrb[0].mxu0
      %v4896 = vadd.f32 0.0, %v4895
      %v4897 = vpop.f32.mrb[0].mxu0
      %v4898 = vpop.f32.mrb[0].mxu0
      %v4899 = vadd.f32 0.0, %v4898
      %v4900 = vpop.f32.mrb[0].mxu0
      %4901 = vmatprep.mubr.bf16.mxu0 0
      %4902 = vmatmul.mubr.bf16.gmra.mrb[0].mxu0 %v4754
      %v4903 = vpop.f32.mrb[0].mxu0
      %v4904 = vadd.f32 0.0, %v4903
      %v4905 = vpop.f32.mrb[0].mxu0
      %v4906 = vpop.f32.mrb[0].mxu0
      %v4907 = vadd.f32 0.0, %v4906
      %v4908 = vpop.f32.mrb[0].mxu0
      %4909 = vmatprep.mubr.bf16.mxu0 0
      %4910 = vmatmul.mubr.bf16.gmra.mrb[0].mxu0 %v4755
      %v4911 = vpop.f32.mrb[0].mxu0
      %v4912 = vadd.f32 0.0, %v4911
      %v4913 = vpop.f32.mrb[0].mxu0
      %v4914 = vpop.f32.mrb[0].mxu0
      %v4915 = vadd.f32 0.0, %v4914
      %v4916 = vpop.f32.mrb[0].mxu0
      %4917 = vdwg.mxu0
      %v4918 = vadd.f32 %v4576, %v4856
      %v4919 = vadd.f32 %v4577, %v4859
      %v4920 = vadd.f32 %v4578, %v4864
      %v4921 = vadd.f32 %v4579, %v4867
      %v4922 = vadd.f32 %v4580, %v4872
      %v4923 = vadd.f32 %v4581, %v4875
      %v4924 = vadd.f32 %v4582, %v4880
      %v4925 = vadd.f32 %v4583, %v4883
      %v4926 = vadd.f32 %v4584, %v4888
      %v4927 = vadd.f32 %v4585, %v4891
      %v4928 = vadd.f32 %v4586, %v4896
      %v4929 = vadd.f32 %v4587, %v4899
      %v4930 = vadd.f32 %v4588, %v4904
      %v4931 = vadd.f32 %v4589, %v4907
      %v4932 = vadd.f32 %v4590, %v4912
      %v4933 = vadd.f32 %v4591, %v4915
      %v4934 = vld [vmem:[%s517] sm:$0xff]
      %v4935 = vld [vmem:[%s517 + $0x8] sm:$0xff]
      %v4936 = vld [vmem:[%s517 + $0x10] sm:$0xff]
      %v4937 = vld [vmem:[%s517 + $0x18] sm:$0xff]
      %v4938 = vld [vmem:[%s517 + $0x20] sm:$0xff]
      %v4939 = vld [vmem:[%s517 + $0x28] sm:$0xff]
      %v4940 = vld [vmem:[%s517 + $0x30] sm:$0xff]
      %v4941 = vld [vmem:[%s517 + $0x38] sm:$0xff]
      %s4942 = scalar_lea.vmem %s4, 320
      %v4943 = vld [vmem:[%s4942] sm:$0xf]
      %v4944 = vld [vmem:[%s4942 + $0x4] sm:$0xf]
      %v4945 = vld [vmem:[%s4942 + $0x8] sm:$0xf]
      %v4946 = vld [vmem:[%s4942 + $0xc] sm:$0xf]
      %v4947 = vld [vmem:[%s4942 + $0x10] sm:$0xf]
      %v4948 = vld [vmem:[%s4942 + $0x14] sm:$0xf]
      %v4949 = vld [vmem:[%s4942 + $0x18] sm:$0xf]
      %v4950 = vld [vmem:[%s4942 + $0x1c] sm:$0xf]
      %v4951 = vld [vmem:[%s4942 + $0x20] sm:$0xf]
      %v4952 = vld [vmem:[%s4942 + $0x24] sm:$0xf]
      %v4953 = vld [vmem:[%s4942 + $0x28] sm:$0xf]
      %v4954 = vld [vmem:[%s4942 + $0x2c] sm:$0xf]
      %v4955 = vld [vmem:[%s4942 + $0x30] sm:$0xf]
      %v4956 = vld [vmem:[%s4942 + $0x34] sm:$0xf]
      %v4957 = vld [vmem:[%s4942 + $0x38] sm:$0xf]
      %v4958 = vld [vmem:[%s4942 + $0x3c] sm:$0xf]
      %v4975 = vunpack.c.l.b16 %v4943
      %v4976 = vunpack.c.l.b16 %v4944
      %v4977 = vunpack.c.l.b16 %v4945
      %v4978 = vunpack.c.l.b16 %v4946
      %v4979 = vunpack.c.l.b16 %v4947
      %v4980 = vunpack.c.l.b16 %v4948
      %v4981 = vunpack.c.l.b16 %v4949
      %v4982 = vunpack.c.l.b16 %v4950
      %v4983 = vunpack.c.l.b16 %v4951
      %v4984 = vunpack.c.l.b16 %v4952
      %v4985 = vunpack.c.l.b16 %v4953
      %v4986 = vunpack.c.l.b16 %v4954
      %v4987 = vunpack.c.l.b16 %v4955
      %v4988 = vunpack.c.l.b16 %v4956
      %v4989 = vunpack.c.l.b16 %v4957
      %v4990 = vunpack.c.l.b16 %v4958
      %v4991 = vpack.c.b16 %v4976, %v4975
      %v4992 = vpack.c.b16 %v4978, %v4977
      %v4993 = vpack.c.b16 %v4980, %v4979
      %v4994 = vpack.c.b16 %v4982, %v4981
      %v4995 = vpack.c.b16 %v4984, %v4983
      %v4996 = vpack.c.b16 %v4986, %v4985
      %v4997 = vpack.c.b16 %v4988, %v4987
      %v4998 = vpack.c.b16 %v4990, %v4989
      %5007 = vmatprep.subr.bf16.mxu0 0
      %5008 = vmatpush1.bf16.msra.mxu0 %v4991
      %5009 = vmatprep.subr.bf16.mxu0 0
      %5010 = vmatpush1.bf16.msra.mxu0 %v4992
      %5011 = vmatprep.subr.bf16.mxu0 0
      %5012 = vmatpush1.bf16.msra.mxu0 %v4993
      %5013 = vmatprep.subr.bf16.mxu0 0
      %5014 = vmatpush1.bf16.msra.mxu0 %v4994
      %5015 = vmatprep.subr.bf16.mxu0 0
      %5016 = vmatpush1.bf16.msra.mxu0 %v4995
      %5017 = vmatprep.subr.bf16.mxu0 0
      %5018 = vmatpush1.bf16.msra.mxu0 %v4996
      %5019 = vmatprep.subr.bf16.mxu0 0
      %5020 = vmatpush1.bf16.msra.mxu0 %v4997
      %5021 = vmatprep.subr.bf16.mxu0 0
      %5022 = vmatpush1.bf16.msra.mxu0 %v4998
      %5023 = vmatprep.subr.bf16.mxu0 0
      %5024 = vmatpush1.bf16.msra.mxu0 0
      %5025 = vmatprep.subr.bf16.mxu0 0
      %5026 = vmatpush1.bf16.msra.mxu0 0
      %5027 = vmatprep.subr.bf16.mxu0 0
      %5028 = vmatpush1.bf16.msra.mxu0 0
      %5029 = vmatprep.subr.bf16.mxu0 0
      %5030 = vmatpush1.bf16.msra.mxu0 0
      %5031 = vmatprep.subr.bf16.mxu0 0
      %5032 = vmatpush1.bf16.msra.mxu0 0
      %5033 = vmatprep.subr.bf16.mxu0 0
      %5034 = vmatpush1.bf16.msra.mxu0 0
      %5035 = vmatprep.subr.bf16.mxu0 0
      %5036 = vmatpush1.bf16.msra.mxu0 0
      %5037 = vmatprep.subr.bf16.mxu0 0
      %5038 = vmatpush1.bf16.msra.mxu0 0
      %5039 = vmatprep.mubr.bf16.mxu0 0
      %5040 = vmatmul.mubr.bf16.gmra.mrb[0].mxu0 %v4934
      %v5041 = vpop.f32.mrb[0].mxu0
      %v5042 = vadd.f32 0.0, %v5041
      %v5043 = vpop.f32.mrb[0].mxu0
      %v5044 = vpop.f32.mrb[0].mxu0
      %v5045 = vadd.f32 0.0, %v5044
      %v5046 = vpop.f32.mrb[0].mxu0
      %5047 = vmatprep.mubr.bf16.mxu0 0
      %5048 = vmatmul.mubr.bf16.gmra.mrb[0].mxu0 %v4935
      %v5049 = vpop.f32.mrb[0].mxu0
      %v5050 = vadd.f32 0.0, %v5049
      %v5051 = vpop.f32.mrb[0].mxu0
      %v5052 = vpop.f32.mrb[0].mxu0
      %v5053 = vadd.f32 0.0, %v5052
      %v5054 = vpop.f32.mrb[0].mxu0
      %5055 = vmatprep.mubr.bf16.mxu0 0
      %5056 = vmatmul.mubr.bf16.gmra.mrb[0].mxu0 %v4936
      %v5057 = vpop.f32.mrb[0].mxu0
      %v5058 = vadd.f32 0.0, %v5057
      %v5059 = vpop.f32.mrb[0].mxu0
      %v5060 = vpop.f32.mrb[0].mxu0
      %v5061 = vadd.f32 0.0, %v5060
      %v5062 = vpop.f32.mrb[0].mxu0
      %5063 = vmatprep.mubr.bf16.mxu0 0
      %5064 = vmatmul.mubr.bf16.gmra.mrb[0].mxu0 %v4937
      %v5065 = vpop.f32.mrb[0].mxu0
      %v5066 = vadd.f32 0.0, %v5065
      %v5067 = vpop.f32.mrb[0].mxu0
      %v5068 = vpop.f32.mrb[0].mxu0
      %v5069 = vadd.f32 0.0, %v5068
      %v5070 = vpop.f32.mrb[0].mxu0
      %5071 = vmatprep.mubr.bf16.mxu0 0
      %5072 = vmatmul.mubr.bf16.gmra.mrb[0].mxu0 %v4938
      %v5073 = vpop.f32.mrb[0].mxu0
      %v5074 = vadd.f32 0.0, %v5073
      %v5075 = vpop.f32.mrb[0].mxu0
      %v5076 = vpop.f32.mrb[0].mxu0
      %v5077 = vadd.f32 0.0, %v5076
      %v5078 = vpop.f32.mrb[0].mxu0
      %5079 = vmatprep.mubr.bf16.mxu0 0
      %5080 = vmatmul.mubr.bf16.gmra.mrb[0].mxu0 %v4939
      %v5081 = vpop.f32.mrb[0].mxu0
      %v5082 = vadd.f32 0.0, %v5081
      %v5083 = vpop.f32.mrb[0].mxu0
      %v5084 = vpop.f32.mrb[0].mxu0
      %v5085 = vadd.f32 0.0, %v5084
      %v5086 = vpop.f32.mrb[0].mxu0
      %5087 = vmatprep.mubr.bf16.mxu0 0
      %5088 = vmatmul.mubr.bf16.gmra.mrb[0].mxu0 %v4940
      %v5089 = vpop.f32.mrb[0].mxu0
      %v5090 = vadd.f32 0.0, %v5089
      %v5091 = vpop.f32.mrb[0].mxu0
      %v5092 = vpop.f32.mrb[0].mxu0
      %v5093 = vadd.f32 0.0, %v5092
      %v5094 = vpop.f32.mrb[0].mxu0
      %5095 = vmatprep.mubr.bf16.mxu0 0
      %5096 = vmatmul.mubr.bf16.gmra.mrb[0].mxu0 %v4941
      %v5097 = vpop.f32.mrb[0].mxu0
      %v5098 = vadd.f32 0.0, %v5097
      %v5099 = vpop.f32.mrb[0].mxu0
      %v5100 = vpop.f32.mrb[0].mxu0
      %v5101 = vadd.f32 0.0, %v5100
      %v5102 = vpop.f32.mrb[0].mxu0
      %5103 = vdwg.mxu0
      %v5104 = vadd.f32 %v4918, %v5042
      %v5105 = vadd.f32 %v4919, %v5045
      %v5106 = vadd.f32 %v4920, %v5050
      %v5107 = vadd.f32 %v4921, %v5053
      %v5108 = vadd.f32 %v4922, %v5058
      %v5109 = vadd.f32 %v4923, %v5061
      %v5110 = vadd.f32 %v4924, %v5066
      %v5111 = vadd.f32 %v4925, %v5069
      %v5112 = vadd.f32 %v4926, %v5074
      %v5113 = vadd.f32 %v4927, %v5077
      %v5114 = vadd.f32 %v4928, %v5082
      %v5115 = vadd.f32 %v4929, %v5085
      %v5116 = vadd.f32 %v4930, %v5090
      %v5117 = vadd.f32 %v4931, %v5093
      %v5118 = vadd.f32 %v4932, %v5098
      %v5119 = vadd.f32 %v4933, %v5101
      %v5120 = vld [vmem:[%s901] sm:$0xff]
      %v5121 = vld [vmem:[%s901 + $0x8] sm:$0xff]
      %v5122 = vld [vmem:[%s901 + $0x10] sm:$0xff]
      %v5123 = vld [vmem:[%s901 + $0x18] sm:$0xff]
      %v5124 = vld [vmem:[%s901 + $0x20] sm:$0xff]
      %v5125 = vld [vmem:[%s901 + $0x28] sm:$0xff]
      %v5126 = vld [vmem:[%s901 + $0x30] sm:$0xff]
      %v5127 = vld [vmem:[%s901 + $0x38] sm:$0xff]
      %s5128 = scalar_lea.vmem %s4, 512
      %v5129 = vld [vmem:[%s5128] sm:$0xf]
      %v5130 = vld [vmem:[%s5128 + $0x4] sm:$0xf]
      %v5131 = vld [vmem:[%s5128 + $0x8] sm:$0xf]
      %v5132 = vld [vmem:[%s5128 + $0xc] sm:$0xf]
      %v5133 = vld [vmem:[%s5128 + $0x10] sm:$0xf]
      %v5134 = vld [vmem:[%s5128 + $0x14] sm:$0xf]
      %v5135 = vld [vmem:[%s5128 + $0x18] sm:$0xf]
      %v5136 = vld [vmem:[%s5128 + $0x1c] sm:$0xf]
      %v5137 = vld [vmem:[%s5128 + $0x20] sm:$0xf]
      %v5138 = vld [vmem:[%s5128 + $0x24] sm:$0xf]
      %v5139 = vld [vmem:[%s5128 + $0x28] sm:$0xf]
      %v5140 = vld [vmem:[%s5128 + $0x2c] sm:$0xf]
      %v5141 = vld [vmem:[%s5128 + $0x30] sm:$0xf]
      %v5142 = vld [vmem:[%s5128 + $0x34] sm:$0xf]
      %v5143 = vld [vmem:[%s5128 + $0x38] sm:$0xf]
      %v5144 = vld [vmem:[%s5128 + $0x3c] sm:$0xf]
      %v5161 = vunpack.c.l.b16 %v5129
      %v5162 = vunpack.c.l.b16 %v5130
      %v5163 = vunpack.c.l.b16 %v5131
      %v5164 = vunpack.c.l.b16 %v5132
      %v5165 = vunpack.c.l.b16 %v5133
      %v5166 = vunpack.c.l.b16 %v5134
      %v5167 = vunpack.c.l.b16 %v5135
      %v5168 = vunpack.c.l.b16 %v5136
      %v5169 = vunpack.c.l.b16 %v5137
      %v5170 = vunpack.c.l.b16 %v5138
      %v5171 = vunpack.c.l.b16 %v5139
      %v5172 = vunpack.c.l.b16 %v5140
      %v5173 = vunpack.c.l.b16 %v5141
      %v5174 = vunpack.c.l.b16 %v5142
      %v5175 = vunpack.c.l.b16 %v5143
      %v5176 = vunpack.c.l.b16 %v5144
      %v5177 = vpack.c.b16 %v5162, %v5161
      %v5178 = vpack.c.b16 %v5164, %v5163
      %v5179 = vpack.c.b16 %v5166, %v5165
      %v5180 = vpack.c.b16 %v5168, %v5167
      %v5181 = vpack.c.b16 %v5170, %v5169
      %v5182 = vpack.c.b16 %v5172, %v5171
      %v5183 = vpack.c.b16 %v5174, %v5173
      %v5184 = vpack.c.b16 %v5176, %v5175
      %5193 = vmatprep.subr.bf16.mxu0 0
      %5194 = vmatpush1.bf16.msra.mxu0 %v5177
      %5195 = vmatprep.subr.bf16.mxu0 0
      %5196 = vmatpush1.bf16.msra.mxu0 %v5178
      %5197 = vmatprep.subr.bf16.mxu0 0
      %5198 = vmatpush1.bf16.msra.mxu0 %v5179
      %5199 = vmatprep.subr.bf16.mxu0 0
      %5200 = vmatpush1.bf16.msra.mxu0 %v5180
      %5201 = vmatprep.subr.bf16.mxu0 0
      %5202 = vmatpush1.bf16.msra.mxu0 %v5181
      %5203 = vmatprep.subr.bf16.mxu0 0
      %5204 = vmatpush1.bf16.msra.mxu0 %v5182
      %5205 = vmatprep.subr.bf16.mxu0 0
      %5206 = vmatpush1.bf16.msra.mxu0 %v5183
      %5207 = vmatprep.subr.bf16.mxu0 0
      %5208 = vmatpush1.bf16.msra.mxu0 %v5184
      %5209 = vmatprep.subr.bf16.mxu0 0
      %5210 = vmatpush1.bf16.msra.mxu0 0
      %5211 = vmatprep.subr.bf16.mxu0 0
      %5212 = vmatpush1.bf16.msra.mxu0 0
      %5213 = vmatprep.subr.bf16.mxu0 0
      %5214 = vmatpush1.bf16.msra.mxu0 0
      %5215 = vmatprep.subr.bf16.mxu0 0
      %5216 = vmatpush1.bf16.msra.mxu0 0
      %5217 = vmatprep.subr.bf16.mxu0 0
      %5218 = vmatpush1.bf16.msra.mxu0 0
      %5219 = vmatprep.subr.bf16.mxu0 0
      %5220 = vmatpush1.bf16.msra.mxu0 0
      %5221 = vmatprep.subr.bf16.mxu0 0
      %5222 = vmatpush1.bf16.msra.mxu0 0
      %5223 = vmatprep.subr.bf16.mxu0 0
      %5224 = vmatpush1.bf16.msra.mxu0 0
      %5225 = vmatprep.mubr.bf16.mxu0 0
      %5226 = vmatmul.mubr.bf16.gmra.mrb[0].mxu0 %v5120
      %v5227 = vpop.f32.mrb[0].mxu0
      %v5228 = vadd.f32 0.0, %v5227
      %v5229 = vpop.f32.mrb[0].mxu0
      %v5230 = vpop.f32.mrb[0].mxu0
      %v5231 = vadd.f32 0.0, %v5230
      %v5232 = vpop.f32.mrb[0].mxu0
      %5233 = vmatprep.mubr.bf16.mxu0 0
      %5234 = vmatmul.mubr.bf16.gmra.mrb[0].mxu0 %v5121
      %v5235 = vpop.f32.mrb[0].mxu0
      %v5236 = vadd.f32 0.0, %v5235
      %v5237 = vpop.f32.mrb[0].mxu0
      %v5238 = vpop.f32.mrb[0].mxu0
      %v5239 = vadd.f32 0.0, %v5238
      %v5240 = vpop.f32.mrb[0].mxu0
      %5241 = vmatprep.mubr.bf16.mxu0 0
      %5242 = vmatmul.mubr.bf16.gmra.mrb[0].mxu0 %v5122
      %v5243 = vpop.f32.mrb[0].mxu0
      %v5244 = vadd.f32 0.0, %v5243
      %v5245 = vpop.f32.mrb[0].mxu0
      %v5246 = vpop.f32.mrb[0].mxu0
      %v5247 = vadd.f32 0.0, %v5246
      %v5248 = vpop.f32.mrb[0].mxu0
      %5249 = vmatprep.mubr.bf16.mxu0 0
      %5250 = vmatmul.mubr.bf16.gmra.mrb[0].mxu0 %v5123
      %v5251 = vpop.f32.mrb[0].mxu0
      %v5252 = vadd.f32 0.0, %v5251
      %v5253 = vpop.f32.mrb[0].mxu0
      %v5254 = vpop.f32.mrb[0].mxu0
      %v5255 = vadd.f32 0.0, %v5254
      %v5256 = vpop.f32.mrb[0].mxu0
      %5257 = vmatprep.mubr.bf16.mxu0 0
      %5258 = vmatmul.mubr.bf16.gmra.mrb[0].mxu0 %v5124
      %v5259 = vpop.f32.mrb[0].mxu0
      %v5260 = vadd.f32 0.0, %v5259
      %v5261 = vpop.f32.mrb[0].mxu0
      %v5262 = vpop.f32.mrb[0].mxu0
      %v5263 = vadd.f32 0.0, %v5262
      %v5264 = vpop.f32.mrb[0].mxu0
      %5265 = vmatprep.mubr.bf16.mxu0 0
      %5266 = vmatmul.mubr.bf16.gmra.mrb[0].mxu0 %v5125
      %v5267 = vpop.f32.mrb[0].mxu0
      %v5268 = vadd.f32 0.0, %v5267
      %v5269 = vpop.f32.mrb[0].mxu0
      %v5270 = vpop.f32.mrb[0].mxu0
      %v5271 = vadd.f32 0.0, %v5270
      %v5272 = vpop.f32.mrb[0].mxu0
      %5273 = vmatprep.mubr.bf16.mxu0 0
      %5274 = vmatmul.mubr.bf16.gmra.mrb[0].mxu0 %v5126
      %v5275 = vpop.f32.mrb[0].mxu0
      %v5276 = vadd.f32 0.0, %v5275
      %v5277 = vpop.f32.mrb[0].mxu0
      %v5278 = vpop.f32.mrb[0].mxu0
      %v5279 = vadd.f32 0.0, %v5278
      %v5280 = vpop.f32.mrb[0].mxu0
      %5281 = vmatprep.mubr.bf16.mxu0 0
      %5282 = vmatmul.mubr.bf16.gmra.mrb[0].mxu0 %v5127
      %v5283 = vpop.f32.mrb[0].mxu0
      %v5284 = vadd.f32 0.0, %v5283
      %v5285 = vpop.f32.mrb[0].mxu0
      %v5286 = vpop.f32.mrb[0].mxu0
      %v5287 = vadd.f32 0.0, %v5286
      %v5288 = vpop.f32.mrb[0].mxu0
      %5289 = vdwg.mxu0
      %v5290 = vadd.f32 %v5104, %v5228
      %v5291 = vadd.f32 %v5105, %v5231
      %v5292 = vadd.f32 %v5106, %v5236
      %v5293 = vadd.f32 %v5107, %v5239
      %v5294 = vadd.f32 %v5108, %v5244
      %v5295 = vadd.f32 %v5109, %v5247
      %v5296 = vadd.f32 %v5110, %v5252
      %v5297 = vadd.f32 %v5111, %v5255
      %v5298 = vadd.f32 %v5112, %v5260
      %v5299 = vadd.f32 %v5113, %v5263
      %v5300 = vadd.f32 %v5114, %v5268
      %v5301 = vadd.f32 %v5115, %v5271
      %v5302 = vadd.f32 %v5116, %v5276
      %v5303 = vadd.f32 %v5117, %v5279
      %v5304 = vadd.f32 %v5118, %v5284
      %v5305 = vadd.f32 %v5119, %v5287
      %v5306 = vld [vmem:[%s5] sm:$0x1]
      %v5308 = vlaneseq
      %v5309 = vshrl.u32 %v5308, 7
      %v5310 = vsub.s32 0, %v5309
      %v5311 = vrot.slane %v5306, %v5310
      %v5313 = vadd.f32 %v5290, %v5311
      %v5314 = vadd.f32 %v5291, %v5311
      %v5315 = vadd.f32 %v5292, %v5311
      %v5316 = vadd.f32 %v5293, %v5311
      %v5317 = vadd.f32 %v5294, %v5311
      %v5318 = vadd.f32 %v5295, %v5311
      %v5319 = vadd.f32 %v5296, %v5311
      %v5320 = vadd.f32 %v5297, %v5311
      %v5321 = vadd.f32 %v5298, %v5311
      %v5322 = vadd.f32 %v5299, %v5311
      %v5323 = vadd.f32 %v5300, %v5311
      %v5324 = vadd.f32 %v5301, %v5311
      %v5325 = vadd.f32 %v5302, %v5311
      %v5326 = vadd.f32 %v5303, %v5311
      %v5327 = vadd.f32 %v5304, %v5311
      %v5328 = vadd.f32 %v5305, %v5311
      %v5329 = vmax.f32 %v5313, 0.0
      %v5330 = vmax.f32 %v5314, 0.0
      %v5331 = vmax.f32 %v5315, 0.0
      %v5332 = vmax.f32 %v5316, 0.0
      %v5333 = vmax.f32 %v5317, 0.0
      %v5334 = vmax.f32 %v5318, 0.0
      %v5335 = vmax.f32 %v5319, 0.0
      %v5336 = vmax.f32 %v5320, 0.0
      %v5337 = vmax.f32 %v5321, 0.0
      %v5338 = vmax.f32 %v5322, 0.0
      %v5339 = vmax.f32 %v5323, 0.0
      %v5340 = vmax.f32 %v5324, 0.0
      %v5341 = vmax.f32 %v5325, 0.0
      %v5342 = vmax.f32 %v5326, 0.0
      %v5343 = vmax.f32 %v5327, 0.0
      %v5344 = vmax.f32 %v5328, 0.0
      %v5345 = vpack.c.bf16 %v5330, %v5329
      %v5346 = vpack.c.bf16 %v5332, %v5331
      %v5347 = vpack.c.bf16 %v5334, %v5333
      %v5348 = vpack.c.bf16 %v5336, %v5335
      %v5349 = vpack.c.bf16 %v5338, %v5337
      %v5350 = vpack.c.bf16 %v5340, %v5339
      %v5351 = vpack.c.bf16 %v5342, %v5341
      %v5352 = vpack.c.bf16 %v5344, %v5343
      %v5361 = vunpack.c.l.b16 %v5345
      %v5362 = vunpack.c.h.b16 %v5345
      %v5363 = vunpack.c.l.b16 %v5346
      %v5364 = vunpack.c.h.b16 %v5346
      %v5365 = vunpack.c.l.b16 %v5347
      %v5366 = vunpack.c.h.b16 %v5347
      %v5367 = vunpack.c.l.b16 %v5348
      %v5368 = vunpack.c.h.b16 %v5348
      %v5369 = vunpack.c.l.b16 %v5349
      %v5370 = vunpack.c.h.b16 %v5349
      %v5371 = vunpack.c.l.b16 %v5350
      %v5372 = vunpack.c.h.b16 %v5350
      %v5373 = vunpack.c.l.b16 %v5351
      %v5374 = vunpack.c.h.b16 %v5351
      %v5375 = vunpack.c.l.b16 %v5352
      %v5376 = vunpack.c.h.b16 %v5352
      %v5377 = vpack.c.b16 %v5361, %v5361
      %v5378 = vpack.c.b16 %v5362, %v5362
      %v5379 = vpack.c.b16 %v5363, %v5363
      %v5380 = vpack.c.b16 %v5364, %v5364
      %v5381 = vpack.c.b16 %v5365, %v5365
      %v5382 = vpack.c.b16 %v5366, %v5366
      %v5383 = vpack.c.b16 %v5367, %v5367
      %v5384 = vpack.c.b16 %v5368, %v5368
      %v5385 = vpack.c.b16 %v5369, %v5369
      %v5386 = vpack.c.b16 %v5370, %v5370
      %v5387 = vpack.c.b16 %v5371, %v5371
      %v5388 = vpack.c.b16 %v5372, %v5372
      %v5389 = vpack.c.b16 %v5373, %v5373
      %v5390 = vpack.c.b16 %v5374, %v5374
      %v5391 = vpack.c.b16 %v5375, %v5375
      %v5392 = vpack.c.b16 %v5376, %v5376
      %5409 = vst [vmem:[%s340] sm:$0xf] %v5377
      %5410 = vst [vmem:[%s340 + $0x4] sm:$0xf] %v5378
      %5411 = vst [vmem:[%s340 + $0x8] sm:$0xf] %v5379
      %5412 = vst [vmem:[%s340 + $0xc] sm:$0xf] %v5380
      %5413 = vst [vmem:[%s340 + $0x10] sm:$0xf] %v5381
      %5414 = vst [vmem:[%s340 + $0x14] sm:$0xf] %v5382
      %5415 = vst [vmem:[%s340 + $0x18] sm:$0xf] %v5383
      %5416 = vst [vmem:[%s340 + $0x1c] sm:$0xf] %v5384
      %5417 = vst [vmem:[%s340 + $0x20] sm:$0xf] %v5385
      %5418 = vst [vmem:[%s340 + $0x24] sm:$0xf] %v5386
      %5419 = vst [vmem:[%s340 + $0x28] sm:$0xf] %v5387
      %5420 = vst [vmem:[%s340 + $0x2c] sm:$0xf] %v5388
      %5421 = vst [vmem:[%s340 + $0x30] sm:$0xf] %v5389
      %5422 = vst [vmem:[%s340 + $0x34] sm:$0xf] %v5390
      %5423 = vst [vmem:[%s340 + $0x38] sm:$0xf] %v5391
      %5424 = vst [vmem:[%s340 + $0x3c] sm:$0xf] %v5392
      %s5425 = smul.u32 4, %s22
      %p5426 = scmp.lt.s32.totalorder %s21, 1
      %s5427 = scalar_select %p5426, %s21, 1
      %p5428 = scmp.lt.s32.totalorder %s5425, 15
      %s5429 = scalar_select %p5428, %s5425, 15
      %s5430 = smul.addr %s5429, 4
      %s5431 = smul.addr %s5427, 64
      %s5432 = sadd.s32 %s5430, %s5431
      %s5433 = smul.addr %s5432, 4
      %s5434 = scalar_lea.vmem %s6, %s5433
      // Predicated region
      $region45: #{_double_conv_impl.1} parent=43 // pred_check
        %p5435 = pneg %p191
      $region46: #{_double_conv_impl.1} parent=43 // pred_check_branch
        %5437 = sbr.rel (%p5435) target = $region48
      $region47: #{_double_conv_impl.1} parent=43 // pred_region
        %s5438 = smul.u32 4, %s22
      $region48: #{_double_conv_impl.1} parent=43 // pred_fallthru
        _
    $region44: #{_double_conv_impl.1} parent=5 // pred_fallthru
      _
    %p5439 = scmp.le.s32.totalorder 2, %s12
    // Predicated region
    $region49: #{_double_conv_impl.1} parent=5 // pred_check
      %p5440 = pneg %p5439
    $region50: #{_double_conv_impl.1} parent=5 // pred_check_branch
      %5442 = sbr.rel (%p5440) target = $region52
    $region51: #{_double_conv_impl.1} parent=5 // pred_region
      %s5443 = ssub.s32 %s12, 2
      // Predicated region
      $region53: #{_double_conv_impl.1} parent=51 // pred_check
        %p5444 = pneg %p197
      $region54: #{_double_conv_impl.1} parent=51 // pred_check_branch
        %5446 = sbr.rel (%p5444) target = $region56
      $region55: #{_double_conv_impl.1} parent=51 // pred_region
        %s5447 = smul.u32 4, %s24
        %p5448 = scmp.lt.s32.totalorder %s23, 1
        %s5449 = scalar_select %p5448, %s23, 1
        %p5450 = scmp.lt.s32.totalorder %s5447, 15
        %s5451 = scalar_select %p5450, %s5447, 15
        %s5452 = smul.addr %s5451, 4
        %s5453 = smul.addr %s5449, 64
        %s5454 = sadd.s32 %s5452, %s5453
        %s5455 = smul.addr %s5454, 4
        %s5456 = scalar_lea.vmem %s6, %s5455
      $region56: #{_double_conv_impl.1} parent=51 // pred_fallthru
        _
    $region52: #{_double_conv_impl.1} parent=5 // pred_fallthru
      _
  $region6: #{_double_conv_impl.1} parent=0 // loop_footer
    %s16 = sadd.s32 1, %s12
  $region7: #{_double_conv_impl.1} parent=0 // loop_footer_branch
    %11 = sbr.rel target = $region3
  $region8: #{_double_conv_impl.1} parent=0 // loop_exit
    _

</llo_original>
